<compile_context>
chip_gen: v6e
topology: v6e:2x2x1
jax: 0.10.0
libtpu: 0.0.40
codegen_flags: <defaults>
</compile_context>

<pallas_src>
import jax
import jax.numpy as jnp
from jax import lax
from jax.experimental import pallas as pl
from jax.experimental.pallas import tpu as pltpu


# ----------------------------------------------------------------------------
# Pallas kernel: fused bidirectional LSTM with packed-sequence length masking
# ----------------------------------------------------------------------------
def _bilstm_kernel(x_ref, len_ref, wih_ref, b_ref, whh_ref, out_ref, xw_ref):
    """One 128-lane batch tile of the fused bidirectional LSTM.

    x_ref   : (T, E, TB)   time-major char embeddings, batch in lanes
    len_ref : (1, TB)      int32 sequence lengths
    wih_ref : (8H, E)      input weights, rows [i_f,i_b,f_f,f_b,g_f,g_b,o_f,o_b]
    b_ref   : (8H, 1)      b_ih + b_hh, same row order
    whh_ref : (8H, 2H)     block-diag recurrent weights (cols 0:H fwd, H:2H bwd)
    out_ref : (T, 2H, TB)  rows 0:H = fwd hidden at time i,
                           rows H:2H = bwd hidden at time T-1-i (flipped in wrapper)
    xw_ref  : (T, 8H, TB)  scratch: x @ W_ih + bias; bwd gate rows pre-time-reversed
    """
    T, E, TB = x_ref.shape
    H2 = whh_ref.shape[1]                 # 2H
    H = H2 // 2

    wihT = wih_ref[...]                   # (8H, E)
    bias = b_ref[...]                     # (8H, 1)
    whhT = whh_ref[...]                   # (8H, 2H)
    lengths = len_ref[...]                # (1, TB) int32

    # ---- hoisted input projection (bias folded), outside the recurrence ----
    # fwd gate rows of xw[t] come from x_t, bwd gate rows from x_{T-1-t}
    for t in range(T):
        pre = jnp.dot(wihT, x_ref[t], preferred_element_type=jnp.float32) + bias
        for g in range(4):
            lo = g * H2
            xw_ref[t, lo:lo + H, :] = pre[lo:lo + H, :]
            xw_ref[T - 1 - t, lo + H:lo + H2, :] = pre[lo + H:lo + H2, :]

    # ---- loop-invariant masks (hoisted: JAX does not CSE broadcasts) ----
    row = lax.broadcasted_iota(jnp.int32, (H2, 1), 0)
    is_fwd_row = row < H                                  # state rows owned by fwd dir
    zeros_s = jnp.zeros((H2, TB), jnp.float32)

    def step(i, carry):
        h, c = carry                                      # (2H, TB) packed [fwd; bwd]
        j = T - 1 - i                                     # backward-direction time index
        gates = xw_ref[i] + jnp.dot(whhT, h, preferred_element_type=jnp.float32)  # (8H, TB)
        i_g = jax.nn.sigmoid(gates[0 * H2:1 * H2])
        f_g = jax.nn.sigmoid(gates[1 * H2:2 * H2])
        g_g = jnp.tanh(gates[2 * H2:3 * H2])
        o_g = jax.nn.sigmoid(gates[3 * H2:4 * H2])
        c_new = f_g * c + i_g * g_g
        h_new = o_g * jnp.tanh(c_new)
        # packed-sequence masking: fwd rows valid for i < len, bwd rows for j < len
        # (equivalent to PyTorch pack_padded_sequence only because the initial
        #  hidden/cell state is zero)
        t_vec = jnp.where(is_fwd_row, i, j)               # (2H, 1)
        mask = t_vec < lengths                            # (2H, TB)
        h_out = jnp.where(mask, h_new, zeros_s)
        out_ref[i] = h_out     # single lane-dense store; bwd half time-flipped in wrapper
        h = jnp.where(mask, h_new, h)
        c = jnp.where(mask, c_new, c)
        return h, c

    # TODO(synk): for long sequences (T >> 32) switch to a partial unroll.
    lax.fori_loop(0, T, step, (zeros_s, zeros_s), unroll=True)


# ----------------------------------------------------------------------------
# Weight packing helpers (run once in the wrapper, plain JAX)
# ----------------------------------------------------------------------------
def _pack_gate_rows(wf, wb, h):
    """(4H, X) fwd + (4H, X) bwd -> (8H, X) rows [i_f,i_b,f_f,f_b,g_f,g_b,o_f,o_b]."""
    x = wf.shape[-1]
    wf4 = wf.reshape(4, h, x)
    wb4 = wb.reshape(4, h, x)
    return jnp.stack([wf4, wb4], axis=1).reshape(8 * h, x)


def _pack_whh(whh_f, whh_b, h):
    """(4H, H) x2 -> (8H, 2H) block-diagonal, gate-interleaved rows."""
    zeros = jnp.zeros_like(whh_f)                               # (4H, H)
    fwd = jnp.concatenate([whh_f, zeros], axis=1)               # (4H, 2H)
    bwd = jnp.concatenate([zeros, whh_b], axis=1)               # (4H, 2H)
    return _pack_gate_rows(fwd, bwd, h)


# ----------------------------------------------------------------------------
# CharBiLSTM.get_all_hiddens  (== CharBiLSTM.forward)
# ----------------------------------------------------------------------------
@jax.jit
def char_bilstm_forward(char_ids, seq_lengths, char_params):
    """char_ids: (N, T) int32, seq_lengths: (N,) int32 -> (N, T, 2H) float32."""
    H = char_params["w_hh_f"].shape[1]
    assert H % 8 == 0, "per-direction hidden size must be a multiple of 8"

    x = jnp.take(char_params["embedding"], char_ids, axis=0).astype(jnp.float32)  # (N,T,E)
    N, T, E = x.shape
    x_k = jnp.transpose(x, (1, 2, 0))                        # (T, E, N) -- batch in lanes
    lens = seq_lengths.astype(jnp.int32).reshape(1, N)

    # one full-lane-width (128) batch tile per grid step; multiple tiles split
    # across TensorCores on v7x ("parallel"), and run serially on v5e/v6e.
    TB = 128
    n_tiles = pl.cdiv(N, TB)
    n_pad = n_tiles * TB
    if n_pad != N:
        x_k = jnp.pad(x_k, ((0, 0), (0, 0), (0, n_pad - N)))
        lens = jnp.pad(lens, ((0, 0), (0, n_pad - N)))       # len 0 -> zero output

    G = 8 * H
    wihT = _pack_gate_rows(char_params["w_ih_f"], char_params["w_ih_b"], H)      # (8H, E)
    bias = _pack_gate_rows(
        (char_params["b_ih_f"] + char_params["b_hh_f"]).reshape(4 * H, 1),
        (char_params["b_ih_b"] + char_params["b_hh_b"]).reshape(4 * H, 1), H)    # (8H, 1)
    whhT = _pack_whh(char_params["w_hh_f"], char_params["w_hh_b"], H)            # (8H, 2H)

    # VMEM at these sizes: x/out blocks ~0.25 MiB each (x2 buffers) + xw scratch
    # T*8H*TB*4 B = 1 MiB -> well under every chip's scoped default; re-derive
    # (and set vmem_limit_bytes) before scaling T / H up.
    out = pl.pallas_call(
        _bilstm_kernel,
        out_shape=jax.ShapeDtypeStruct((T, 2 * H, n_pad), jnp.float32),
        grid=(n_tiles,),
        in_specs=[
            pl.BlockSpec((T, E, TB), lambda b: (0, 0, b)),
            pl.BlockSpec((1, TB), lambda b: (0, b)),
            pl.BlockSpec((G, E), lambda b: (0, 0)),
            pl.BlockSpec((G, 1), lambda b: (0, 0)),
            pl.BlockSpec((G, 2 * H), lambda b: (0, 0)),
        ],
        out_specs=pl.BlockSpec((T, 2 * H, TB), lambda b: (0, 0, b)),
        scratch_shapes=[pltpu.VMEM((T, G, TB), jnp.float32)],
        compiler_params=pltpu.CompilerParams(
            dimension_semantics=("parallel",)),
    )(x_k, lens, wihT, bias, whhT)

    # backward half was stored at the recurrence index -> flip it back in time
    out = jnp.concatenate([out[:, :H, :], out[::-1, H:, :]], axis=1)   # (T, 2H, n_pad)
    out = out[:, :, :N]                                                # drop padding lanes
    return jnp.transpose(out, (2, 0, 1))                               # (N, T, 2H)


def _last_hiddens(all_h, lens, H):
    """h_n of a packed bidirectional LSTM: fwd hidden at t=len-1, bwd hidden at t=0."""
    n = all_h.shape[0]
    h_fwd = all_h[jnp.arange(n), lens.astype(jnp.int32) - 1, :H]   # (N, H)
    h_bwd = all_h[:, 0, H:]                                        # (N, H)
    return jnp.concatenate([h_fwd, h_bwd], axis=-1)                # (N, 2H)


# ----------------------------------------------------------------------------
# WordRep.forward
# ----------------------------------------------------------------------------
@jax.jit
def word_rep_forward(params, word_inputs, pred_inputs, char_inputs,
                     char_seq_lengths, char_seq_recover):
    """word emb ++ pred emb ++ CharBiLSTM last hiddens (recovered / reshaped)."""
    B, S = word_inputs.shape
    H = params["char"]["w_hh_f"].shape[1]

    word_embs = jnp.take(params["word_embedding"], word_inputs, axis=0)   # (B, S, Wd)
    pred_embs = jnp.take(params["pred_embedding"], pred_inputs, axis=0)   # (B, S, Pd)

    all_h = char_bilstm_forward(char_inputs, char_seq_lengths, params["char"])  # (B*S,T,2H)
    char_feat = _last_hiddens(all_h, char_seq_lengths, H)                 # (B*S, 2H)
    char_feat = char_feat[char_seq_recover].reshape(B, S, 2 * H)

    out = jnp.concatenate([word_embs, pred_embs, char_feat], axis=-1)
    # TODO(synk): WordDropout / char dropout are train-time only (identity at inference).
    return out


# ----------------------------------------------------------------------------
# Synthetic parameter init (mirrors the module's parameter shapes / nn.LSTM layout)
# ----------------------------------------------------------------------------
def init_params(key, alphabet_size, char_emb_dim, char_hidden_dim,
                word_vocab, wdims, pdims):
    H = char_hidden_dim // 2
    ks = jax.random.split(key, 12)

    def unif(kk, shape, scale):
        return jax.random.uniform(kk, shape, minval=-scale, maxval=scale,
                                  dtype=jnp.float32)

    bound = float(H) ** -0.5                      # nn.LSTM default init
    char = {
        "embedding": unif(ks[0], (alphabet_size, char_emb_dim),
                          (3.0 / char_emb_dim) ** 0.5).at[0].set(0.0),
        "w_ih_f": unif(ks[1], (4 * H, char_emb_dim), bound),
        "w_hh_f": unif(ks[2], (4 * H, H), bound),
        "b_ih_f": unif(ks[3], (4 * H,), bound),
        "b_hh_f": unif(ks[4], (4 * H,), bound),
        "w_ih_b": unif(ks[5], (4 * H, char_emb_dim), bound),
        "w_hh_b": unif(ks[6], (4 * H, H), bound),
        "b_ih_b": unif(ks[7], (4 * H,), bound),
        "b_hh_b": unif(ks[8], (4 * H,), bound),
    }
    return {
        "char": char,
        "word_embedding": unif(ks[9], (word_vocab, wdims),
                               (3.0 / wdims) ** 0.5).at[0].set(0.0),
        "pred_embedding": unif(ks[10], (4, pdims),
                               (3.0 / pdims) ** 0.5).at[0].set(0.0),
    }


# ----------------------------------------------------------------------------
# Pure-JAX references for verification
# ----------------------------------------------------------------------------
def _reference_bilstm(char_ids, seq_lengths, p):
    emb = jnp.take(p["embedding"], char_ids, axis=0)  # (N, T, E)
    N, T, E = emb.shape
    H = p["w_hh_f"].shape[1]
    lens = seq_lengths.astype(jnp.int32)

    def run_dir(w_ih, w_hh, b_ih, b_hh, reverse):
        def step(carry, t):
            h, c = carry
            x_t = emb[:, t, :]
            gates = x_t @ w_ih.T + h @ w_hh.T + b_ih + b_hh
            i_g = jax.nn.sigmoid(gates[:, 0:H])
            f_g = jax.nn.sigmoid(gates[:, H:2 * H])
            g_g = jnp.tanh(gates[:, 2 * H:3 * H])
            o_g = jax.nn.sigmoid(gates[:, 3 * H:4 * H])
            c_new = f_g * c + i_g * g_g
            h_new = o_g * jnp.tanh(c_new)
            mask = (t < lens)[:, None]
            out_t = jnp.where(mask, h_new, 0.0)
            h = jnp.where(mask, h_new, h)
            c = jnp.where(mask, c_new, c)
            return (h, c), out_t

        ts = jnp.arange(T)[::-1] if reverse else jnp.arange(T)
        (_, _), outs = lax.scan(step, (jnp.zeros((N, H)), jnp.zeros((N, H))), ts)
        outs = outs[::-1] if reverse else outs
        return jnp.transpose(outs, (1, 0, 2))  # (N, T, H)

    of = run_dir(p["w_ih_f"], p["w_hh_f"], p["b_ih_f"], p["b_hh_f"], False)
    ob = run_dir(p["w_ih_b"], p["w_hh_b"], p["b_ih_b"], p["b_hh_b"], True)
    return jnp.concatenate([of, ob], axis=-1)


def _reference_word_rep(params, word_inputs, pred_inputs, char_inputs,
                        char_seq_lengths, char_seq_recover):
    B, S = word_inputs.shape
    H = params["char"]["w_hh_f"].shape[1]
    all_h = _reference_bilstm(char_inputs, char_seq_lengths, params["char"])
    char_feat = _last_hiddens(all_h, char_seq_lengths, H)
    char_feat = char_feat[char_seq_recover].reshape(B, S, 2 * H)
    word_embs = jnp.take(params["word_embedding"], word_inputs, axis=0)
    pred_embs = jnp.take(params["pred_embedding"], pred_inputs, axis=0)
    return jnp.concatenate([word_embs, pred_embs, char_feat], axis=-1)


if __name__ == "__main__":
    alphabet_size = 20        # len(charset) + 2
    char_emb_dim = 32         # _cdims
    char_hidden_dim = 32      # _char_hidden  (per-direction H = 16)
    word_vocab = 50           # len(vocab) + 2
    wdims = 32
    pdims = 16
    batch = 16                # sentences
    sent_len = 8
    word_length = 16          # chars per word

    key = jax.random.PRNGKey(0)
    k_par, k_char, k_word, k_pred, k_len = jax.random.split(key, 5)
    params = init_params(k_par, alphabet_size, char_emb_dim, char_hidden_dim,
                         word_vocab, wdims, pdims)

    n_words = batch * sent_len                      # 128 char sequences per call
    char_ids_orig = jax.random.randint(
        k_char, (n_words, word_length), 1, alphabet_size, dtype=jnp.int32)
    lens_orig = jax.random.randint(
        k_len, (n_words,), 1, word_length + 1, dtype=jnp.int32)

    # pack_padded_sequence requires descending lengths; recover restores original order
    order = jnp.argsort(-lens_orig)
    char_inputs = char_ids_orig[order]
    char_seq_lengths = lens_orig[order]
    char_seq_recover = jnp.argsort(order)

    word_inputs = jax.random.randint(
        k_word, (batch, sent_len), 1, word_vocab, dtype=jnp.int32)
    pred_inputs = jax.random.randint(
        k_pred, (batch, sent_len), 0, 2, dtype=jnp.int32)

    H = char_hidden_dim // 2

    # --- standalone CharBiLSTM kernel check (all hiddens) ---
    out_char = jax.block_until_ready(
        char_bilstm_forward(char_inputs, char_seq_lengths, params["char"]))
    assert out_char.shape == (n_words, word_length, 2 * H)
    ref_char = _reference_bilstm(char_inputs, char_seq_lengths, params["char"])
    assert jnp.allclose(out_char, ref_char, rtol=1e-3, atol=1e-3)

    # --- full WordRep forward ---
    out = jax.block_until_ready(
        word_rep_forward(params, word_inputs, pred_inputs, char_inputs,
                         char_seq_lengths, char_seq_recover))
    assert out.shape == (batch, sent_len, wdims + pdims + 2 * H)
    ref = _reference_word_rep(params, word_inputs, pred_inputs, char_inputs,
                              char_seq_lengths, char_seq_recover)
    assert jnp.allclose(out, ref, rtol=1e-3, atol=1e-3)

    print("KERNEL_OK")
</pallas_src>

<mosaic_0001>
module attributes {stable_mosaic.version = 11 : i64} {
  func.func @_bilstm_kernel(%arg0: i32, %arg1: memref<16x32x128xf32, #tpu.memory_space<vmem>>, %arg2: memref<1x128xi32, #tpu.memory_space<vmem>>, %arg3: memref<128x32xf32, #tpu.memory_space<vmem>>, %arg4: memref<128x1xf32, #tpu.memory_space<vmem>>, %arg5: memref<128x32xf32, #tpu.memory_space<vmem>>, %arg6: memref<16x32x128xf32, #tpu.memory_space<vmem>>, %arg7: memref<16x128x128xf32, #tpu.memory_space<vmem>>) attributes {dimension_semantics = [#tpu.dimension_semantics<parallel>], iteration_bounds = array<i64: 1>, scalar_prefetch = 0 : i64, scratch_operands = 1 : i64, tpu.core_type = #tpu.core_type<tc>, window_params = [{transform_indices = @transform_0, window_bounds = array<i64: 16, 32, 128>}, {transform_indices = @transform_1, window_bounds = array<i64: 1, 128>}, {pipeline_mode = #tpu.pipeline_mode<synchronous>, transform_indices = @transform_2, window_bounds = array<i64: 128, 32>}, {pipeline_mode = #tpu.pipeline_mode<synchronous>, transform_indices = @transform_3, window_bounds = array<i64: 128, 1>}, {pipeline_mode = #tpu.pipeline_mode<synchronous>, transform_indices = @transform_4, window_bounds = array<i64: 128, 32>}, {transform_indices = @transform_5, window_bounds = array<i64: 16, 32, 128>}]} {
    %c0 = arith.constant 0 : index
    %c0_0 = arith.constant 0 : index
    %0 = vector.load %arg3[%c0, %c0_0] : memref<128x32xf32, #tpu.memory_space<vmem>>, vector<128x32xf32>
    %c0_1 = arith.constant 0 : index
    %c0_2 = arith.constant 0 : index
    %1 = vector.load %arg4[%c0_1, %c0_2] : memref<128x1xf32, #tpu.memory_space<vmem>>, vector<128x1xf32>
    %c0_3 = arith.constant 0 : index
    %c0_4 = arith.constant 0 : index
    %2 = vector.load %arg5[%c0_3, %c0_4] : memref<128x32xf32, #tpu.memory_space<vmem>>, vector<128x32xf32>
    %c0_5 = arith.constant 0 : index
    %c0_6 = arith.constant 0 : index
    %3 = vector.load %arg2[%c0_5, %c0_6] : memref<1x128xi32, #tpu.memory_space<vmem>>, vector<1x128xi32>
    %c0_7 = arith.constant 0 : index
    %c0_8 = arith.constant 0 : index
    %c0_9 = arith.constant 0 : index
    %4 = vector.load %arg1[%c0_7, %c0_8, %c0_9] : memref<16x32x128xf32, #tpu.memory_space<vmem>>, vector<1x32x128xf32>
    %5 = vector.shape_cast %4 : vector<1x32x128xf32> to vector<32x128xf32>
    %cst = arith.constant dense<0.000000e+00> : vector<128x128xf32>
    %6 = tpu.matmul %0, %5, %cst {dimension_numbers = #tpu.dot_dimension_numbers<[1], [0], [0], [1], [0, 0, 1, 1], [], []>} : vector<128x32xf32>, vector<32x128xf32>, vector<128x128xf32> -> vector<128x128xf32>
    %7 = vector.broadcast %1 : vector<128x1xf32> to vector<128x128xf32>
    %8 = arith.addf %6, %7 : vector<128x128xf32>
    %9 = vector.extract_strided_slice %8 {offsets = [0, 0], sizes = [16, 128], strides = [1, 1]} : vector<128x128xf32> to vector<16x128xf32>
    %c0_10 = arith.constant 0 : index
    %c0_11 = arith.constant 0 : index
    %c0_12 = arith.constant 0 : index
    %10 = vector.load %arg7[%c0_10, %c0_11, %c0_12] : memref<16x128x128xf32, #tpu.memory_space<vmem>>, vector<1x16x128xf32>
    %11 = vector.shape_cast %10 : vector<1x16x128xf32> to vector<16x128xf32>
    %12 = vector.shape_cast %9 : vector<16x128xf32> to vector<1x16x128xf32>
    tpu.vector_store %arg7[%c0_10, %c0_11, %c0_12], %12 {strides = array<i32>} : memref<16x128x128xf32, #tpu.memory_space<vmem>>, vector<1x16x128xf32>,
    %13 = vector.extract_strided_slice %8 {offsets = [16, 0], sizes = [16, 128], strides = [1, 1]} : vector<128x128xf32> to vector<16x128xf32>
    %c15 = arith.constant 15 : index
    %c16 = arith.constant 16 : index
    %c0_13 = arith.constant 0 : index
    %14 = vector.load %arg7[%c15, %c16, %c0_13] : memref<16x128x128xf32, #tpu.memory_space<vmem>>, vector<1x16x128xf32>
    %15 = vector.shape_cast %14 : vector<1x16x128xf32> to vector<16x128xf32>
    %16 = vector.shape_cast %13 : vector<16x128xf32> to vector<1x16x128xf32>
    tpu.vector_store %arg7[%c15, %c16, %c0_13], %16 {strides = array<i32>} : memref<16x128x128xf32, #tpu.memory_space<vmem>>, vector<1x16x128xf32>,
    %17 = vector.extract_strided_slice %8 {offsets = [32, 0], sizes = [16, 128], strides = [1, 1]} : vector<128x128xf32> to vector<16x128xf32>
    %c0_14 = arith.constant 0 : index
    %c32 = arith.constant 32 : index
    %c0_15 = arith.constant 0 : index
    %18 = vector.load %arg7[%c0_14, %c32, %c0_15] : memref<16x128x128xf32, #tpu.memory_space<vmem>>, vector<1x16x128xf32>
    %19 = vector.shape_cast %18 : vector<1x16x128xf32> to vector<16x128xf32>
    %20 = vector.shape_cast %17 : vector<16x128xf32> to vector<1x16x128xf32>
    tpu.vector_store %arg7[%c0_14, %c32, %c0_15], %20 {strides = array<i32>} : memref<16x128x128xf32, #tpu.memory_space<vmem>>, vector<1x16x128xf32>,
    %21 = vector.extract_strided_slice %8 {offsets = [48, 0], sizes = [16, 128], strides = [1, 1]} : vector<128x128xf32> to vector<16x128xf32>
    %c15_16 = arith.constant 15 : index
    %c48 = arith.constant 48 : index
    %c0_17 = arith.constant 0 : index
    %22 = vector.load %arg7[%c15_16, %c48, %c0_17] : memref<16x128x128xf32, #tpu.memory_space<vmem>>, vector<1x16x128xf32>
    %23 = vector.shape_cast %22 : vector<1x16x128xf32> to vector<16x128xf32>
    %24 = vector.shape_cast %21 : vector<16x128xf32> to vector<1x16x128xf32>
    tpu.vector_store %arg7[%c15_16, %c48, %c0_17], %24 {strides = array<i32>} : memref<16x128x128xf32, #tpu.memory_space<vmem>>, vector<1x16x128xf32>,
    %25 = vector.extract_strided_slice %8 {offsets = [64, 0], sizes = [16, 128], strides = [1, 1]} : vector<128x128xf32> to vector<16x128xf32>
    %c0_18 = arith.constant 0 : index
    %c64 = arith.constant 64 : index
    %c0_19 = arith.constant 0 : index
    %26 = vector.load %arg7[%c0_18, %c64, %c0_19] : memref<16x128x128xf32, #tpu.memory_space<vmem>>, vector<1x16x128xf32>
    %27 = vector.shape_cast %26 : vector<1x16x128xf32> to vector<16x128xf32>
    %28 = vector.shape_cast %25 : vector<16x128xf32> to vector<1x16x128xf32>
    tpu.vector_store %arg7[%c0_18, %c64, %c0_19], %28 {strides = array<i32>} : memref<16x128x128xf32, #tpu.memory_space<vmem>>, vector<1x16x128xf32>,
    %29 = vector.extract_strided_slice %8 {offsets = [80, 0], sizes = [16, 128], strides = [1, 1]} : vector<128x128xf32> to vector<16x128xf32>
    %c15_20 = arith.constant 15 : index
    %c80 = arith.constant 80 : index
    %c0_21 = arith.constant 0 : index
    %30 = vector.load %arg7[%c15_20, %c80, %c0_21] : memref<16x128x128xf32, #tpu.memory_space<vmem>>, vector<1x16x128xf32>
    %31 = vector.shape_cast %30 : vector<1x16x128xf32> to vector<16x128xf32>
    %32 = vector.shape_cast %29 : vector<16x128xf32> to vector<1x16x128xf32>
    tpu.vector_store %arg7[%c15_20, %c80, %c0_21], %32 {strides = array<i32>} : memref<16x128x128xf32, #tpu.memory_space<vmem>>, vector<1x16x128xf32>,
    %33 = vector.extract_strided_slice %8 {offsets = [96, 0], sizes = [16, 128], strides = [1, 1]} : vector<128x128xf32> to vector<16x128xf32>
    %c0_22 = arith.constant 0 : index
    %c96 = arith.constant 96 : index
    %c0_23 = arith.constant 0 : index
    %34 = vector.load %arg7[%c0_22, %c96, %c0_23] : memref<16x128x128xf32, #tpu.memory_space<vmem>>, vector<1x16x128xf32>
    %35 = vector.shape_cast %34 : vector<1x16x128xf32> to vector<16x128xf32>
    %36 = vector.shape_cast %33 : vector<16x128xf32> to vector<1x16x128xf32>
    tpu.vector_store %arg7[%c0_22, %c96, %c0_23], %36 {strides = array<i32>} : memref<16x128x128xf32, #tpu.memory_space<vmem>>, vector<1x16x128xf32>,
    %37 = vector.extract_strided_slice %8 {offsets = [112, 0], sizes = [16, 128], strides = [1, 1]} : vector<128x128xf32> to vector<16x128xf32>
    %c15_24 = arith.constant 15 : index
    %c112 = arith.constant 112 : index
    %c0_25 = arith.constant 0 : index
    %38 = vector.load %arg7[%c15_24, %c112, %c0_25] : memref<16x128x128xf32, #tpu.memory_space<vmem>>, vector<1x16x128xf32>
    %39 = vector.shape_cast %38 : vector<1x16x128xf32> to vector<16x128xf32>
    %40 = vector.shape_cast %37 : vector<16x128xf32> to vector<1x16x128xf32>
    tpu.vector_store %arg7[%c15_24, %c112, %c0_25], %40 {strides = array<i32>} : memref<16x128x128xf32, #tpu.memory_space<vmem>>, vector<1x16x128xf32>,
    %c1 = arith.constant 1 : index
    %c0_26 = arith.constant 0 : index
    %c0_27 = arith.constant 0 : index
    %41 = vector.load %arg1[%c1, %c0_26, %c0_27] : memref<16x32x128xf32, #tpu.memory_space<vmem>>, vector<1x32x128xf32>
    %42 = vector.shape_cast %41 : vector<1x32x128xf32> to vector<32x128xf32>
    %cst_28 = arith.constant dense<0.000000e+00> : vector<128x128xf32>
    %43 = tpu.matmul %0, %42, %cst_28 {dimension_numbers = #tpu.dot_dimension_numbers<[1], [0], [0], [1], [0, 0, 1, 1], [], []>} : vector<128x32xf32>, vector<32x128xf32>, vector<128x128xf32> -> vector<128x128xf32>
    %44 = vector.broadcast %1 : vector<128x1xf32> to vector<128x128xf32>
    %45 = arith.addf %43, %44 : vector<128x128xf32>
    %46 = vector.extract_strided_slice %45 {offsets = [0, 0], sizes = [16, 128], strides = [1, 1]} : vector<128x128xf32> to vector<16x128xf32>
    %c1_29 = arith.constant 1 : index
    %c0_30 = arith.constant 0 : index
    %c0_31 = arith.constant 0 : index
    %47 = vector.load %arg7[%c1_29, %c0_30, %c0_31] : memref<16x128x128xf32, #tpu.memory_space<vmem>>, vector<1x16x128xf32>
    %48 = vector.shape_cast %47 : vector<1x16x128xf32> to vector<16x128xf32>
    %49 = vector.shape_cast %46 : vector<16x128xf32> to vector<1x16x128xf32>
    tpu.vector_store %arg7[%c1_29, %c0_30, %c0_31], %49 {strides = array<i32>} : memref<16x128x128xf32, #tpu.memory_space<vmem>>, vector<1x16x128xf32>,
    %50 = vector.extract_strided_slice %45 {offsets = [16, 0], sizes = [16, 128], strides = [1, 1]} : vector<128x128xf32> to vector<16x128xf32>
    %c14 = arith.constant 14 : index
    %c16_32 = arith.constant 16 : index
    %c0_33 = arith.constant 0 : index
    %51 = vector.load %arg7[%c14, %c16_32, %c0_33] : memref<16x128x128xf32, #tpu.memory_space<vmem>>, vector<1x16x128xf32>
    %52 = vector.shape_cast %51 : vector<1x16x128xf32> to vector<16x128xf32>
    %53 = vector.shape_cast %50 : vector<16x128xf32> to vector<1x16x128xf32>
    tpu.vector_store %arg7[%c14, %c16_32, %c0_33], %53 {strides = array<i32>} : memref<16x128x128xf32, #tpu.memory_space<vmem>>, vector<1x16x128xf32>,
    %54 = vector.extract_strided_slice %45 {offsets = [32, 0], sizes = [16, 128], strides = [1, 1]} : vector<128x128xf32> to vector<16x128xf32>
    %c1_34 = arith.constant 1 : index
    %c32_35 = arith.constant 32 : index
    %c0_36 = arith.constant 0 : index
    %55 = vector.load %arg7[%c1_34, %c32_35, %c0_36] : memref<16x128x128xf32, #tpu.memory_space<vmem>>, vector<1x16x128xf32>
    %56 = vector.shape_cast %55 : vector<1x16x128xf32> to vector<16x128xf32>
    %57 = vector.shape_cast %54 : vector<16x128xf32> to vector<1x16x128xf32>
    tpu.vector_store %arg7[%c1_34, %c32_35, %c0_36], %57 {strides = array<i32>} : memref<16x128x128xf32, #tpu.memory_space<vmem>>, vector<1x16x128xf32>,
    %58 = vector.extract_strided_slice %45 {offsets = [48, 0], sizes = [16, 128], strides = [1, 1]} : vector<128x128xf32> to vector<16x128xf32>
    %c14_37 = arith.constant 14 : index
    %c48_38 = arith.constant 48 : index
    %c0_39 = arith.constant 0 : index
    %59 = vector.load %arg7[%c14_37, %c48_38, %c0_39] : memref<16x128x128xf32, #tpu.memory_space<vmem>>, vector<1x16x128xf32>
    %60 = vector.shape_cast %59 : vector<1x16x128xf32> to vector<16x128xf32>
    %61 = vector.shape_cast %58 : vector<16x128xf32> to vector<1x16x128xf32>
    tpu.vector_store %arg7[%c14_37, %c48_38, %c0_39], %61 {strides = array<i32>} : memref<16x128x128xf32, #tpu.memory_space<vmem>>, vector<1x16x128xf32>,
    %62 = vector.extract_strided_slice %45 {offsets = [64, 0], sizes = [16, 128], strides = [1, 1]} : vector<128x128xf32> to vector<16x128xf32>
    %c1_40 = arith.constant 1 : index
    %c64_41 = arith.constant 64 : index
    %c0_42 = arith.constant 0 : index
    %63 = vector.load %arg7[%c1_40, %c64_41, %c0_42] : memref<16x128x128xf32, #tpu.memory_space<vmem>>, vector<1x16x128xf32>
    %64 = vector.shape_cast %63 : vector<1x16x128xf32> to vector<16x128xf32>
    %65 = vector.shape_cast %62 : vector<16x128xf32> to vector<1x16x128xf32>
    tpu.vector_store %arg7[%c1_40, %c64_41, %c0_42], %65 {strides = array<i32>} : memref<16x128x128xf32, #tpu.memory_space<vmem>>, vector<1x16x128xf32>,
    %66 = vector.extract_strided_slice %45 {offsets = [80, 0], sizes = [16, 128], strides = [1, 1]} : vector<128x128xf32> to vector<16x128xf32>
    %c14_43 = arith.constant 14 : index
    %c80_44 = arith.constant 80 : index
    %c0_45 = arith.constant 0 : index
    %67 = vector.load %arg7[%c14_43, %c80_44, %c0_45] : memref<16x128x128xf32, #tpu.memory_space<vmem>>, vector<1x16x128xf32>
    %68 = vector.shape_cast %67 : vector<1x16x128xf32> to vector<16x128xf32>
    %69 = vector.shape_cast %66 : vector<16x128xf32> to vector<1x16x128xf32>
    tpu.vector_store %arg7[%c14_43, %c80_44, %c0_45], %69 {strides = array<i32>} : memref<16x128x128xf32, #tpu.memory_space<vmem>>, vector<1x16x128xf32>,
    %70 = vector.extract_strided_slice %45 {offsets = [96, 0], sizes = [16, 128], strides = [1, 1]} : vector<128x128xf32> to vector<16x128xf32>
    %c1_46 = arith.constant 1 : index
    %c96_47 = arith.constant 96 : index
    %c0_48 = arith.constant 0 : index
    %71 = vector.load %arg7[%c1_46, %c96_47, %c0_48] : memref<16x128x128xf32, #tpu.memory_space<vmem>>, vector<1x16x128xf32>
    %72 = vector.shape_cast %71 : vector<1x16x128xf32> to vector<16x128xf32>
    %73 = vector.shape_cast %70 : vector<16x128xf32> to vector<1x16x128xf32>
    tpu.vector_store %arg7[%c1_46, %c96_47, %c0_48], %73 {strides = array<i32>} : memref<16x128x128xf32, #tpu.memory_space<vmem>>, vector<1x16x128xf32>,
    %74 = vector.extract_strided_slice %45 {offsets = [112, 0], sizes = [16, 128], strides = [1, 1]} : vector<128x128xf32> to vector<16x128xf32>
    %c14_49 = arith.constant 14 : index
    %c112_50 = arith.constant 112 : index
    %c0_51 = arith.constant 0 : index
    %75 = vector.load %arg7[%c14_49, %c112_50, %c0_51] : memref<16x128x128xf32, #tpu.memory_space<vmem>>, vector<1x16x128xf32>
    %76 = vector.shape_cast %75 : vector<1x16x128xf32> to vector<16x128xf32>
    %77 = vector.shape_cast %74 : vector<16x128xf32> to vector<1x16x128xf32>
    tpu.vector_store %arg7[%c14_49, %c112_50, %c0_51], %77 {strides = array<i32>} : memref<16x128x128xf32, #tpu.memory_space<vmem>>, vector<1x16x128xf32>,
    %c2 = arith.constant 2 : index
    %c0_52 = arith.constant 0 : index
    %c0_53 = arith.constant 0 : index
    %78 = vector.load %arg1[%c2, %c0_52, %c0_53] : memref<16x32x128xf32, #tpu.memory_space<vmem>>, vector<1x32x128xf32>
    %79 = vector.shape_cast %78 : vector<1x32x128xf32> to vector<32x128xf32>
    %cst_54 = arith.constant dense<0.000000e+00> : vector<128x128xf32>
    %80 = tpu.matmul %0, %79, %cst_54 {dimension_numbers = #tpu.dot_dimension_numbers<[1], [0], [0], [1], [0, 0, 1, 1], [], []>} : vector<128x32xf32>, vector<32x128xf32>, vector<128x128xf32> -> vector<128x128xf32>
    %81 = vector.broadcast %1 : vector<128x1xf32> to vector<128x128xf32>
    %82 = arith.addf %80, %81 : vector<128x128xf32>
    %83 = vector.extract_strided_slice %82 {offsets = [0, 0], sizes = [16, 128], strides = [1, 1]} : vector<128x128xf32> to vector<16x128xf32>
    %c2_55 = arith.constant 2 : index
    %c0_56 = arith.constant 0 : index
    %c0_57 = arith.constant 0 : index
    %84 = vector.load %arg7[%c2_55, %c0_56, %c0_57] : memref<16x128x128xf32, #tpu.memory_space<vmem>>, vector<1x16x128xf32>
    %85 = vector.shape_cast %84 : vector<1x16x128xf32> to vector<16x128xf32>
    %86 = vector.shape_cast %83 : vector<16x128xf32> to vector<1x16x128xf32>
    tpu.vector_store %arg7[%c2_55, %c0_56, %c0_57], %86 {strides = array<i32>} : memref<16x128x128xf32, #tpu.memory_space<vmem>>, vector<1x16x128xf32>,
    %87 = vector.extract_strided_slice %82 {offsets = [16, 0], sizes = [16, 128], strides = [1, 1]} : vector<128x128xf32> to vector<16x128xf32>
    %c13 = arith.constant 13 : index
    %c16_58 = arith.constant 16 : index
    %c0_59 = arith.constant 0 : index
    %88 = vector.load %arg7[%c13, %c16_58, %c0_59] : memref<16x128x128xf32, #tpu.memory_space<vmem>>, vector<1x16x128xf32>
    %89 = vector.shape_cast %88 : vector<1x16x128xf32> to vector<16x128xf32>
    %90 = vector.shape_cast %87 : vector<16x128xf32> to vector<1x16x128xf32>
    tpu.vector_store %arg7[%c13, %c16_58, %c0_59], %90 {strides = array<i32>} : memref<16x128x128xf32, #tpu.memory_space<vmem>>, vector<1x16x128xf32>,
    %91 = vector.extract_strided_slice %82 {offsets = [32, 0], sizes = [16, 128], strides = [1, 1]} : vector<128x128xf32> to vector<16x128xf32>
    %c2_60 = arith.constant 2 : index
    %c32_61 = arith.constant 32 : index
    %c0_62 = arith.constant 0 : index
    %92 = vector.load %arg7[%c2_60, %c32_61, %c0_62] : memref<16x128x128xf32, #tpu.memory_space<vmem>>, vector<1x16x128xf32>
    %93 = vector.shape_cast %92 : vector<1x16x128xf32> to vector<16x128xf32>
    %94 = vector.shape_cast %91 : vector<16x128xf32> to vector<1x16x128xf32>
    tpu.vector_store %arg7[%c2_60, %c32_61, %c0_62], %94 {strides = array<i32>} : memref<16x128x128xf32, #tpu.memory_space<vmem>>, vector<1x16x128xf32>,
    %95 = vector.extract_strided_slice %82 {offsets = [48, 0], sizes = [16, 128], strides = [1, 1]} : vector<128x128xf32> to vector<16x128xf32>
    %c13_63 = arith.constant 13 : index
    %c48_64 = arith.constant 48 : index
    %c0_65 = arith.constant 0 : index
    %96 = vector.load %arg7[%c13_63, %c48_64, %c0_65] : memref<16x128x128xf32, #tpu.memory_space<vmem>>, vector<1x16x128xf32>
    %97 = vector.shape_cast %96 : vector<1x16x128xf32> to vector<16x128xf32>
    %98 = vector.shape_cast %95 : vector<16x128xf32> to vector<1x16x128xf32>
    tpu.vector_store %arg7[%c13_63, %c48_64, %c0_65], %98 {strides = array<i32>} : memref<16x128x128xf32, #tpu.memory_space<vmem>>, vector<1x16x128xf32>,
    %99 = vector.extract_strided_slice %82 {offsets = [64, 0], sizes = [16, 128], strides = [1, 1]} : vector<128x128xf32> to vector<16x128xf32>
    %c2_66 = arith.constant 2 : index
    %c64_67 = arith.constant 64 : index
    %c0_68 = arith.constant 0 : index
    %100 = vector.load %arg7[%c2_66, %c64_67, %c0_68] : memref<16x128x128xf32, #tpu.memory_space<vmem>>, vector<1x16x128xf32>
    %101 = vector.shape_cast %100 : vector<1x16x128xf32> to vector<16x128xf32>
    %102 = vector.shape_cast %99 : vector<16x128xf32> to vector<1x16x128xf32>
    tpu.vector_store %arg7[%c2_66, %c64_67, %c0_68], %102 {strides = array<i32>} : memref<16x128x128xf32, #tpu.memory_space<vmem>>, vector<1x16x128xf32>,
    %103 = vector.extract_strided_slice %82 {offsets = [80, 0], sizes = [16, 128], strides = [1, 1]} : vector<128x128xf32> to vector<16x128xf32>
    %c13_69 = arith.constant 13 : index
    %c80_70 = arith.constant 80 : index
    %c0_71 = arith.constant 0 : index
    %104 = vector.load %arg7[%c13_69, %c80_70, %c0_71] : memref<16x128x128xf32, #tpu.memory_space<vmem>>, vector<1x16x128xf32>
    %105 = vector.shape_cast %104 : vector<1x16x128xf32> to vector<16x128xf32>
    %106 = vector.shape_cast %103 : vector<16x128xf32> to vector<1x16x128xf32>
    tpu.vector_store %arg7[%c13_69, %c80_70, %c0_71], %106 {strides = array<i32>} : memref<16x128x128xf32, #tpu.memory_space<vmem>>, vector<1x16x128xf32>,
    %107 = vector.extract_strided_slice %82 {offsets = [96, 0], sizes = [16, 128], strides = [1, 1]} : vector<128x128xf32> to vector<16x128xf32>
    %c2_72 = arith.constant 2 : index
    %c96_73 = arith.constant 96 : index
    %c0_74 = arith.constant 0 : index
    %108 = vector.load %arg7[%c2_72, %c96_73, %c0_74] : memref<16x128x128xf32, #tpu.memory_space<vmem>>, vector<1x16x128xf32>
    %109 = vector.shape_cast %108 : vector<1x16x128xf32> to vector<16x128xf32>
    %110 = vector.shape_cast %107 : vector<16x128xf32> to vector<1x16x128xf32>
    tpu.vector_store %arg7[%c2_72, %c96_73, %c0_74], %110 {strides = array<i32>} : memref<16x128x128xf32, #tpu.memory_space<vmem>>, vector<1x16x128xf32>,
    %111 = vector.extract_strided_slice %82 {offsets = [112, 0], sizes = [16, 128], strides = [1, 1]} : vector<128x128xf32> to vector<16x128xf32>
    %c13_75 = arith.constant 13 : index
    %c112_76 = arith.constant 112 : index
    %c0_77 = arith.constant 0 : index
    %112 = vector.load %arg7[%c13_75, %c112_76, %c0_77] : memref<16x128x128xf32, #tpu.memory_space<vmem>>, vector<1x16x128xf32>
    %113 = vector.shape_cast %112 : vector<1x16x128xf32> to vector<16x128xf32>
    %114 = vector.shape_cast %111 : vector<16x128xf32> to vector<1x16x128xf32>
    tpu.vector_store %arg7[%c13_75, %c112_76, %c0_77], %114 {strides = array<i32>} : memref<16x128x128xf32, #tpu.memory_space<vmem>>, vector<1x16x128xf32>,
    %c3 = arith.constant 3 : index
    %c0_78 = arith.constant 0 : index
    %c0_79 = arith.constant 0 : index
    %115 = vector.load %arg1[%c3, %c0_78, %c0_79] : memref<16x32x128xf32, #tpu.memory_space<vmem>>, vector<1x32x128xf32>
    %116 = vector.shape_cast %115 : vector<1x32x128xf32> to vector<32x128xf32>
    %cst_80 = arith.constant dense<0.000000e+00> : vector<128x128xf32>
    %117 = tpu.matmul %0, %116, %cst_80 {dimension_numbers = #tpu.dot_dimension_numbers<[1], [0], [0], [1], [0, 0, 1, 1], [], []>} : vector<128x32xf32>, vector<32x128xf32>, vector<128x128xf32> -> vector<128x128xf32>
    %118 = vector.broadcast %1 : vector<128x1xf32> to vector<128x128xf32>
    %119 = arith.addf %117, %118 : vector<128x128xf32>
    %120 = vector.extract_strided_slice %119 {offsets = [0, 0], sizes = [16, 128], strides = [1, 1]} : vector<128x128xf32> to vector<16x128xf32>
    %c3_81 = arith.constant 3 : index
    %c0_82 = arith.constant 0 : index
    %c0_83 = arith.constant 0 : index
    %121 = vector.load %arg7[%c3_81, %c0_82, %c0_83] : memref<16x128x128xf32, #tpu.memory_space<vmem>>, vector<1x16x128xf32>
    %122 = vector.shape_cast %121 : vector<1x16x128xf32> to vector<16x128xf32>
    %123 = vector.shape_cast %120 : vector<16x128xf32> to vector<1x16x128xf32>
    tpu.vector_store %arg7[%c3_81, %c0_82, %c0_83], %123 {strides = array<i32>} : memref<16x128x128xf32, #tpu.memory_space<vmem>>, vector<1x16x128xf32>,
    %124 = vector.extract_strided_slice %119 {offsets = [16, 0], sizes = [16, 128], strides = [1, 1]} : vector<128x128xf32> to vector<16x128xf32>
    %c12 = arith.constant 12 : index
    %c16_84 = arith.constant 16 : index
    %c0_85 = arith.constant 0 : index
    %125 = vector.load %arg7[%c12, %c16_84, %c0_85] : memref<16x128x128xf32, #tpu.memory_space<vmem>>, vector<1x16x128xf32>
    %126 = vector.shape_cast %125 : vector<1x16x128xf32> to vector<16x128xf32>
    %127 = vector.shape_cast %124 : vector<16x128xf32> to vector<1x16x128xf32>
    tpu.vector_store %arg7[%c12, %c16_84, %c0_85], %127 {strides = array<i32>} : memref<16x128x128xf32, #tpu.memory_space<vmem>>, vector<1x16x128xf32>,
    %128 = vector.extract_strided_slice %119 {offsets = [32, 0], sizes = [16, 128], strides = [1, 1]} : vector<128x128xf32> to vector<16x128xf32>
    %c3_86 = arith.constant 3 : index
    %c32_87 = arith.constant 32 : index
    %c0_88 = arith.constant 0 : index
    %129 = vector.load %arg7[%c3_86, %c32_87, %c0_88] : memref<16x128x128xf32, #tpu.memory_space<vmem>>, vector<1x16x128xf32>
    %130 = vector.shape_cast %129 : vector<1x16x128xf32> to vector<16x128xf32>
    %131 = vector.shape_cast %128 : vector<16x128xf32> to vector<1x16x128xf32>
    tpu.vector_store %arg7[%c3_86, %c32_87, %c0_88], %131 {strides = array<i32>} : memref<16x128x128xf32, #tpu.memory_space<vmem>>, vector<1x16x128xf32>,
    %132 = vector.extract_strided_slice %119 {offsets = [48, 0], sizes = [16, 128], strides = [1, 1]} : vector<128x128xf32> to vector<16x128xf32>
    %c12_89 = arith.constant 12 : index
    %c48_90 = arith.constant 48 : index
    %c0_91 = arith.constant 0 : index
    %133 = vector.load %arg7[%c12_89, %c48_90, %c0_91] : memref<16x128x128xf32, #tpu.memory_space<vmem>>, vector<1x16x128xf32>
    %134 = vector.shape_cast %133 : vector<1x16x128xf32> to vector<16x128xf32>
    %135 = vector.shape_cast %132 : vector<16x128xf32> to vector<1x16x128xf32>
    tpu.vector_store %arg7[%c12_89, %c48_90, %c0_91], %135 {strides = array<i32>} : memref<16x128x128xf32, #tpu.memory_space<vmem>>, vector<1x16x128xf32>,
    %136 = vector.extract_strided_slice %119 {offsets = [64, 0], sizes = [16, 128], strides = [1, 1]} : vector<128x128xf32> to vector<16x128xf32>
    %c3_92 = arith.constant 3 : index
    %c64_93 = arith.constant 64 : index
    %c0_94 = arith.constant 0 : index
    %137 = vector.load %arg7[%c3_92, %c64_93, %c0_94] : memref<16x128x128xf32, #tpu.memory_space<vmem>>, vector<1x16x128xf32>
    %138 = vector.shape_cast %137 : vector<1x16x128xf32> to vector<16x128xf32>
    %139 = vector.shape_cast %136 : vector<16x128xf32> to vector<1x16x128xf32>
    tpu.vector_store %arg7[%c3_92, %c64_93, %c0_94], %139 {strides = array<i32>} : memref<16x128x128xf32, #tpu.memory_space<vmem>>, vector<1x16x128xf32>,
    %140 = vector.extract_strided_slice %119 {offsets = [80, 0], sizes = [16, 128], strides = [1, 1]} : vector<128x128xf32> to vector<16x128xf32>
    %c12_95 = arith.constant 12 : index
    %c80_96 = arith.constant 80 : index
    %c0_97 = arith.constant 0 : index
    %141 = vector.load %arg7[%c12_95, %c80_96, %c0_97] : memref<16x128x128xf32, #tpu.memory_space<vmem>>, vector<1x16x128xf32>
    %142 = vector.shape_cast %141 : vector<1x16x128xf32> to vector<16x128xf32>
    %143 = vector.shape_cast %140 : vector<16x128xf32> to vector<1x16x128xf32>
    tpu.vector_store %arg7[%c12_95, %c80_96, %c0_97], %143 {strides = array<i32>} : memref<16x128x128xf32, #tpu.memory_space<vmem>>, vector<1x16x128xf32>,
    %144 = vector.extract_strided_slice %119 {offsets = [96, 0], sizes = [16, 128], strides = [1, 1]} : vector<128x128xf32> to vector<16x128xf32>
    %c3_98 = arith.constant 3 : index
    %c96_99 = arith.constant 96 : index
    %c0_100 = arith.constant 0 : index
    %145 = vector.load %arg7[%c3_98, %c96_99, %c0_100] : memref<16x128x128xf32, #tpu.memory_space<vmem>>, vector<1x16x128xf32>
    %146 = vector.shape_cast %145 : vector<1x16x128xf32> to vector<16x128xf32>
    %147 = vector.shape_cast %144 : vector<16x128xf32> to vector<1x16x128xf32>
    tpu.vector_store %arg7[%c3_98, %c96_99, %c0_100], %147 {strides = array<i32>} : memref<16x128x128xf32, #tpu.memory_space<vmem>>, vector<1x16x128xf32>,
    %148 = vector.extract_strided_slice %119 {offsets = [112, 0], sizes = [16, 128], strides = [1, 1]} : vector<128x128xf32> to vector<16x128xf32>
    %c12_101 = arith.constant 12 : index
    %c112_102 = arith.constant 112 : index
    %c0_103 = arith.constant 0 : index
    %149 = vector.load %arg7[%c12_101, %c112_102, %c0_103] : memref<16x128x128xf32, #tpu.memory_space<vmem>>, vector<1x16x128xf32>
    %150 = vector.shape_cast %149 : vector<1x16x128xf32> to vector<16x128xf32>
    %151 = vector.shape_cast %148 : vector<16x128xf32> to vector<1x16x128xf32>
    tpu.vector_store %arg7[%c12_101, %c112_102, %c0_103], %151 {strides = array<i32>} : memref<16x128x128xf32, #tpu.memory_space<vmem>>, vector<1x16x128xf32>,
    %c4 = arith.constant 4 : index
    %c0_104 = arith.constant 0 : index
    %c0_105 = arith.constant 0 : index
    %152 = vector.load %arg1[%c4, %c0_104, %c0_105] : memref<16x32x128xf32, #tpu.memory_space<vmem>>, vector<1x32x128xf32>
    %153 = vector.shape_cast %152 : vector<1x32x128xf32> to vector<32x128xf32>
    %cst_106 = arith.constant dense<0.000000e+00> : vector<128x128xf32>
    %154 = tpu.matmul %0, %153, %cst_106 {dimension_numbers = #tpu.dot_dimension_numbers<[1], [0], [0], [1], [0, 0, 1, 1], [], []>} : vector<128x32xf32>, vector<32x128xf32>, vector<128x128xf32> -> vector<128x128xf32>
    %155 = vector.broadcast %1 : vector<128x1xf32> to vector<128x128xf32>
    %156 = arith.addf %154, %155 : vector<128x128xf32>
    %157 = vector.extract_strided_slice %156 {offsets = [0, 0], sizes = [16, 128], strides = [1, 1]} : vector<128x128xf32> to vector<16x128xf32>
    %c4_107 = arith.constant 4 : index
    %c0_108 = arith.constant 0 : index
    %c0_109 = arith.constant 0 : index
    %158 = vector.load %arg7[%c4_107, %c0_108, %c0_109] : memref<16x128x128xf32, #tpu.memory_space<vmem>>, vector<1x16x128xf32>
    %159 = vector.shape_cast %158 : vector<1x16x128xf32> to vector<16x128xf32>
    %160 = vector.shape_cast %157 : vector<16x128xf32> to vector<1x16x128xf32>
    tpu.vector_store %arg7[%c4_107, %c0_108, %c0_109], %160 {strides = array<i32>} : memref<16x128x128xf32, #tpu.memory_space<vmem>>, vector<1x16x128xf32>,
    %161 = vector.extract_strided_slice %156 {offsets = [16, 0], sizes = [16, 128], strides = [1, 1]} : vector<128x128xf32> to vector<16x128xf32>
    %c11 = arith.constant 11 : index
    %c16_110 = arith.constant 16 : index
    %c0_111 = arith.constant 0 : index
    %162 = vector.load %arg7[%c11, %c16_110, %c0_111] : memref<16x128x128xf32, #tpu.memory_space<vmem>>, vector<1x16x128xf32>
    %163 = vector.shape_cast %162 : vector<1x16x128xf32> to vector<16x128xf32>
    %164 = vector.shape_cast %161 : vector<16x128xf32> to vector<1x16x128xf32>
    tpu.vector_store %arg7[%c11, %c16_110, %c0_111], %164 {strides = array<i32>} : memref<16x128x128xf32, #tpu.memory_space<vmem>>, vector<1x16x128xf32>,
    %165 = vector.extract_strided_slice %156 {offsets = [32, 0], sizes = [16, 128], strides = [1, 1]} : vector<128x128xf32> to vector<16x128xf32>
    %c4_112 = arith.constant 4 : index
    %c32_113 = arith.constant 32 : index
    %c0_114 = arith.constant 0 : index
    %166 = vector.load %arg7[%c4_112, %c32_113, %c0_114] : memref<16x128x128xf32, #tpu.memory_space<vmem>>, vector<1x16x128xf32>
    %167 = vector.shape_cast %166 : vector<1x16x128xf32> to vector<16x128xf32>
    %168 = vector.shape_cast %165 : vector<16x128xf32> to vector<1x16x128xf32>
    tpu.vector_store %arg7[%c4_112, %c32_113, %c0_114], %168 {strides = array<i32>} : memref<16x128x128xf32, #tpu.memory_space<vmem>>, vector<1x16x128xf32>,
    %169 = vector.extract_strided_slice %156 {offsets = [48, 0], sizes = [16, 128], strides = [1, 1]} : vector<128x128xf32> to vector<16x128xf32>
    %c11_115 = arith.constant 11 : index
    %c48_116 = arith.constant 48 : index
    %c0_117 = arith.constant 0 : index
    %170 = vector.load %arg7[%c11_115, %c48_116, %c0_117] : memref<16x128x128xf32, #tpu.memory_space<vmem>>, vector<1x16x128xf32>
    %171 = vector.shape_cast %170 : vector<1x16x128xf32> to vector<16x128xf32>
    %172 = vector.shape_cast %169 : vector<16x128xf32> to vector<1x16x128xf32>
    tpu.vector_store %arg7[%c11_115, %c48_116, %c0_117], %172 {strides = array<i32>} : memref<16x128x128xf32, #tpu.memory_space<vmem>>, vector<1x16x128xf32>,
    %173 = vector.extract_strided_slice %156 {offsets = [64, 0], sizes = [16, 128], strides = [1, 1]} : vector<128x128xf32> to vector<16x128xf32>
    %c4_118 = arith.constant 4 : index
    %c64_119 = arith.constant 64 : index
    %c0_120 = arith.constant 0 : index
    %174 = vector.load %arg7[%c4_118, %c64_119, %c0_120] : memref<16x128x128xf32, #tpu.memory_space<vmem>>, vector<1x16x128xf32>
    %175 = vector.shape_cast %174 : vector<1x16x128xf32> to vector<16x128xf32>
    %176 = vector.shape_cast %173 : vector<16x128xf32> to vector<1x16x128xf32>
    tpu.vector_store %arg7[%c4_118, %c64_119, %c0_120], %176 {strides = array<i32>} : memref<16x128x128xf32, #tpu.memory_space<vmem>>, vector<1x16x128xf32>,
    %177 = vector.extract_strided_slice %156 {offsets = [80, 0], sizes = [16, 128], strides = [1, 1]} : vector<128x128xf32> to vector<16x128xf32>
    %c11_121 = arith.constant 11 : index
    %c80_122 = arith.constant 80 : index
    %c0_123 = arith.constant 0 : index
    %178 = vector.load %arg7[%c11_121, %c80_122, %c0_123] : memref<16x128x128xf32, #tpu.memory_space<vmem>>, vector<1x16x128xf32>
    %179 = vector.shape_cast %178 : vector<1x16x128xf32> to vector<16x128xf32>
    %180 = vector.shape_cast %177 : vector<16x128xf32> to vector<1x16x128xf32>
    tpu.vector_store %arg7[%c11_121, %c80_122, %c0_123], %180 {strides = array<i32>} : memref<16x128x128xf32, #tpu.memory_space<vmem>>, vector<1x16x128xf32>,
    %181 = vector.extract_strided_slice %156 {offsets = [96, 0], sizes = [16, 128], strides = [1, 1]} : vector<128x128xf32> to vector<16x128xf32>
    %c4_124 = arith.constant 4 : index
    %c96_125 = arith.constant 96 : index
    %c0_126 = arith.constant 0 : index
    %182 = vector.load %arg7[%c4_124, %c96_125, %c0_126] : memref<16x128x128xf32, #tpu.memory_space<vmem>>, vector<1x16x128xf32>
    %183 = vector.shape_cast %182 : vector<1x16x128xf32> to vector<16x128xf32>
    %184 = vector.shape_cast %181 : vector<16x128xf32> to vector<1x16x128xf32>
    tpu.vector_store %arg7[%c4_124, %c96_125, %c0_126], %184 {strides = array<i32>} : memref<16x128x128xf32, #tpu.memory_space<vmem>>, vector<1x16x128xf32>,
    %185 = vector.extract_strided_slice %156 {offsets = [112, 0], sizes = [16, 128], strides = [1, 1]} : vector<128x128xf32> to vector<16x128xf32>
    %c11_127 = arith.constant 11 : index
    %c112_128 = arith.constant 112 : index
    %c0_129 = arith.constant 0 : index
    %186 = vector.load %arg7[%c11_127, %c112_128, %c0_129] : memref<16x128x128xf32, #tpu.memory_space<vmem>>, vector<1x16x128xf32>
    %187 = vector.shape_cast %186 : vector<1x16x128xf32> to vector<16x128xf32>
    %188 = vector.shape_cast %185 : vector<16x128xf32> to vector<1x16x128xf32>
    tpu.vector_store %arg7[%c11_127, %c112_128, %c0_129], %188 {strides = array<i32>} : memref<16x128x128xf32, #tpu.memory_space<vmem>>, vector<1x16x128xf32>,
    %c5 = arith.constant 5 : index
    %c0_130 = arith.constant 0 : index
    %c0_131 = arith.constant 0 : index
    %189 = vector.load %arg1[%c5, %c0_130, %c0_131] : memref<16x32x128xf32, #tpu.memory_space<vmem>>, vector<1x32x128xf32>
    %190 = vector.shape_cast %189 : vector<1x32x128xf32> to vector<32x128xf32>
    %cst_132 = arith.constant dense<0.000000e+00> : vector<128x128xf32>
    %191 = tpu.matmul %0, %190, %cst_132 {dimension_numbers = #tpu.dot_dimension_numbers<[1], [0], [0], [1], [0, 0, 1, 1], [], []>} : vector<128x32xf32>, vector<32x128xf32>, vector<128x128xf32> -> vector<128x128xf32>
    %192 = vector.broadcast %1 : vector<128x1xf32> to vector<128x128xf32>
    %193 = arith.addf %191, %192 : vector<128x128xf32>
    %194 = vector.extract_strided_slice %193 {offsets = [0, 0], sizes = [16, 128], strides = [1, 1]} : vector<128x128xf32> to vector<16x128xf32>
    %c5_133 = arith.constant 5 : index
    %c0_134 = arith.constant 0 : index
    %c0_135 = arith.constant 0 : index
    %195 = vector.load %arg7[%c5_133, %c0_134, %c0_135] : memref<16x128x128xf32, #tpu.memory_space<vmem>>, vector<1x16x128xf32>
    %196 = vector.shape_cast %195 : vector<1x16x128xf32> to vector<16x128xf32>
    %197 = vector.shape_cast %194 : vector<16x128xf32> to vector<1x16x128xf32>
    tpu.vector_store %arg7[%c5_133, %c0_134, %c0_135], %197 {strides = array<i32>} : memref<16x128x128xf32, #tpu.memory_space<vmem>>, vector<1x16x128xf32>,
    %198 = vector.extract_strided_slice %193 {offsets = [16, 0], sizes = [16, 128], strides = [1, 1]} : vector<128x128xf32> to vector<16x128xf32>
    %c10 = arith.constant 10 : index
    %c16_136 = arith.constant 16 : index
    %c0_137 = arith.constant 0 : index
    %199 = vector.load %arg7[%c10, %c16_136, %c0_137] : memref<16x128x128xf32, #tpu.memory_space<vmem>>, vector<1x16x128xf32>
    %200 = vector.shape_cast %199 : vector<1x16x128xf32> to vector<16x128xf32>
    %201 = vector.shape_cast %198 : vector<16x128xf32> to vector<1x16x128xf32>
    tpu.vector_store %arg7[%c10, %c16_136, %c0_137], %201 {strides = array<i32>} : memref<16x128x128xf32, #tpu.memory_space<vmem>>, vector<1x16x128xf32>,
    %202 = vector.extract_strided_slice %193 {offsets = [32, 0], sizes = [16, 128], strides = [1, 1]} : vector<128x128xf32> to vector<16x128xf32>
    %c5_138 = arith.constant 5 : index
    %c32_139 = arith.constant 32 : index
    %c0_140 = arith.constant 0 : index
    %203 = vector.load %arg7[%c5_138, %c32_139, %c0_140] : memref<16x128x128xf32, #tpu.memory_space<vmem>>, vector<1x16x128xf32>
    %204 = vector.shape_cast %203 : vector<1x16x128xf32> to vector<16x128xf32>
    %205 = vector.shape_cast %202 : vector<16x128xf32> to vector<1x16x128xf32>
    tpu.vector_store %arg7[%c5_138, %c32_139, %c0_140], %205 {strides = array<i32>} : memref<16x128x128xf32, #tpu.memory_space<vmem>>, vector<1x16x128xf32>,
    %206 = vector.extract_strided_slice %193 {offsets = [48, 0], sizes = [16, 128], strides = [1, 1]} : vector<128x128xf32> to vector<16x128xf32>
    %c10_141 = arith.constant 10 : index
    %c48_142 = arith.constant 48 : index
    %c0_143 = arith.constant 0 : index
    %207 = vector.load %arg7[%c10_141, %c48_142, %c0_143] : memref<16x128x128xf32, #tpu.memory_space<vmem>>, vector<1x16x128xf32>
    %208 = vector.shape_cast %207 : vector<1x16x128xf32> to vector<16x128xf32>
    %209 = vector.shape_cast %206 : vector<16x128xf32> to vector<1x16x128xf32>
    tpu.vector_store %arg7[%c10_141, %c48_142, %c0_143], %209 {strides = array<i32>} : memref<16x128x128xf32, #tpu.memory_space<vmem>>, vector<1x16x128xf32>,
    %210 = vector.extract_strided_slice %193 {offsets = [64, 0], sizes = [16, 128], strides = [1, 1]} : vector<128x128xf32> to vector<16x128xf32>
    %c5_144 = arith.constant 5 : index
    %c64_145 = arith.constant 64 : index
    %c0_146 = arith.constant 0 : index
    %211 = vector.load %arg7[%c5_144, %c64_145, %c0_146] : memref<16x128x128xf32, #tpu.memory_space<vmem>>, vector<1x16x128xf32>
    %212 = vector.shape_cast %211 : vector<1x16x128xf32> to vector<16x128xf32>
    %213 = vector.shape_cast %210 : vector<16x128xf32> to vector<1x16x128xf32>
    tpu.vector_store %arg7[%c5_144, %c64_145, %c0_146], %213 {strides = array<i32>} : memref<16x128x128xf32, #tpu.memory_space<vmem>>, vector<1x16x128xf32>,
    %214 = vector.extract_strided_slice %193 {offsets = [80, 0], sizes = [16, 128], strides = [1, 1]} : vector<128x128xf32> to vector<16x128xf32>
    %c10_147 = arith.constant 10 : index
    %c80_148 = arith.constant 80 : index
    %c0_149 = arith.constant 0 : index
    %215 = vector.load %arg7[%c10_147, %c80_148, %c0_149] : memref<16x128x128xf32, #tpu.memory_space<vmem>>, vector<1x16x128xf32>
    %216 = vector.shape_cast %215 : vector<1x16x128xf32> to vector<16x128xf32>
    %217 = vector.shape_cast %214 : vector<16x128xf32> to vector<1x16x128xf32>
    tpu.vector_store %arg7[%c10_147, %c80_148, %c0_149], %217 {strides = array<i32>} : memref<16x128x128xf32, #tpu.memory_space<vmem>>, vector<1x16x128xf32>,
    %218 = vector.extract_strided_slice %193 {offsets = [96, 0], sizes = [16, 128], strides = [1, 1]} : vector<128x128xf32> to vector<16x128xf32>
    %c5_150 = arith.constant 5 : index
    %c96_151 = arith.constant 96 : index
    %c0_152 = arith.constant 0 : index
    %219 = vector.load %arg7[%c5_150, %c96_151, %c0_152] : memref<16x128x128xf32, #tpu.memory_space<vmem>>, vector<1x16x128xf32>
    %220 = vector.shape_cast %219 : vector<1x16x128xf32> to vector<16x128xf32>
    %221 = vector.shape_cast %218 : vector<16x128xf32> to vector<1x16x128xf32>
    tpu.vector_store %arg7[%c5_150, %c96_151, %c0_152], %221 {strides = array<i32>} : memref<16x128x128xf32, #tpu.memory_space<vmem>>, vector<1x16x128xf32>,
    %222 = vector.extract_strided_slice %193 {offsets = [112, 0], sizes = [16, 128], strides = [1, 1]} : vector<128x128xf32> to vector<16x128xf32>
    %c10_153 = arith.constant 10 : index
    %c112_154 = arith.constant 112 : index
    %c0_155 = arith.constant 0 : index
    %223 = vector.load %arg7[%c10_153, %c112_154, %c0_155] : memref<16x128x128xf32, #tpu.memory_space<vmem>>, vector<1x16x128xf32>
    %224 = vector.shape_cast %223 : vector<1x16x128xf32> to vector<16x128xf32>
    %225 = vector.shape_cast %222 : vector<16x128xf32> to vector<1x16x128xf32>
    tpu.vector_store %arg7[%c10_153, %c112_154, %c0_155], %225 {strides = array<i32>} : memref<16x128x128xf32, #tpu.memory_space<vmem>>, vector<1x16x128xf32>,
    %c6 = arith.constant 6 : index
    %c0_156 = arith.constant 0 : index
    %c0_157 = arith.constant 0 : index
    %226 = vector.load %arg1[%c6, %c0_156, %c0_157] : memref<16x32x128xf32, #tpu.memory_space<vmem>>, vector<1x32x128xf32>
    %227 = vector.shape_cast %226 : vector<1x32x128xf32> to vector<32x128xf32>
    %cst_158 = arith.constant dense<0.000000e+00> : vector<128x128xf32>
    %228 = tpu.matmul %0, %227, %cst_158 {dimension_numbers = #tpu.dot_dimension_numbers<[1], [0], [0], [1], [0, 0, 1, 1], [], []>} : vector<128x32xf32>, vector<32x128xf32>, vector<128x128xf32> -> vector<128x128xf32>
    %229 = vector.broadcast %1 : vector<128x1xf32> to vector<128x128xf32>
    %230 = arith.addf %228, %229 : vector<128x128xf32>
    %231 = vector.extract_strided_slice %230 {offsets = [0, 0], sizes = [16, 128], strides = [1, 1]} : vector<128x128xf32> to vector<16x128xf32>
    %c6_159 = arith.constant 6 : index
    %c0_160 = arith.constant 0 : index
    %c0_161 = arith.constant 0 : index
    %232 = vector.load %arg7[%c6_159, %c0_160, %c0_161] : memref<16x128x128xf32, #tpu.memory_space<vmem>>, vector<1x16x128xf32>
    %233 = vector.shape_cast %232 : vector<1x16x128xf32> to vector<16x128xf32>
    %234 = vector.shape_cast %231 : vector<16x128xf32> to vector<1x16x128xf32>
    tpu.vector_store %arg7[%c6_159, %c0_160, %c0_161], %234 {strides = array<i32>} : memref<16x128x128xf32, #tpu.memory_space<vmem>>, vector<1x16x128xf32>,
    %235 = vector.extract_strided_slice %230 {offsets = [16, 0], sizes = [16, 128], strides = [1, 1]} : vector<128x128xf32> to vector<16x128xf32>
    %c9 = arith.constant 9 : index
    %c16_162 = arith.constant 16 : index
    %c0_163 = arith.constant 0 : index
    %236 = vector.load %arg7[%c9, %c16_162, %c0_163] : memref<16x128x128xf32, #tpu.memory_space<vmem>>, vector<1x16x128xf32>
    %237 = vector.shape_cast %236 : vector<1x16x128xf32> to vector<16x128xf32>
    %238 = vector.shape_cast %235 : vector<16x128xf32> to vector<1x16x128xf32>
    tpu.vector_store %arg7[%c9, %c16_162, %c0_163], %238 {strides = array<i32>} : memref<16x128x128xf32, #tpu.memory_space<vmem>>, vector<1x16x128xf32>,
    %239 = vector.extract_strided_slice %230 {offsets = [32, 0], sizes = [16, 128], strides = [1, 1]} : vector<128x128xf32> to vector<16x128xf32>
    %c6_164 = arith.constant 6 : index
    %c32_165 = arith.constant 32 : index
    %c0_166 = arith.constant 0 : index
    %240 = vector.load %arg7[%c6_164, %c32_165, %c0_166] : memref<16x128x128xf32, #tpu.memory_space<vmem>>, vector<1x16x128xf32>
    %241 = vector.shape_cast %240 : vector<1x16x128xf32> to vector<16x128xf32>
    %242 = vector.shape_cast %239 : vector<16x128xf32> to vector<1x16x128xf32>
    tpu.vector_store %arg7[%c6_164, %c32_165, %c0_166], %242 {strides = array<i32>} : memref<16x128x128xf32, #tpu.memory_space<vmem>>, vector<1x16x128xf32>,
    %243 = vector.extract_strided_slice %230 {offsets = [48, 0], sizes = [16, 128], strides = [1, 1]} : vector<128x128xf32> to vector<16x128xf32>
    %c9_167 = arith.constant 9 : index
    %c48_168 = arith.constant 48 : index
    %c0_169 = arith.constant 0 : index
    %244 = vector.load %arg7[%c9_167, %c48_168, %c0_169] : memref<16x128x128xf32, #tpu.memory_space<vmem>>, vector<1x16x128xf32>
    %245 = vector.shape_cast %244 : vector<1x16x128xf32> to vector<16x128xf32>
    %246 = vector.shape_cast %243 : vector<16x128xf32> to vector<1x16x128xf32>
    tpu.vector_store %arg7[%c9_167, %c48_168, %c0_169], %246 {strides = array<i32>} : memref<16x128x128xf32, #tpu.memory_space<vmem>>, vector<1x16x128xf32>,
    %247 = vector.extract_strided_slice %230 {offsets = [64, 0], sizes = [16, 128], strides = [1, 1]} : vector<128x128xf32> to vector<16x128xf32>
    %c6_170 = arith.constant 6 : index
    %c64_171 = arith.constant 64 : index
    %c0_172 = arith.constant 0 : index
    %248 = vector.load %arg7[%c6_170, %c64_171, %c0_172] : memref<16x128x128xf32, #tpu.memory_space<vmem>>, vector<1x16x128xf32>
    %249 = vector.shape_cast %248 : vector<1x16x128xf32> to vector<16x128xf32>
    %250 = vector.shape_cast %247 : vector<16x128xf32> to vector<1x16x128xf32>
    tpu.vector_store %arg7[%c6_170, %c64_171, %c0_172], %250 {strides = array<i32>} : memref<16x128x128xf32, #tpu.memory_space<vmem>>, vector<1x16x128xf32>,
    %251 = vector.extract_strided_slice %230 {offsets = [80, 0], sizes = [16, 128], strides = [1, 1]} : vector<128x128xf32> to vector<16x128xf32>
    %c9_173 = arith.constant 9 : index
    %c80_174 = arith.constant 80 : index
    %c0_175 = arith.constant 0 : index
    %252 = vector.load %arg7[%c9_173, %c80_174, %c0_175] : memref<16x128x128xf32, #tpu.memory_space<vmem>>, vector<1x16x128xf32>
    %253 = vector.shape_cast %252 : vector<1x16x128xf32> to vector<16x128xf32>
    %254 = vector.shape_cast %251 : vector<16x128xf32> to vector<1x16x128xf32>
    tpu.vector_store %arg7[%c9_173, %c80_174, %c0_175], %254 {strides = array<i32>} : memref<16x128x128xf32, #tpu.memory_space<vmem>>, vector<1x16x128xf32>,
    %255 = vector.extract_strided_slice %230 {offsets = [96, 0], sizes = [16, 128], strides = [1, 1]} : vector<128x128xf32> to vector<16x128xf32>
    %c6_176 = arith.constant 6 : index
    %c96_177 = arith.constant 96 : index
    %c0_178 = arith.constant 0 : index
    %256 = vector.load %arg7[%c6_176, %c96_177, %c0_178] : memref<16x128x128xf32, #tpu.memory_space<vmem>>, vector<1x16x128xf32>
    %257 = vector.shape_cast %256 : vector<1x16x128xf32> to vector<16x128xf32>
    %258 = vector.shape_cast %255 : vector<16x128xf32> to vector<1x16x128xf32>
    tpu.vector_store %arg7[%c6_176, %c96_177, %c0_178], %258 {strides = array<i32>} : memref<16x128x128xf32, #tpu.memory_space<vmem>>, vector<1x16x128xf32>,
    %259 = vector.extract_strided_slice %230 {offsets = [112, 0], sizes = [16, 128], strides = [1, 1]} : vector<128x128xf32> to vector<16x128xf32>
    %c9_179 = arith.constant 9 : index
    %c112_180 = arith.constant 112 : index
    %c0_181 = arith.constant 0 : index
    %260 = vector.load %arg7[%c9_179, %c112_180, %c0_181] : memref<16x128x128xf32, #tpu.memory_space<vmem>>, vector<1x16x128xf32>
    %261 = vector.shape_cast %260 : vector<1x16x128xf32> to vector<16x128xf32>
    %262 = vector.shape_cast %259 : vector<16x128xf32> to vector<1x16x128xf32>
    tpu.vector_store %arg7[%c9_179, %c112_180, %c0_181], %262 {strides = array<i32>} : memref<16x128x128xf32, #tpu.memory_space<vmem>>, vector<1x16x128xf32>,
    %c7 = arith.constant 7 : index
    %c0_182 = arith.constant 0 : index
    %c0_183 = arith.constant 0 : index
    %263 = vector.load %arg1[%c7, %c0_182, %c0_183] : memref<16x32x128xf32, #tpu.memory_space<vmem>>, vector<1x32x128xf32>
    %264 = vector.shape_cast %263 : vector<1x32x128xf32> to vector<32x128xf32>
    %cst_184 = arith.constant dense<0.000000e+00> : vector<128x128xf32>
    %265 = tpu.matmul %0, %264, %cst_184 {dimension_numbers = #tpu.dot_dimension_numbers<[1], [0], [0], [1], [0, 0, 1, 1], [], []>} : vector<128x32xf32>, vector<32x128xf32>, vector<128x128xf32> -> vector<128x128xf32>
    %266 = vector.broadcast %1 : vector<128x1xf32> to vector<128x128xf32>
    %267 = arith.addf %265, %266 : vector<128x128xf32>
    %268 = vector.extract_strided_slice %267 {offsets = [0, 0], sizes = [16, 128], strides = [1, 1]} : vector<128x128xf32> to vector<16x128xf32>
    %c7_185 = arith.constant 7 : index
    %c0_186 = arith.constant 0 : index
    %c0_187 = arith.constant 0 : index
    %269 = vector.load %arg7[%c7_185, %c0_186, %c0_187] : memref<16x128x128xf32, #tpu.memory_space<vmem>>, vector<1x16x128xf32>
    %270 = vector.shape_cast %269 : vector<1x16x128xf32> to vector<16x128xf32>
    %271 = vector.shape_cast %268 : vector<16x128xf32> to vector<1x16x128xf32>
    tpu.vector_store %arg7[%c7_185, %c0_186, %c0_187], %271 {strides = array<i32>} : memref<16x128x128xf32, #tpu.memory_space<vmem>>, vector<1x16x128xf32>,
    %272 = vector.extract_strided_slice %267 {offsets = [16, 0], sizes = [16, 128], strides = [1, 1]} : vector<128x128xf32> to vector<16x128xf32>
    %c8 = arith.constant 8 : index
    %c16_188 = arith.constant 16 : index
    %c0_189 = arith.constant 0 : index
    %273 = vector.load %arg7[%c8, %c16_188, %c0_189] : memref<16x128x128xf32, #tpu.memory_space<vmem>>, vector<1x16x128xf32>
    %274 = vector.shape_cast %273 : vector<1x16x128xf32> to vector<16x128xf32>
    %275 = vector.shape_cast %272 : vector<16x128xf32> to vector<1x16x128xf32>
    tpu.vector_store %arg7[%c8, %c16_188, %c0_189], %275 {strides = array<i32>} : memref<16x128x128xf32, #tpu.memory_space<vmem>>, vector<1x16x128xf32>,
    %276 = vector.extract_strided_slice %267 {offsets = [32, 0], sizes = [16, 128], strides = [1, 1]} : vector<128x128xf32> to vector<16x128xf32>
    %c7_190 = arith.constant 7 : index
    %c32_191 = arith.constant 32 : index
    %c0_192 = arith.constant 0 : index
    %277 = vector.load %arg7[%c7_190, %c32_191, %c0_192] : memref<16x128x128xf32, #tpu.memory_space<vmem>>, vector<1x16x128xf32>
    %278 = vector.shape_cast %277 : vector<1x16x128xf32> to vector<16x128xf32>
    %279 = vector.shape_cast %276 : vector<16x128xf32> to vector<1x16x128xf32>
    tpu.vector_store %arg7[%c7_190, %c32_191, %c0_192], %279 {strides = array<i32>} : memref<16x128x128xf32, #tpu.memory_space<vmem>>, vector<1x16x128xf32>,
    %280 = vector.extract_strided_slice %267 {offsets = [48, 0], sizes = [16, 128], strides = [1, 1]} : vector<128x128xf32> to vector<16x128xf32>
    %c8_193 = arith.constant 8 : index
    %c48_194 = arith.constant 48 : index
    %c0_195 = arith.constant 0 : index
    %281 = vector.load %arg7[%c8_193, %c48_194, %c0_195] : memref<16x128x128xf32, #tpu.memory_space<vmem>>, vector<1x16x128xf32>
    %282 = vector.shape_cast %281 : vector<1x16x128xf32> to vector<16x128xf32>
    %283 = vector.shape_cast %280 : vector<16x128xf32> to vector<1x16x128xf32>
    tpu.vector_store %arg7[%c8_193, %c48_194, %c0_195], %283 {strides = array<i32>} : memref<16x128x128xf32, #tpu.memory_space<vmem>>, vector<1x16x128xf32>,
    %284 = vector.extract_strided_slice %267 {offsets = [64, 0], sizes = [16, 128], strides = [1, 1]} : vector<128x128xf32> to vector<16x128xf32>
    %c7_196 = arith.constant 7 : index
    %c64_197 = arith.constant 64 : index
    %c0_198 = arith.constant 0 : index
    %285 = vector.load %arg7[%c7_196, %c64_197, %c0_198] : memref<16x128x128xf32, #tpu.memory_space<vmem>>, vector<1x16x128xf32>
    %286 = vector.shape_cast %285 : vector<1x16x128xf32> to vector<16x128xf32>
    %287 = vector.shape_cast %284 : vector<16x128xf32> to vector<1x16x128xf32>
    tpu.vector_store %arg7[%c7_196, %c64_197, %c0_198], %287 {strides = array<i32>} : memref<16x128x128xf32, #tpu.memory_space<vmem>>, vector<1x16x128xf32>,
    %288 = vector.extract_strided_slice %267 {offsets = [80, 0], sizes = [16, 128], strides = [1, 1]} : vector<128x128xf32> to vector<16x128xf32>
    %c8_199 = arith.constant 8 : index
    %c80_200 = arith.constant 80 : index
    %c0_201 = arith.constant 0 : index
    %289 = vector.load %arg7[%c8_199, %c80_200, %c0_201] : memref<16x128x128xf32, #tpu.memory_space<vmem>>, vector<1x16x128xf32>
    %290 = vector.shape_cast %289 : vector<1x16x128xf32> to vector<16x128xf32>
    %291 = vector.shape_cast %288 : vector<16x128xf32> to vector<1x16x128xf32>
    tpu.vector_store %arg7[%c8_199, %c80_200, %c0_201], %291 {strides = array<i32>} : memref<16x128x128xf32, #tpu.memory_space<vmem>>, vector<1x16x128xf32>,
    %292 = vector.extract_strided_slice %267 {offsets = [96, 0], sizes = [16, 128], strides = [1, 1]} : vector<128x128xf32> to vector<16x128xf32>
    %c7_202 = arith.constant 7 : index
    %c96_203 = arith.constant 96 : index
    %c0_204 = arith.constant 0 : index
    %293 = vector.load %arg7[%c7_202, %c96_203, %c0_204] : memref<16x128x128xf32, #tpu.memory_space<vmem>>, vector<1x16x128xf32>
    %294 = vector.shape_cast %293 : vector<1x16x128xf32> to vector<16x128xf32>
    %295 = vector.shape_cast %292 : vector<16x128xf32> to vector<1x16x128xf32>
    tpu.vector_store %arg7[%c7_202, %c96_203, %c0_204], %295 {strides = array<i32>} : memref<16x128x128xf32, #tpu.memory_space<vmem>>, vector<1x16x128xf32>,
    %296 = vector.extract_strided_slice %267 {offsets = [112, 0], sizes = [16, 128], strides = [1, 1]} : vector<128x128xf32> to vector<16x128xf32>
    %c8_205 = arith.constant 8 : index
    %c112_206 = arith.constant 112 : index
    %c0_207 = arith.constant 0 : index
    %297 = vector.load %arg7[%c8_205, %c112_206, %c0_207] : memref<16x128x128xf32, #tpu.memory_space<vmem>>, vector<1x16x128xf32>
    %298 = vector.shape_cast %297 : vector<1x16x128xf32> to vector<16x128xf32>
    %299 = vector.shape_cast %296 : vector<16x128xf32> to vector<1x16x128xf32>
    tpu.vector_store %arg7[%c8_205, %c112_206, %c0_207], %299 {strides = array<i32>} : memref<16x128x128xf32, #tpu.memory_space<vmem>>, vector<1x16x128xf32>,
    %c8_208 = arith.constant 8 : index
    %c0_209 = arith.constant 0 : index
    %c0_210 = arith.constant 0 : index
    %300 = vector.load %arg1[%c8_208, %c0_209, %c0_210] : memref<16x32x128xf32, #tpu.memory_space<vmem>>, vector<1x32x128xf32>
    %301 = vector.shape_cast %300 : vector<1x32x128xf32> to vector<32x128xf32>
    %cst_211 = arith.constant dense<0.000000e+00> : vector<128x128xf32>
    %302 = tpu.matmul %0, %301, %cst_211 {dimension_numbers = #tpu.dot_dimension_numbers<[1], [0], [0], [1], [0, 0, 1, 1], [], []>} : vector<128x32xf32>, vector<32x128xf32>, vector<128x128xf32> -> vector<128x128xf32>
    %303 = vector.broadcast %1 : vector<128x1xf32> to vector<128x128xf32>
    %304 = arith.addf %302, %303 : vector<128x128xf32>
    %305 = vector.extract_strided_slice %304 {offsets = [0, 0], sizes = [16, 128], strides = [1, 1]} : vector<128x128xf32> to vector<16x128xf32>
    %c8_212 = arith.constant 8 : index
    %c0_213 = arith.constant 0 : index
    %c0_214 = arith.constant 0 : index
    %306 = vector.load %arg7[%c8_212, %c0_213, %c0_214] : memref<16x128x128xf32, #tpu.memory_space<vmem>>, vector<1x16x128xf32>
    %307 = vector.shape_cast %306 : vector<1x16x128xf32> to vector<16x128xf32>
    %308 = vector.shape_cast %305 : vector<16x128xf32> to vector<1x16x128xf32>
    tpu.vector_store %arg7[%c8_212, %c0_213, %c0_214], %308 {strides = array<i32>} : memref<16x128x128xf32, #tpu.memory_space<vmem>>, vector<1x16x128xf32>,
    %309 = vector.extract_strided_slice %304 {offsets = [16, 0], sizes = [16, 128], strides = [1, 1]} : vector<128x128xf32> to vector<16x128xf32>
    %c7_215 = arith.constant 7 : index
    %c16_216 = arith.constant 16 : index
    %c0_217 = arith.constant 0 : index
    %310 = vector.load %arg7[%c7_215, %c16_216, %c0_217] : memref<16x128x128xf32, #tpu.memory_space<vmem>>, vector<1x16x128xf32>
    %311 = vector.shape_cast %310 : vector<1x16x128xf32> to vector<16x128xf32>
    %312 = vector.shape_cast %309 : vector<16x128xf32> to vector<1x16x128xf32>
    tpu.vector_store %arg7[%c7_215, %c16_216, %c0_217], %312 {strides = array<i32>} : memref<16x128x128xf32, #tpu.memory_space<vmem>>, vector<1x16x128xf32>,
    %313 = vector.extract_strided_slice %304 {offsets = [32, 0], sizes = [16, 128], strides = [1, 1]} : vector<128x128xf32> to vector<16x128xf32>
    %c8_218 = arith.constant 8 : index
    %c32_219 = arith.constant 32 : index
    %c0_220 = arith.constant 0 : index
    %314 = vector.load %arg7[%c8_218, %c32_219, %c0_220] : memref<16x128x128xf32, #tpu.memory_space<vmem>>, vector<1x16x128xf32>
    %315 = vector.shape_cast %314 : vector<1x16x128xf32> to vector<16x128xf32>
    %316 = vector.shape_cast %313 : vector<16x128xf32> to vector<1x16x128xf32>
    tpu.vector_store %arg7[%c8_218, %c32_219, %c0_220], %316 {strides = array<i32>} : memref<16x128x128xf32, #tpu.memory_space<vmem>>, vector<1x16x128xf32>,
    %317 = vector.extract_strided_slice %304 {offsets = [48, 0], sizes = [16, 128], strides = [1, 1]} : vector<128x128xf32> to vector<16x128xf32>
    %c7_221 = arith.constant 7 : index
    %c48_222 = arith.constant 48 : index
    %c0_223 = arith.constant 0 : index
    %318 = vector.load %arg7[%c7_221, %c48_222, %c0_223] : memref<16x128x128xf32, #tpu.memory_space<vmem>>, vector<1x16x128xf32>
    %319 = vector.shape_cast %318 : vector<1x16x128xf32> to vector<16x128xf32>
    %320 = vector.shape_cast %317 : vector<16x128xf32> to vector<1x16x128xf32>
    tpu.vector_store %arg7[%c7_221, %c48_222, %c0_223], %320 {strides = array<i32>} : memref<16x128x128xf32, #tpu.memory_space<vmem>>, vector<1x16x128xf32>,
    %321 = vector.extract_strided_slice %304 {offsets = [64, 0], sizes = [16, 128], strides = [1, 1]} : vector<128x128xf32> to vector<16x128xf32>
    %c8_224 = arith.constant 8 : index
    %c64_225 = arith.constant 64 : index
    %c0_226 = arith.constant 0 : index
    %322 = vector.load %arg7[%c8_224, %c64_225, %c0_226] : memref<16x128x128xf32, #tpu.memory_space<vmem>>, vector<1x16x128xf32>
    %323 = vector.shape_cast %322 : vector<1x16x128xf32> to vector<16x128xf32>
    %324 = vector.shape_cast %321 : vector<16x128xf32> to vector<1x16x128xf32>
    tpu.vector_store %arg7[%c8_224, %c64_225, %c0_226], %324 {strides = array<i32>} : memref<16x128x128xf32, #tpu.memory_space<vmem>>, vector<1x16x128xf32>,
    %325 = vector.extract_strided_slice %304 {offsets = [80, 0], sizes = [16, 128], strides = [1, 1]} : vector<128x128xf32> to vector<16x128xf32>
    %c7_227 = arith.constant 7 : index
    %c80_228 = arith.constant 80 : index
    %c0_229 = arith.constant 0 : index
    %326 = vector.load %arg7[%c7_227, %c80_228, %c0_229] : memref<16x128x128xf32, #tpu.memory_space<vmem>>, vector<1x16x128xf32>
    %327 = vector.shape_cast %326 : vector<1x16x128xf32> to vector<16x128xf32>
    %328 = vector.shape_cast %325 : vector<16x128xf32> to vector<1x16x128xf32>
    tpu.vector_store %arg7[%c7_227, %c80_228, %c0_229], %328 {strides = array<i32>} : memref<16x128x128xf32, #tpu.memory_space<vmem>>, vector<1x16x128xf32>,
    %329 = vector.extract_strided_slice %304 {offsets = [96, 0], sizes = [16, 128], strides = [1, 1]} : vector<128x128xf32> to vector<16x128xf32>
    %c8_230 = arith.constant 8 : index
    %c96_231 = arith.constant 96 : index
    %c0_232 = arith.constant 0 : index
    %330 = vector.load %arg7[%c8_230, %c96_231, %c0_232] : memref<16x128x128xf32, #tpu.memory_space<vmem>>, vector<1x16x128xf32>
    %331 = vector.shape_cast %330 : vector<1x16x128xf32> to vector<16x128xf32>
    %332 = vector.shape_cast %329 : vector<16x128xf32> to vector<1x16x128xf32>
    tpu.vector_store %arg7[%c8_230, %c96_231, %c0_232], %332 {strides = array<i32>} : memref<16x128x128xf32, #tpu.memory_space<vmem>>, vector<1x16x128xf32>,
    %333 = vector.extract_strided_slice %304 {offsets = [112, 0], sizes = [16, 128], strides = [1, 1]} : vector<128x128xf32> to vector<16x128xf32>
    %c7_233 = arith.constant 7 : index
    %c112_234 = arith.constant 112 : index
    %c0_235 = arith.constant 0 : index
    %334 = vector.load %arg7[%c7_233, %c112_234, %c0_235] : memref<16x128x128xf32, #tpu.memory_space<vmem>>, vector<1x16x128xf32>
    %335 = vector.shape_cast %334 : vector<1x16x128xf32> to vector<16x128xf32>
    %336 = vector.shape_cast %333 : vector<16x128xf32> to vector<1x16x128xf32>
    tpu.vector_store %arg7[%c7_233, %c112_234, %c0_235], %336 {strides = array<i32>} : memref<16x128x128xf32, #tpu.memory_space<vmem>>, vector<1x16x128xf32>,
    %c9_236 = arith.constant 9 : index
    %c0_237 = arith.constant 0 : index
    %c0_238 = arith.constant 0 : index
    %337 = vector.load %arg1[%c9_236, %c0_237, %c0_238] : memref<16x32x128xf32, #tpu.memory_space<vmem>>, vector<1x32x128xf32>
    %338 = vector.shape_cast %337 : vector<1x32x128xf32> to vector<32x128xf32>
    %cst_239 = arith.constant dense<0.000000e+00> : vector<128x128xf32>
    %339 = tpu.matmul %0, %338, %cst_239 {dimension_numbers = #tpu.dot_dimension_numbers<[1], [0], [0], [1], [0, 0, 1, 1], [], []>} : vector<128x32xf32>, vector<32x128xf32>, vector<128x128xf32> -> vector<128x128xf32>
    %340 = vector.broadcast %1 : vector<128x1xf32> to vector<128x128xf32>
    %341 = arith.addf %339, %340 : vector<128x128xf32>
    %342 = vector.extract_strided_slice %341 {offsets = [0, 0], sizes = [16, 128], strides = [1, 1]} : vector<128x128xf32> to vector<16x128xf32>
    %c9_240 = arith.constant 9 : index
    %c0_241 = arith.constant 0 : index
    %c0_242 = arith.constant 0 : index
    %343 = vector.load %arg7[%c9_240, %c0_241, %c0_242] : memref<16x128x128xf32, #tpu.memory_space<vmem>>, vector<1x16x128xf32>
    %344 = vector.shape_cast %343 : vector<1x16x128xf32> to vector<16x128xf32>
    %345 = vector.shape_cast %342 : vector<16x128xf32> to vector<1x16x128xf32>
    tpu.vector_store %arg7[%c9_240, %c0_241, %c0_242], %345 {strides = array<i32>} : memref<16x128x128xf32, #tpu.memory_space<vmem>>, vector<1x16x128xf32>,
    %346 = vector.extract_strided_slice %341 {offsets = [16, 0], sizes = [16, 128], strides = [1, 1]} : vector<128x128xf32> to vector<16x128xf32>
    %c6_243 = arith.constant 6 : index
    %c16_244 = arith.constant 16 : index
    %c0_245 = arith.constant 0 : index
    %347 = vector.load %arg7[%c6_243, %c16_244, %c0_245] : memref<16x128x128xf32, #tpu.memory_space<vmem>>, vector<1x16x128xf32>
    %348 = vector.shape_cast %347 : vector<1x16x128xf32> to vector<16x128xf32>
    %349 = vector.shape_cast %346 : vector<16x128xf32> to vector<1x16x128xf32>
    tpu.vector_store %arg7[%c6_243, %c16_244, %c0_245], %349 {strides = array<i32>} : memref<16x128x128xf32, #tpu.memory_space<vmem>>, vector<1x16x128xf32>,
    %350 = vector.extract_strided_slice %341 {offsets = [32, 0], sizes = [16, 128], strides = [1, 1]} : vector<128x128xf32> to vector<16x128xf32>
    %c9_246 = arith.constant 9 : index
    %c32_247 = arith.constant 32 : index
    %c0_248 = arith.constant 0 : index
    %351 = vector.load %arg7[%c9_246, %c32_247, %c0_248] : memref<16x128x128xf32, #tpu.memory_space<vmem>>, vector<1x16x128xf32>
    %352 = vector.shape_cast %351 : vector<1x16x128xf32> to vector<16x128xf32>
    %353 = vector.shape_cast %350 : vector<16x128xf32> to vector<1x16x128xf32>
    tpu.vector_store %arg7[%c9_246, %c32_247, %c0_248], %353 {strides = array<i32>} : memref<16x128x128xf32, #tpu.memory_space<vmem>>, vector<1x16x128xf32>,
    %354 = vector.extract_strided_slice %341 {offsets = [48, 0], sizes = [16, 128], strides = [1, 1]} : vector<128x128xf32> to vector<16x128xf32>
    %c6_249 = arith.constant 6 : index
    %c48_250 = arith.constant 48 : index
    %c0_251 = arith.constant 0 : index
    %355 = vector.load %arg7[%c6_249, %c48_250, %c0_251] : memref<16x128x128xf32, #tpu.memory_space<vmem>>, vector<1x16x128xf32>
    %356 = vector.shape_cast %355 : vector<1x16x128xf32> to vector<16x128xf32>
    %357 = vector.shape_cast %354 : vector<16x128xf32> to vector<1x16x128xf32>
    tpu.vector_store %arg7[%c6_249, %c48_250, %c0_251], %357 {strides = array<i32>} : memref<16x128x128xf32, #tpu.memory_space<vmem>>, vector<1x16x128xf32>,
    %358 = vector.extract_strided_slice %341 {offsets = [64, 0], sizes = [16, 128], strides = [1, 1]} : vector<128x128xf32> to vector<16x128xf32>
    %c9_252 = arith.constant 9 : index
    %c64_253 = arith.constant 64 : index
    %c0_254 = arith.constant 0 : index
    %359 = vector.load %arg7[%c9_252, %c64_253, %c0_254] : memref<16x128x128xf32, #tpu.memory_space<vmem>>, vector<1x16x128xf32>
    %360 = vector.shape_cast %359 : vector<1x16x128xf32> to vector<16x128xf32>
    %361 = vector.shape_cast %358 : vector<16x128xf32> to vector<1x16x128xf32>
    tpu.vector_store %arg7[%c9_252, %c64_253, %c0_254], %361 {strides = array<i32>} : memref<16x128x128xf32, #tpu.memory_space<vmem>>, vector<1x16x128xf32>,
    %362 = vector.extract_strided_slice %341 {offsets = [80, 0], sizes = [16, 128], strides = [1, 1]} : vector<128x128xf32> to vector<16x128xf32>
    %c6_255 = arith.constant 6 : index
    %c80_256 = arith.constant 80 : index
    %c0_257 = arith.constant 0 : index
    %363 = vector.load %arg7[%c6_255, %c80_256, %c0_257] : memref<16x128x128xf32, #tpu.memory_space<vmem>>, vector<1x16x128xf32>
    %364 = vector.shape_cast %363 : vector<1x16x128xf32> to vector<16x128xf32>
    %365 = vector.shape_cast %362 : vector<16x128xf32> to vector<1x16x128xf32>
    tpu.vector_store %arg7[%c6_255, %c80_256, %c0_257], %365 {strides = array<i32>} : memref<16x128x128xf32, #tpu.memory_space<vmem>>, vector<1x16x128xf32>,
    %366 = vector.extract_strided_slice %341 {offsets = [96, 0], sizes = [16, 128], strides = [1, 1]} : vector<128x128xf32> to vector<16x128xf32>
    %c9_258 = arith.constant 9 : index
    %c96_259 = arith.constant 96 : index
    %c0_260 = arith.constant 0 : index
    %367 = vector.load %arg7[%c9_258, %c96_259, %c0_260] : memref<16x128x128xf32, #tpu.memory_space<vmem>>, vector<1x16x128xf32>
    %368 = vector.shape_cast %367 : vector<1x16x128xf32> to vector<16x128xf32>
    %369 = vector.shape_cast %366 : vector<16x128xf32> to vector<1x16x128xf32>
    tpu.vector_store %arg7[%c9_258, %c96_259, %c0_260], %369 {strides = array<i32>} : memref<16x128x128xf32, #tpu.memory_space<vmem>>, vector<1x16x128xf32>,
    %370 = vector.extract_strided_slice %341 {offsets = [112, 0], sizes = [16, 128], strides = [1, 1]} : vector<128x128xf32> to vector<16x128xf32>
    %c6_261 = arith.constant 6 : index
    %c112_262 = arith.constant 112 : index
    %c0_263 = arith.constant 0 : index
    %371 = vector.load %arg7[%c6_261, %c112_262, %c0_263] : memref<16x128x128xf32, #tpu.memory_space<vmem>>, vector<1x16x128xf32>
    %372 = vector.shape_cast %371 : vector<1x16x128xf32> to vector<16x128xf32>
    %373 = vector.shape_cast %370 : vector<16x128xf32> to vector<1x16x128xf32>
    tpu.vector_store %arg7[%c6_261, %c112_262, %c0_263], %373 {strides = array<i32>} : memref<16x128x128xf32, #tpu.memory_space<vmem>>, vector<1x16x128xf32>,
    %c10_264 = arith.constant 10 : index
    %c0_265 = arith.constant 0 : index
    %c0_266 = arith.constant 0 : index
    %374 = vector.load %arg1[%c10_264, %c0_265, %c0_266] : memref<16x32x128xf32, #tpu.memory_space<vmem>>, vector<1x32x128xf32>
    %375 = vector.shape_cast %374 : vector<1x32x128xf32> to vector<32x128xf32>
    %cst_267 = arith.constant dense<0.000000e+00> : vector<128x128xf32>
    %376 = tpu.matmul %0, %375, %cst_267 {dimension_numbers = #tpu.dot_dimension_numbers<[1], [0], [0], [1], [0, 0, 1, 1], [], []>} : vector<128x32xf32>, vector<32x128xf32>, vector<128x128xf32> -> vector<128x128xf32>
    %377 = vector.broadcast %1 : vector<128x1xf32> to vector<128x128xf32>
    %378 = arith.addf %376, %377 : vector<128x128xf32>
    %379 = vector.extract_strided_slice %378 {offsets = [0, 0], sizes = [16, 128], strides = [1, 1]} : vector<128x128xf32> to vector<16x128xf32>
    %c10_268 = arith.constant 10 : index
    %c0_269 = arith.constant 0 : index
    %c0_270 = arith.constant 0 : index
    %380 = vector.load %arg7[%c10_268, %c0_269, %c0_270] : memref<16x128x128xf32, #tpu.memory_space<vmem>>, vector<1x16x128xf32>
    %381 = vector.shape_cast %380 : vector<1x16x128xf32> to vector<16x128xf32>
    %382 = vector.shape_cast %379 : vector<16x128xf32> to vector<1x16x128xf32>
    tpu.vector_store %arg7[%c10_268, %c0_269, %c0_270], %382 {strides = array<i32>} : memref<16x128x128xf32, #tpu.memory_space<vmem>>, vector<1x16x128xf32>,
    %383 = vector.extract_strided_slice %378 {offsets = [16, 0], sizes = [16, 128], strides = [1, 1]} : vector<128x128xf32> to vector<16x128xf32>
    %c5_271 = arith.constant 5 : index
    %c16_272 = arith.constant 16 : index
    %c0_273 = arith.constant 0 : index
    %384 = vector.load %arg7[%c5_271, %c16_272, %c0_273] : memref<16x128x128xf32, #tpu.memory_space<vmem>>, vector<1x16x128xf32>
    %385 = vector.shape_cast %384 : vector<1x16x128xf32> to vector<16x128xf32>
    %386 = vector.shape_cast %383 : vector<16x128xf32> to vector<1x16x128xf32>
    tpu.vector_store %arg7[%c5_271, %c16_272, %c0_273], %386 {strides = array<i32>} : memref<16x128x128xf32, #tpu.memory_space<vmem>>, vector<1x16x128xf32>,
    %387 = vector.extract_strided_slice %378 {offsets = [32, 0], sizes = [16, 128], strides = [1, 1]} : vector<128x128xf32> to vector<16x128xf32>
    %c10_274 = arith.constant 10 : index
    %c32_275 = arith.constant 32 : index
    %c0_276 = arith.constant 0 : index
    %388 = vector.load %arg7[%c10_274, %c32_275, %c0_276] : memref<16x128x128xf32, #tpu.memory_space<vmem>>, vector<1x16x128xf32>
    %389 = vector.shape_cast %388 : vector<1x16x128xf32> to vector<16x128xf32>
    %390 = vector.shape_cast %387 : vector<16x128xf32> to vector<1x16x128xf32>
    tpu.vector_store %arg7[%c10_274, %c32_275, %c0_276], %390 {strides = array<i32>} : memref<16x128x128xf32, #tpu.memory_space<vmem>>, vector<1x16x128xf32>,
    %391 = vector.extract_strided_slice %378 {offsets = [48, 0], sizes = [16, 128], strides = [1, 1]} : vector<128x128xf32> to vector<16x128xf32>
    %c5_277 = arith.constant 5 : index
    %c48_278 = arith.constant 48 : index
    %c0_279 = arith.constant 0 : index
    %392 = vector.load %arg7[%c5_277, %c48_278, %c0_279] : memref<16x128x128xf32, #tpu.memory_space<vmem>>, vector<1x16x128xf32>
    %393 = vector.shape_cast %392 : vector<1x16x128xf32> to vector<16x128xf32>
    %394 = vector.shape_cast %391 : vector<16x128xf32> to vector<1x16x128xf32>
    tpu.vector_store %arg7[%c5_277, %c48_278, %c0_279], %394 {strides = array<i32>} : memref<16x128x128xf32, #tpu.memory_space<vmem>>, vector<1x16x128xf32>,
    %395 = vector.extract_strided_slice %378 {offsets = [64, 0], sizes = [16, 128], strides = [1, 1]} : vector<128x128xf32> to vector<16x128xf32>
    %c10_280 = arith.constant 10 : index
    %c64_281 = arith.constant 64 : index
    %c0_282 = arith.constant 0 : index
    %396 = vector.load %arg7[%c10_280, %c64_281, %c0_282] : memref<16x128x128xf32, #tpu.memory_space<vmem>>, vector<1x16x128xf32>
    %397 = vector.shape_cast %396 : vector<1x16x128xf32> to vector<16x128xf32>
    %398 = vector.shape_cast %395 : vector<16x128xf32> to vector<1x16x128xf32>
    tpu.vector_store %arg7[%c10_280, %c64_281, %c0_282], %398 {strides = array<i32>} : memref<16x128x128xf32, #tpu.memory_space<vmem>>, vector<1x16x128xf32>,
    %399 = vector.extract_strided_slice %378 {offsets = [80, 0], sizes = [16, 128], strides = [1, 1]} : vector<128x128xf32> to vector<16x128xf32>
    %c5_283 = arith.constant 5 : index
    %c80_284 = arith.constant 80 : index
    %c0_285 = arith.constant 0 : index
    %400 = vector.load %arg7[%c5_283, %c80_284, %c0_285] : memref<16x128x128xf32, #tpu.memory_space<vmem>>, vector<1x16x128xf32>
    %401 = vector.shape_cast %400 : vector<1x16x128xf32> to vector<16x128xf32>
    %402 = vector.shape_cast %399 : vector<16x128xf32> to vector<1x16x128xf32>
    tpu.vector_store %arg7[%c5_283, %c80_284, %c0_285], %402 {strides = array<i32>} : memref<16x128x128xf32, #tpu.memory_space<vmem>>, vector<1x16x128xf32>,
    %403 = vector.extract_strided_slice %378 {offsets = [96, 0], sizes = [16, 128], strides = [1, 1]} : vector<128x128xf32> to vector<16x128xf32>
    %c10_286 = arith.constant 10 : index
    %c96_287 = arith.constant 96 : index
    %c0_288 = arith.constant 0 : index
    %404 = vector.load %arg7[%c10_286, %c96_287, %c0_288] : memref<16x128x128xf32, #tpu.memory_space<vmem>>, vector<1x16x128xf32>
    %405 = vector.shape_cast %404 : vector<1x16x128xf32> to vector<16x128xf32>
    %406 = vector.shape_cast %403 : vector<16x128xf32> to vector<1x16x128xf32>
    tpu.vector_store %arg7[%c10_286, %c96_287, %c0_288], %406 {strides = array<i32>} : memref<16x128x128xf32, #tpu.memory_space<vmem>>, vector<1x16x128xf32>,
    %407 = vector.extract_strided_slice %378 {offsets = [112, 0], sizes = [16, 128], strides = [1, 1]} : vector<128x128xf32> to vector<16x128xf32>
    %c5_289 = arith.constant 5 : index
    %c112_290 = arith.constant 112 : index
    %c0_291 = arith.constant 0 : index
    %408 = vector.load %arg7[%c5_289, %c112_290, %c0_291] : memref<16x128x128xf32, #tpu.memory_space<vmem>>, vector<1x16x128xf32>
    %409 = vector.shape_cast %408 : vector<1x16x128xf32> to vector<16x128xf32>
    %410 = vector.shape_cast %407 : vector<16x128xf32> to vector<1x16x128xf32>
    tpu.vector_store %arg7[%c5_289, %c112_290, %c0_291], %410 {strides = array<i32>} : memref<16x128x128xf32, #tpu.memory_space<vmem>>, vector<1x16x128xf32>,
    %c11_292 = arith.constant 11 : index
    %c0_293 = arith.constant 0 : index
    %c0_294 = arith.constant 0 : index
    %411 = vector.load %arg1[%c11_292, %c0_293, %c0_294] : memref<16x32x128xf32, #tpu.memory_space<vmem>>, vector<1x32x128xf32>
    %412 = vector.shape_cast %411 : vector<1x32x128xf32> to vector<32x128xf32>
    %cst_295 = arith.constant dense<0.000000e+00> : vector<128x128xf32>
    %413 = tpu.matmul %0, %412, %cst_295 {dimension_numbers = #tpu.dot_dimension_numbers<[1], [0], [0], [1], [0, 0, 1, 1], [], []>} : vector<128x32xf32>, vector<32x128xf32>, vector<128x128xf32> -> vector<128x128xf32>
    %414 = vector.broadcast %1 : vector<128x1xf32> to vector<128x128xf32>
    %415 = arith.addf %413, %414 : vector<128x128xf32>
    %416 = vector.extract_strided_slice %415 {offsets = [0, 0], sizes = [16, 128], strides = [1, 1]} : vector<128x128xf32> to vector<16x128xf32>
    %c11_296 = arith.constant 11 : index
    %c0_297 = arith.constant 0 : index
    %c0_298 = arith.constant 0 : index
    %417 = vector.load %arg7[%c11_296, %c0_297, %c0_298] : memref<16x128x128xf32, #tpu.memory_space<vmem>>, vector<1x16x128xf32>
    %418 = vector.shape_cast %417 : vector<1x16x128xf32> to vector<16x128xf32>
    %419 = vector.shape_cast %416 : vector<16x128xf32> to vector<1x16x128xf32>
    tpu.vector_store %arg7[%c11_296, %c0_297, %c0_298], %419 {strides = array<i32>} : memref<16x128x128xf32, #tpu.memory_space<vmem>>, vector<1x16x128xf32>,
    %420 = vector.extract_strided_slice %415 {offsets = [16, 0], sizes = [16, 128], strides = [1, 1]} : vector<128x128xf32> to vector<16x128xf32>
    %c4_299 = arith.constant 4 : index
    %c16_300 = arith.constant 16 : index
    %c0_301 = arith.constant 0 : index
    %421 = vector.load %arg7[%c4_299, %c16_300, %c0_301] : memref<16x128x128xf32, #tpu.memory_space<vmem>>, vector<1x16x128xf32>
    %422 = vector.shape_cast %421 : vector<1x16x128xf32> to vector<16x128xf32>
    %423 = vector.shape_cast %420 : vector<16x128xf32> to vector<1x16x128xf32>
    tpu.vector_store %arg7[%c4_299, %c16_300, %c0_301], %423 {strides = array<i32>} : memref<16x128x128xf32, #tpu.memory_space<vmem>>, vector<1x16x128xf32>,
    %424 = vector.extract_strided_slice %415 {offsets = [32, 0], sizes = [16, 128], strides = [1, 1]} : vector<128x128xf32> to vector<16x128xf32>
    %c11_302 = arith.constant 11 : index
    %c32_303 = arith.constant 32 : index
    %c0_304 = arith.constant 0 : index
    %425 = vector.load %arg7[%c11_302, %c32_303, %c0_304] : memref<16x128x128xf32, #tpu.memory_space<vmem>>, vector<1x16x128xf32>
    %426 = vector.shape_cast %425 : vector<1x16x128xf32> to vector<16x128xf32>
    %427 = vector.shape_cast %424 : vector<16x128xf32> to vector<1x16x128xf32>
    tpu.vector_store %arg7[%c11_302, %c32_303, %c0_304], %427 {strides = array<i32>} : memref<16x128x128xf32, #tpu.memory_space<vmem>>, vector<1x16x128xf32>,
    %428 = vector.extract_strided_slice %415 {offsets = [48, 0], sizes = [16, 128], strides = [1, 1]} : vector<128x128xf32> to vector<16x128xf32>
    %c4_305 = arith.constant 4 : index
    %c48_306 = arith.constant 48 : index
    %c0_307 = arith.constant 0 : index
    %429 = vector.load %arg7[%c4_305, %c48_306, %c0_307] : memref<16x128x128xf32, #tpu.memory_space<vmem>>, vector<1x16x128xf32>
    %430 = vector.shape_cast %429 : vector<1x16x128xf32> to vector<16x128xf32>
    %431 = vector.shape_cast %428 : vector<16x128xf32> to vector<1x16x128xf32>
    tpu.vector_store %arg7[%c4_305, %c48_306, %c0_307], %431 {strides = array<i32>} : memref<16x128x128xf32, #tpu.memory_space<vmem>>, vector<1x16x128xf32>,
    %432 = vector.extract_strided_slice %415 {offsets = [64, 0], sizes = [16, 128], strides = [1, 1]} : vector<128x128xf32> to vector<16x128xf32>
    %c11_308 = arith.constant 11 : index
    %c64_309 = arith.constant 64 : index
    %c0_310 = arith.constant 0 : index
    %433 = vector.load %arg7[%c11_308, %c64_309, %c0_310] : memref<16x128x128xf32, #tpu.memory_space<vmem>>, vector<1x16x128xf32>
    %434 = vector.shape_cast %433 : vector<1x16x128xf32> to vector<16x128xf32>
    %435 = vector.shape_cast %432 : vector<16x128xf32> to vector<1x16x128xf32>
    tpu.vector_store %arg7[%c11_308, %c64_309, %c0_310], %435 {strides = array<i32>} : memref<16x128x128xf32, #tpu.memory_space<vmem>>, vector<1x16x128xf32>,
    %436 = vector.extract_strided_slice %415 {offsets = [80, 0], sizes = [16, 128], strides = [1, 1]} : vector<128x128xf32> to vector<16x128xf32>
    %c4_311 = arith.constant 4 : index
    %c80_312 = arith.constant 80 : index
    %c0_313 = arith.constant 0 : index
    %437 = vector.load %arg7[%c4_311, %c80_312, %c0_313] : memref<16x128x128xf32, #tpu.memory_space<vmem>>, vector<1x16x128xf32>
    %438 = vector.shape_cast %437 : vector<1x16x128xf32> to vector<16x128xf32>
    %439 = vector.shape_cast %436 : vector<16x128xf32> to vector<1x16x128xf32>
    tpu.vector_store %arg7[%c4_311, %c80_312, %c0_313], %439 {strides = array<i32>} : memref<16x128x128xf32, #tpu.memory_space<vmem>>, vector<1x16x128xf32>,
    %440 = vector.extract_strided_slice %415 {offsets = [96, 0], sizes = [16, 128], strides = [1, 1]} : vector<128x128xf32> to vector<16x128xf32>
    %c11_314 = arith.constant 11 : index
    %c96_315 = arith.constant 96 : index
    %c0_316 = arith.constant 0 : index
    %441 = vector.load %arg7[%c11_314, %c96_315, %c0_316] : memref<16x128x128xf32, #tpu.memory_space<vmem>>, vector<1x16x128xf32>
    %442 = vector.shape_cast %441 : vector<1x16x128xf32> to vector<16x128xf32>
    %443 = vector.shape_cast %440 : vector<16x128xf32> to vector<1x16x128xf32>
    tpu.vector_store %arg7[%c11_314, %c96_315, %c0_316], %443 {strides = array<i32>} : memref<16x128x128xf32, #tpu.memory_space<vmem>>, vector<1x16x128xf32>,
    %444 = vector.extract_strided_slice %415 {offsets = [112, 0], sizes = [16, 128], strides = [1, 1]} : vector<128x128xf32> to vector<16x128xf32>
    %c4_317 = arith.constant 4 : index
    %c112_318 = arith.constant 112 : index
    %c0_319 = arith.constant 0 : index
    %445 = vector.load %arg7[%c4_317, %c112_318, %c0_319] : memref<16x128x128xf32, #tpu.memory_space<vmem>>, vector<1x16x128xf32>
    %446 = vector.shape_cast %445 : vector<1x16x128xf32> to vector<16x128xf32>
    %447 = vector.shape_cast %444 : vector<16x128xf32> to vector<1x16x128xf32>
    tpu.vector_store %arg7[%c4_317, %c112_318, %c0_319], %447 {strides = array<i32>} : memref<16x128x128xf32, #tpu.memory_space<vmem>>, vector<1x16x128xf32>,
    %c12_320 = arith.constant 12 : index
    %c0_321 = arith.constant 0 : index
    %c0_322 = arith.constant 0 : index
    %448 = vector.load %arg1[%c12_320, %c0_321, %c0_322] : memref<16x32x128xf32, #tpu.memory_space<vmem>>, vector<1x32x128xf32>
    %449 = vector.shape_cast %448 : vector<1x32x128xf32> to vector<32x128xf32>
    %cst_323 = arith.constant dense<0.000000e+00> : vector<128x128xf32>
    %450 = tpu.matmul %0, %449, %cst_323 {dimension_numbers = #tpu.dot_dimension_numbers<[1], [0], [0], [1], [0, 0, 1, 1], [], []>} : vector<128x32xf32>, vector<32x128xf32>, vector<128x128xf32> -> vector<128x128xf32>
    %451 = vector.broadcast %1 : vector<128x1xf32> to vector<128x128xf32>
    %452 = arith.addf %450, %451 : vector<128x128xf32>
    %453 = vector.extract_strided_slice %452 {offsets = [0, 0], sizes = [16, 128], strides = [1, 1]} : vector<128x128xf32> to vector<16x128xf32>
    %c12_324 = arith.constant 12 : index
    %c0_325 = arith.constant 0 : index
    %c0_326 = arith.constant 0 : index
    %454 = vector.load %arg7[%c12_324, %c0_325, %c0_326] : memref<16x128x128xf32, #tpu.memory_space<vmem>>, vector<1x16x128xf32>
    %455 = vector.shape_cast %454 : vector<1x16x128xf32> to vector<16x128xf32>
    %456 = vector.shape_cast %453 : vector<16x128xf32> to vector<1x16x128xf32>
    tpu.vector_store %arg7[%c12_324, %c0_325, %c0_326], %456 {strides = array<i32>} : memref<16x128x128xf32, #tpu.memory_space<vmem>>, vector<1x16x128xf32>,
    %457 = vector.extract_strided_slice %452 {offsets = [16, 0], sizes = [16, 128], strides = [1, 1]} : vector<128x128xf32> to vector<16x128xf32>
    %c3_327 = arith.constant 3 : index
    %c16_328 = arith.constant 16 : index
    %c0_329 = arith.constant 0 : index
    %458 = vector.load %arg7[%c3_327, %c16_328, %c0_329] : memref<16x128x128xf32, #tpu.memory_space<vmem>>, vector<1x16x128xf32>
    %459 = vector.shape_cast %458 : vector<1x16x128xf32> to vector<16x128xf32>
    %460 = vector.shape_cast %457 : vector<16x128xf32> to vector<1x16x128xf32>
    tpu.vector_store %arg7[%c3_327, %c16_328, %c0_329], %460 {strides = array<i32>} : memref<16x128x128xf32, #tpu.memory_space<vmem>>, vector<1x16x128xf32>,
    %461 = vector.extract_strided_slice %452 {offsets = [32, 0], sizes = [16, 128], strides = [1, 1]} : vector<128x128xf32> to vector<16x128xf32>
    %c12_330 = arith.constant 12 : index
    %c32_331 = arith.constant 32 : index
    %c0_332 = arith.constant 0 : index
    %462 = vector.load %arg7[%c12_330, %c32_331, %c0_332] : memref<16x128x128xf32, #tpu.memory_space<vmem>>, vector<1x16x128xf32>
    %463 = vector.shape_cast %462 : vector<1x16x128xf32> to vector<16x128xf32>
    %464 = vector.shape_cast %461 : vector<16x128xf32> to vector<1x16x128xf32>
    tpu.vector_store %arg7[%c12_330, %c32_331, %c0_332], %464 {strides = array<i32>} : memref<16x128x128xf32, #tpu.memory_space<vmem>>, vector<1x16x128xf32>,
    %465 = vector.extract_strided_slice %452 {offsets = [48, 0], sizes = [16, 128], strides = [1, 1]} : vector<128x128xf32> to vector<16x128xf32>
    %c3_333 = arith.constant 3 : index
    %c48_334 = arith.constant 48 : index
    %c0_335 = arith.constant 0 : index
    %466 = vector.load %arg7[%c3_333, %c48_334, %c0_335] : memref<16x128x128xf32, #tpu.memory_space<vmem>>, vector<1x16x128xf32>
    %467 = vector.shape_cast %466 : vector<1x16x128xf32> to vector<16x128xf32>
    %468 = vector.shape_cast %465 : vector<16x128xf32> to vector<1x16x128xf32>
    tpu.vector_store %arg7[%c3_333, %c48_334, %c0_335], %468 {strides = array<i32>} : memref<16x128x128xf32, #tpu.memory_space<vmem>>, vector<1x16x128xf32>,
    %469 = vector.extract_strided_slice %452 {offsets = [64, 0], sizes = [16, 128], strides = [1, 1]} : vector<128x128xf32> to vector<16x128xf32>
    %c12_336 = arith.constant 12 : index
    %c64_337 = arith.constant 64 : index
    %c0_338 = arith.constant 0 : index
    %470 = vector.load %arg7[%c12_336, %c64_337, %c0_338] : memref<16x128x128xf32, #tpu.memory_space<vmem>>, vector<1x16x128xf32>
    %471 = vector.shape_cast %470 : vector<1x16x128xf32> to vector<16x128xf32>
    %472 = vector.shape_cast %469 : vector<16x128xf32> to vector<1x16x128xf32>
    tpu.vector_store %arg7[%c12_336, %c64_337, %c0_338], %472 {strides = array<i32>} : memref<16x128x128xf32, #tpu.memory_space<vmem>>, vector<1x16x128xf32>,
    %473 = vector.extract_strided_slice %452 {offsets = [80, 0], sizes = [16, 128], strides = [1, 1]} : vector<128x128xf32> to vector<16x128xf32>
    %c3_339 = arith.constant 3 : index
    %c80_340 = arith.constant 80 : index
    %c0_341 = arith.constant 0 : index
    %474 = vector.load %arg7[%c3_339, %c80_340, %c0_341] : memref<16x128x128xf32, #tpu.memory_space<vmem>>, vector<1x16x128xf32>
    %475 = vector.shape_cast %474 : vector<1x16x128xf32> to vector<16x128xf32>
    %476 = vector.shape_cast %473 : vector<16x128xf32> to vector<1x16x128xf32>
    tpu.vector_store %arg7[%c3_339, %c80_340, %c0_341], %476 {strides = array<i32>} : memref<16x128x128xf32, #tpu.memory_space<vmem>>, vector<1x16x128xf32>,
    %477 = vector.extract_strided_slice %452 {offsets = [96, 0], sizes = [16, 128], strides = [1, 1]} : vector<128x128xf32> to vector<16x128xf32>
    %c12_342 = arith.constant 12 : index
    %c96_343 = arith.constant 96 : index
    %c0_344 = arith.constant 0 : index
    %478 = vector.load %arg7[%c12_342, %c96_343, %c0_344] : memref<16x128x128xf32, #tpu.memory_space<vmem>>, vector<1x16x128xf32>
    %479 = vector.shape_cast %478 : vector<1x16x128xf32> to vector<16x128xf32>
    %480 = vector.shape_cast %477 : vector<16x128xf32> to vector<1x16x128xf32>
    tpu.vector_store %arg7[%c12_342, %c96_343, %c0_344], %480 {strides = array<i32>} : memref<16x128x128xf32, #tpu.memory_space<vmem>>, vector<1x16x128xf32>,
    %481 = vector.extract_strided_slice %452 {offsets = [112, 0], sizes = [16, 128], strides = [1, 1]} : vector<128x128xf32> to vector<16x128xf32>
    %c3_345 = arith.constant 3 : index
    %c112_346 = arith.constant 112 : index
    %c0_347 = arith.constant 0 : index
    %482 = vector.load %arg7[%c3_345, %c112_346, %c0_347] : memref<16x128x128xf32, #tpu.memory_space<vmem>>, vector<1x16x128xf32>
    %483 = vector.shape_cast %482 : vector<1x16x128xf32> to vector<16x128xf32>
    %484 = vector.shape_cast %481 : vector<16x128xf32> to vector<1x16x128xf32>
    tpu.vector_store %arg7[%c3_345, %c112_346, %c0_347], %484 {strides = array<i32>} : memref<16x128x128xf32, #tpu.memory_space<vmem>>, vector<1x16x128xf32>,
    %c13_348 = arith.constant 13 : index
    %c0_349 = arith.constant 0 : index
    %c0_350 = arith.constant 0 : index
    %485 = vector.load %arg1[%c13_348, %c0_349, %c0_350] : memref<16x32x128xf32, #tpu.memory_space<vmem>>, vector<1x32x128xf32>
    %486 = vector.shape_cast %485 : vector<1x32x128xf32> to vector<32x128xf32>
    %cst_351 = arith.constant dense<0.000000e+00> : vector<128x128xf32>
    %487 = tpu.matmul %0, %486, %cst_351 {dimension_numbers = #tpu.dot_dimension_numbers<[1], [0], [0], [1], [0, 0, 1, 1], [], []>} : vector<128x32xf32>, vector<32x128xf32>, vector<128x128xf32> -> vector<128x128xf32>
    %488 = vector.broadcast %1 : vector<128x1xf32> to vector<128x128xf32>
    %489 = arith.addf %487, %488 : vector<128x128xf32>
    %490 = vector.extract_strided_slice %489 {offsets = [0, 0], sizes = [16, 128], strides = [1, 1]} : vector<128x128xf32> to vector<16x128xf32>
    %c13_352 = arith.constant 13 : index
    %c0_353 = arith.constant 0 : index
    %c0_354 = arith.constant 0 : index
    %491 = vector.load %arg7[%c13_352, %c0_353, %c0_354] : memref<16x128x128xf32, #tpu.memory_space<vmem>>, vector<1x16x128xf32>
    %492 = vector.shape_cast %491 : vector<1x16x128xf32> to vector<16x128xf32>
    %493 = vector.shape_cast %490 : vector<16x128xf32> to vector<1x16x128xf32>
    tpu.vector_store %arg7[%c13_352, %c0_353, %c0_354], %493 {strides = array<i32>} : memref<16x128x128xf32, #tpu.memory_space<vmem>>, vector<1x16x128xf32>,
    %494 = vector.extract_strided_slice %489 {offsets = [16, 0], sizes = [16, 128], strides = [1, 1]} : vector<128x128xf32> to vector<16x128xf32>
    %c2_355 = arith.constant 2 : index
    %c16_356 = arith.constant 16 : index
    %c0_357 = arith.constant 0 : index
    %495 = vector.load %arg7[%c2_355, %c16_356, %c0_357] : memref<16x128x128xf32, #tpu.memory_space<vmem>>, vector<1x16x128xf32>
    %496 = vector.shape_cast %495 : vector<1x16x128xf32> to vector<16x128xf32>
    %497 = vector.shape_cast %494 : vector<16x128xf32> to vector<1x16x128xf32>
    tpu.vector_store %arg7[%c2_355, %c16_356, %c0_357], %497 {strides = array<i32>} : memref<16x128x128xf32, #tpu.memory_space<vmem>>, vector<1x16x128xf32>,
    %498 = vector.extract_strided_slice %489 {offsets = [32, 0], sizes = [16, 128], strides = [1, 1]} : vector<128x128xf32> to vector<16x128xf32>
    %c13_358 = arith.constant 13 : index
    %c32_359 = arith.constant 32 : index
    %c0_360 = arith.constant 0 : index
    %499 = vector.load %arg7[%c13_358, %c32_359, %c0_360] : memref<16x128x128xf32, #tpu.memory_space<vmem>>, vector<1x16x128xf32>
    %500 = vector.shape_cast %499 : vector<1x16x128xf32> to vector<16x128xf32>
    %501 = vector.shape_cast %498 : vector<16x128xf32> to vector<1x16x128xf32>
    tpu.vector_store %arg7[%c13_358, %c32_359, %c0_360], %501 {strides = array<i32>} : memref<16x128x128xf32, #tpu.memory_space<vmem>>, vector<1x16x128xf32>,
    %502 = vector.extract_strided_slice %489 {offsets = [48, 0], sizes = [16, 128], strides = [1, 1]} : vector<128x128xf32> to vector<16x128xf32>
    %c2_361 = arith.constant 2 : index
    %c48_362 = arith.constant 48 : index
    %c0_363 = arith.constant 0 : index
    %503 = vector.load %arg7[%c2_361, %c48_362, %c0_363] : memref<16x128x128xf32, #tpu.memory_space<vmem>>, vector<1x16x128xf32>
    %504 = vector.shape_cast %503 : vector<1x16x128xf32> to vector<16x128xf32>
    %505 = vector.shape_cast %502 : vector<16x128xf32> to vector<1x16x128xf32>
    tpu.vector_store %arg7[%c2_361, %c48_362, %c0_363], %505 {strides = array<i32>} : memref<16x128x128xf32, #tpu.memory_space<vmem>>, vector<1x16x128xf32>,
    %506 = vector.extract_strided_slice %489 {offsets = [64, 0], sizes = [16, 128], strides = [1, 1]} : vector<128x128xf32> to vector<16x128xf32>
    %c13_364 = arith.constant 13 : index
    %c64_365 = arith.constant 64 : index
    %c0_366 = arith.constant 0 : index
    %507 = vector.load %arg7[%c13_364, %c64_365, %c0_366] : memref<16x128x128xf32, #tpu.memory_space<vmem>>, vector<1x16x128xf32>
    %508 = vector.shape_cast %507 : vector<1x16x128xf32> to vector<16x128xf32>
    %509 = vector.shape_cast %506 : vector<16x128xf32> to vector<1x16x128xf32>
    tpu.vector_store %arg7[%c13_364, %c64_365, %c0_366], %509 {strides = array<i32>} : memref<16x128x128xf32, #tpu.memory_space<vmem>>, vector<1x16x128xf32>,
    %510 = vector.extract_strided_slice %489 {offsets = [80, 0], sizes = [16, 128], strides = [1, 1]} : vector<128x128xf32> to vector<16x128xf32>
    %c2_367 = arith.constant 2 : index
    %c80_368 = arith.constant 80 : index
    %c0_369 = arith.constant 0 : index
    %511 = vector.load %arg7[%c2_367, %c80_368, %c0_369] : memref<16x128x128xf32, #tpu.memory_space<vmem>>, vector<1x16x128xf32>
    %512 = vector.shape_cast %511 : vector<1x16x128xf32> to vector<16x128xf32>
    %513 = vector.shape_cast %510 : vector<16x128xf32> to vector<1x16x128xf32>
    tpu.vector_store %arg7[%c2_367, %c80_368, %c0_369], %513 {strides = array<i32>} : memref<16x128x128xf32, #tpu.memory_space<vmem>>, vector<1x16x128xf32>,
    %514 = vector.extract_strided_slice %489 {offsets = [96, 0], sizes = [16, 128], strides = [1, 1]} : vector<128x128xf32> to vector<16x128xf32>
    %c13_370 = arith.constant 13 : index
    %c96_371 = arith.constant 96 : index
    %c0_372 = arith.constant 0 : index
    %515 = vector.load %arg7[%c13_370, %c96_371, %c0_372] : memref<16x128x128xf32, #tpu.memory_space<vmem>>, vector<1x16x128xf32>
    %516 = vector.shape_cast %515 : vector<1x16x128xf32> to vector<16x128xf32>
    %517 = vector.shape_cast %514 : vector<16x128xf32> to vector<1x16x128xf32>
    tpu.vector_store %arg7[%c13_370, %c96_371, %c0_372], %517 {strides = array<i32>} : memref<16x128x128xf32, #tpu.memory_space<vmem>>, vector<1x16x128xf32>,
    %518 = vector.extract_strided_slice %489 {offsets = [112, 0], sizes = [16, 128], strides = [1, 1]} : vector<128x128xf32> to vector<16x128xf32>
    %c2_373 = arith.constant 2 : index
    %c112_374 = arith.constant 112 : index
    %c0_375 = arith.constant 0 : index
    %519 = vector.load %arg7[%c2_373, %c112_374, %c0_375] : memref<16x128x128xf32, #tpu.memory_space<vmem>>, vector<1x16x128xf32>
    %520 = vector.shape_cast %519 : vector<1x16x128xf32> to vector<16x128xf32>
    %521 = vector.shape_cast %518 : vector<16x128xf32> to vector<1x16x128xf32>
    tpu.vector_store %arg7[%c2_373, %c112_374, %c0_375], %521 {strides = array<i32>} : memref<16x128x128xf32, #tpu.memory_space<vmem>>, vector<1x16x128xf32>,
    %c14_376 = arith.constant 14 : index
    %c0_377 = arith.constant 0 : index
    %c0_378 = arith.constant 0 : index
    %522 = vector.load %arg1[%c14_376, %c0_377, %c0_378] : memref<16x32x128xf32, #tpu.memory_space<vmem>>, vector<1x32x128xf32>
    %523 = vector.shape_cast %522 : vector<1x32x128xf32> to vector<32x128xf32>
    %cst_379 = arith.constant dense<0.000000e+00> : vector<128x128xf32>
    %524 = tpu.matmul %0, %523, %cst_379 {dimension_numbers = #tpu.dot_dimension_numbers<[1], [0], [0], [1], [0, 0, 1, 1], [], []>} : vector<128x32xf32>, vector<32x128xf32>, vector<128x128xf32> -> vector<128x128xf32>
    %525 = vector.broadcast %1 : vector<128x1xf32> to vector<128x128xf32>
    %526 = arith.addf %524, %525 : vector<128x128xf32>
    %527 = vector.extract_strided_slice %526 {offsets = [0, 0], sizes = [16, 128], strides = [1, 1]} : vector<128x128xf32> to vector<16x128xf32>
    %c14_380 = arith.constant 14 : index
    %c0_381 = arith.constant 0 : index
    %c0_382 = arith.constant 0 : index
    %528 = vector.load %arg7[%c14_380, %c0_381, %c0_382] : memref<16x128x128xf32, #tpu.memory_space<vmem>>, vector<1x16x128xf32>
    %529 = vector.shape_cast %528 : vector<1x16x128xf32> to vector<16x128xf32>
    %530 = vector.shape_cast %527 : vector<16x128xf32> to vector<1x16x128xf32>
    tpu.vector_store %arg7[%c14_380, %c0_381, %c0_382], %530 {strides = array<i32>} : memref<16x128x128xf32, #tpu.memory_space<vmem>>, vector<1x16x128xf32>,
    %531 = vector.extract_strided_slice %526 {offsets = [16, 0], sizes = [16, 128], strides = [1, 1]} : vector<128x128xf32> to vector<16x128xf32>
    %c1_383 = arith.constant 1 : index
    %c16_384 = arith.constant 16 : index
    %c0_385 = arith.constant 0 : index
    %532 = vector.load %arg7[%c1_383, %c16_384, %c0_385] : memref<16x128x128xf32, #tpu.memory_space<vmem>>, vector<1x16x128xf32>
    %533 = vector.shape_cast %532 : vector<1x16x128xf32> to vector<16x128xf32>
    %534 = vector.shape_cast %531 : vector<16x128xf32> to vector<1x16x128xf32>
    tpu.vector_store %arg7[%c1_383, %c16_384, %c0_385], %534 {strides = array<i32>} : memref<16x128x128xf32, #tpu.memory_space<vmem>>, vector<1x16x128xf32>,
    %535 = vector.extract_strided_slice %526 {offsets = [32, 0], sizes = [16, 128], strides = [1, 1]} : vector<128x128xf32> to vector<16x128xf32>
    %c14_386 = arith.constant 14 : index
    %c32_387 = arith.constant 32 : index
    %c0_388 = arith.constant 0 : index
    %536 = vector.load %arg7[%c14_386, %c32_387, %c0_388] : memref<16x128x128xf32, #tpu.memory_space<vmem>>, vector<1x16x128xf32>
    %537 = vector.shape_cast %536 : vector<1x16x128xf32> to vector<16x128xf32>
    %538 = vector.shape_cast %535 : vector<16x128xf32> to vector<1x16x128xf32>
    tpu.vector_store %arg7[%c14_386, %c32_387, %c0_388], %538 {strides = array<i32>} : memref<16x128x128xf32, #tpu.memory_space<vmem>>, vector<1x16x128xf32>,
    %539 = vector.extract_strided_slice %526 {offsets = [48, 0], sizes = [16, 128], strides = [1, 1]} : vector<128x128xf32> to vector<16x128xf32>
    %c1_389 = arith.constant 1 : index
    %c48_390 = arith.constant 48 : index
    %c0_391 = arith.constant 0 : index
    %540 = vector.load %arg7[%c1_389, %c48_390, %c0_391] : memref<16x128x128xf32, #tpu.memory_space<vmem>>, vector<1x16x128xf32>
    %541 = vector.shape_cast %540 : vector<1x16x128xf32> to vector<16x128xf32>
    %542 = vector.shape_cast %539 : vector<16x128xf32> to vector<1x16x128xf32>
    tpu.vector_store %arg7[%c1_389, %c48_390, %c0_391], %542 {strides = array<i32>} : memref<16x128x128xf32, #tpu.memory_space<vmem>>, vector<1x16x128xf32>,
    %543 = vector.extract_strided_slice %526 {offsets = [64, 0], sizes = [16, 128], strides = [1, 1]} : vector<128x128xf32> to vector<16x128xf32>
    %c14_392 = arith.constant 14 : index
    %c64_393 = arith.constant 64 : index
    %c0_394 = arith.constant 0 : index
    %544 = vector.load %arg7[%c14_392, %c64_393, %c0_394] : memref<16x128x128xf32, #tpu.memory_space<vmem>>, vector<1x16x128xf32>
    %545 = vector.shape_cast %544 : vector<1x16x128xf32> to vector<16x128xf32>
    %546 = vector.shape_cast %543 : vector<16x128xf32> to vector<1x16x128xf32>
    tpu.vector_store %arg7[%c14_392, %c64_393, %c0_394], %546 {strides = array<i32>} : memref<16x128x128xf32, #tpu.memory_space<vmem>>, vector<1x16x128xf32>,
    %547 = vector.extract_strided_slice %526 {offsets = [80, 0], sizes = [16, 128], strides = [1, 1]} : vector<128x128xf32> to vector<16x128xf32>
    %c1_395 = arith.constant 1 : index
    %c80_396 = arith.constant 80 : index
    %c0_397 = arith.constant 0 : index
    %548 = vector.load %arg7[%c1_395, %c80_396, %c0_397] : memref<16x128x128xf32, #tpu.memory_space<vmem>>, vector<1x16x128xf32>
    %549 = vector.shape_cast %548 : vector<1x16x128xf32> to vector<16x128xf32>
    %550 = vector.shape_cast %547 : vector<16x128xf32> to vector<1x16x128xf32>
    tpu.vector_store %arg7[%c1_395, %c80_396, %c0_397], %550 {strides = array<i32>} : memref<16x128x128xf32, #tpu.memory_space<vmem>>, vector<1x16x128xf32>,
    %551 = vector.extract_strided_slice %526 {offsets = [96, 0], sizes = [16, 128], strides = [1, 1]} : vector<128x128xf32> to vector<16x128xf32>
    %c14_398 = arith.constant 14 : index
    %c96_399 = arith.constant 96 : index
    %c0_400 = arith.constant 0 : index
    %552 = vector.load %arg7[%c14_398, %c96_399, %c0_400] : memref<16x128x128xf32, #tpu.memory_space<vmem>>, vector<1x16x128xf32>
    %553 = vector.shape_cast %552 : vector<1x16x128xf32> to vector<16x128xf32>
    %554 = vector.shape_cast %551 : vector<16x128xf32> to vector<1x16x128xf32>
    tpu.vector_store %arg7[%c14_398, %c96_399, %c0_400], %554 {strides = array<i32>} : memref<16x128x128xf32, #tpu.memory_space<vmem>>, vector<1x16x128xf32>,
    %555 = vector.extract_strided_slice %526 {offsets = [112, 0], sizes = [16, 128], strides = [1, 1]} : vector<128x128xf32> to vector<16x128xf32>
    %c1_401 = arith.constant 1 : index
    %c112_402 = arith.constant 112 : index
    %c0_403 = arith.constant 0 : index
    %556 = vector.load %arg7[%c1_401, %c112_402, %c0_403] : memref<16x128x128xf32, #tpu.memory_space<vmem>>, vector<1x16x128xf32>
    %557 = vector.shape_cast %556 : vector<1x16x128xf32> to vector<16x128xf32>
    %558 = vector.shape_cast %555 : vector<16x128xf32> to vector<1x16x128xf32>
    tpu.vector_store %arg7[%c1_401, %c112_402, %c0_403], %558 {strides = array<i32>} : memref<16x128x128xf32, #tpu.memory_space<vmem>>, vector<1x16x128xf32>,
    %c15_404 = arith.constant 15 : index
    %c0_405 = arith.constant 0 : index
    %c0_406 = arith.constant 0 : index
    %559 = vector.load %arg1[%c15_404, %c0_405, %c0_406] : memref<16x32x128xf32, #tpu.memory_space<vmem>>, vector<1x32x128xf32>
    %560 = vector.shape_cast %559 : vector<1x32x128xf32> to vector<32x128xf32>
    %cst_407 = arith.constant dense<0.000000e+00> : vector<128x128xf32>
    %561 = tpu.matmul %0, %560, %cst_407 {dimension_numbers = #tpu.dot_dimension_numbers<[1], [0], [0], [1], [0, 0, 1, 1], [], []>} : vector<128x32xf32>, vector<32x128xf32>, vector<128x128xf32> -> vector<128x128xf32>
    %562 = vector.broadcast %1 : vector<128x1xf32> to vector<128x128xf32>
    %563 = arith.addf %561, %562 : vector<128x128xf32>
    %564 = vector.extract_strided_slice %563 {offsets = [0, 0], sizes = [16, 128], strides = [1, 1]} : vector<128x128xf32> to vector<16x128xf32>
    %c15_408 = arith.constant 15 : index
    %c0_409 = arith.constant 0 : index
    %c0_410 = arith.constant 0 : index
    %565 = vector.load %arg7[%c15_408, %c0_409, %c0_410] : memref<16x128x128xf32, #tpu.memory_space<vmem>>, vector<1x16x128xf32>
    %566 = vector.shape_cast %565 : vector<1x16x128xf32> to vector<16x128xf32>
    %567 = vector.shape_cast %564 : vector<16x128xf32> to vector<1x16x128xf32>
    tpu.vector_store %arg7[%c15_408, %c0_409, %c0_410], %567 {strides = array<i32>} : memref<16x128x128xf32, #tpu.memory_space<vmem>>, vector<1x16x128xf32>,
    %568 = vector.extract_strided_slice %563 {offsets = [16, 0], sizes = [16, 128], strides = [1, 1]} : vector<128x128xf32> to vector<16x128xf32>
    %c0_411 = arith.constant 0 : index
    %c16_412 = arith.constant 16 : index
    %c0_413 = arith.constant 0 : index
    %569 = vector.load %arg7[%c0_411, %c16_412, %c0_413] : memref<16x128x128xf32, #tpu.memory_space<vmem>>, vector<1x16x128xf32>
    %570 = vector.shape_cast %569 : vector<1x16x128xf32> to vector<16x128xf32>
    %571 = vector.shape_cast %568 : vector<16x128xf32> to vector<1x16x128xf32>
    tpu.vector_store %arg7[%c0_411, %c16_412, %c0_413], %571 {strides = array<i32>} : memref<16x128x128xf32, #tpu.memory_space<vmem>>, vector<1x16x128xf32>,
    %572 = vector.extract_strided_slice %563 {offsets = [32, 0], sizes = [16, 128], strides = [1, 1]} : vector<128x128xf32> to vector<16x128xf32>
    %c15_414 = arith.constant 15 : index
    %c32_415 = arith.constant 32 : index
    %c0_416 = arith.constant 0 : index
    %573 = vector.load %arg7[%c15_414, %c32_415, %c0_416] : memref<16x128x128xf32, #tpu.memory_space<vmem>>, vector<1x16x128xf32>
    %574 = vector.shape_cast %573 : vector<1x16x128xf32> to vector<16x128xf32>
    %575 = vector.shape_cast %572 : vector<16x128xf32> to vector<1x16x128xf32>
    tpu.vector_store %arg7[%c15_414, %c32_415, %c0_416], %575 {strides = array<i32>} : memref<16x128x128xf32, #tpu.memory_space<vmem>>, vector<1x16x128xf32>,
    %576 = vector.extract_strided_slice %563 {offsets = [48, 0], sizes = [16, 128], strides = [1, 1]} : vector<128x128xf32> to vector<16x128xf32>
    %c0_417 = arith.constant 0 : index
    %c48_418 = arith.constant 48 : index
    %c0_419 = arith.constant 0 : index
    %577 = vector.load %arg7[%c0_417, %c48_418, %c0_419] : memref<16x128x128xf32, #tpu.memory_space<vmem>>, vector<1x16x128xf32>
    %578 = vector.shape_cast %577 : vector<1x16x128xf32> to vector<16x128xf32>
    %579 = vector.shape_cast %576 : vector<16x128xf32> to vector<1x16x128xf32>
    tpu.vector_store %arg7[%c0_417, %c48_418, %c0_419], %579 {strides = array<i32>} : memref<16x128x128xf32, #tpu.memory_space<vmem>>, vector<1x16x128xf32>,
    %580 = vector.extract_strided_slice %563 {offsets = [64, 0], sizes = [16, 128], strides = [1, 1]} : vector<128x128xf32> to vector<16x128xf32>
    %c15_420 = arith.constant 15 : index
    %c64_421 = arith.constant 64 : index
    %c0_422 = arith.constant 0 : index
    %581 = vector.load %arg7[%c15_420, %c64_421, %c0_422] : memref<16x128x128xf32, #tpu.memory_space<vmem>>, vector<1x16x128xf32>
    %582 = vector.shape_cast %581 : vector<1x16x128xf32> to vector<16x128xf32>
    %583 = vector.shape_cast %580 : vector<16x128xf32> to vector<1x16x128xf32>
    tpu.vector_store %arg7[%c15_420, %c64_421, %c0_422], %583 {strides = array<i32>} : memref<16x128x128xf32, #tpu.memory_space<vmem>>, vector<1x16x128xf32>,
    %584 = vector.extract_strided_slice %563 {offsets = [80, 0], sizes = [16, 128], strides = [1, 1]} : vector<128x128xf32> to vector<16x128xf32>
    %c0_423 = arith.constant 0 : index
    %c80_424 = arith.constant 80 : index
    %c0_425 = arith.constant 0 : index
    %585 = vector.load %arg7[%c0_423, %c80_424, %c0_425] : memref<16x128x128xf32, #tpu.memory_space<vmem>>, vector<1x16x128xf32>
    %586 = vector.shape_cast %585 : vector<1x16x128xf32> to vector<16x128xf32>
    %587 = vector.shape_cast %584 : vector<16x128xf32> to vector<1x16x128xf32>
    tpu.vector_store %arg7[%c0_423, %c80_424, %c0_425], %587 {strides = array<i32>} : memref<16x128x128xf32, #tpu.memory_space<vmem>>, vector<1x16x128xf32>,
    %588 = vector.extract_strided_slice %563 {offsets = [96, 0], sizes = [16, 128], strides = [1, 1]} : vector<128x128xf32> to vector<16x128xf32>
    %c15_426 = arith.constant 15 : index
    %c96_427 = arith.constant 96 : index
    %c0_428 = arith.constant 0 : index
    %589 = vector.load %arg7[%c15_426, %c96_427, %c0_428] : memref<16x128x128xf32, #tpu.memory_space<vmem>>, vector<1x16x128xf32>
    %590 = vector.shape_cast %589 : vector<1x16x128xf32> to vector<16x128xf32>
    %591 = vector.shape_cast %588 : vector<16x128xf32> to vector<1x16x128xf32>
    tpu.vector_store %arg7[%c15_426, %c96_427, %c0_428], %591 {strides = array<i32>} : memref<16x128x128xf32, #tpu.memory_space<vmem>>, vector<1x16x128xf32>,
    %592 = vector.extract_strided_slice %563 {offsets = [112, 0], sizes = [16, 128], strides = [1, 1]} : vector<128x128xf32> to vector<16x128xf32>
    %c0_429 = arith.constant 0 : index
    %c112_430 = arith.constant 112 : index
    %c0_431 = arith.constant 0 : index
    %593 = vector.load %arg7[%c0_429, %c112_430, %c0_431] : memref<16x128x128xf32, #tpu.memory_space<vmem>>, vector<1x16x128xf32>
    %594 = vector.shape_cast %593 : vector<1x16x128xf32> to vector<16x128xf32>
    %595 = vector.shape_cast %592 : vector<16x128xf32> to vector<1x16x128xf32>
    tpu.vector_store %arg7[%c0_429, %c112_430, %c0_431], %595 {strides = array<i32>} : memref<16x128x128xf32, #tpu.memory_space<vmem>>, vector<1x16x128xf32>,
    %596 = tpu.iota {dimensions = array<i32: 0>} : vector<32x1xi32>
    %c16_i32 = arith.constant 16 : i32
    %597 = vector.broadcast %c16_i32 : i32 to vector<32x1xi32>
    %598 = arith.cmpi slt, %596, %597 : vector<32x1xi32>
    %cst_432 = arith.constant 0.000000e+00 : f32
    %599 = vector.broadcast %cst_432 : f32 to vector<32x128xf32>
    %c0_i32 = arith.constant 0 : i32
    %c15_i32 = arith.constant 15 : i32
    %600 = arith.subi %c15_i32, %c0_i32 : i32
    %601 = arith.index_cast %c0_i32 : i32 to index
    %c0_433 = arith.constant 0 : index
    %c0_434 = arith.constant 0 : index
    %602 = vector.load %arg7[%601, %c0_433, %c0_434] : memref<16x128x128xf32, #tpu.memory_space<vmem>>, vector<1x128x128xf32>
    %603 = vector.shape_cast %602 : vector<1x128x128xf32> to vector<128x128xf32>
    %cst_435 = arith.constant dense<0.000000e+00> : vector<128x128xf32>
    %604 = tpu.matmul %2, %599, %cst_435 {dimension_numbers = #tpu.dot_dimension_numbers<[1], [0], [0], [1], [0, 0, 1, 1], [], []>} : vector<128x32xf32>, vector<32x128xf32>, vector<128x128xf32> -> vector<128x128xf32>
    %605 = arith.addf %603, %604 : vector<128x128xf32>
    %606 = vector.extract_strided_slice %605 {offsets = [0, 0], sizes = [32, 128], strides = [1, 1]} : vector<128x128xf32> to vector<32x128xf32>
    %607 = arith.negf %606 : vector<32x128xf32>
    %608 = math.exp %607 : vector<32x128xf32>
    %cst_436 = arith.constant 1.000000e+00 : f32
    %609 = vector.broadcast %cst_436 : f32 to vector<32x128xf32>
    %610 = arith.addf %609, %608 : vector<32x128xf32>
    %611 = arith.divf %609, %610 : vector<32x128xf32>
    %612 = vector.extract_strided_slice %605 {offsets = [32, 0], sizes = [32, 128], strides = [1, 1]} : vector<128x128xf32> to vector<32x128xf32>
    %613 = arith.negf %612 : vector<32x128xf32>
    %614 = math.exp %613 : vector<32x128xf32>
    %cst_437 = arith.constant 1.000000e+00 : f32
    %615 = vector.broadcast %cst_437 : f32 to vector<32x128xf32>
    %616 = arith.addf %615, %614 : vector<32x128xf32>
    %617 = arith.divf %615, %616 : vector<32x128xf32>
    %618 = vector.extract_strided_slice %605 {offsets = [64, 0], sizes = [32, 128], strides = [1, 1]} : vector<128x128xf32> to vector<32x128xf32>
    %619 = math.tanh %618 : vector<32x128xf32>
    %620 = vector.extract_strided_slice %605 {offsets = [96, 0], sizes = [32, 128], strides = [1, 1]} : vector<128x128xf32> to vector<32x128xf32>
    %621 = arith.negf %620 : vector<32x128xf32>
    %622 = math.exp %621 : vector<32x128xf32>
    %cst_438 = arith.constant 1.000000e+00 : f32
    %623 = vector.broadcast %cst_438 : f32 to vector<32x128xf32>
    %624 = arith.addf %623, %622 : vector<32x128xf32>
    %625 = arith.divf %623, %624 : vector<32x128xf32>
    %626 = arith.mulf %617, %599 : vector<32x128xf32>
    %627 = arith.mulf %611, %619 : vector<32x128xf32>
    %628 = arith.addf %626, %627 : vector<32x128xf32>
    %629 = math.tanh %628 : vector<32x128xf32>
    %630 = arith.mulf %625, %629 : vector<32x128xf32>
    %631 = vector.broadcast %c0_i32 : i32 to vector<32x1xi32>
    %632 = vector.broadcast %600 : i32 to vector<32x1xi32>
    %633 = arith.select %598, %631, %632 : vector<32x1xi1>, vector<32x1xi32>
    %634 = vector.broadcast %633 : vector<32x1xi32> to vector<32x128xi32>
    %635 = vector.broadcast %3 : vector<1x128xi32> to vector<32x128xi32>
    %636 = arith.cmpi slt, %634, %635 : vector<32x128xi32>
    %637 = arith.select %636, %630, %599 : vector<32x128xi1>, vector<32x128xf32>
    %638 = arith.index_cast %c0_i32 : i32 to index
    %c0_439 = arith.constant 0 : index
    %c0_440 = arith.constant 0 : index
    %639 = vector.load %arg6[%638, %c0_439, %c0_440] : memref<16x32x128xf32, #tpu.memory_space<vmem>>, vector<1x32x128xf32>
    %640 = vector.shape_cast %639 : vector<1x32x128xf32> to vector<32x128xf32>
    %641 = vector.shape_cast %637 : vector<32x128xf32> to vector<1x32x128xf32>
    tpu.vector_store %arg6[%638, %c0_439, %c0_440], %641 {strides = array<i32>} : memref<16x32x128xf32, #tpu.memory_space<vmem>>, vector<1x32x128xf32>,
    %642 = arith.select %636, %630, %599 : vector<32x128xi1>, vector<32x128xf32>
    %643 = arith.select %636, %628, %599 : vector<32x128xi1>, vector<32x128xf32>
    %c1_i32 = arith.constant 1 : i32
    %c15_i32_441 = arith.constant 15 : i32
    %644 = arith.subi %c15_i32_441, %c1_i32 : i32
    %645 = arith.index_cast %c1_i32 : i32 to index
    %c0_442 = arith.constant 0 : index
    %c0_443 = arith.constant 0 : index
    %646 = vector.load %arg7[%645, %c0_442, %c0_443] : memref<16x128x128xf32, #tpu.memory_space<vmem>>, vector<1x128x128xf32>
    %647 = vector.shape_cast %646 : vector<1x128x128xf32> to vector<128x128xf32>
    %cst_444 = arith.constant dense<0.000000e+00> : vector<128x128xf32>
    %648 = tpu.matmul %2, %642, %cst_444 {dimension_numbers = #tpu.dot_dimension_numbers<[1], [0], [0], [1], [0, 0, 1, 1], [], []>} : vector<128x32xf32>, vector<32x128xf32>, vector<128x128xf32> -> vector<128x128xf32>
    %649 = arith.addf %647, %648 : vector<128x128xf32>
    %650 = vector.extract_strided_slice %649 {offsets = [0, 0], sizes = [32, 128], strides = [1, 1]} : vector<128x128xf32> to vector<32x128xf32>
    %651 = arith.negf %650 : vector<32x128xf32>
    %652 = math.exp %651 : vector<32x128xf32>
    %cst_445 = arith.constant 1.000000e+00 : f32
    %653 = vector.broadcast %cst_445 : f32 to vector<32x128xf32>
    %654 = arith.addf %653, %652 : vector<32x128xf32>
    %655 = arith.divf %653, %654 : vector<32x128xf32>
    %656 = vector.extract_strided_slice %649 {offsets = [32, 0], sizes = [32, 128], strides = [1, 1]} : vector<128x128xf32> to vector<32x128xf32>
    %657 = arith.negf %656 : vector<32x128xf32>
    %658 = math.exp %657 : vector<32x128xf32>
    %cst_446 = arith.constant 1.000000e+00 : f32
    %659 = vector.broadcast %cst_446 : f32 to vector<32x128xf32>
    %660 = arith.addf %659, %658 : vector<32x128xf32>
    %661 = arith.divf %659, %660 : vector<32x128xf32>
    %662 = vector.extract_strided_slice %649 {offsets = [64, 0], sizes = [32, 128], strides = [1, 1]} : vector<128x128xf32> to vector<32x128xf32>
    %663 = math.tanh %662 : vector<32x128xf32>
    %664 = vector.extract_strided_slice %649 {offsets = [96, 0], sizes = [32, 128], strides = [1, 1]} : vector<128x128xf32> to vector<32x128xf32>
    %665 = arith.negf %664 : vector<32x128xf32>
    %666 = math.exp %665 : vector<32x128xf32>
    %cst_447 = arith.constant 1.000000e+00 : f32
    %667 = vector.broadcast %cst_447 : f32 to vector<32x128xf32>
    %668 = arith.addf %667, %666 : vector<32x128xf32>
    %669 = arith.divf %667, %668 : vector<32x128xf32>
    %670 = arith.mulf %661, %643 : vector<32x128xf32>
    %671 = arith.mulf %655, %663 : vector<32x128xf32>
    %672 = arith.addf %670, %671 : vector<32x128xf32>
    %673 = math.tanh %672 : vector<32x128xf32>
    %674 = arith.mulf %669, %673 : vector<32x128xf32>
    %675 = vector.broadcast %c1_i32 : i32 to vector<32x1xi32>
    %676 = vector.broadcast %644 : i32 to vector<32x1xi32>
    %677 = arith.select %598, %675, %676 : vector<32x1xi1>, vector<32x1xi32>
    %678 = vector.broadcast %677 : vector<32x1xi32> to vector<32x128xi32>
    %679 = vector.broadcast %3 : vector<1x128xi32> to vector<32x128xi32>
    %680 = arith.cmpi slt, %678, %679 : vector<32x128xi32>
    %681 = arith.select %680, %674, %599 : vector<32x128xi1>, vector<32x128xf32>
    %682 = arith.index_cast %c1_i32 : i32 to index
    %c0_448 = arith.constant 0 : index
    %c0_449 = arith.constant 0 : index
    %683 = vector.load %arg6[%682, %c0_448, %c0_449] : memref<16x32x128xf32, #tpu.memory_space<vmem>>, vector<1x32x128xf32>
    %684 = vector.shape_cast %683 : vector<1x32x128xf32> to vector<32x128xf32>
    %685 = vector.shape_cast %681 : vector<32x128xf32> to vector<1x32x128xf32>
    tpu.vector_store %arg6[%682, %c0_448, %c0_449], %685 {strides = array<i32>} : memref<16x32x128xf32, #tpu.memory_space<vmem>>, vector<1x32x128xf32>,
    %686 = arith.select %680, %674, %642 : vector<32x128xi1>, vector<32x128xf32>
    %687 = arith.select %680, %672, %643 : vector<32x128xi1>, vector<32x128xf32>
    %c2_i32 = arith.constant 2 : i32
    %c15_i32_450 = arith.constant 15 : i32
    %688 = arith.subi %c15_i32_450, %c2_i32 : i32
    %689 = arith.index_cast %c2_i32 : i32 to index
    %c0_451 = arith.constant 0 : index
    %c0_452 = arith.constant 0 : index
    %690 = vector.load %arg7[%689, %c0_451, %c0_452] : memref<16x128x128xf32, #tpu.memory_space<vmem>>, vector<1x128x128xf32>
    %691 = vector.shape_cast %690 : vector<1x128x128xf32> to vector<128x128xf32>
    %cst_453 = arith.constant dense<0.000000e+00> : vector<128x128xf32>
    %692 = tpu.matmul %2, %686, %cst_453 {dimension_numbers = #tpu.dot_dimension_numbers<[1], [0], [0], [1], [0, 0, 1, 1], [], []>} : vector<128x32xf32>, vector<32x128xf32>, vector<128x128xf32> -> vector<128x128xf32>
    %693 = arith.addf %691, %692 : vector<128x128xf32>
    %694 = vector.extract_strided_slice %693 {offsets = [0, 0], sizes = [32, 128], strides = [1, 1]} : vector<128x128xf32> to vector<32x128xf32>
    %695 = arith.negf %694 : vector<32x128xf32>
    %696 = math.exp %695 : vector<32x128xf32>
    %cst_454 = arith.constant 1.000000e+00 : f32
    %697 = vector.broadcast %cst_454 : f32 to vector<32x128xf32>
    %698 = arith.addf %697, %696 : vector<32x128xf32>
    %699 = arith.divf %697, %698 : vector<32x128xf32>
    %700 = vector.extract_strided_slice %693 {offsets = [32, 0], sizes = [32, 128], strides = [1, 1]} : vector<128x128xf32> to vector<32x128xf32>
    %701 = arith.negf %700 : vector<32x128xf32>
    %702 = math.exp %701 : vector<32x128xf32>
    %cst_455 = arith.constant 1.000000e+00 : f32
    %703 = vector.broadcast %cst_455 : f32 to vector<32x128xf32>
    %704 = arith.addf %703, %702 : vector<32x128xf32>
    %705 = arith.divf %703, %704 : vector<32x128xf32>
    %706 = vector.extract_strided_slice %693 {offsets = [64, 0], sizes = [32, 128], strides = [1, 1]} : vector<128x128xf32> to vector<32x128xf32>
    %707 = math.tanh %706 : vector<32x128xf32>
    %708 = vector.extract_strided_slice %693 {offsets = [96, 0], sizes = [32, 128], strides = [1, 1]} : vector<128x128xf32> to vector<32x128xf32>
    %709 = arith.negf %708 : vector<32x128xf32>
    %710 = math.exp %709 : vector<32x128xf32>
    %cst_456 = arith.constant 1.000000e+00 : f32
    %711 = vector.broadcast %cst_456 : f32 to vector<32x128xf32>
    %712 = arith.addf %711, %710 : vector<32x128xf32>
    %713 = arith.divf %711, %712 : vector<32x128xf32>
    %714 = arith.mulf %705, %687 : vector<32x128xf32>
    %715 = arith.mulf %699, %707 : vector<32x128xf32>
    %716 = arith.addf %714, %715 : vector<32x128xf32>
    %717 = math.tanh %716 : vector<32x128xf32>
    %718 = arith.mulf %713, %717 : vector<32x128xf32>
    %719 = vector.broadcast %c2_i32 : i32 to vector<32x1xi32>
    %720 = vector.broadcast %688 : i32 to vector<32x1xi32>
    %721 = arith.select %598, %719, %720 : vector<32x1xi1>, vector<32x1xi32>
    %722 = vector.broadcast %721 : vector<32x1xi32> to vector<32x128xi32>
    %723 = vector.broadcast %3 : vector<1x128xi32> to vector<32x128xi32>
    %724 = arith.cmpi slt, %722, %723 : vector<32x128xi32>
    %725 = arith.select %724, %718, %599 : vector<32x128xi1>, vector<32x128xf32>
    %726 = arith.index_cast %c2_i32 : i32 to index
    %c0_457 = arith.constant 0 : index
    %c0_458 = arith.constant 0 : index
    %727 = vector.load %arg6[%726, %c0_457, %c0_458] : memref<16x32x128xf32, #tpu.memory_space<vmem>>, vector<1x32x128xf32>
    %728 = vector.shape_cast %727 : vector<1x32x128xf32> to vector<32x128xf32>
    %729 = vector.shape_cast %725 : vector<32x128xf32> to vector<1x32x128xf32>
    tpu.vector_store %arg6[%726, %c0_457, %c0_458], %729 {strides = array<i32>} : memref<16x32x128xf32, #tpu.memory_space<vmem>>, vector<1x32x128xf32>,
    %730 = arith.select %724, %718, %686 : vector<32x128xi1>, vector<32x128xf32>
    %731 = arith.select %724, %716, %687 : vector<32x128xi1>, vector<32x128xf32>
    %c3_i32 = arith.constant 3 : i32
    %c15_i32_459 = arith.constant 15 : i32
    %732 = arith.subi %c15_i32_459, %c3_i32 : i32
    %733 = arith.index_cast %c3_i32 : i32 to index
    %c0_460 = arith.constant 0 : index
    %c0_461 = arith.constant 0 : index
    %734 = vector.load %arg7[%733, %c0_460, %c0_461] : memref<16x128x128xf32, #tpu.memory_space<vmem>>, vector<1x128x128xf32>
    %735 = vector.shape_cast %734 : vector<1x128x128xf32> to vector<128x128xf32>
    %cst_462 = arith.constant dense<0.000000e+00> : vector<128x128xf32>
    %736 = tpu.matmul %2, %730, %cst_462 {dimension_numbers = #tpu.dot_dimension_numbers<[1], [0], [0], [1], [0, 0, 1, 1], [], []>} : vector<128x32xf32>, vector<32x128xf32>, vector<128x128xf32> -> vector<128x128xf32>
    %737 = arith.addf %735, %736 : vector<128x128xf32>
    %738 = vector.extract_strided_slice %737 {offsets = [0, 0], sizes = [32, 128], strides = [1, 1]} : vector<128x128xf32> to vector<32x128xf32>
    %739 = arith.negf %738 : vector<32x128xf32>
    %740 = math.exp %739 : vector<32x128xf32>
    %cst_463 = arith.constant 1.000000e+00 : f32
    %741 = vector.broadcast %cst_463 : f32 to vector<32x128xf32>
    %742 = arith.addf %741, %740 : vector<32x128xf32>
    %743 = arith.divf %741, %742 : vector<32x128xf32>
    %744 = vector.extract_strided_slice %737 {offsets = [32, 0], sizes = [32, 128], strides = [1, 1]} : vector<128x128xf32> to vector<32x128xf32>
    %745 = arith.negf %744 : vector<32x128xf32>
    %746 = math.exp %745 : vector<32x128xf32>
    %cst_464 = arith.constant 1.000000e+00 : f32
    %747 = vector.broadcast %cst_464 : f32 to vector<32x128xf32>
    %748 = arith.addf %747, %746 : vector<32x128xf32>
    %749 = arith.divf %747, %748 : vector<32x128xf32>
    %750 = vector.extract_strided_slice %737 {offsets = [64, 0], sizes = [32, 128], strides = [1, 1]} : vector<128x128xf32> to vector<32x128xf32>
    %751 = math.tanh %750 : vector<32x128xf32>
    %752 = vector.extract_strided_slice %737 {offsets = [96, 0], sizes = [32, 128], strides = [1, 1]} : vector<128x128xf32> to vector<32x128xf32>
    %753 = arith.negf %752 : vector<32x128xf32>
    %754 = math.exp %753 : vector<32x128xf32>
    %cst_465 = arith.constant 1.000000e+00 : f32
    %755 = vector.broadcast %cst_465 : f32 to vector<32x128xf32>
    %756 = arith.addf %755, %754 : vector<32x128xf32>
    %757 = arith.divf %755, %756 : vector<32x128xf32>
    %758 = arith.mulf %749, %731 : vector<32x128xf32>
    %759 = arith.mulf %743, %751 : vector<32x128xf32>
    %760 = arith.addf %758, %759 : vector<32x128xf32>
    %761 = math.tanh %760 : vector<32x128xf32>
    %762 = arith.mulf %757, %761 : vector<32x128xf32>
    %763 = vector.broadcast %c3_i32 : i32 to vector<32x1xi32>
    %764 = vector.broadcast %732 : i32 to vector<32x1xi32>
    %765 = arith.select %598, %763, %764 : vector<32x1xi1>, vector<32x1xi32>
    %766 = vector.broadcast %765 : vector<32x1xi32> to vector<32x128xi32>
    %767 = vector.broadcast %3 : vector<1x128xi32> to vector<32x128xi32>
    %768 = arith.cmpi slt, %766, %767 : vector<32x128xi32>
    %769 = arith.select %768, %762, %599 : vector<32x128xi1>, vector<32x128xf32>
    %770 = arith.index_cast %c3_i32 : i32 to index
    %c0_466 = arith.constant 0 : index
    %c0_467 = arith.constant 0 : index
    %771 = vector.load %arg6[%770, %c0_466, %c0_467] : memref<16x32x128xf32, #tpu.memory_space<vmem>>, vector<1x32x128xf32>
    %772 = vector.shape_cast %771 : vector<1x32x128xf32> to vector<32x128xf32>
    %773 = vector.shape_cast %769 : vector<32x128xf32> to vector<1x32x128xf32>
    tpu.vector_store %arg6[%770, %c0_466, %c0_467], %773 {strides = array<i32>} : memref<16x32x128xf32, #tpu.memory_space<vmem>>, vector<1x32x128xf32>,
    %774 = arith.select %768, %762, %730 : vector<32x128xi1>, vector<32x128xf32>
    %775 = arith.select %768, %760, %731 : vector<32x128xi1>, vector<32x128xf32>
    %c4_i32 = arith.constant 4 : i32
    %c15_i32_468 = arith.constant 15 : i32
    %776 = arith.subi %c15_i32_468, %c4_i32 : i32
    %777 = arith.index_cast %c4_i32 : i32 to index
    %c0_469 = arith.constant 0 : index
    %c0_470 = arith.constant 0 : index
    %778 = vector.load %arg7[%777, %c0_469, %c0_470] : memref<16x128x128xf32, #tpu.memory_space<vmem>>, vector<1x128x128xf32>
    %779 = vector.shape_cast %778 : vector<1x128x128xf32> to vector<128x128xf32>
    %cst_471 = arith.constant dense<0.000000e+00> : vector<128x128xf32>
    %780 = tpu.matmul %2, %774, %cst_471 {dimension_numbers = #tpu.dot_dimension_numbers<[1], [0], [0], [1], [0, 0, 1, 1], [], []>} : vector<128x32xf32>, vector<32x128xf32>, vector<128x128xf32> -> vector<128x128xf32>
    %781 = arith.addf %779, %780 : vector<128x128xf32>
    %782 = vector.extract_strided_slice %781 {offsets = [0, 0], sizes = [32, 128], strides = [1, 1]} : vector<128x128xf32> to vector<32x128xf32>
    %783 = arith.negf %782 : vector<32x128xf32>
    %784 = math.exp %783 : vector<32x128xf32>
    %cst_472 = arith.constant 1.000000e+00 : f32
    %785 = vector.broadcast %cst_472 : f32 to vector<32x128xf32>
    %786 = arith.addf %785, %784 : vector<32x128xf32>
    %787 = arith.divf %785, %786 : vector<32x128xf32>
    %788 = vector.extract_strided_slice %781 {offsets = [32, 0], sizes = [32, 128], strides = [1, 1]} : vector<128x128xf32> to vector<32x128xf32>
    %789 = arith.negf %788 : vector<32x128xf32>
    %790 = math.exp %789 : vector<32x128xf32>
    %cst_473 = arith.constant 1.000000e+00 : f32
    %791 = vector.broadcast %cst_473 : f32 to vector<32x128xf32>
    %792 = arith.addf %791, %790 : vector<32x128xf32>
    %793 = arith.divf %791, %792 : vector<32x128xf32>
    %794 = vector.extract_strided_slice %781 {offsets = [64, 0], sizes = [32, 128], strides = [1, 1]} : vector<128x128xf32> to vector<32x128xf32>
    %795 = math.tanh %794 : vector<32x128xf32>
    %796 = vector.extract_strided_slice %781 {offsets = [96, 0], sizes = [32, 128], strides = [1, 1]} : vector<128x128xf32> to vector<32x128xf32>
    %797 = arith.negf %796 : vector<32x128xf32>
    %798 = math.exp %797 : vector<32x128xf32>
    %cst_474 = arith.constant 1.000000e+00 : f32
    %799 = vector.broadcast %cst_474 : f32 to vector<32x128xf32>
    %800 = arith.addf %799, %798 : vector<32x128xf32>
    %801 = arith.divf %799, %800 : vector<32x128xf32>
    %802 = arith.mulf %793, %775 : vector<32x128xf32>
    %803 = arith.mulf %787, %795 : vector<32x128xf32>
    %804 = arith.addf %802, %803 : vector<32x128xf32>
    %805 = math.tanh %804 : vector<32x128xf32>
    %806 = arith.mulf %801, %805 : vector<32x128xf32>
    %807 = vector.broadcast %c4_i32 : i32 to vector<32x1xi32>
    %808 = vector.broadcast %776 : i32 to vector<32x1xi32>
    %809 = arith.select %598, %807, %808 : vector<32x1xi1>, vector<32x1xi32>
    %810 = vector.broadcast %809 : vector<32x1xi32> to vector<32x128xi32>
    %811 = vector.broadcast %3 : vector<1x128xi32> to vector<32x128xi32>
    %812 = arith.cmpi slt, %810, %811 : vector<32x128xi32>
    %813 = arith.select %812, %806, %599 : vector<32x128xi1>, vector<32x128xf32>
    %814 = arith.index_cast %c4_i32 : i32 to index
    %c0_475 = arith.constant 0 : index
    %c0_476 = arith.constant 0 : index
    %815 = vector.load %arg6[%814, %c0_475, %c0_476] : memref<16x32x128xf32, #tpu.memory_space<vmem>>, vector<1x32x128xf32>
    %816 = vector.shape_cast %815 : vector<1x32x128xf32> to vector<32x128xf32>
    %817 = vector.shape_cast %813 : vector<32x128xf32> to vector<1x32x128xf32>
    tpu.vector_store %arg6[%814, %c0_475, %c0_476], %817 {strides = array<i32>} : memref<16x32x128xf32, #tpu.memory_space<vmem>>, vector<1x32x128xf32>,
    %818 = arith.select %812, %806, %774 : vector<32x128xi1>, vector<32x128xf32>
    %819 = arith.select %812, %804, %775 : vector<32x128xi1>, vector<32x128xf32>
    %c5_i32 = arith.constant 5 : i32
    %c15_i32_477 = arith.constant 15 : i32
    %820 = arith.subi %c15_i32_477, %c5_i32 : i32
    %821 = arith.index_cast %c5_i32 : i32 to index
    %c0_478 = arith.constant 0 : index
    %c0_479 = arith.constant 0 : index
    %822 = vector.load %arg7[%821, %c0_478, %c0_479] : memref<16x128x128xf32, #tpu.memory_space<vmem>>, vector<1x128x128xf32>
    %823 = vector.shape_cast %822 : vector<1x128x128xf32> to vector<128x128xf32>
    %cst_480 = arith.constant dense<0.000000e+00> : vector<128x128xf32>
    %824 = tpu.matmul %2, %818, %cst_480 {dimension_numbers = #tpu.dot_dimension_numbers<[1], [0], [0], [1], [0, 0, 1, 1], [], []>} : vector<128x32xf32>, vector<32x128xf32>, vector<128x128xf32> -> vector<128x128xf32>
    %825 = arith.addf %823, %824 : vector<128x128xf32>
    %826 = vector.extract_strided_slice %825 {offsets = [0, 0], sizes = [32, 128], strides = [1, 1]} : vector<128x128xf32> to vector<32x128xf32>
    %827 = arith.negf %826 : vector<32x128xf32>
    %828 = math.exp %827 : vector<32x128xf32>
    %cst_481 = arith.constant 1.000000e+00 : f32
    %829 = vector.broadcast %cst_481 : f32 to vector<32x128xf32>
    %830 = arith.addf %829, %828 : vector<32x128xf32>
    %831 = arith.divf %829, %830 : vector<32x128xf32>
    %832 = vector.extract_strided_slice %825 {offsets = [32, 0], sizes = [32, 128], strides = [1, 1]} : vector<128x128xf32> to vector<32x128xf32>
    %833 = arith.negf %832 : vector<32x128xf32>
    %834 = math.exp %833 : vector<32x128xf32>
    %cst_482 = arith.constant 1.000000e+00 : f32
    %835 = vector.broadcast %cst_482 : f32 to vector<32x128xf32>
    %836 = arith.addf %835, %834 : vector<32x128xf32>
    %837 = arith.divf %835, %836 : vector<32x128xf32>
    %838 = vector.extract_strided_slice %825 {offsets = [64, 0], sizes = [32, 128], strides = [1, 1]} : vector<128x128xf32> to vector<32x128xf32>
    %839 = math.tanh %838 : vector<32x128xf32>
    %840 = vector.extract_strided_slice %825 {offsets = [96, 0], sizes = [32, 128], strides = [1, 1]} : vector<128x128xf32> to vector<32x128xf32>
    %841 = arith.negf %840 : vector<32x128xf32>
    %842 = math.exp %841 : vector<32x128xf32>
    %cst_483 = arith.constant 1.000000e+00 : f32
    %843 = vector.broadcast %cst_483 : f32 to vector<32x128xf32>
    %844 = arith.addf %843, %842 : vector<32x128xf32>
    %845 = arith.divf %843, %844 : vector<32x128xf32>
    %846 = arith.mulf %837, %819 : vector<32x128xf32>
    %847 = arith.mulf %831, %839 : vector<32x128xf32>
    %848 = arith.addf %846, %847 : vector<32x128xf32>
    %849 = math.tanh %848 : vector<32x128xf32>
    %850 = arith.mulf %845, %849 : vector<32x128xf32>
    %851 = vector.broadcast %c5_i32 : i32 to vector<32x1xi32>
    %852 = vector.broadcast %820 : i32 to vector<32x1xi32>
    %853 = arith.select %598, %851, %852 : vector<32x1xi1>, vector<32x1xi32>
    %854 = vector.broadcast %853 : vector<32x1xi32> to vector<32x128xi32>
    %855 = vector.broadcast %3 : vector<1x128xi32> to vector<32x128xi32>
    %856 = arith.cmpi slt, %854, %855 : vector<32x128xi32>
    %857 = arith.select %856, %850, %599 : vector<32x128xi1>, vector<32x128xf32>
    %858 = arith.index_cast %c5_i32 : i32 to index
    %c0_484 = arith.constant 0 : index
    %c0_485 = arith.constant 0 : index
    %859 = vector.load %arg6[%858, %c0_484, %c0_485] : memref<16x32x128xf32, #tpu.memory_space<vmem>>, vector<1x32x128xf32>
    %860 = vector.shape_cast %859 : vector<1x32x128xf32> to vector<32x128xf32>
    %861 = vector.shape_cast %857 : vector<32x128xf32> to vector<1x32x128xf32>
    tpu.vector_store %arg6[%858, %c0_484, %c0_485], %861 {strides = array<i32>} : memref<16x32x128xf32, #tpu.memory_space<vmem>>, vector<1x32x128xf32>,
    %862 = arith.select %856, %850, %818 : vector<32x128xi1>, vector<32x128xf32>
    %863 = arith.select %856, %848, %819 : vector<32x128xi1>, vector<32x128xf32>
    %c6_i32 = arith.constant 6 : i32
    %c15_i32_486 = arith.constant 15 : i32
    %864 = arith.subi %c15_i32_486, %c6_i32 : i32
    %865 = arith.index_cast %c6_i32 : i32 to index
    %c0_487 = arith.constant 0 : index
    %c0_488 = arith.constant 0 : index
    %866 = vector.load %arg7[%865, %c0_487, %c0_488] : memref<16x128x128xf32, #tpu.memory_space<vmem>>, vector<1x128x128xf32>
    %867 = vector.shape_cast %866 : vector<1x128x128xf32> to vector<128x128xf32>
    %cst_489 = arith.constant dense<0.000000e+00> : vector<128x128xf32>
    %868 = tpu.matmul %2, %862, %cst_489 {dimension_numbers = #tpu.dot_dimension_numbers<[1], [0], [0], [1], [0, 0, 1, 1], [], []>} : vector<128x32xf32>, vector<32x128xf32>, vector<128x128xf32> -> vector<128x128xf32>
    %869 = arith.addf %867, %868 : vector<128x128xf32>
    %870 = vector.extract_strided_slice %869 {offsets = [0, 0], sizes = [32, 128], strides = [1, 1]} : vector<128x128xf32> to vector<32x128xf32>
    %871 = arith.negf %870 : vector<32x128xf32>
    %872 = math.exp %871 : vector<32x128xf32>
    %cst_490 = arith.constant 1.000000e+00 : f32
    %873 = vector.broadcast %cst_490 : f32 to vector<32x128xf32>
    %874 = arith.addf %873, %872 : vector<32x128xf32>
    %875 = arith.divf %873, %874 : vector<32x128xf32>
    %876 = vector.extract_strided_slice %869 {offsets = [32, 0], sizes = [32, 128], strides = [1, 1]} : vector<128x128xf32> to vector<32x128xf32>
    %877 = arith.negf %876 : vector<32x128xf32>
    %878 = math.exp %877 : vector<32x128xf32>
    %cst_491 = arith.constant 1.000000e+00 : f32
    %879 = vector.broadcast %cst_491 : f32 to vector<32x128xf32>
    %880 = arith.addf %879, %878 : vector<32x128xf32>
    %881 = arith.divf %879, %880 : vector<32x128xf32>
    %882 = vector.extract_strided_slice %869 {offsets = [64, 0], sizes = [32, 128], strides = [1, 1]} : vector<128x128xf32> to vector<32x128xf32>
    %883 = math.tanh %882 : vector<32x128xf32>
    %884 = vector.extract_strided_slice %869 {offsets = [96, 0], sizes = [32, 128], strides = [1, 1]} : vector<128x128xf32> to vector<32x128xf32>
    %885 = arith.negf %884 : vector<32x128xf32>
    %886 = math.exp %885 : vector<32x128xf32>
    %cst_492 = arith.constant 1.000000e+00 : f32
    %887 = vector.broadcast %cst_492 : f32 to vector<32x128xf32>
    %888 = arith.addf %887, %886 : vector<32x128xf32>
    %889 = arith.divf %887, %888 : vector<32x128xf32>
    %890 = arith.mulf %881, %863 : vector<32x128xf32>
    %891 = arith.mulf %875, %883 : vector<32x128xf32>
    %892 = arith.addf %890, %891 : vector<32x128xf32>
    %893 = math.tanh %892 : vector<32x128xf32>
    %894 = arith.mulf %889, %893 : vector<32x128xf32>
    %895 = vector.broadcast %c6_i32 : i32 to vector<32x1xi32>
    %896 = vector.broadcast %864 : i32 to vector<32x1xi32>
    %897 = arith.select %598, %895, %896 : vector<32x1xi1>, vector<32x1xi32>
    %898 = vector.broadcast %897 : vector<32x1xi32> to vector<32x128xi32>
    %899 = vector.broadcast %3 : vector<1x128xi32> to vector<32x128xi32>
    %900 = arith.cmpi slt, %898, %899 : vector<32x128xi32>
    %901 = arith.select %900, %894, %599 : vector<32x128xi1>, vector<32x128xf32>
    %902 = arith.index_cast %c6_i32 : i32 to index
    %c0_493 = arith.constant 0 : index
    %c0_494 = arith.constant 0 : index
    %903 = vector.load %arg6[%902, %c0_493, %c0_494] : memref<16x32x128xf32, #tpu.memory_space<vmem>>, vector<1x32x128xf32>
    %904 = vector.shape_cast %903 : vector<1x32x128xf32> to vector<32x128xf32>
    %905 = vector.shape_cast %901 : vector<32x128xf32> to vector<1x32x128xf32>
    tpu.vector_store %arg6[%902, %c0_493, %c0_494], %905 {strides = array<i32>} : memref<16x32x128xf32, #tpu.memory_space<vmem>>, vector<1x32x128xf32>,
    %906 = arith.select %900, %894, %862 : vector<32x128xi1>, vector<32x128xf32>
    %907 = arith.select %900, %892, %863 : vector<32x128xi1>, vector<32x128xf32>
    %c7_i32 = arith.constant 7 : i32
    %c15_i32_495 = arith.constant 15 : i32
    %908 = arith.subi %c15_i32_495, %c7_i32 : i32
    %909 = arith.index_cast %c7_i32 : i32 to index
    %c0_496 = arith.constant 0 : index
    %c0_497 = arith.constant 0 : index
    %910 = vector.load %arg7[%909, %c0_496, %c0_497] : memref<16x128x128xf32, #tpu.memory_space<vmem>>, vector<1x128x128xf32>
    %911 = vector.shape_cast %910 : vector<1x128x128xf32> to vector<128x128xf32>
    %cst_498 = arith.constant dense<0.000000e+00> : vector<128x128xf32>
    %912 = tpu.matmul %2, %906, %cst_498 {dimension_numbers = #tpu.dot_dimension_numbers<[1], [0], [0], [1], [0, 0, 1, 1], [], []>} : vector<128x32xf32>, vector<32x128xf32>, vector<128x128xf32> -> vector<128x128xf32>
    %913 = arith.addf %911, %912 : vector<128x128xf32>
    %914 = vector.extract_strided_slice %913 {offsets = [0, 0], sizes = [32, 128], strides = [1, 1]} : vector<128x128xf32> to vector<32x128xf32>
    %915 = arith.negf %914 : vector<32x128xf32>
    %916 = math.exp %915 : vector<32x128xf32>
    %cst_499 = arith.constant 1.000000e+00 : f32
    %917 = vector.broadcast %cst_499 : f32 to vector<32x128xf32>
    %918 = arith.addf %917, %916 : vector<32x128xf32>
    %919 = arith.divf %917, %918 : vector<32x128xf32>
    %920 = vector.extract_strided_slice %913 {offsets = [32, 0], sizes = [32, 128], strides = [1, 1]} : vector<128x128xf32> to vector<32x128xf32>
    %921 = arith.negf %920 : vector<32x128xf32>
    %922 = math.exp %921 : vector<32x128xf32>
    %cst_500 = arith.constant 1.000000e+00 : f32
    %923 = vector.broadcast %cst_500 : f32 to vector<32x128xf32>
    %924 = arith.addf %923, %922 : vector<32x128xf32>
    %925 = arith.divf %923, %924 : vector<32x128xf32>
    %926 = vector.extract_strided_slice %913 {offsets = [64, 0], sizes = [32, 128], strides = [1, 1]} : vector<128x128xf32> to vector<32x128xf32>
    %927 = math.tanh %926 : vector<32x128xf32>
    %928 = vector.extract_strided_slice %913 {offsets = [96, 0], sizes = [32, 128], strides = [1, 1]} : vector<128x128xf32> to vector<32x128xf32>
    %929 = arith.negf %928 : vector<32x128xf32>
    %930 = math.exp %929 : vector<32x128xf32>
    %cst_501 = arith.constant 1.000000e+00 : f32
    %931 = vector.broadcast %cst_501 : f32 to vector<32x128xf32>
    %932 = arith.addf %931, %930 : vector<32x128xf32>
    %933 = arith.divf %931, %932 : vector<32x128xf32>
    %934 = arith.mulf %925, %907 : vector<32x128xf32>
    %935 = arith.mulf %919, %927 : vector<32x128xf32>
    %936 = arith.addf %934, %935 : vector<32x128xf32>
    %937 = math.tanh %936 : vector<32x128xf32>
    %938 = arith.mulf %933, %937 : vector<32x128xf32>
    %939 = vector.broadcast %c7_i32 : i32 to vector<32x1xi32>
    %940 = vector.broadcast %908 : i32 to vector<32x1xi32>
    %941 = arith.select %598, %939, %940 : vector<32x1xi1>, vector<32x1xi32>
    %942 = vector.broadcast %941 : vector<32x1xi32> to vector<32x128xi32>
    %943 = vector.broadcast %3 : vector<1x128xi32> to vector<32x128xi32>
    %944 = arith.cmpi slt, %942, %943 : vector<32x128xi32>
    %945 = arith.select %944, %938, %599 : vector<32x128xi1>, vector<32x128xf32>
    %946 = arith.index_cast %c7_i32 : i32 to index
    %c0_502 = arith.constant 0 : index
    %c0_503 = arith.constant 0 : index
    %947 = vector.load %arg6[%946, %c0_502, %c0_503] : memref<16x32x128xf32, #tpu.memory_space<vmem>>, vector<1x32x128xf32>
    %948 = vector.shape_cast %947 : vector<1x32x128xf32> to vector<32x128xf32>
    %949 = vector.shape_cast %945 : vector<32x128xf32> to vector<1x32x128xf32>
    tpu.vector_store %arg6[%946, %c0_502, %c0_503], %949 {strides = array<i32>} : memref<16x32x128xf32, #tpu.memory_space<vmem>>, vector<1x32x128xf32>,
    %950 = arith.select %944, %938, %906 : vector<32x128xi1>, vector<32x128xf32>
    %951 = arith.select %944, %936, %907 : vector<32x128xi1>, vector<32x128xf32>
    %c8_i32 = arith.constant 8 : i32
    %c15_i32_504 = arith.constant 15 : i32
    %952 = arith.subi %c15_i32_504, %c8_i32 : i32
    %953 = arith.index_cast %c8_i32 : i32 to index
    %c0_505 = arith.constant 0 : index
    %c0_506 = arith.constant 0 : index
    %954 = vector.load %arg7[%953, %c0_505, %c0_506] : memref<16x128x128xf32, #tpu.memory_space<vmem>>, vector<1x128x128xf32>
    %955 = vector.shape_cast %954 : vector<1x128x128xf32> to vector<128x128xf32>
    %cst_507 = arith.constant dense<0.000000e+00> : vector<128x128xf32>
    %956 = tpu.matmul %2, %950, %cst_507 {dimension_numbers = #tpu.dot_dimension_numbers<[1], [0], [0], [1], [0, 0, 1, 1], [], []>} : vector<128x32xf32>, vector<32x128xf32>, vector<128x128xf32> -> vector<128x128xf32>
    %957 = arith.addf %955, %956 : vector<128x128xf32>
    %958 = vector.extract_strided_slice %957 {offsets = [0, 0], sizes = [32, 128], strides = [1, 1]} : vector<128x128xf32> to vector<32x128xf32>
    %959 = arith.negf %958 : vector<32x128xf32>
    %960 = math.exp %959 : vector<32x128xf32>
    %cst_508 = arith.constant 1.000000e+00 : f32
    %961 = vector.broadcast %cst_508 : f32 to vector<32x128xf32>
    %962 = arith.addf %961, %960 : vector<32x128xf32>
    %963 = arith.divf %961, %962 : vector<32x128xf32>
    %964 = vector.extract_strided_slice %957 {offsets = [32, 0], sizes = [32, 128], strides = [1, 1]} : vector<128x128xf32> to vector<32x128xf32>
    %965 = arith.negf %964 : vector<32x128xf32>
    %966 = math.exp %965 : vector<32x128xf32>
    %cst_509 = arith.constant 1.000000e+00 : f32
    %967 = vector.broadcast %cst_509 : f32 to vector<32x128xf32>
    %968 = arith.addf %967, %966 : vector<32x128xf32>
    %969 = arith.divf %967, %968 : vector<32x128xf32>
    %970 = vector.extract_strided_slice %957 {offsets = [64, 0], sizes = [32, 128], strides = [1, 1]} : vector<128x128xf32> to vector<32x128xf32>
    %971 = math.tanh %970 : vector<32x128xf32>
    %972 = vector.extract_strided_slice %957 {offsets = [96, 0], sizes = [32, 128], strides = [1, 1]} : vector<128x128xf32> to vector<32x128xf32>
    %973 = arith.negf %972 : vector<32x128xf32>
    %974 = math.exp %973 : vector<32x128xf32>
    %cst_510 = arith.constant 1.000000e+00 : f32
    %975 = vector.broadcast %cst_510 : f32 to vector<32x128xf32>
    %976 = arith.addf %975, %974 : vector<32x128xf32>
    %977 = arith.divf %975, %976 : vector<32x128xf32>
    %978 = arith.mulf %969, %951 : vector<32x128xf32>
    %979 = arith.mulf %963, %971 : vector<32x128xf32>
    %980 = arith.addf %978, %979 : vector<32x128xf32>
    %981 = math.tanh %980 : vector<32x128xf32>
    %982 = arith.mulf %977, %981 : vector<32x128xf32>
    %983 = vector.broadcast %c8_i32 : i32 to vector<32x1xi32>
    %984 = vector.broadcast %952 : i32 to vector<32x1xi32>
    %985 = arith.select %598, %983, %984 : vector<32x1xi1>, vector<32x1xi32>
    %986 = vector.broadcast %985 : vector<32x1xi32> to vector<32x128xi32>
    %987 = vector.broadcast %3 : vector<1x128xi32> to vector<32x128xi32>
    %988 = arith.cmpi slt, %986, %987 : vector<32x128xi32>
    %989 = arith.select %988, %982, %599 : vector<32x128xi1>, vector<32x128xf32>
    %990 = arith.index_cast %c8_i32 : i32 to index
    %c0_511 = arith.constant 0 : index
    %c0_512 = arith.constant 0 : index
    %991 = vector.load %arg6[%990, %c0_511, %c0_512] : memref<16x32x128xf32, #tpu.memory_space<vmem>>, vector<1x32x128xf32>
    %992 = vector.shape_cast %991 : vector<1x32x128xf32> to vector<32x128xf32>
    %993 = vector.shape_cast %989 : vector<32x128xf32> to vector<1x32x128xf32>
    tpu.vector_store %arg6[%990, %c0_511, %c0_512], %993 {strides = array<i32>} : memref<16x32x128xf32, #tpu.memory_space<vmem>>, vector<1x32x128xf32>,
    %994 = arith.select %988, %982, %950 : vector<32x128xi1>, vector<32x128xf32>
    %995 = arith.select %988, %980, %951 : vector<32x128xi1>, vector<32x128xf32>
    %c9_i32 = arith.constant 9 : i32
    %c15_i32_513 = arith.constant 15 : i32
    %996 = arith.subi %c15_i32_513, %c9_i32 : i32
    %997 = arith.index_cast %c9_i32 : i32 to index
    %c0_514 = arith.constant 0 : index
    %c0_515 = arith.constant 0 : index
    %998 = vector.load %arg7[%997, %c0_514, %c0_515] : memref<16x128x128xf32, #tpu.memory_space<vmem>>, vector<1x128x128xf32>
    %999 = vector.shape_cast %998 : vector<1x128x128xf32> to vector<128x128xf32>
    %cst_516 = arith.constant dense<0.000000e+00> : vector<128x128xf32>
    %1000 = tpu.matmul %2, %994, %cst_516 {dimension_numbers = #tpu.dot_dimension_numbers<[1], [0], [0], [1], [0, 0, 1, 1], [], []>} : vector<128x32xf32>, vector<32x128xf32>, vector<128x128xf32> -> vector<128x128xf32>
    %1001 = arith.addf %999, %1000 : vector<128x128xf32>
    %1002 = vector.extract_strided_slice %1001 {offsets = [0, 0], sizes = [32, 128], strides = [1, 1]} : vector<128x128xf32> to vector<32x128xf32>
    %1003 = arith.negf %1002 : vector<32x128xf32>
    %1004 = math.exp %1003 : vector<32x128xf32>
    %cst_517 = arith.constant 1.000000e+00 : f32
    %1005 = vector.broadcast %cst_517 : f32 to vector<32x128xf32>
    %1006 = arith.addf %1005, %1004 : vector<32x128xf32>
    %1007 = arith.divf %1005, %1006 : vector<32x128xf32>
    %1008 = vector.extract_strided_slice %1001 {offsets = [32, 0], sizes = [32, 128], strides = [1, 1]} : vector<128x128xf32> to vector<32x128xf32>
    %1009 = arith.negf %1008 : vector<32x128xf32>
    %1010 = math.exp %1009 : vector<32x128xf32>
    %cst_518 = arith.constant 1.000000e+00 : f32
    %1011 = vector.broadcast %cst_518 : f32 to vector<32x128xf32>
    %1012 = arith.addf %1011, %1010 : vector<32x128xf32>
    %1013 = arith.divf %1011, %1012 : vector<32x128xf32>
    %1014 = vector.extract_strided_slice %1001 {offsets = [64, 0], sizes = [32, 128], strides = [1, 1]} : vector<128x128xf32> to vector<32x128xf32>
    %1015 = math.tanh %1014 : vector<32x128xf32>
    %1016 = vector.extract_strided_slice %1001 {offsets = [96, 0], sizes = [32, 128], strides = [1, 1]} : vector<128x128xf32> to vector<32x128xf32>
    %1017 = arith.negf %1016 : vector<32x128xf32>
    %1018 = math.exp %1017 : vector<32x128xf32>
    %cst_519 = arith.constant 1.000000e+00 : f32
    %1019 = vector.broadcast %cst_519 : f32 to vector<32x128xf32>
    %1020 = arith.addf %1019, %1018 : vector<32x128xf32>
    %1021 = arith.divf %1019, %1020 : vector<32x128xf32>
    %1022 = arith.mulf %1013, %995 : vector<32x128xf32>
    %1023 = arith.mulf %1007, %1015 : vector<32x128xf32>
    %1024 = arith.addf %1022, %1023 : vector<32x128xf32>
    %1025 = math.tanh %1024 : vector<32x128xf32>
    %1026 = arith.mulf %1021, %1025 : vector<32x128xf32>
    %1027 = vector.broadcast %c9_i32 : i32 to vector<32x1xi32>
    %1028 = vector.broadcast %996 : i32 to vector<32x1xi32>
    %1029 = arith.select %598, %1027, %1028 : vector<32x1xi1>, vector<32x1xi32>
    %1030 = vector.broadcast %1029 : vector<32x1xi32> to vector<32x128xi32>
    %1031 = vector.broadcast %3 : vector<1x128xi32> to vector<32x128xi32>
    %1032 = arith.cmpi slt, %1030, %1031 : vector<32x128xi32>
    %1033 = arith.select %1032, %1026, %599 : vector<32x128xi1>, vector<32x128xf32>
    %1034 = arith.index_cast %c9_i32 : i32 to index
    %c0_520 = arith.constant 0 : index
    %c0_521 = arith.constant 0 : index
    %1035 = vector.load %arg6[%1034, %c0_520, %c0_521] : memref<16x32x128xf32, #tpu.memory_space<vmem>>, vector<1x32x128xf32>
    %1036 = vector.shape_cast %1035 : vector<1x32x128xf32> to vector<32x128xf32>
    %1037 = vector.shape_cast %1033 : vector<32x128xf32> to vector<1x32x128xf32>
    tpu.vector_store %arg6[%1034, %c0_520, %c0_521], %1037 {strides = array<i32>} : memref<16x32x128xf32, #tpu.memory_space<vmem>>, vector<1x32x128xf32>,
    %1038 = arith.select %1032, %1026, %994 : vector<32x128xi1>, vector<32x128xf32>
    %1039 = arith.select %1032, %1024, %995 : vector<32x128xi1>, vector<32x128xf32>
    %c10_i32 = arith.constant 10 : i32
    %c15_i32_522 = arith.constant 15 : i32
    %1040 = arith.subi %c15_i32_522, %c10_i32 : i32
    %1041 = arith.index_cast %c10_i32 : i32 to index
    %c0_523 = arith.constant 0 : index
    %c0_524 = arith.constant 0 : index
    %1042 = vector.load %arg7[%1041, %c0_523, %c0_524] : memref<16x128x128xf32, #tpu.memory_space<vmem>>, vector<1x128x128xf32>
    %1043 = vector.shape_cast %1042 : vector<1x128x128xf32> to vector<128x128xf32>
    %cst_525 = arith.constant dense<0.000000e+00> : vector<128x128xf32>
    %1044 = tpu.matmul %2, %1038, %cst_525 {dimension_numbers = #tpu.dot_dimension_numbers<[1], [0], [0], [1], [0, 0, 1, 1], [], []>} : vector<128x32xf32>, vector<32x128xf32>, vector<128x128xf32> -> vector<128x128xf32>
    %1045 = arith.addf %1043, %1044 : vector<128x128xf32>
    %1046 = vector.extract_strided_slice %1045 {offsets = [0, 0], sizes = [32, 128], strides = [1, 1]} : vector<128x128xf32> to vector<32x128xf32>
    %1047 = arith.negf %1046 : vector<32x128xf32>
    %1048 = math.exp %1047 : vector<32x128xf32>
    %cst_526 = arith.constant 1.000000e+00 : f32
    %1049 = vector.broadcast %cst_526 : f32 to vector<32x128xf32>
    %1050 = arith.addf %1049, %1048 : vector<32x128xf32>
    %1051 = arith.divf %1049, %1050 : vector<32x128xf32>
    %1052 = vector.extract_strided_slice %1045 {offsets = [32, 0], sizes = [32, 128], strides = [1, 1]} : vector<128x128xf32> to vector<32x128xf32>
    %1053 = arith.negf %1052 : vector<32x128xf32>
    %1054 = math.exp %1053 : vector<32x128xf32>
    %cst_527 = arith.constant 1.000000e+00 : f32
    %1055 = vector.broadcast %cst_527 : f32 to vector<32x128xf32>
    %1056 = arith.addf %1055, %1054 : vector<32x128xf32>
    %1057 = arith.divf %1055, %1056 : vector<32x128xf32>
    %1058 = vector.extract_strided_slice %1045 {offsets = [64, 0], sizes = [32, 128], strides = [1, 1]} : vector<128x128xf32> to vector<32x128xf32>
    %1059 = math.tanh %1058 : vector<32x128xf32>
    %1060 = vector.extract_strided_slice %1045 {offsets = [96, 0], sizes = [32, 128], strides = [1, 1]} : vector<128x128xf32> to vector<32x128xf32>
    %1061 = arith.negf %1060 : vector<32x128xf32>
    %1062 = math.exp %1061 : vector<32x128xf32>
    %cst_528 = arith.constant 1.000000e+00 : f32
    %1063 = vector.broadcast %cst_528 : f32 to vector<32x128xf32>
    %1064 = arith.addf %1063, %1062 : vector<32x128xf32>
    %1065 = arith.divf %1063, %1064 : vector<32x128xf32>
    %1066 = arith.mulf %1057, %1039 : vector<32x128xf32>
    %1067 = arith.mulf %1051, %1059 : vector<32x128xf32>
    %1068 = arith.addf %1066, %1067 : vector<32x128xf32>
    %1069 = math.tanh %1068 : vector<32x128xf32>
    %1070 = arith.mulf %1065, %1069 : vector<32x128xf32>
    %1071 = vector.broadcast %c10_i32 : i32 to vector<32x1xi32>
    %1072 = vector.broadcast %1040 : i32 to vector<32x1xi32>
    %1073 = arith.select %598, %1071, %1072 : vector<32x1xi1>, vector<32x1xi32>
    %1074 = vector.broadcast %1073 : vector<32x1xi32> to vector<32x128xi32>
    %1075 = vector.broadcast %3 : vector<1x128xi32> to vector<32x128xi32>
    %1076 = arith.cmpi slt, %1074, %1075 : vector<32x128xi32>
    %1077 = arith.select %1076, %1070, %599 : vector<32x128xi1>, vector<32x128xf32>
    %1078 = arith.index_cast %c10_i32 : i32 to index
    %c0_529 = arith.constant 0 : index
    %c0_530 = arith.constant 0 : index
    %1079 = vector.load %arg6[%1078, %c0_529, %c0_530] : memref<16x32x128xf32, #tpu.memory_space<vmem>>, vector<1x32x128xf32>
    %1080 = vector.shape_cast %1079 : vector<1x32x128xf32> to vector<32x128xf32>
    %1081 = vector.shape_cast %1077 : vector<32x128xf32> to vector<1x32x128xf32>
    tpu.vector_store %arg6[%1078, %c0_529, %c0_530], %1081 {strides = array<i32>} : memref<16x32x128xf32, #tpu.memory_space<vmem>>, vector<1x32x128xf32>,
    %1082 = arith.select %1076, %1070, %1038 : vector<32x128xi1>, vector<32x128xf32>
    %1083 = arith.select %1076, %1068, %1039 : vector<32x128xi1>, vector<32x128xf32>
    %c11_i32 = arith.constant 11 : i32
    %c15_i32_531 = arith.constant 15 : i32
    %1084 = arith.subi %c15_i32_531, %c11_i32 : i32
    %1085 = arith.index_cast %c11_i32 : i32 to index
    %c0_532 = arith.constant 0 : index
    %c0_533 = arith.constant 0 : index
    %1086 = vector.load %arg7[%1085, %c0_532, %c0_533] : memref<16x128x128xf32, #tpu.memory_space<vmem>>, vector<1x128x128xf32>
    %1087 = vector.shape_cast %1086 : vector<1x128x128xf32> to vector<128x128xf32>
    %cst_534 = arith.constant dense<0.000000e+00> : vector<128x128xf32>
    %1088 = tpu.matmul %2, %1082, %cst_534 {dimension_numbers = #tpu.dot_dimension_numbers<[1], [0], [0], [1], [0, 0, 1, 1], [], []>} : vector<128x32xf32>, vector<32x128xf32>, vector<128x128xf32> -> vector<128x128xf32>
    %1089 = arith.addf %1087, %1088 : vector<128x128xf32>
    %1090 = vector.extract_strided_slice %1089 {offsets = [0, 0], sizes = [32, 128], strides = [1, 1]} : vector<128x128xf32> to vector<32x128xf32>
    %1091 = arith.negf %1090 : vector<32x128xf32>
    %1092 = math.exp %1091 : vector<32x128xf32>
    %cst_535 = arith.constant 1.000000e+00 : f32
    %1093 = vector.broadcast %cst_535 : f32 to vector<32x128xf32>
    %1094 = arith.addf %1093, %1092 : vector<32x128xf32>
    %1095 = arith.divf %1093, %1094 : vector<32x128xf32>
    %1096 = vector.extract_strided_slice %1089 {offsets = [32, 0], sizes = [32, 128], strides = [1, 1]} : vector<128x128xf32> to vector<32x128xf32>
    %1097 = arith.negf %1096 : vector<32x128xf32>
    %1098 = math.exp %1097 : vector<32x128xf32>
    %cst_536 = arith.constant 1.000000e+00 : f32
    %1099 = vector.broadcast %cst_536 : f32 to vector<32x128xf32>
    %1100 = arith.addf %1099, %1098 : vector<32x128xf32>
    %1101 = arith.divf %1099, %1100 : vector<32x128xf32>
    %1102 = vector.extract_strided_slice %1089 {offsets = [64, 0], sizes = [32, 128], strides = [1, 1]} : vector<128x128xf32> to vector<32x128xf32>
    %1103 = math.tanh %1102 : vector<32x128xf32>
    %1104 = vector.extract_strided_slice %1089 {offsets = [96, 0], sizes = [32, 128], strides = [1, 1]} : vector<128x128xf32> to vector<32x128xf32>
    %1105 = arith.negf %1104 : vector<32x128xf32>
    %1106 = math.exp %1105 : vector<32x128xf32>
    %cst_537 = arith.constant 1.000000e+00 : f32
    %1107 = vector.broadcast %cst_537 : f32 to vector<32x128xf32>
    %1108 = arith.addf %1107, %1106 : vector<32x128xf32>
    %1109 = arith.divf %1107, %1108 : vector<32x128xf32>
    %1110 = arith.mulf %1101, %1083 : vector<32x128xf32>
    %1111 = arith.mulf %1095, %1103 : vector<32x128xf32>
    %1112 = arith.addf %1110, %1111 : vector<32x128xf32>
    %1113 = math.tanh %1112 : vector<32x128xf32>
    %1114 = arith.mulf %1109, %1113 : vector<32x128xf32>
    %1115 = vector.broadcast %c11_i32 : i32 to vector<32x1xi32>
    %1116 = vector.broadcast %1084 : i32 to vector<32x1xi32>
    %1117 = arith.select %598, %1115, %1116 : vector<32x1xi1>, vector<32x1xi32>
    %1118 = vector.broadcast %1117 : vector<32x1xi32> to vector<32x128xi32>
    %1119 = vector.broadcast %3 : vector<1x128xi32> to vector<32x128xi32>
    %1120 = arith.cmpi slt, %1118, %1119 : vector<32x128xi32>
    %1121 = arith.select %1120, %1114, %599 : vector<32x128xi1>, vector<32x128xf32>
    %1122 = arith.index_cast %c11_i32 : i32 to index
    %c0_538 = arith.constant 0 : index
    %c0_539 = arith.constant 0 : index
    %1123 = vector.load %arg6[%1122, %c0_538, %c0_539] : memref<16x32x128xf32, #tpu.memory_space<vmem>>, vector<1x32x128xf32>
    %1124 = vector.shape_cast %1123 : vector<1x32x128xf32> to vector<32x128xf32>
    %1125 = vector.shape_cast %1121 : vector<32x128xf32> to vector<1x32x128xf32>
    tpu.vector_store %arg6[%1122, %c0_538, %c0_539], %1125 {strides = array<i32>} : memref<16x32x128xf32, #tpu.memory_space<vmem>>, vector<1x32x128xf32>,
    %1126 = arith.select %1120, %1114, %1082 : vector<32x128xi1>, vector<32x128xf32>
    %1127 = arith.select %1120, %1112, %1083 : vector<32x128xi1>, vector<32x128xf32>
    %c12_i32 = arith.constant 12 : i32
    %c15_i32_540 = arith.constant 15 : i32
    %1128 = arith.subi %c15_i32_540, %c12_i32 : i32
    %1129 = arith.index_cast %c12_i32 : i32 to index
    %c0_541 = arith.constant 0 : index
    %c0_542 = arith.constant 0 : index
    %1130 = vector.load %arg7[%1129, %c0_541, %c0_542] : memref<16x128x128xf32, #tpu.memory_space<vmem>>, vector<1x128x128xf32>
    %1131 = vector.shape_cast %1130 : vector<1x128x128xf32> to vector<128x128xf32>
    %cst_543 = arith.constant dense<0.000000e+00> : vector<128x128xf32>
    %1132 = tpu.matmul %2, %1126, %cst_543 {dimension_numbers = #tpu.dot_dimension_numbers<[1], [0], [0], [1], [0, 0, 1, 1], [], []>} : vector<128x32xf32>, vector<32x128xf32>, vector<128x128xf32> -> vector<128x128xf32>
    %1133 = arith.addf %1131, %1132 : vector<128x128xf32>
    %1134 = vector.extract_strided_slice %1133 {offsets = [0, 0], sizes = [32, 128], strides = [1, 1]} : vector<128x128xf32> to vector<32x128xf32>
    %1135 = arith.negf %1134 : vector<32x128xf32>
    %1136 = math.exp %1135 : vector<32x128xf32>
    %cst_544 = arith.constant 1.000000e+00 : f32
    %1137 = vector.broadcast %cst_544 : f32 to vector<32x128xf32>
    %1138 = arith.addf %1137, %1136 : vector<32x128xf32>
    %1139 = arith.divf %1137, %1138 : vector<32x128xf32>
    %1140 = vector.extract_strided_slice %1133 {offsets = [32, 0], sizes = [32, 128], strides = [1, 1]} : vector<128x128xf32> to vector<32x128xf32>
    %1141 = arith.negf %1140 : vector<32x128xf32>
    %1142 = math.exp %1141 : vector<32x128xf32>
    %cst_545 = arith.constant 1.000000e+00 : f32
    %1143 = vector.broadcast %cst_545 : f32 to vector<32x128xf32>
    %1144 = arith.addf %1143, %1142 : vector<32x128xf32>
    %1145 = arith.divf %1143, %1144 : vector<32x128xf32>
    %1146 = vector.extract_strided_slice %1133 {offsets = [64, 0], sizes = [32, 128], strides = [1, 1]} : vector<128x128xf32> to vector<32x128xf32>
    %1147 = math.tanh %1146 : vector<32x128xf32>
    %1148 = vector.extract_strided_slice %1133 {offsets = [96, 0], sizes = [32, 128], strides = [1, 1]} : vector<128x128xf32> to vector<32x128xf32>
    %1149 = arith.negf %1148 : vector<32x128xf32>
    %1150 = math.exp %1149 : vector<32x128xf32>
    %cst_546 = arith.constant 1.000000e+00 : f32
    %1151 = vector.broadcast %cst_546 : f32 to vector<32x128xf32>
    %1152 = arith.addf %1151, %1150 : vector<32x128xf32>
    %1153 = arith.divf %1151, %1152 : vector<32x128xf32>
    %1154 = arith.mulf %1145, %1127 : vector<32x128xf32>
    %1155 = arith.mulf %1139, %1147 : vector<32x128xf32>
    %1156 = arith.addf %1154, %1155 : vector<32x128xf32>
    %1157 = math.tanh %1156 : vector<32x128xf32>
    %1158 = arith.mulf %1153, %1157 : vector<32x128xf32>
    %1159 = vector.broadcast %c12_i32 : i32 to vector<32x1xi32>
    %1160 = vector.broadcast %1128 : i32 to vector<32x1xi32>
    %1161 = arith.select %598, %1159, %1160 : vector<32x1xi1>, vector<32x1xi32>
    %1162 = vector.broadcast %1161 : vector<32x1xi32> to vector<32x128xi32>
    %1163 = vector.broadcast %3 : vector<1x128xi32> to vector<32x128xi32>
    %1164 = arith.cmpi slt, %1162, %1163 : vector<32x128xi32>
    %1165 = arith.select %1164, %1158, %599 : vector<32x128xi1>, vector<32x128xf32>
    %1166 = arith.index_cast %c12_i32 : i32 to index
    %c0_547 = arith.constant 0 : index
    %c0_548 = arith.constant 0 : index
    %1167 = vector.load %arg6[%1166, %c0_547, %c0_548] : memref<16x32x128xf32, #tpu.memory_space<vmem>>, vector<1x32x128xf32>
    %1168 = vector.shape_cast %1167 : vector<1x32x128xf32> to vector<32x128xf32>
    %1169 = vector.shape_cast %1165 : vector<32x128xf32> to vector<1x32x128xf32>
    tpu.vector_store %arg6[%1166, %c0_547, %c0_548], %1169 {strides = array<i32>} : memref<16x32x128xf32, #tpu.memory_space<vmem>>, vector<1x32x128xf32>,
    %1170 = arith.select %1164, %1158, %1126 : vector<32x128xi1>, vector<32x128xf32>
    %1171 = arith.select %1164, %1156, %1127 : vector<32x128xi1>, vector<32x128xf32>
    %c13_i32 = arith.constant 13 : i32
    %c15_i32_549 = arith.constant 15 : i32
    %1172 = arith.subi %c15_i32_549, %c13_i32 : i32
    %1173 = arith.index_cast %c13_i32 : i32 to index
    %c0_550 = arith.constant 0 : index
    %c0_551 = arith.constant 0 : index
    %1174 = vector.load %arg7[%1173, %c0_550, %c0_551] : memref<16x128x128xf32, #tpu.memory_space<vmem>>, vector<1x128x128xf32>
    %1175 = vector.shape_cast %1174 : vector<1x128x128xf32> to vector<128x128xf32>
    %cst_552 = arith.constant dense<0.000000e+00> : vector<128x128xf32>
    %1176 = tpu.matmul %2, %1170, %cst_552 {dimension_numbers = #tpu.dot_dimension_numbers<[1], [0], [0], [1], [0, 0, 1, 1], [], []>} : vector<128x32xf32>, vector<32x128xf32>, vector<128x128xf32> -> vector<128x128xf32>
    %1177 = arith.addf %1175, %1176 : vector<128x128xf32>
    %1178 = vector.extract_strided_slice %1177 {offsets = [0, 0], sizes = [32, 128], strides = [1, 1]} : vector<128x128xf32> to vector<32x128xf32>
    %1179 = arith.negf %1178 : vector<32x128xf32>
    %1180 = math.exp %1179 : vector<32x128xf32>
    %cst_553 = arith.constant 1.000000e+00 : f32
    %1181 = vector.broadcast %cst_553 : f32 to vector<32x128xf32>
    %1182 = arith.addf %1181, %1180 : vector<32x128xf32>
    %1183 = arith.divf %1181, %1182 : vector<32x128xf32>
    %1184 = vector.extract_strided_slice %1177 {offsets = [32, 0], sizes = [32, 128], strides = [1, 1]} : vector<128x128xf32> to vector<32x128xf32>
    %1185 = arith.negf %1184 : vector<32x128xf32>
    %1186 = math.exp %1185 : vector<32x128xf32>
    %cst_554 = arith.constant 1.000000e+00 : f32
    %1187 = vector.broadcast %cst_554 : f32 to vector<32x128xf32>
    %1188 = arith.addf %1187, %1186 : vector<32x128xf32>
    %1189 = arith.divf %1187, %1188 : vector<32x128xf32>
    %1190 = vector.extract_strided_slice %1177 {offsets = [64, 0], sizes = [32, 128], strides = [1, 1]} : vector<128x128xf32> to vector<32x128xf32>
    %1191 = math.tanh %1190 : vector<32x128xf32>
    %1192 = vector.extract_strided_slice %1177 {offsets = [96, 0], sizes = [32, 128], strides = [1, 1]} : vector<128x128xf32> to vector<32x128xf32>
    %1193 = arith.negf %1192 : vector<32x128xf32>
    %1194 = math.exp %1193 : vector<32x128xf32>
    %cst_555 = arith.constant 1.000000e+00 : f32
    %1195 = vector.broadcast %cst_555 : f32 to vector<32x128xf32>
    %1196 = arith.addf %1195, %1194 : vector<32x128xf32>
    %1197 = arith.divf %1195, %1196 : vector<32x128xf32>
    %1198 = arith.mulf %1189, %1171 : vector<32x128xf32>
    %1199 = arith.mulf %1183, %1191 : vector<32x128xf32>
    %1200 = arith.addf %1198, %1199 : vector<32x128xf32>
    %1201 = math.tanh %1200 : vector<32x128xf32>
    %1202 = arith.mulf %1197, %1201 : vector<32x128xf32>
    %1203 = vector.broadcast %c13_i32 : i32 to vector<32x1xi32>
    %1204 = vector.broadcast %1172 : i32 to vector<32x1xi32>
    %1205 = arith.select %598, %1203, %1204 : vector<32x1xi1>, vector<32x1xi32>
    %1206 = vector.broadcast %1205 : vector<32x1xi32> to vector<32x128xi32>
    %1207 = vector.broadcast %3 : vector<1x128xi32> to vector<32x128xi32>
    %1208 = arith.cmpi slt, %1206, %1207 : vector<32x128xi32>
    %1209 = arith.select %1208, %1202, %599 : vector<32x128xi1>, vector<32x128xf32>
    %1210 = arith.index_cast %c13_i32 : i32 to index
    %c0_556 = arith.constant 0 : index
    %c0_557 = arith.constant 0 : index
    %1211 = vector.load %arg6[%1210, %c0_556, %c0_557] : memref<16x32x128xf32, #tpu.memory_space<vmem>>, vector<1x32x128xf32>
    %1212 = vector.shape_cast %1211 : vector<1x32x128xf32> to vector<32x128xf32>
    %1213 = vector.shape_cast %1209 : vector<32x128xf32> to vector<1x32x128xf32>
    tpu.vector_store %arg6[%1210, %c0_556, %c0_557], %1213 {strides = array<i32>} : memref<16x32x128xf32, #tpu.memory_space<vmem>>, vector<1x32x128xf32>,
    %1214 = arith.select %1208, %1202, %1170 : vector<32x128xi1>, vector<32x128xf32>
    %1215 = arith.select %1208, %1200, %1171 : vector<32x128xi1>, vector<32x128xf32>
    %c14_i32 = arith.constant 14 : i32
    %c15_i32_558 = arith.constant 15 : i32
    %1216 = arith.subi %c15_i32_558, %c14_i32 : i32
    %1217 = arith.index_cast %c14_i32 : i32 to index
    %c0_559 = arith.constant 0 : index
    %c0_560 = arith.constant 0 : index
    %1218 = vector.load %arg7[%1217, %c0_559, %c0_560] : memref<16x128x128xf32, #tpu.memory_space<vmem>>, vector<1x128x128xf32>
    %1219 = vector.shape_cast %1218 : vector<1x128x128xf32> to vector<128x128xf32>
    %cst_561 = arith.constant dense<0.000000e+00> : vector<128x128xf32>
    %1220 = tpu.matmul %2, %1214, %cst_561 {dimension_numbers = #tpu.dot_dimension_numbers<[1], [0], [0], [1], [0, 0, 1, 1], [], []>} : vector<128x32xf32>, vector<32x128xf32>, vector<128x128xf32> -> vector<128x128xf32>
    %1221 = arith.addf %1219, %1220 : vector<128x128xf32>
    %1222 = vector.extract_strided_slice %1221 {offsets = [0, 0], sizes = [32, 128], strides = [1, 1]} : vector<128x128xf32> to vector<32x128xf32>
    %1223 = arith.negf %1222 : vector<32x128xf32>
    %1224 = math.exp %1223 : vector<32x128xf32>
    %cst_562 = arith.constant 1.000000e+00 : f32
    %1225 = vector.broadcast %cst_562 : f32 to vector<32x128xf32>
    %1226 = arith.addf %1225, %1224 : vector<32x128xf32>
    %1227 = arith.divf %1225, %1226 : vector<32x128xf32>
    %1228 = vector.extract_strided_slice %1221 {offsets = [32, 0], sizes = [32, 128], strides = [1, 1]} : vector<128x128xf32> to vector<32x128xf32>
    %1229 = arith.negf %1228 : vector<32x128xf32>
    %1230 = math.exp %1229 : vector<32x128xf32>
    %cst_563 = arith.constant 1.000000e+00 : f32
    %1231 = vector.broadcast %cst_563 : f32 to vector<32x128xf32>
    %1232 = arith.addf %1231, %1230 : vector<32x128xf32>
    %1233 = arith.divf %1231, %1232 : vector<32x128xf32>
    %1234 = vector.extract_strided_slice %1221 {offsets = [64, 0], sizes = [32, 128], strides = [1, 1]} : vector<128x128xf32> to vector<32x128xf32>
    %1235 = math.tanh %1234 : vector<32x128xf32>
    %1236 = vector.extract_strided_slice %1221 {offsets = [96, 0], sizes = [32, 128], strides = [1, 1]} : vector<128x128xf32> to vector<32x128xf32>
    %1237 = arith.negf %1236 : vector<32x128xf32>
    %1238 = math.exp %1237 : vector<32x128xf32>
    %cst_564 = arith.constant 1.000000e+00 : f32
    %1239 = vector.broadcast %cst_564 : f32 to vector<32x128xf32>
    %1240 = arith.addf %1239, %1238 : vector<32x128xf32>
    %1241 = arith.divf %1239, %1240 : vector<32x128xf32>
    %1242 = arith.mulf %1233, %1215 : vector<32x128xf32>
    %1243 = arith.mulf %1227, %1235 : vector<32x128xf32>
    %1244 = arith.addf %1242, %1243 : vector<32x128xf32>
    %1245 = math.tanh %1244 : vector<32x128xf32>
    %1246 = arith.mulf %1241, %1245 : vector<32x128xf32>
    %1247 = vector.broadcast %c14_i32 : i32 to vector<32x1xi32>
    %1248 = vector.broadcast %1216 : i32 to vector<32x1xi32>
    %1249 = arith.select %598, %1247, %1248 : vector<32x1xi1>, vector<32x1xi32>
    %1250 = vector.broadcast %1249 : vector<32x1xi32> to vector<32x128xi32>
    %1251 = vector.broadcast %3 : vector<1x128xi32> to vector<32x128xi32>
    %1252 = arith.cmpi slt, %1250, %1251 : vector<32x128xi32>
    %1253 = arith.select %1252, %1246, %599 : vector<32x128xi1>, vector<32x128xf32>
    %1254 = arith.index_cast %c14_i32 : i32 to index
    %c0_565 = arith.constant 0 : index
    %c0_566 = arith.constant 0 : index
    %1255 = vector.load %arg6[%1254, %c0_565, %c0_566] : memref<16x32x128xf32, #tpu.memory_space<vmem>>, vector<1x32x128xf32>
    %1256 = vector.shape_cast %1255 : vector<1x32x128xf32> to vector<32x128xf32>
    %1257 = vector.shape_cast %1253 : vector<32x128xf32> to vector<1x32x128xf32>
    tpu.vector_store %arg6[%1254, %c0_565, %c0_566], %1257 {strides = array<i32>} : memref<16x32x128xf32, #tpu.memory_space<vmem>>, vector<1x32x128xf32>,
    %1258 = arith.select %1252, %1246, %1214 : vector<32x128xi1>, vector<32x128xf32>
    %1259 = arith.select %1252, %1244, %1215 : vector<32x128xi1>, vector<32x128xf32>
    %c15_i32_567 = arith.constant 15 : i32
    %c15_i32_568 = arith.constant 15 : i32
    %1260 = arith.subi %c15_i32_568, %c15_i32_567 : i32
    %1261 = arith.index_cast %c15_i32_567 : i32 to index
    %c0_569 = arith.constant 0 : index
    %c0_570 = arith.constant 0 : index
    %1262 = vector.load %arg7[%1261, %c0_569, %c0_570] : memref<16x128x128xf32, #tpu.memory_space<vmem>>, vector<1x128x128xf32>
    %1263 = vector.shape_cast %1262 : vector<1x128x128xf32> to vector<128x128xf32>
    %cst_571 = arith.constant dense<0.000000e+00> : vector<128x128xf32>
    %1264 = tpu.matmul %2, %1258, %cst_571 {dimension_numbers = #tpu.dot_dimension_numbers<[1], [0], [0], [1], [0, 0, 1, 1], [], []>} : vector<128x32xf32>, vector<32x128xf32>, vector<128x128xf32> -> vector<128x128xf32>
    %1265 = arith.addf %1263, %1264 : vector<128x128xf32>
    %1266 = vector.extract_strided_slice %1265 {offsets = [0, 0], sizes = [32, 128], strides = [1, 1]} : vector<128x128xf32> to vector<32x128xf32>
    %1267 = arith.negf %1266 : vector<32x128xf32>
    %1268 = math.exp %1267 : vector<32x128xf32>
    %cst_572 = arith.constant 1.000000e+00 : f32
    %1269 = vector.broadcast %cst_572 : f32 to vector<32x128xf32>
    %1270 = arith.addf %1269, %1268 : vector<32x128xf32>
    %1271 = arith.divf %1269, %1270 : vector<32x128xf32>
    %1272 = vector.extract_strided_slice %1265 {offsets = [32, 0], sizes = [32, 128], strides = [1, 1]} : vector<128x128xf32> to vector<32x128xf32>
    %1273 = arith.negf %1272 : vector<32x128xf32>
    %1274 = math.exp %1273 : vector<32x128xf32>
    %cst_573 = arith.constant 1.000000e+00 : f32
    %1275 = vector.broadcast %cst_573 : f32 to vector<32x128xf32>
    %1276 = arith.addf %1275, %1274 : vector<32x128xf32>
    %1277 = arith.divf %1275, %1276 : vector<32x128xf32>
    %1278 = vector.extract_strided_slice %1265 {offsets = [64, 0], sizes = [32, 128], strides = [1, 1]} : vector<128x128xf32> to vector<32x128xf32>
    %1279 = math.tanh %1278 : vector<32x128xf32>
    %1280 = vector.extract_strided_slice %1265 {offsets = [96, 0], sizes = [32, 128], strides = [1, 1]} : vector<128x128xf32> to vector<32x128xf32>
    %1281 = arith.negf %1280 : vector<32x128xf32>
    %1282 = math.exp %1281 : vector<32x128xf32>
    %cst_574 = arith.constant 1.000000e+00 : f32
    %1283 = vector.broadcast %cst_574 : f32 to vector<32x128xf32>
    %1284 = arith.addf %1283, %1282 : vector<32x128xf32>
    %1285 = arith.divf %1283, %1284 : vector<32x128xf32>
    %1286 = arith.mulf %1277, %1259 : vector<32x128xf32>
    %1287 = arith.mulf %1271, %1279 : vector<32x128xf32>
    %1288 = arith.addf %1286, %1287 : vector<32x128xf32>
    %1289 = math.tanh %1288 : vector<32x128xf32>
    %1290 = arith.mulf %1285, %1289 : vector<32x128xf32>
    %1291 = vector.broadcast %c15_i32_567 : i32 to vector<32x1xi32>
    %1292 = vector.broadcast %1260 : i32 to vector<32x1xi32>
    %1293 = arith.select %598, %1291, %1292 : vector<32x1xi1>, vector<32x1xi32>
    %1294 = vector.broadcast %1293 : vector<32x1xi32> to vector<32x128xi32>
    %1295 = vector.broadcast %3 : vector<1x128xi32> to vector<32x128xi32>
    %1296 = arith.cmpi slt, %1294, %1295 : vector<32x128xi32>
    %1297 = arith.select %1296, %1290, %599 : vector<32x128xi1>, vector<32x128xf32>
    %1298 = arith.index_cast %c15_i32_567 : i32 to index
    %c0_575 = arith.constant 0 : index
    %c0_576 = arith.constant 0 : index
    %1299 = vector.load %arg6[%1298, %c0_575, %c0_576] : memref<16x32x128xf32, #tpu.memory_space<vmem>>, vector<1x32x128xf32>
    %1300 = vector.shape_cast %1299 : vector<1x32x128xf32> to vector<32x128xf32>
    %1301 = vector.shape_cast %1297 : vector<32x128xf32> to vector<1x32x128xf32>
    tpu.vector_store %arg6[%1298, %c0_575, %c0_576], %1301 {strides = array<i32>} : memref<16x32x128xf32, #tpu.memory_space<vmem>>, vector<1x32x128xf32>,
    %1302 = arith.select %1296, %1290, %1258 : vector<32x128xi1>, vector<32x128xf32>
    %1303 = arith.select %1296, %1288, %1259 : vector<32x128xi1>, vector<32x128xf32>
    %c16_i32_577 = arith.constant 16 : i32
    return
  }
  func.func @transform_0(%arg0: i32) -> (i32, i32, i32) {
    %c0_i32 = arith.constant 0 : i32
    %c0_i32_0 = arith.constant 0 : i32
    %c0_i32_1 = arith.constant 0 : i32
    return %c0_i32, %c0_i32_0, %arg0 : i32, i32, i32
  }
  func.func @transform_1(%arg0: i32) -> (i32, i32) {
    %c0_i32 = arith.constant 0 : i32
    %c0_i32_0 = arith.constant 0 : i32
    return %c0_i32, %arg0 : i32, i32
  }
  func.func @transform_2(%arg0: i32) -> (i32, i32) {
    %c0_i32 = arith.constant 0 : i32
    %c0_i32_0 = arith.constant 0 : i32
    %c0_i32_1 = arith.constant 0 : i32
    return %c0_i32, %c0_i32_0 : i32, i32
  }
  func.func @transform_3(%arg0: i32) -> (i32, i32) {
    %c0_i32 = arith.constant 0 : i32
    %c0_i32_0 = arith.constant 0 : i32
    %c0_i32_1 = arith.constant 0 : i32
    return %c0_i32, %c0_i32_0 : i32, i32
  }
  func.func @transform_4(%arg0: i32) -> (i32, i32) {
    %c0_i32 = arith.constant 0 : i32
    %c0_i32_0 = arith.constant 0 : i32
    %c0_i32_1 = arith.constant 0 : i32
    return %c0_i32, %c0_i32_0 : i32, i32
  }
  func.func @transform_5(%arg0: i32) -> (i32, i32, i32) {
    %c0_i32 = arith.constant 0 : i32
    %c0_i32_0 = arith.constant 0 : i32
    %c0_i32_1 = arith.constant 0 : i32
    return %c0_i32, %c0_i32_0, %arg0 : i32, i32, i32
  }
}

</mosaic_0001>

<llo_original>
// kernel: char_bilstm_forward.1
$region0: #{char_bilstm_forward.1}
  #allocation0 [shape = 'u32[]', space=smem, size = 0x4, offset = 0x4, fixed_abs, tag = 'smem constant byte address 0x4 - core index']
  #allocation1 [shape = 'u32[144,128]{1,0:T(1,128)}', space=vmem, size = 0x12000, scoped, tag = 'internal scratch']
  #allocation2 [shape = 'f32[16,128,128]{2,1,0:T(8,128)}', space=vmem, size = 0x100000, scoped, tag = 'scratch operand']
  %s0 = inlined_call_operand.vmem [shape: f32[16,32,128], index: 0, kind: input, shape index: {}]
  %s1 = inlined_call_operand.vmem [shape: s32[1,128], index: 1, kind: input, shape index: {}]
  %s2 = inlined_call_operand.vmem [shape: f32[128,32], index: 2, kind: input, shape index: {}]
  %s3 = inlined_call_operand.vmem [shape: f32[128,1], index: 3, kind: input, shape index: {}]
  %s4 = inlined_call_operand.vmem [shape: f32[128,32], index: 4, kind: input, shape index: {}]
  %s5 = inlined_call_operand.vmem [shape: f32[16,32,128], index: 5, kind: output, shape index: {}]
  %s6 = sld [smem:[#allocation0]]
  $region30: #{char_bilstm_forward.1} parent=0
    _
  %s8 = ssub.s32 1, %s6
  %s9 = scalar_select 0, %s8, %s6
  // Predicated region
  $region2: #{char_bilstm_forward.1} parent=0 // pred_check
    _
  $region3: #{char_bilstm_forward.1} parent=0 // pred_check_branch
    %11 = sbr.rel (0) target = $region5
  $region4: #{char_bilstm_forward.1} parent=0 // pred_region
    _
  $region5: #{char_bilstm_forward.1} parent=0 // pred_fallthru
    _
  // Predicated region
  $region6: #{char_bilstm_forward.1} parent=0 // pred_check
    _
  $region7: #{char_bilstm_forward.1} parent=0 // pred_check_branch
    %13 = sbr.rel (0) target = $region9
  $region8: #{char_bilstm_forward.1} parent=0 // pred_region
    _
  $region9: #{char_bilstm_forward.1} parent=0 // pred_fallthru
    _
  // Predicated region
  $region10: #{char_bilstm_forward.1} parent=0 // pred_check
    _
  $region11: #{char_bilstm_forward.1} parent=0 // pred_check_branch
    %15 = sbr.rel (0) target = $region13
  $region12: #{char_bilstm_forward.1} parent=0 // pred_region
    _
  $region13: #{char_bilstm_forward.1} parent=0 // pred_fallthru
    _
  // Predicated region
  $region14: #{char_bilstm_forward.1} parent=0 // pred_check
    _
  $region15: #{char_bilstm_forward.1} parent=0 // pred_check_branch
    %17 = sbr.rel (0) target = $region17
  $region16: #{char_bilstm_forward.1} parent=0 // pred_region
    _
  $region17: #{char_bilstm_forward.1} parent=0 // pred_fallthru
    _
  // Predicated region
  $region18: #{char_bilstm_forward.1} parent=0 // pred_check
    _
  $region19: #{char_bilstm_forward.1} parent=0 // pred_check_branch
    %19 = sbr.rel (0) target = $region21
  $region20: #{char_bilstm_forward.1} parent=0 // pred_region
    _
  $region21: #{char_bilstm_forward.1} parent=0 // pred_fallthru
    _
  %v20 = vld [vmem:[%s2] sm:$0xff]
  %v21 = vld [vmem:[%s2 + $0x8] sm:$0xff]
  %v22 = vld [vmem:[%s2 + $0x10] sm:$0xff]
  %v23 = vld [vmem:[%s2 + $0x18] sm:$0xff]
  %v24 = vld [vmem:[%s2 + $0x20] sm:$0xff]
  %v25 = vld [vmem:[%s2 + $0x28] sm:$0xff]
  %v26 = vld [vmem:[%s2 + $0x30] sm:$0xff]
  %v27 = vld [vmem:[%s2 + $0x38] sm:$0xff]
  %v28 = vld [vmem:[%s2 + $0x40] sm:$0xff]
  %v29 = vld [vmem:[%s2 + $0x48] sm:$0xff]
  %v30 = vld [vmem:[%s2 + $0x50] sm:$0xff]
  %v31 = vld [vmem:[%s2 + $0x58] sm:$0xff]
  %v32 = vld [vmem:[%s2 + $0x60] sm:$0xff]
  %v33 = vld [vmem:[%s2 + $0x68] sm:$0xff]
  %v34 = vld [vmem:[%s2 + $0x70] sm:$0xff]
  %v35 = vld [vmem:[%s2 + $0x78] sm:$0xff]
  %v36 = vld [vmem:[%s3] sm:$0xff]
  %v37 = vld [vmem:[%s3 + $0x8] sm:$0xff]
  %v38 = vld [vmem:[%s3 + $0x10] sm:$0xff]
  %v39 = vld [vmem:[%s3 + $0x18] sm:$0xff]
  %v40 = vld [vmem:[%s3 + $0x20] sm:$0xff]
  %v41 = vld [vmem:[%s3 + $0x28] sm:$0xff]
  %v42 = vld [vmem:[%s3 + $0x30] sm:$0xff]
  %v43 = vld [vmem:[%s3 + $0x38] sm:$0xff]
  %v44 = vld [vmem:[%s3 + $0x40] sm:$0xff]
  %v45 = vld [vmem:[%s3 + $0x48] sm:$0xff]
  %v46 = vld [vmem:[%s3 + $0x50] sm:$0xff]
  %v47 = vld [vmem:[%s3 + $0x58] sm:$0xff]
  %v48 = vld [vmem:[%s3 + $0x60] sm:$0xff]
  %v49 = vld [vmem:[%s3 + $0x68] sm:$0xff]
  %v50 = vld [vmem:[%s3 + $0x70] sm:$0xff]
  %v51 = vld [vmem:[%s3 + $0x78] sm:$0xff]
  %v52 = vld [vmem:[%s4] sm:$0xff]
  %v53 = vld [vmem:[%s4 + $0x8] sm:$0xff]
  %v54 = vld [vmem:[%s4 + $0x10] sm:$0xff]
  %v55 = vld [vmem:[%s4 + $0x18] sm:$0xff]
  %v56 = vld [vmem:[%s4 + $0x20] sm:$0xff]
  %v57 = vld [vmem:[%s4 + $0x28] sm:$0xff]
  %v58 = vld [vmem:[%s4 + $0x30] sm:$0xff]
  %v59 = vld [vmem:[%s4 + $0x38] sm:$0xff]
  %v60 = vld [vmem:[%s4 + $0x40] sm:$0xff]
  %v61 = vld [vmem:[%s4 + $0x48] sm:$0xff]
  %v62 = vld [vmem:[%s4 + $0x50] sm:$0xff]
  %v63 = vld [vmem:[%s4 + $0x58] sm:$0xff]
  %v64 = vld [vmem:[%s4 + $0x60] sm:$0xff]
  %v65 = vld [vmem:[%s4 + $0x68] sm:$0xff]
  %v66 = vld [vmem:[%s4 + $0x70] sm:$0xff]
  %v67 = vld [vmem:[%s4 + $0x78] sm:$0xff]
  %v68 = vld [vmem:[%s1] sm:$0x1]
  %v69 = vld [vmem:[%s0] sm:$0xff]
  %v70 = vld [vmem:[%s0 + $0x8] sm:$0xff]
  %v71 = vld [vmem:[%s0 + $0x10] sm:$0xff]
  %v72 = vld [vmem:[%s0 + $0x18] sm:$0xff]
  %74 = vset.pattern.permute.xlu0 0
  %75 = vperm.xlu0 %74, %v36
  %v76 = vpop.permute.xlu0 %75
  %79 = vset.pattern.permute.xlu0 0
  %80 = vperm.xlu0 %79, %v37
  %v81 = vpop.permute.xlu0 %80
  %84 = vset.pattern.permute.xlu0 0
  %85 = vperm.xlu0 %84, %v38
  %v86 = vpop.permute.xlu0 %85
  %89 = vset.pattern.permute.xlu0 0
  %90 = vperm.xlu0 %89, %v39
  %v91 = vpop.permute.xlu0 %90
  %94 = vset.pattern.permute.xlu0 0
  %95 = vperm.xlu0 %94, %v40
  %v96 = vpop.permute.xlu0 %95
  %99 = vset.pattern.permute.xlu0 0
  %100 = vperm.xlu0 %99, %v41
  %v101 = vpop.permute.xlu0 %100
  %104 = vset.pattern.permute.xlu0 0
  %105 = vperm.xlu0 %104, %v42
  %v106 = vpop.permute.xlu0 %105
  %109 = vset.pattern.permute.xlu0 0
  %110 = vperm.xlu0 %109, %v43
  %v111 = vpop.permute.xlu0 %110
  %114 = vset.pattern.permute.xlu0 0
  %115 = vperm.xlu0 %114, %v44
  %v116 = vpop.permute.xlu0 %115
  %119 = vset.pattern.permute.xlu0 0
  %120 = vperm.xlu0 %119, %v45
  %v121 = vpop.permute.xlu0 %120
  %124 = vset.pattern.permute.xlu0 0
  %125 = vperm.xlu0 %124, %v46
  %v126 = vpop.permute.xlu0 %125
  %129 = vset.pattern.permute.xlu0 0
  %130 = vperm.xlu0 %129, %v47
  %v131 = vpop.permute.xlu0 %130
  %134 = vset.pattern.permute.xlu0 0
  %135 = vperm.xlu0 %134, %v48
  %v136 = vpop.permute.xlu0 %135
  %139 = vset.pattern.permute.xlu0 0
  %140 = vperm.xlu0 %139, %v49
  %v141 = vpop.permute.xlu0 %140
  %144 = vset.pattern.permute.xlu0 0
  %145 = vperm.xlu0 %144, %v50
  %v146 = vpop.permute.xlu0 %145
  %149 = vset.pattern.permute.xlu0 0
  %150 = vperm.xlu0 %149, %v51
  %v151 = vpop.permute.xlu0 %150
  %vm153 = vcmask 261120
  %v155 = vsel %vm153, %v20, 0
  %v158 = vsel %vm153, %v21, 0
  %v161 = vsel %vm153, %v22, 0
  %v164 = vsel %vm153, %v23, 0
  %v167 = vsel %vm153, %v24, 0
  %v170 = vsel %vm153, %v25, 0
  %v173 = vsel %vm153, %v26, 0
  %v176 = vsel %vm153, %v27, 0
  %v179 = vsel %vm153, %v28, 0
  %v182 = vsel %vm153, %v29, 0
  %v185 = vsel %vm153, %v30, 0
  %v188 = vsel %vm153, %v31, 0
  %v191 = vsel %vm153, %v32, 0
  %v194 = vsel %vm153, %v33, 0
  %v197 = vsel %vm153, %v34, 0
  %v200 = vsel %vm153, %v35, 0
  %202 = vmatprep.subr.mxu0 0.0
  %203 = vmatpush1.msra.mxu0 0.0
  %204 = vmatprep.subr.mxu0 0.0
  %205 = vmatpush1.msra.mxu0 0.0
  %206 = vmatprep.subr.mxu0 0.0
  %207 = vmatpush1.msra.mxu0 0.0
  %208 = vmatprep.subr.mxu0 0.0
  %209 = vmatpush1.msra.mxu0 0.0
  %210 = vmatprep.subr.mxu0 0.0
  %211 = vmatpush1.msra.mxu0 0.0
  %212 = vmatprep.subr.mxu0 0.0
  %213 = vmatpush1.msra.mxu0 0.0
  %214 = vmatprep.subr.mxu0 0.0
  %215 = vmatpush1.msra.mxu0 0.0
  %216 = vmatprep.subr.mxu0 0.0
  %217 = vmatpush1.msra.mxu0 0.0
  %218 = vmatprep.subr.mxu0 0.0
  %219 = vmatpush1.msra.mxu0 0.0
  %220 = vmatprep.subr.mxu0 0.0
  %221 = vmatpush1.msra.mxu0 0.0
  %222 = vmatprep.subr.mxu0 0.0
  %223 = vmatpush1.msra.mxu0 0.0
  %224 = vmatprep.subr.mxu0 0.0
  %225 = vmatpush1.msra.mxu0 0.0
  %226 = vmatprep.subr.mxu0 0.0
  %227 = vmatpush1.msra.mxu0 %v72
  %228 = vmatprep.subr.mxu0 0.0
  %229 = vmatpush1.msra.mxu0 %v71
  %230 = vmatprep.subr.mxu0 0.0
  %231 = vmatpush1.msra.mxu0 %v70
  %232 = vmatprep.subr.mxu0 0.0
  %233 = vmatpush1.msra.mxu0 %v69
  %234 = vmatprep.subr.mxu0 0.0
  %235 = vmatpush2.msra.mxu0 0.0
  %236 = vmatprep.subr.mxu0 0.0
  %237 = vmatpush2.msra.mxu0 0.0
  %238 = vmatprep.subr.mxu0 0.0
  %239 = vmatpush2.msra.mxu0 0.0
  %240 = vmatprep.subr.mxu0 0.0
  %241 = vmatpush2.msra.mxu0 0.0
  %242 = vmatprep.subr.mxu0 0.0
  %243 = vmatpush2.msra.mxu0 0.0
  %244 = vmatprep.subr.mxu0 0.0
  %245 = vmatpush2.msra.mxu0 0.0
  %246 = vmatprep.subr.mxu0 0.0
  %247 = vmatpush2.msra.mxu0 0.0
  %248 = vmatprep.subr.mxu0 0.0
  %249 = vmatpush2.msra.mxu0 0.0
  %250 = vmatprep.subr.mxu0 0.0
  %251 = vmatpush2.msra.mxu0 0.0
  %252 = vmatprep.subr.mxu0 0.0
  %253 = vmatpush2.msra.mxu0 0.0
  %254 = vmatprep.subr.mxu0 0.0
  %255 = vmatpush2.msra.mxu0 0.0
  %256 = vmatprep.subr.mxu0 0.0
  %257 = vmatpush2.msra.mxu0 0.0
  %258 = vmatprep.subr.mxu0 0.0
  %259 = vmatpush2.msra.mxu0 0.0
  %260 = vmatprep.subr.mxu0 0.0
  %261 = vmatpush2.msra.mxu0 0.0
  %262 = vmatprep.subr.mxu0 0.0
  %263 = vmatpush2.msra.mxu0 0.0
  %264 = vmatprep.subr.mxu0 0.0
  %265 = vmatpush2.msra.mxu0 0.0
  %266 = vmatprep.mubr.f32.mxu0 0.0
  %267 = vmatmul.mubr.f32.gmra.mxu0 %v155
  %v268 = vpop.f32.mrf.mxu0
  %v269 = vadd.f32 %v76, %v268
  %v270 = vpop.f32.mrf.mxu0
  %271 = vmatprep.mubr.f32.mxu0 0.0
  %272 = vmatmul.mubr.f32.gmra.mxu0 %v158
  %v273 = vpop.f32.mrf.mxu0
  %v274 = vadd.f32 %v81, %v273
  %v275 = vpop.f32.mrf.mxu0
  %276 = vmatprep.mubr.f32.mxu0 0.0
  %277 = vmatmul.mubr.f32.gmra.mxu0 %v161
  %v278 = vpop.f32.mrf.mxu0
  %v279 = vadd.f32 %v86, %v278
  %v280 = vpop.f32.mrf.mxu0
  %281 = vmatprep.mubr.f32.mxu0 0.0
  %282 = vmatmul.mubr.f32.gmra.mxu0 %v164
  %v283 = vpop.f32.mrf.mxu0
  %v284 = vadd.f32 %v91, %v283
  %v285 = vpop.f32.mrf.mxu0
  %286 = vmatprep.mubr.f32.mxu0 0.0
  %287 = vmatmul.mubr.f32.gmra.mxu0 %v167
  %v288 = vpop.f32.mrf.mxu0
  %v289 = vadd.f32 %v96, %v288
  %v290 = vpop.f32.mrf.mxu0
  %291 = vmatprep.mubr.f32.mxu0 0.0
  %292 = vmatmul.mubr.f32.gmra.mxu0 %v170
  %v293 = vpop.f32.mrf.mxu0
  %v294 = vadd.f32 %v101, %v293
  %v295 = vpop.f32.mrf.mxu0
  %296 = vmatprep.mubr.f32.mxu0 0.0
  %297 = vmatmul.mubr.f32.gmra.mxu0 %v173
  %v298 = vpop.f32.mrf.mxu0
  %v299 = vadd.f32 %v106, %v298
  %v300 = vpop.f32.mrf.mxu0
  %301 = vmatprep.mubr.f32.mxu0 0.0
  %302 = vmatmul.mubr.f32.gmra.mxu0 %v176
  %v303 = vpop.f32.mrf.mxu0
  %v304 = vadd.f32 %v111, %v303
  %v305 = vpop.f32.mrf.mxu0
  %306 = vmatprep.mubr.f32.mxu0 0.0
  %307 = vmatmul.mubr.f32.gmra.mxu0 %v179
  %v308 = vpop.f32.mrf.mxu0
  %v309 = vadd.f32 %v116, %v308
  %v310 = vpop.f32.mrf.mxu0
  %311 = vmatprep.mubr.f32.mxu0 0.0
  %312 = vmatmul.mubr.f32.gmra.mxu0 %v182
  %v313 = vpop.f32.mrf.mxu0
  %v314 = vadd.f32 %v121, %v313
  %v315 = vpop.f32.mrf.mxu0
  %316 = vmatprep.mubr.f32.mxu0 0.0
  %317 = vmatmul.mubr.f32.gmra.mxu0 %v185
  %v318 = vpop.f32.mrf.mxu0
  %v319 = vadd.f32 %v126, %v318
  %v320 = vpop.f32.mrf.mxu0
  %321 = vmatprep.mubr.f32.mxu0 0.0
  %322 = vmatmul.mubr.f32.gmra.mxu0 %v188
  %v323 = vpop.f32.mrf.mxu0
  %v324 = vadd.f32 %v131, %v323
  %v325 = vpop.f32.mrf.mxu0
  %326 = vmatprep.mubr.f32.mxu0 0.0
  %327 = vmatmul.mubr.f32.gmra.mxu0 %v191
  %v328 = vpop.f32.mrf.mxu0
  %v329 = vadd.f32 %v136, %v328
  %v330 = vpop.f32.mrf.mxu0
  %331 = vmatprep.mubr.f32.mxu0 0.0
  %332 = vmatmul.mubr.f32.gmra.mxu0 %v194
  %v333 = vpop.f32.mrf.mxu0
  %v334 = vadd.f32 %v141, %v333
  %v335 = vpop.f32.mrf.mxu0
  %336 = vmatprep.mubr.f32.mxu0 0.0
  %337 = vmatmul.mubr.f32.gmra.mxu0 %v197
  %v338 = vpop.f32.mrf.mxu0
  %v339 = vadd.f32 %v146, %v338
  %v340 = vpop.f32.mrf.mxu0
  %341 = vmatprep.mubr.f32.mxu0 0.0
  %342 = vmatmul.mubr.f32.gmra.mxu0 %v200
  %v343 = vpop.f32.mrf.mxu0
  %v344 = vadd.f32 %v151, %v343
  %v345 = vpop.f32.mrf.mxu0
  %346 = vdwg.mxu0
  %347 = vst [vmem:[#allocation2] sm:$0xff] %v269
  %348 = vst [vmem:[#allocation2 + $0x8] sm:$0xff] %v274
  %s349 = scalar_lea.vmem [#allocation2], 1920
  %350 = vst [vmem:[%s349 + $0x10] sm:$0xff] %v279
  %351 = vst [vmem:[%s349 + $0x18] sm:$0xff] %v284
  %352 = vst [vmem:[#allocation2 + $0x20] sm:$0xff] %v289
  %353 = vst [vmem:[#allocation2 + $0x28] sm:$0xff] %v294
  %354 = vst [vmem:[%s349 + $0x30] sm:$0xff] %v299
  %355 = vst [vmem:[%s349 + $0x38] sm:$0xff] %v304
  %356 = vst [vmem:[#allocation2 + $0x40] sm:$0xff] %v309
  %357 = vst [vmem:[#allocation2 + $0x48] sm:$0xff] %v314
  %358 = vst [vmem:[%s349 + $0x50] sm:$0xff] %v319
  %359 = vst [vmem:[%s349 + $0x58] sm:$0xff] %v324
  %360 = vst [vmem:[#allocation2 + $0x60] sm:$0xff] %v329
  %361 = vst [vmem:[#allocation2 + $0x68] sm:$0xff] %v334
  %362 = vst [vmem:[%s349 + $0x70] sm:$0xff] %v339
  %363 = vst [vmem:[%s349 + $0x78] sm:$0xff] %v344
  %s364 = scalar_lea.vmem %s0, 32
  %v365 = vld [vmem:[%s364] sm:$0xff]
  %v366 = vld [vmem:[%s364 + $0x8] sm:$0xff]
  %v367 = vld [vmem:[%s364 + $0x10] sm:$0xff]
  %v368 = vld [vmem:[%s364 + $0x18] sm:$0xff]
  %369 = vmatprep.subr.mxu0 0.0
  %370 = vmatpush1.msra.mxu0 0.0
  %371 = vmatprep.subr.mxu0 0.0
  %372 = vmatpush1.msra.mxu0 0.0
  %373 = vmatprep.subr.mxu0 0.0
  %374 = vmatpush1.msra.mxu0 0.0
  %375 = vmatprep.subr.mxu0 0.0
  %376 = vmatpush1.msra.mxu0 0.0
  %377 = vmatprep.subr.mxu0 0.0
  %378 = vmatpush1.msra.mxu0 0.0
  %379 = vmatprep.subr.mxu0 0.0
  %380 = vmatpush1.msra.mxu0 0.0
  %381 = vmatprep.subr.mxu0 0.0
  %382 = vmatpush1.msra.mxu0 0.0
  %383 = vmatprep.subr.mxu0 0.0
  %384 = vmatpush1.msra.mxu0 0.0
  %385 = vmatprep.subr.mxu0 0.0
  %386 = vmatpush1.msra.mxu0 0.0
  %387 = vmatprep.subr.mxu0 0.0
  %388 = vmatpush1.msra.mxu0 0.0
  %389 = vmatprep.subr.mxu0 0.0
  %390 = vmatpush1.msra.mxu0 0.0
  %391 = vmatprep.subr.mxu0 0.0
  %392 = vmatpush1.msra.mxu0 0.0
  %393 = vmatprep.subr.mxu0 0.0
  %394 = vmatpush1.msra.mxu0 %v368
  %395 = vmatprep.subr.mxu0 0.0
  %396 = vmatpush1.msra.mxu0 %v367
  %397 = vmatprep.subr.mxu0 0.0
  %398 = vmatpush1.msra.mxu0 %v366
  %399 = vmatprep.subr.mxu0 0.0
  %400 = vmatpush1.msra.mxu0 %v365
  %401 = vmatprep.subr.mxu0 0.0
  %402 = vmatpush2.msra.mxu0 0.0
  %403 = vmatprep.subr.mxu0 0.0
  %404 = vmatpush2.msra.mxu0 0.0
  %405 = vmatprep.subr.mxu0 0.0
  %406 = vmatpush2.msra.mxu0 0.0
  %407 = vmatprep.subr.mxu0 0.0
  %408 = vmatpush2.msra.mxu0 0.0
  %409 = vmatprep.subr.mxu0 0.0
  %410 = vmatpush2.msra.mxu0 0.0
  %411 = vmatprep.subr.mxu0 0.0
  %412 = vmatpush2.msra.mxu0 0.0
  %413 = vmatprep.subr.mxu0 0.0
  %414 = vmatpush2.msra.mxu0 0.0
  %415 = vmatprep.subr.mxu0 0.0
  %416 = vmatpush2.msra.mxu0 0.0
  %417 = vmatprep.subr.mxu0 0.0
  %418 = vmatpush2.msra.mxu0 0.0
  %419 = vmatprep.subr.mxu0 0.0
  %420 = vmatpush2.msra.mxu0 0.0
  %421 = vmatprep.subr.mxu0 0.0
  %422 = vmatpush2.msra.mxu0 0.0
  %423 = vmatprep.subr.mxu0 0.0
  %424 = vmatpush2.msra.mxu0 0.0
  %425 = vmatprep.subr.mxu0 0.0
  %426 = vmatpush2.msra.mxu0 0.0
  %427 = vmatprep.subr.mxu0 0.0
  %428 = vmatpush2.msra.mxu0 0.0
  %429 = vmatprep.subr.mxu0 0.0
  %430 = vmatpush2.msra.mxu0 0.0
  %431 = vmatprep.subr.mxu0 0.0
  %432 = vmatpush2.msra.mxu0 0.0
  %433 = vmatprep.mubr.f32.mxu0 0.0
  %434 = vmatmul.mubr.f32.gmra.mxu0 %v155
  %v435 = vpop.f32.mrf.mxu0
  %v436 = vadd.f32 %v76, %v435
  %v437 = vpop.f32.mrf.mxu0
  %438 = vmatprep.mubr.f32.mxu0 0.0
  %439 = vmatmul.mubr.f32.gmra.mxu0 %v158
  %v440 = vpop.f32.mrf.mxu0
  %v441 = vadd.f32 %v81, %v440
  %v442 = vpop.f32.mrf.mxu0
  %443 = vmatprep.mubr.f32.mxu0 0.0
  %444 = vmatmul.mubr.f32.gmra.mxu0 %v161
  %v445 = vpop.f32.mrf.mxu0
  %v446 = vadd.f32 %v86, %v445
  %v447 = vpop.f32.mrf.mxu0
  %448 = vmatprep.mubr.f32.mxu0 0.0
  %449 = vmatmul.mubr.f32.gmra.mxu0 %v164
  %v450 = vpop.f32.mrf.mxu0
  %v451 = vadd.f32 %v91, %v450
  %v452 = vpop.f32.mrf.mxu0
  %453 = vmatprep.mubr.f32.mxu0 0.0
  %454 = vmatmul.mubr.f32.gmra.mxu0 %v167
  %v455 = vpop.f32.mrf.mxu0
  %v456 = vadd.f32 %v96, %v455
  %v457 = vpop.f32.mrf.mxu0
  %458 = vmatprep.mubr.f32.mxu0 0.0
  %459 = vmatmul.mubr.f32.gmra.mxu0 %v170
  %v460 = vpop.f32.mrf.mxu0
  %v461 = vadd.f32 %v101, %v460
  %v462 = vpop.f32.mrf.mxu0
  %463 = vmatprep.mubr.f32.mxu0 0.0
  %464 = vmatmul.mubr.f32.gmra.mxu0 %v173
  %v465 = vpop.f32.mrf.mxu0
  %v466 = vadd.f32 %v106, %v465
  %v467 = vpop.f32.mrf.mxu0
  %468 = vmatprep.mubr.f32.mxu0 0.0
  %469 = vmatmul.mubr.f32.gmra.mxu0 %v176
  %v470 = vpop.f32.mrf.mxu0
  %v471 = vadd.f32 %v111, %v470
  %v472 = vpop.f32.mrf.mxu0
  %473 = vmatprep.mubr.f32.mxu0 0.0
  %474 = vmatmul.mubr.f32.gmra.mxu0 %v179
  %v475 = vpop.f32.mrf.mxu0
  %v476 = vadd.f32 %v116, %v475
  %v477 = vpop.f32.mrf.mxu0
  %478 = vmatprep.mubr.f32.mxu0 0.0
  %479 = vmatmul.mubr.f32.gmra.mxu0 %v182
  %v480 = vpop.f32.mrf.mxu0
  %v481 = vadd.f32 %v121, %v480
  %v482 = vpop.f32.mrf.mxu0
  %483 = vmatprep.mubr.f32.mxu0 0.0
  %484 = vmatmul.mubr.f32.gmra.mxu0 %v185
  %v485 = vpop.f32.mrf.mxu0
  %v486 = vadd.f32 %v126, %v485
  %v487 = vpop.f32.mrf.mxu0
  %488 = vmatprep.mubr.f32.mxu0 0.0
  %489 = vmatmul.mubr.f32.gmra.mxu0 %v188
  %v490 = vpop.f32.mrf.mxu0
  %v491 = vadd.f32 %v131, %v490
  %v492 = vpop.f32.mrf.mxu0
  %493 = vmatprep.mubr.f32.mxu0 0.0
  %494 = vmatmul.mubr.f32.gmra.mxu0 %v191
  %v495 = vpop.f32.mrf.mxu0
  %v496 = vadd.f32 %v136, %v495
  %v497 = vpop.f32.mrf.mxu0
  %498 = vmatprep.mubr.f32.mxu0 0.0
  %499 = vmatmul.mubr.f32.gmra.mxu0 %v194
  %v500 = vpop.f32.mrf.mxu0
  %v501 = vadd.f32 %v141, %v500
  %v502 = vpop.f32.mrf.mxu0
  %503 = vmatprep.mubr.f32.mxu0 0.0
  %504 = vmatmul.mubr.f32.gmra.mxu0 %v197
  %v505 = vpop.f32.mrf.mxu0
  %v506 = vadd.f32 %v146, %v505
  %v507 = vpop.f32.mrf.mxu0
  %508 = vmatprep.mubr.f32.mxu0 0.0
  %509 = vmatmul.mubr.f32.gmra.mxu0 %v200
  %v510 = vpop.f32.mrf.mxu0
  %v511 = vadd.f32 %v151, %v510
  %v512 = vpop.f32.mrf.mxu0
  %513 = vdwg.mxu0
  %s514 = scalar_lea.vmem [#allocation2], 128
  %515 = vst [vmem:[%s514] sm:$0xff] %v436
  %516 = vst [vmem:[%s514 + $0x8] sm:$0xff] %v441
  %s517 = scalar_lea.vmem [#allocation2], 1792
  %518 = vst [vmem:[%s517 + $0x10] sm:$0xff] %v446
  %519 = vst [vmem:[%s517 + $0x18] sm:$0xff] %v451
  %520 = vst [vmem:[%s514 + $0x20] sm:$0xff] %v456
  %521 = vst [vmem:[%s514 + $0x28] sm:$0xff] %v461
  %522 = vst [vmem:[%s517 + $0x30] sm:$0xff] %v466
  %523 = vst [vmem:[%s517 + $0x38] sm:$0xff] %v471
  %524 = vst [vmem:[%s514 + $0x40] sm:$0xff] %v476
  %525 = vst [vmem:[%s514 + $0x48] sm:$0xff] %v481
  %526 = vst [vmem:[%s517 + $0x50] sm:$0xff] %v486
  %527 = vst [vmem:[%s517 + $0x58] sm:$0xff] %v491
  %528 = vst [vmem:[%s514 + $0x60] sm:$0xff] %v496
  %529 = vst [vmem:[%s514 + $0x68] sm:$0xff] %v501
  %530 = vst [vmem:[%s517 + $0x70] sm:$0xff] %v506
  %531 = vst [vmem:[%s517 + $0x78] sm:$0xff] %v511
  %s532 = scalar_lea.vmem %s0, 64
  %v533 = vld [vmem:[%s532] sm:$0xff]
  %v534 = vld [vmem:[%s532 + $0x8] sm:$0xff]
  %v535 = vld [vmem:[%s532 + $0x10] sm:$0xff]
  %v536 = vld [vmem:[%s532 + $0x18] sm:$0xff]
  %537 = vmatprep.subr.mxu0 0.0
  %538 = vmatpush1.msra.mxu0 0.0
  %539 = vmatprep.subr.mxu0 0.0
  %540 = vmatpush1.msra.mxu0 0.0
  %541 = vmatprep.subr.mxu0 0.0
  %542 = vmatpush1.msra.mxu0 0.0
  %543 = vmatprep.subr.mxu0 0.0
  %544 = vmatpush1.msra.mxu0 0.0
  %545 = vmatprep.subr.mxu0 0.0
  %546 = vmatpush1.msra.mxu0 0.0
  %547 = vmatprep.subr.mxu0 0.0
  %548 = vmatpush1.msra.mxu0 0.0
  %549 = vmatprep.subr.mxu0 0.0
  %550 = vmatpush1.msra.mxu0 0.0
  %551 = vmatprep.subr.mxu0 0.0
  %552 = vmatpush1.msra.mxu0 0.0
  %553 = vmatprep.subr.mxu0 0.0
  %554 = vmatpush1.msra.mxu0 0.0
  %555 = vmatprep.subr.mxu0 0.0
  %556 = vmatpush1.msra.mxu0 0.0
  %557 = vmatprep.subr.mxu0 0.0
  %558 = vmatpush1.msra.mxu0 0.0
  %559 = vmatprep.subr.mxu0 0.0
  %560 = vmatpush1.msra.mxu0 0.0
  %561 = vmatprep.subr.mxu0 0.0
  %562 = vmatpush1.msra.mxu0 %v536
  %563 = vmatprep.subr.mxu0 0.0
  %564 = vmatpush1.msra.mxu0 %v535
  %565 = vmatprep.subr.mxu0 0.0
  %566 = vmatpush1.msra.mxu0 %v534
  %567 = vmatprep.subr.mxu0 0.0
  %568 = vmatpush1.msra.mxu0 %v533
  %569 = vmatprep.subr.mxu0 0.0
  %570 = vmatpush2.msra.mxu0 0.0
  %571 = vmatprep.subr.mxu0 0.0
  %572 = vmatpush2.msra.mxu0 0.0
  %573 = vmatprep.subr.mxu0 0.0
  %574 = vmatpush2.msra.mxu0 0.0
  %575 = vmatprep.subr.mxu0 0.0
  %576 = vmatpush2.msra.mxu0 0.0
  %577 = vmatprep.subr.mxu0 0.0
  %578 = vmatpush2.msra.mxu0 0.0
  %579 = vmatprep.subr.mxu0 0.0
  %580 = vmatpush2.msra.mxu0 0.0
  %581 = vmatprep.subr.mxu0 0.0
  %582 = vmatpush2.msra.mxu0 0.0
  %583 = vmatprep.subr.mxu0 0.0
  %584 = vmatpush2.msra.mxu0 0.0
  %585 = vmatprep.subr.mxu0 0.0
  %586 = vmatpush2.msra.mxu0 0.0
  %587 = vmatprep.subr.mxu0 0.0
  %588 = vmatpush2.msra.mxu0 0.0
  %589 = vmatprep.subr.mxu0 0.0
  %590 = vmatpush2.msra.mxu0 0.0
  %591 = vmatprep.subr.mxu0 0.0
  %592 = vmatpush2.msra.mxu0 0.0
  %593 = vmatprep.subr.mxu0 0.0
  %594 = vmatpush2.msra.mxu0 0.0
  %595 = vmatprep.subr.mxu0 0.0
  %596 = vmatpush2.msra.mxu0 0.0
  %597 = vmatprep.subr.mxu0 0.0
  %598 = vmatpush2.msra.mxu0 0.0
  %599 = vmatprep.subr.mxu0 0.0
  %600 = vmatpush2.msra.mxu0 0.0
  %601 = vmatprep.mubr.f32.mxu0 0.0
  %602 = vmatmul.mubr.f32.gmra.mxu0 %v155
  %v603 = vpop.f32.mrf.mxu0
  %v604 = vadd.f32 %v76, %v603
  %v605 = vpop.f32.mrf.mxu0
  %606 = vmatprep.mubr.f32.mxu0 0.0
  %607 = vmatmul.mubr.f32.gmra.mxu0 %v158
  %v608 = vpop.f32.mrf.mxu0
  %v609 = vadd.f32 %v81, %v608
  %v610 = vpop.f32.mrf.mxu0
  %611 = vmatprep.mubr.f32.mxu0 0.0
  %612 = vmatmul.mubr.f32.gmra.mxu0 %v161
  %v613 = vpop.f32.mrf.mxu0
  %v614 = vadd.f32 %v86, %v613
  %v615 = vpop.f32.mrf.mxu0
  %616 = vmatprep.mubr.f32.mxu0 0.0
  %617 = vmatmul.mubr.f32.gmra.mxu0 %v164
  %v618 = vpop.f32.mrf.mxu0
  %v619 = vadd.f32 %v91, %v618
  %v620 = vpop.f32.mrf.mxu0
  %621 = vmatprep.mubr.f32.mxu0 0.0
  %622 = vmatmul.mubr.f32.gmra.mxu0 %v167
  %v623 = vpop.f32.mrf.mxu0
  %v624 = vadd.f32 %v96, %v623
  %v625 = vpop.f32.mrf.mxu0
  %626 = vmatprep.mubr.f32.mxu0 0.0
  %627 = vmatmul.mubr.f32.gmra.mxu0 %v170
  %v628 = vpop.f32.mrf.mxu0
  %v629 = vadd.f32 %v101, %v628
  %v630 = vpop.f32.mrf.mxu0
  %631 = vmatprep.mubr.f32.mxu0 0.0
  %632 = vmatmul.mubr.f32.gmra.mxu0 %v173
  %v633 = vpop.f32.mrf.mxu0
  %v634 = vadd.f32 %v106, %v633
  %v635 = vpop.f32.mrf.mxu0
  %636 = vmatprep.mubr.f32.mxu0 0.0
  %637 = vmatmul.mubr.f32.gmra.mxu0 %v176
  %v638 = vpop.f32.mrf.mxu0
  %v639 = vadd.f32 %v111, %v638
  %v640 = vpop.f32.mrf.mxu0
  %641 = vmatprep.mubr.f32.mxu0 0.0
  %642 = vmatmul.mubr.f32.gmra.mxu0 %v179
  %v643 = vpop.f32.mrf.mxu0
  %v644 = vadd.f32 %v116, %v643
  %v645 = vpop.f32.mrf.mxu0
  %646 = vmatprep.mubr.f32.mxu0 0.0
  %647 = vmatmul.mubr.f32.gmra.mxu0 %v182
  %v648 = vpop.f32.mrf.mxu0
  %v649 = vadd.f32 %v121, %v648
  %v650 = vpop.f32.mrf.mxu0
  %651 = vmatprep.mubr.f32.mxu0 0.0
  %652 = vmatmul.mubr.f32.gmra.mxu0 %v185
  %v653 = vpop.f32.mrf.mxu0
  %v654 = vadd.f32 %v126, %v653
  %v655 = vpop.f32.mrf.mxu0
  %656 = vmatprep.mubr.f32.mxu0 0.0
  %657 = vmatmul.mubr.f32.gmra.mxu0 %v188
  %v658 = vpop.f32.mrf.mxu0
  %v659 = vadd.f32 %v131, %v658
  %v660 = vpop.f32.mrf.mxu0
  %661 = vmatprep.mubr.f32.mxu0 0.0
  %662 = vmatmul.mubr.f32.gmra.mxu0 %v191
  %v663 = vpop.f32.mrf.mxu0
  %v664 = vadd.f32 %v136, %v663
  %v665 = vpop.f32.mrf.mxu0
  %666 = vmatprep.mubr.f32.mxu0 0.0
  %667 = vmatmul.mubr.f32.gmra.mxu0 %v194
  %v668 = vpop.f32.mrf.mxu0
  %v669 = vadd.f32 %v141, %v668
  %v670 = vpop.f32.mrf.mxu0
  %671 = vmatprep.mubr.f32.mxu0 0.0
  %672 = vmatmul.mubr.f32.gmra.mxu0 %v197
  %v673 = vpop.f32.mrf.mxu0
  %v674 = vadd.f32 %v146, %v673
  %v675 = vpop.f32.mrf.mxu0
  %676 = vmatprep.mubr.f32.mxu0 0.0
  %677 = vmatmul.mubr.f32.gmra.mxu0 %v200
  %v678 = vpop.f32.mrf.mxu0
  %v679 = vadd.f32 %v151, %v678
  %v680 = vpop.f32.mrf.mxu0
  %681 = vdwg.mxu0
  %s682 = scalar_lea.vmem [#allocation2], 256
  %683 = vst [vmem:[%s682] sm:$0xff] %v604
  %684 = vst [vmem:[%s682 + $0x8] sm:$0xff] %v609
  %s685 = scalar_lea.vmem [#allocation2], 1664
  %686 = vst [vmem:[%s685 + $0x10] sm:$0xff] %v614
  %687 = vst [vmem:[%s685 + $0x18] sm:$0xff] %v619
  %688 = vst [vmem:[%s682 + $0x20] sm:$0xff] %v624
  %689 = vst [vmem:[%s682 + $0x28] sm:$0xff] %v629
  %690 = vst [vmem:[%s685 + $0x30] sm:$0xff] %v634
  %691 = vst [vmem:[%s685 + $0x38] sm:$0xff] %v639
  %692 = vst [vmem:[%s682 + $0x40] sm:$0xff] %v644
  %693 = vst [vmem:[%s682 + $0x48] sm:$0xff] %v649
  %694 = vst [vmem:[%s685 + $0x50] sm:$0xff] %v654
  %695 = vst [vmem:[%s685 + $0x58] sm:$0xff] %v659
  %696 = vst [vmem:[%s682 + $0x60] sm:$0xff] %v664
  %697 = vst [vmem:[%s682 + $0x68] sm:$0xff] %v669
  %698 = vst [vmem:[%s685 + $0x70] sm:$0xff] %v674
  %699 = vst [vmem:[%s685 + $0x78] sm:$0xff] %v679
  %s700 = scalar_lea.vmem %s0, 96
  %v701 = vld [vmem:[%s700] sm:$0xff]
  %v702 = vld [vmem:[%s700 + $0x8] sm:$0xff]
  %v703 = vld [vmem:[%s700 + $0x10] sm:$0xff]
  %v704 = vld [vmem:[%s700 + $0x18] sm:$0xff]
  %705 = vmatprep.subr.mxu0 0.0
  %706 = vmatpush1.msra.mxu0 0.0
  %707 = vmatprep.subr.mxu0 0.0
  %708 = vmatpush1.msra.mxu0 0.0
  %709 = vmatprep.subr.mxu0 0.0
  %710 = vmatpush1.msra.mxu0 0.0
  %711 = vmatprep.subr.mxu0 0.0
  %712 = vmatpush1.msra.mxu0 0.0
  %713 = vmatprep.subr.mxu0 0.0
  %714 = vmatpush1.msra.mxu0 0.0
  %715 = vmatprep.subr.mxu0 0.0
  %716 = vmatpush1.msra.mxu0 0.0
  %717 = vmatprep.subr.mxu0 0.0
  %718 = vmatpush1.msra.mxu0 0.0
  %719 = vmatprep.subr.mxu0 0.0
  %720 = vmatpush1.msra.mxu0 0.0
  %721 = vmatprep.subr.mxu0 0.0
  %722 = vmatpush1.msra.mxu0 0.0
  %723 = vmatprep.subr.mxu0 0.0
  %724 = vmatpush1.msra.mxu0 0.0
  %725 = vmatprep.subr.mxu0 0.0
  %726 = vmatpush1.msra.mxu0 0.0
  %727 = vmatprep.subr.mxu0 0.0
  %728 = vmatpush1.msra.mxu0 0.0
  %729 = vmatprep.subr.mxu0 0.0
  %730 = vmatpush1.msra.mxu0 %v704
  %731 = vmatprep.subr.mxu0 0.0
  %732 = vmatpush1.msra.mxu0 %v703
  %733 = vmatprep.subr.mxu0 0.0
  %734 = vmatpush1.msra.mxu0 %v702
  %735 = vmatprep.subr.mxu0 0.0
  %736 = vmatpush1.msra.mxu0 %v701
  %737 = vmatprep.subr.mxu0 0.0
  %738 = vmatpush2.msra.mxu0 0.0
  %739 = vmatprep.subr.mxu0 0.0
  %740 = vmatpush2.msra.mxu0 0.0
  %741 = vmatprep.subr.mxu0 0.0
  %742 = vmatpush2.msra.mxu0 0.0
  %743 = vmatprep.subr.mxu0 0.0
  %744 = vmatpush2.msra.mxu0 0.0
  %745 = vmatprep.subr.mxu0 0.0
  %746 = vmatpush2.msra.mxu0 0.0
  %747 = vmatprep.subr.mxu0 0.0
  %748 = vmatpush2.msra.mxu0 0.0
  %749 = vmatprep.subr.mxu0 0.0
  %750 = vmatpush2.msra.mxu0 0.0
  %751 = vmatprep.subr.mxu0 0.0
  %752 = vmatpush2.msra.mxu0 0.0
  %753 = vmatprep.subr.mxu0 0.0
  %754 = vmatpush2.msra.mxu0 0.0
  %755 = vmatprep.subr.mxu0 0.0
  %756 = vmatpush2.msra.mxu0 0.0
  %757 = vmatprep.subr.mxu0 0.0
  %758 = vmatpush2.msra.mxu0 0.0
  %759 = vmatprep.subr.mxu0 0.0
  %760 = vmatpush2.msra.mxu0 0.0
  %761 = vmatprep.subr.mxu0 0.0
  %762 = vmatpush2.msra.mxu0 0.0
  %763 = vmatprep.subr.mxu0 0.0
  %764 = vmatpush2.msra.mxu0 0.0
  %765 = vmatprep.subr.mxu0 0.0
  %766 = vmatpush2.msra.mxu0 0.0
  %767 = vmatprep.subr.mxu0 0.0
  %768 = vmatpush2.msra.mxu0 0.0
  %769 = vmatprep.mubr.f32.mxu0 0.0
  %770 = vmatmul.mubr.f32.gmra.mxu0 %v155
  %v771 = vpop.f32.mrf.mxu0
  %v772 = vadd.f32 %v76, %v771
  %v773 = vpop.f32.mrf.mxu0
  %774 = vmatprep.mubr.f32.mxu0 0.0
  %775 = vmatmul.mubr.f32.gmra.mxu0 %v158
  %v776 = vpop.f32.mrf.mxu0
  %v777 = vadd.f32 %v81, %v776
  %v778 = vpop.f32.mrf.mxu0
  %779 = vmatprep.mubr.f32.mxu0 0.0
  %780 = vmatmul.mubr.f32.gmra.mxu0 %v161
  %v781 = vpop.f32.mrf.mxu0
  %v782 = vadd.f32 %v86, %v781
  %v783 = vpop.f32.mrf.mxu0
  %784 = vmatprep.mubr.f32.mxu0 0.0
  %785 = vmatmul.mubr.f32.gmra.mxu0 %v164
  %v786 = vpop.f32.mrf.mxu0
  %v787 = vadd.f32 %v91, %v786
  %v788 = vpop.f32.mrf.mxu0
  %789 = vmatprep.mubr.f32.mxu0 0.0
  %790 = vmatmul.mubr.f32.gmra.mxu0 %v167
  %v791 = vpop.f32.mrf.mxu0
  %v792 = vadd.f32 %v96, %v791
  %v793 = vpop.f32.mrf.mxu0
  %794 = vmatprep.mubr.f32.mxu0 0.0
  %795 = vmatmul.mubr.f32.gmra.mxu0 %v170
  %v796 = vpop.f32.mrf.mxu0
  %v797 = vadd.f32 %v101, %v796
  %v798 = vpop.f32.mrf.mxu0
  %799 = vmatprep.mubr.f32.mxu0 0.0
  %800 = vmatmul.mubr.f32.gmra.mxu0 %v173
  %v801 = vpop.f32.mrf.mxu0
  %v802 = vadd.f32 %v106, %v801
  %v803 = vpop.f32.mrf.mxu0
  %804 = vmatprep.mubr.f32.mxu0 0.0
  %805 = vmatmul.mubr.f32.gmra.mxu0 %v176
  %v806 = vpop.f32.mrf.mxu0
  %v807 = vadd.f32 %v111, %v806
  %v808 = vpop.f32.mrf.mxu0
  %809 = vmatprep.mubr.f32.mxu0 0.0
  %810 = vmatmul.mubr.f32.gmra.mxu0 %v179
  %v811 = vpop.f32.mrf.mxu0
  %v812 = vadd.f32 %v116, %v811
  %v813 = vpop.f32.mrf.mxu0
  %814 = vmatprep.mubr.f32.mxu0 0.0
  %815 = vmatmul.mubr.f32.gmra.mxu0 %v182
  %v816 = vpop.f32.mrf.mxu0
  %v817 = vadd.f32 %v121, %v816
  %v818 = vpop.f32.mrf.mxu0
  %819 = vmatprep.mubr.f32.mxu0 0.0
  %820 = vmatmul.mubr.f32.gmra.mxu0 %v185
  %v821 = vpop.f32.mrf.mxu0
  %v822 = vadd.f32 %v126, %v821
  %v823 = vpop.f32.mrf.mxu0
  %824 = vmatprep.mubr.f32.mxu0 0.0
  %825 = vmatmul.mubr.f32.gmra.mxu0 %v188
  %v826 = vpop.f32.mrf.mxu0
  %v827 = vadd.f32 %v131, %v826
  %v828 = vpop.f32.mrf.mxu0
  %829 = vmatprep.mubr.f32.mxu0 0.0
  %830 = vmatmul.mubr.f32.gmra.mxu0 %v191
  %v831 = vpop.f32.mrf.mxu0
  %v832 = vadd.f32 %v136, %v831
  %v833 = vpop.f32.mrf.mxu0
  %834 = vmatprep.mubr.f32.mxu0 0.0
  %835 = vmatmul.mubr.f32.gmra.mxu0 %v194
  %v836 = vpop.f32.mrf.mxu0
  %v837 = vadd.f32 %v141, %v836
  %v838 = vpop.f32.mrf.mxu0
  %839 = vmatprep.mubr.f32.mxu0 0.0
  %840 = vmatmul.mubr.f32.gmra.mxu0 %v197
  %v841 = vpop.f32.mrf.mxu0
  %v842 = vadd.f32 %v146, %v841
  %v843 = vpop.f32.mrf.mxu0
  %844 = vmatprep.mubr.f32.mxu0 0.0
  %845 = vmatmul.mubr.f32.gmra.mxu0 %v200
  %v846 = vpop.f32.mrf.mxu0
  %v847 = vadd.f32 %v151, %v846
  %v848 = vpop.f32.mrf.mxu0
  %849 = vdwg.mxu0
  %s850 = scalar_lea.vmem [#allocation2], 384
  %851 = vst [vmem:[%s850] sm:$0xff] %v772
  %852 = vst [vmem:[%s850 + $0x8] sm:$0xff] %v777
  %s853 = scalar_lea.vmem [#allocation2], 1536
  %854 = vst [vmem:[%s853 + $0x10] sm:$0xff] %v782
  %855 = vst [vmem:[%s853 + $0x18] sm:$0xff] %v787
  %856 = vst [vmem:[%s850 + $0x20] sm:$0xff] %v792
  %857 = vst [vmem:[%s850 + $0x28] sm:$0xff] %v797
  %858 = vst [vmem:[%s853 + $0x30] sm:$0xff] %v802
  %859 = vst [vmem:[%s853 + $0x38] sm:$0xff] %v807
  %860 = vst [vmem:[%s850 + $0x40] sm:$0xff] %v812
  %861 = vst [vmem:[%s850 + $0x48] sm:$0xff] %v817
  %862 = vst [vmem:[%s853 + $0x50] sm:$0xff] %v822
  %863 = vst [vmem:[%s853 + $0x58] sm:$0xff] %v827
  %864 = vst [vmem:[%s850 + $0x60] sm:$0xff] %v832
  %865 = vst [vmem:[%s850 + $0x68] sm:$0xff] %v837
  %866 = vst [vmem:[%s853 + $0x70] sm:$0xff] %v842
  %867 = vst [vmem:[%s853 + $0x78] sm:$0xff] %v847
  %s868 = scalar_lea.vmem %s0, 128
  %v869 = vld [vmem:[%s868] sm:$0xff]
  %v870 = vld [vmem:[%s868 + $0x8] sm:$0xff]
  %v871 = vld [vmem:[%s868 + $0x10] sm:$0xff]
  %v872 = vld [vmem:[%s868 + $0x18] sm:$0xff]
  %873 = vmatprep.subr.mxu0 0.0
  %874 = vmatpush1.msra.mxu0 0.0
  %875 = vmatprep.subr.mxu0 0.0
  %876 = vmatpush1.msra.mxu0 0.0
  %877 = vmatprep.subr.mxu0 0.0
  %878 = vmatpush1.msra.mxu0 0.0
  %879 = vmatprep.subr.mxu0 0.0
  %880 = vmatpush1.msra.mxu0 0.0
  %881 = vmatprep.subr.mxu0 0.0
  %882 = vmatpush1.msra.mxu0 0.0
  %883 = vmatprep.subr.mxu0 0.0
  %884 = vmatpush1.msra.mxu0 0.0
  %885 = vmatprep.subr.mxu0 0.0
  %886 = vmatpush1.msra.mxu0 0.0
  %887 = vmatprep.subr.mxu0 0.0
  %888 = vmatpush1.msra.mxu0 0.0
  %889 = vmatprep.subr.mxu0 0.0
  %890 = vmatpush1.msra.mxu0 0.0
  %891 = vmatprep.subr.mxu0 0.0
  %892 = vmatpush1.msra.mxu0 0.0
  %893 = vmatprep.subr.mxu0 0.0
  %894 = vmatpush1.msra.mxu0 0.0
  %895 = vmatprep.subr.mxu0 0.0
  %896 = vmatpush1.msra.mxu0 0.0
  %897 = vmatprep.subr.mxu0 0.0
  %898 = vmatpush1.msra.mxu0 %v872
  %899 = vmatprep.subr.mxu0 0.0
  %900 = vmatpush1.msra.mxu0 %v871
  %901 = vmatprep.subr.mxu0 0.0
  %902 = vmatpush1.msra.mxu0 %v870
  %903 = vmatprep.subr.mxu0 0.0
  %904 = vmatpush1.msra.mxu0 %v869
  %905 = vmatprep.subr.mxu0 0.0
  %906 = vmatpush2.msra.mxu0 0.0
  %907 = vmatprep.subr.mxu0 0.0
  %908 = vmatpush2.msra.mxu0 0.0
  %909 = vmatprep.subr.mxu0 0.0
  %910 = vmatpush2.msra.mxu0 0.0
  %911 = vmatprep.subr.mxu0 0.0
  %912 = vmatpush2.msra.mxu0 0.0
  %913 = vmatprep.subr.mxu0 0.0
  %914 = vmatpush2.msra.mxu0 0.0
  %915 = vmatprep.subr.mxu0 0.0
  %916 = vmatpush2.msra.mxu0 0.0
  %917 = vmatprep.subr.mxu0 0.0
  %918 = vmatpush2.msra.mxu0 0.0
  %919 = vmatprep.subr.mxu0 0.0
  %920 = vmatpush2.msra.mxu0 0.0
  %921 = vmatprep.subr.mxu0 0.0
  %922 = vmatpush2.msra.mxu0 0.0
  %923 = vmatprep.subr.mxu0 0.0
  %924 = vmatpush2.msra.mxu0 0.0
  %925 = vmatprep.subr.mxu0 0.0
  %926 = vmatpush2.msra.mxu0 0.0
  %927 = vmatprep.subr.mxu0 0.0
  %928 = vmatpush2.msra.mxu0 0.0
  %929 = vmatprep.subr.mxu0 0.0
  %930 = vmatpush2.msra.mxu0 0.0
  %931 = vmatprep.subr.mxu0 0.0
  %932 = vmatpush2.msra.mxu0 0.0
  %933 = vmatprep.subr.mxu0 0.0
  %934 = vmatpush2.msra.mxu0 0.0
  %935 = vmatprep.subr.mxu0 0.0
  %936 = vmatpush2.msra.mxu0 0.0
  %937 = vmatprep.mubr.f32.mxu0 0.0
  %938 = vmatmul.mubr.f32.gmra.mxu0 %v155
  %v939 = vpop.f32.mrf.mxu0
  %v940 = vadd.f32 %v76, %v939
  %v941 = vpop.f32.mrf.mxu0
  %942 = vmatprep.mubr.f32.mxu0 0.0
  %943 = vmatmul.mubr.f32.gmra.mxu0 %v158
  %v944 = vpop.f32.mrf.mxu0
  %v945 = vadd.f32 %v81, %v944
  %v946 = vpop.f32.mrf.mxu0
  %947 = vmatprep.mubr.f32.mxu0 0.0
  %948 = vmatmul.mubr.f32.gmra.mxu0 %v161
  %v949 = vpop.f32.mrf.mxu0
  %v950 = vadd.f32 %v86, %v949
  %v951 = vpop.f32.mrf.mxu0
  %952 = vmatprep.mubr.f32.mxu0 0.0
  %953 = vmatmul.mubr.f32.gmra.mxu0 %v164
  %v954 = vpop.f32.mrf.mxu0
  %v955 = vadd.f32 %v91, %v954
  %v956 = vpop.f32.mrf.mxu0
  %957 = vmatprep.mubr.f32.mxu0 0.0
  %958 = vmatmul.mubr.f32.gmra.mxu0 %v167
  %v959 = vpop.f32.mrf.mxu0
  %v960 = vadd.f32 %v96, %v959
  %v961 = vpop.f32.mrf.mxu0
  %962 = vmatprep.mubr.f32.mxu0 0.0
  %963 = vmatmul.mubr.f32.gmra.mxu0 %v170
  %v964 = vpop.f32.mrf.mxu0
  %v965 = vadd.f32 %v101, %v964
  %v966 = vpop.f32.mrf.mxu0
  %967 = vmatprep.mubr.f32.mxu0 0.0
  %968 = vmatmul.mubr.f32.gmra.mxu0 %v173
  %v969 = vpop.f32.mrf.mxu0
  %v970 = vadd.f32 %v106, %v969
  %v971 = vpop.f32.mrf.mxu0
  %972 = vmatprep.mubr.f32.mxu0 0.0
  %973 = vmatmul.mubr.f32.gmra.mxu0 %v176
  %v974 = vpop.f32.mrf.mxu0
  %v975 = vadd.f32 %v111, %v974
  %v976 = vpop.f32.mrf.mxu0
  %977 = vmatprep.mubr.f32.mxu0 0.0
  %978 = vmatmul.mubr.f32.gmra.mxu0 %v179
  %v979 = vpop.f32.mrf.mxu0
  %v980 = vadd.f32 %v116, %v979
  %v981 = vpop.f32.mrf.mxu0
  %982 = vmatprep.mubr.f32.mxu0 0.0
  %983 = vmatmul.mubr.f32.gmra.mxu0 %v182
  %v984 = vpop.f32.mrf.mxu0
  %v985 = vadd.f32 %v121, %v984
  %v986 = vpop.f32.mrf.mxu0
  %987 = vmatprep.mubr.f32.mxu0 0.0
  %988 = vmatmul.mubr.f32.gmra.mxu0 %v185
  %v989 = vpop.f32.mrf.mxu0
  %v990 = vadd.f32 %v126, %v989
  %v991 = vpop.f32.mrf.mxu0
  %992 = vmatprep.mubr.f32.mxu0 0.0
  %993 = vmatmul.mubr.f32.gmra.mxu0 %v188
  %v994 = vpop.f32.mrf.mxu0
  %v995 = vadd.f32 %v131, %v994
  %v996 = vpop.f32.mrf.mxu0
  %997 = vmatprep.mubr.f32.mxu0 0.0
  %998 = vmatmul.mubr.f32.gmra.mxu0 %v191
  %v999 = vpop.f32.mrf.mxu0
  %v1000 = vadd.f32 %v136, %v999
  %v1001 = vpop.f32.mrf.mxu0
  %1002 = vmatprep.mubr.f32.mxu0 0.0
  %1003 = vmatmul.mubr.f32.gmra.mxu0 %v194
  %v1004 = vpop.f32.mrf.mxu0
  %v1005 = vadd.f32 %v141, %v1004
  %v1006 = vpop.f32.mrf.mxu0
  %1007 = vmatprep.mubr.f32.mxu0 0.0
  %1008 = vmatmul.mubr.f32.gmra.mxu0 %v197
  %v1009 = vpop.f32.mrf.mxu0
  %v1010 = vadd.f32 %v146, %v1009
  %v1011 = vpop.f32.mrf.mxu0
  %1012 = vmatprep.mubr.f32.mxu0 0.0
  %1013 = vmatmul.mubr.f32.gmra.mxu0 %v200
  %v1014 = vpop.f32.mrf.mxu0
  %v1015 = vadd.f32 %v151, %v1014
  %v1016 = vpop.f32.mrf.mxu0
  %1017 = vdwg.mxu0
  %s1018 = scalar_lea.vmem [#allocation2], 512
  %1019 = vst [vmem:[%s1018] sm:$0xff] %v940
  %1020 = vst [vmem:[%s1018 + $0x8] sm:$0xff] %v945
  %s1021 = scalar_lea.vmem [#allocation2], 1408
  %1022 = vst [vmem:[%s1021 + $0x10] sm:$0xff] %v950
  %1023 = vst [vmem:[%s1021 + $0x18] sm:$0xff] %v955
  %1024 = vst [vmem:[%s1018 + $0x20] sm:$0xff] %v960
  %1025 = vst [vmem:[%s1018 + $0x28] sm:$0xff] %v965
  %1026 = vst [vmem:[%s1021 + $0x30] sm:$0xff] %v970
  %1027 = vst [vmem:[%s1021 + $0x38] sm:$0xff] %v975
  %1028 = vst [vmem:[%s1018 + $0x40] sm:$0xff] %v980
  %1029 = vst [vmem:[%s1018 + $0x48] sm:$0xff] %v985
  %1030 = vst [vmem:[%s1021 + $0x50] sm:$0xff] %v990
  %1031 = vst [vmem:[%s1021 + $0x58] sm:$0xff] %v995
  %1032 = vst [vmem:[%s1018 + $0x60] sm:$0xff] %v1000
  %1033 = vst [vmem:[%s1018 + $0x68] sm:$0xff] %v1005
  %1034 = vst [vmem:[%s1021 + $0x70] sm:$0xff] %v1010
  %1035 = vst [vmem:[%s1021 + $0x78] sm:$0xff] %v1015
  %s1036 = scalar_lea.vmem %s0, 160
  %v1037 = vld [vmem:[%s1036] sm:$0xff]
  %v1038 = vld [vmem:[%s1036 + $0x8] sm:$0xff]
  %v1039 = vld [vmem:[%s1036 + $0x10] sm:$0xff]
  %v1040 = vld [vmem:[%s1036 + $0x18] sm:$0xff]
  %1041 = vmatprep.subr.mxu0 0.0
  %1042 = vmatpush1.msra.mxu0 0.0
  %1043 = vmatprep.subr.mxu0 0.0
  %1044 = vmatpush1.msra.mxu0 0.0
  %1045 = vmatprep.subr.mxu0 0.0
  %1046 = vmatpush1.msra.mxu0 0.0
  %1047 = vmatprep.subr.mxu0 0.0
  %1048 = vmatpush1.msra.mxu0 0.0
  %1049 = vmatprep.subr.mxu0 0.0
  %1050 = vmatpush1.msra.mxu0 0.0
  %1051 = vmatprep.subr.mxu0 0.0
  %1052 = vmatpush1.msra.mxu0 0.0
  %1053 = vmatprep.subr.mxu0 0.0
  %1054 = vmatpush1.msra.mxu0 0.0
  %1055 = vmatprep.subr.mxu0 0.0
  %1056 = vmatpush1.msra.mxu0 0.0
  %1057 = vmatprep.subr.mxu0 0.0
  %1058 = vmatpush1.msra.mxu0 0.0
  %1059 = vmatprep.subr.mxu0 0.0
  %1060 = vmatpush1.msra.mxu0 0.0
  %1061 = vmatprep.subr.mxu0 0.0
  %1062 = vmatpush1.msra.mxu0 0.0
  %1063 = vmatprep.subr.mxu0 0.0
  %1064 = vmatpush1.msra.mxu0 0.0
  %1065 = vmatprep.subr.mxu0 0.0
  %1066 = vmatpush1.msra.mxu0 %v1040
  %1067 = vmatprep.subr.mxu0 0.0
  %1068 = vmatpush1.msra.mxu0 %v1039
  %1069 = vmatprep.subr.mxu0 0.0
  %1070 = vmatpush1.msra.mxu0 %v1038
  %1071 = vmatprep.subr.mxu0 0.0
  %1072 = vmatpush1.msra.mxu0 %v1037
  %1073 = vmatprep.subr.mxu0 0.0
  %1074 = vmatpush2.msra.mxu0 0.0
  %1075 = vmatprep.subr.mxu0 0.0
  %1076 = vmatpush2.msra.mxu0 0.0
  %1077 = vmatprep.subr.mxu0 0.0
  %1078 = vmatpush2.msra.mxu0 0.0
  %1079 = vmatprep.subr.mxu0 0.0
  %1080 = vmatpush2.msra.mxu0 0.0
  %1081 = vmatprep.subr.mxu0 0.0
  %1082 = vmatpush2.msra.mxu0 0.0
  %1083 = vmatprep.subr.mxu0 0.0
  %1084 = vmatpush2.msra.mxu0 0.0
  %1085 = vmatprep.subr.mxu0 0.0
  %1086 = vmatpush2.msra.mxu0 0.0
  %1087 = vmatprep.subr.mxu0 0.0
  %1088 = vmatpush2.msra.mxu0 0.0
  %1089 = vmatprep.subr.mxu0 0.0
  %1090 = vmatpush2.msra.mxu0 0.0
  %1091 = vmatprep.subr.mxu0 0.0
  %1092 = vmatpush2.msra.mxu0 0.0
  %1093 = vmatprep.subr.mxu0 0.0
  %1094 = vmatpush2.msra.mxu0 0.0
  %1095 = vmatprep.subr.mxu0 0.0
  %1096 = vmatpush2.msra.mxu0 0.0
  %1097 = vmatprep.subr.mxu0 0.0
  %1098 = vmatpush2.msra.mxu0 0.0
  %1099 = vmatprep.subr.mxu0 0.0
  %1100 = vmatpush2.msra.mxu0 0.0
  %1101 = vmatprep.subr.mxu0 0.0
  %1102 = vmatpush2.msra.mxu0 0.0
  %1103 = vmatprep.subr.mxu0 0.0
  %1104 = vmatpush2.msra.mxu0 0.0
  %1105 = vmatprep.mubr.f32.mxu0 0.0
  %1106 = vmatmul.mubr.f32.gmra.mxu0 %v155
  %v1107 = vpop.f32.mrf.mxu0
  %v1108 = vadd.f32 %v76, %v1107
  %v1109 = vpop.f32.mrf.mxu0
  %1110 = vmatprep.mubr.f32.mxu0 0.0
  %1111 = vmatmul.mubr.f32.gmra.mxu0 %v158
  %v1112 = vpop.f32.mrf.mxu0
  %v1113 = vadd.f32 %v81, %v1112
  %v1114 = vpop.f32.mrf.mxu0
  %1115 = vmatprep.mubr.f32.mxu0 0.0
  %1116 = vmatmul.mubr.f32.gmra.mxu0 %v161
  %v1117 = vpop.f32.mrf.mxu0
  %v1118 = vadd.f32 %v86, %v1117
  %v1119 = vpop.f32.mrf.mxu0
  %1120 = vmatprep.mubr.f32.mxu0 0.0
  %1121 = vmatmul.mubr.f32.gmra.mxu0 %v164
  %v1122 = vpop.f32.mrf.mxu0
  %v1123 = vadd.f32 %v91, %v1122
  %v1124 = vpop.f32.mrf.mxu0
  %1125 = vmatprep.mubr.f32.mxu0 0.0
  %1126 = vmatmul.mubr.f32.gmra.mxu0 %v167
  %v1127 = vpop.f32.mrf.mxu0
  %v1128 = vadd.f32 %v96, %v1127
  %v1129 = vpop.f32.mrf.mxu0
  %1130 = vmatprep.mubr.f32.mxu0 0.0
  %1131 = vmatmul.mubr.f32.gmra.mxu0 %v170
  %v1132 = vpop.f32.mrf.mxu0
  %v1133 = vadd.f32 %v101, %v1132
  %v1134 = vpop.f32.mrf.mxu0
  %1135 = vmatprep.mubr.f32.mxu0 0.0
  %1136 = vmatmul.mubr.f32.gmra.mxu0 %v173
  %v1137 = vpop.f32.mrf.mxu0
  %v1138 = vadd.f32 %v106, %v1137
  %v1139 = vpop.f32.mrf.mxu0
  %1140 = vmatprep.mubr.f32.mxu0 0.0
  %1141 = vmatmul.mubr.f32.gmra.mxu0 %v176
  %v1142 = vpop.f32.mrf.mxu0
  %v1143 = vadd.f32 %v111, %v1142
  %v1144 = vpop.f32.mrf.mxu0
  %1145 = vmatprep.mubr.f32.mxu0 0.0
  %1146 = vmatmul.mubr.f32.gmra.mxu0 %v179
  %v1147 = vpop.f32.mrf.mxu0
  %v1148 = vadd.f32 %v116, %v1147
  %v1149 = vpop.f32.mrf.mxu0
  %1150 = vmatprep.mubr.f32.mxu0 0.0
  %1151 = vmatmul.mubr.f32.gmra.mxu0 %v182
  %v1152 = vpop.f32.mrf.mxu0
  %v1153 = vadd.f32 %v121, %v1152
  %v1154 = vpop.f32.mrf.mxu0
  %1155 = vmatprep.mubr.f32.mxu0 0.0
  %1156 = vmatmul.mubr.f32.gmra.mxu0 %v185
  %v1157 = vpop.f32.mrf.mxu0
  %v1158 = vadd.f32 %v126, %v1157
  %v1159 = vpop.f32.mrf.mxu0
  %1160 = vmatprep.mubr.f32.mxu0 0.0
  %1161 = vmatmul.mubr.f32.gmra.mxu0 %v188
  %v1162 = vpop.f32.mrf.mxu0
  %v1163 = vadd.f32 %v131, %v1162
  %v1164 = vpop.f32.mrf.mxu0
  %1165 = vmatprep.mubr.f32.mxu0 0.0
  %1166 = vmatmul.mubr.f32.gmra.mxu0 %v191
  %v1167 = vpop.f32.mrf.mxu0
  %v1168 = vadd.f32 %v136, %v1167
  %v1169 = vpop.f32.mrf.mxu0
  %1170 = vmatprep.mubr.f32.mxu0 0.0
  %1171 = vmatmul.mubr.f32.gmra.mxu0 %v194
  %v1172 = vpop.f32.mrf.mxu0
  %v1173 = vadd.f32 %v141, %v1172
  %v1174 = vpop.f32.mrf.mxu0
  %1175 = vmatprep.mubr.f32.mxu0 0.0
  %1176 = vmatmul.mubr.f32.gmra.mxu0 %v197
  %v1177 = vpop.f32.mrf.mxu0
  %v1178 = vadd.f32 %v146, %v1177
  %v1179 = vpop.f32.mrf.mxu0
  %1180 = vmatprep.mubr.f32.mxu0 0.0
  %1181 = vmatmul.mubr.f32.gmra.mxu0 %v200
  %v1182 = vpop.f32.mrf.mxu0
  %v1183 = vadd.f32 %v151, %v1182
  %v1184 = vpop.f32.mrf.mxu0
  %1185 = vdwg.mxu0
  %s1186 = scalar_lea.vmem [#allocation2], 640
  %1187 = vst [vmem:[%s1186] sm:$0xff] %v1108
  %1188 = vst [vmem:[%s1186 + $0x8] sm:$0xff] %v1113
  %s1189 = scalar_lea.vmem [#allocation2], 1280
  %1190 = vst [vmem:[%s1189 + $0x10] sm:$0xff] %v1118
  %1191 = vst [vmem:[%s1189 + $0x18] sm:$0xff] %v1123
  %1192 = vst [vmem:[%s1186 + $0x20] sm:$0xff] %v1128
  %1193 = vst [vmem:[%s1186 + $0x28] sm:$0xff] %v1133
  %1194 = vst [vmem:[%s1189 + $0x30] sm:$0xff] %v1138
  %1195 = vst [vmem:[%s1189 + $0x38] sm:$0xff] %v1143
  %1196 = vst [vmem:[%s1186 + $0x40] sm:$0xff] %v1148
  %1197 = vst [vmem:[%s1186 + $0x48] sm:$0xff] %v1153
  %1198 = vst [vmem:[%s1189 + $0x50] sm:$0xff] %v1158
  %1199 = vst [vmem:[%s1189 + $0x58] sm:$0xff] %v1163
  %1200 = vst [vmem:[%s1186 + $0x60] sm:$0xff] %v1168
  %1201 = vst [vmem:[%s1186 + $0x68] sm:$0xff] %v1173
  %1202 = vst [vmem:[%s1189 + $0x70] sm:$0xff] %v1178
  %1203 = vst [vmem:[%s1189 + $0x78] sm:$0xff] %v1183
  %s1204 = scalar_lea.vmem %s0, 192
  %v1205 = vld [vmem:[%s1204] sm:$0xff]
  %v1206 = vld [vmem:[%s1204 + $0x8] sm:$0xff]
  %v1207 = vld [vmem:[%s1204 + $0x10] sm:$0xff]
  %v1208 = vld [vmem:[%s1204 + $0x18] sm:$0xff]
  %1209 = vmatprep.subr.mxu0 0.0
  %1210 = vmatpush1.msra.mxu0 0.0
  %1211 = vmatprep.subr.mxu0 0.0
  %1212 = vmatpush1.msra.mxu0 0.0
  %1213 = vmatprep.subr.mxu0 0.0
  %1214 = vmatpush1.msra.mxu0 0.0
  %1215 = vmatprep.subr.mxu0 0.0
  %1216 = vmatpush1.msra.mxu0 0.0
  %1217 = vmatprep.subr.mxu0 0.0
  %1218 = vmatpush1.msra.mxu0 0.0
  %1219 = vmatprep.subr.mxu0 0.0
  %1220 = vmatpush1.msra.mxu0 0.0
  %1221 = vmatprep.subr.mxu0 0.0
  %1222 = vmatpush1.msra.mxu0 0.0
  %1223 = vmatprep.subr.mxu0 0.0
  %1224 = vmatpush1.msra.mxu0 0.0
  %1225 = vmatprep.subr.mxu0 0.0
  %1226 = vmatpush1.msra.mxu0 0.0
  %1227 = vmatprep.subr.mxu0 0.0
  %1228 = vmatpush1.msra.mxu0 0.0
  %1229 = vmatprep.subr.mxu0 0.0
  %1230 = vmatpush1.msra.mxu0 0.0
  %1231 = vmatprep.subr.mxu0 0.0
  %1232 = vmatpush1.msra.mxu0 0.0
  %1233 = vmatprep.subr.mxu0 0.0
  %1234 = vmatpush1.msra.mxu0 %v1208
  %1235 = vmatprep.subr.mxu0 0.0
  %1236 = vmatpush1.msra.mxu0 %v1207
  %1237 = vmatprep.subr.mxu0 0.0
  %1238 = vmatpush1.msra.mxu0 %v1206
  %1239 = vmatprep.subr.mxu0 0.0
  %1240 = vmatpush1.msra.mxu0 %v1205
  %1241 = vmatprep.subr.mxu0 0.0
  %1242 = vmatpush2.msra.mxu0 0.0
  %1243 = vmatprep.subr.mxu0 0.0
  %1244 = vmatpush2.msra.mxu0 0.0
  %1245 = vmatprep.subr.mxu0 0.0
  %1246 = vmatpush2.msra.mxu0 0.0
  %1247 = vmatprep.subr.mxu0 0.0
  %1248 = vmatpush2.msra.mxu0 0.0
  %1249 = vmatprep.subr.mxu0 0.0
  %1250 = vmatpush2.msra.mxu0 0.0
  %1251 = vmatprep.subr.mxu0 0.0
  %1252 = vmatpush2.msra.mxu0 0.0
  %1253 = vmatprep.subr.mxu0 0.0
  %1254 = vmatpush2.msra.mxu0 0.0
  %1255 = vmatprep.subr.mxu0 0.0
  %1256 = vmatpush2.msra.mxu0 0.0
  %1257 = vmatprep.subr.mxu0 0.0
  %1258 = vmatpush2.msra.mxu0 0.0
  %1259 = vmatprep.subr.mxu0 0.0
  %1260 = vmatpush2.msra.mxu0 0.0
  %1261 = vmatprep.subr.mxu0 0.0
  %1262 = vmatpush2.msra.mxu0 0.0
  %1263 = vmatprep.subr.mxu0 0.0
  %1264 = vmatpush2.msra.mxu0 0.0
  %1265 = vmatprep.subr.mxu0 0.0
  %1266 = vmatpush2.msra.mxu0 0.0
  %1267 = vmatprep.subr.mxu0 0.0
  %1268 = vmatpush2.msra.mxu0 0.0
  %1269 = vmatprep.subr.mxu0 0.0
  %1270 = vmatpush2.msra.mxu0 0.0
  %1271 = vmatprep.subr.mxu0 0.0
  %1272 = vmatpush2.msra.mxu0 0.0
  %1273 = vmatprep.mubr.f32.mxu0 0.0
  %1274 = vmatmul.mubr.f32.gmra.mxu0 %v155
  %v1275 = vpop.f32.mrf.mxu0
  %v1276 = vadd.f32 %v76, %v1275
  %v1277 = vpop.f32.mrf.mxu0
  %1278 = vmatprep.mubr.f32.mxu0 0.0
  %1279 = vmatmul.mubr.f32.gmra.mxu0 %v158
  %v1280 = vpop.f32.mrf.mxu0
  %v1281 = vadd.f32 %v81, %v1280
  %v1282 = vpop.f32.mrf.mxu0
  %1283 = vmatprep.mubr.f32.mxu0 0.0
  %1284 = vmatmul.mubr.f32.gmra.mxu0 %v161
  %v1285 = vpop.f32.mrf.mxu0
  %v1286 = vadd.f32 %v86, %v1285
  %v1287 = vpop.f32.mrf.mxu0
  %1288 = vmatprep.mubr.f32.mxu0 0.0
  %1289 = vmatmul.mubr.f32.gmra.mxu0 %v164
  %v1290 = vpop.f32.mrf.mxu0
  %v1291 = vadd.f32 %v91, %v1290
  %v1292 = vpop.f32.mrf.mxu0
  %1293 = vmatprep.mubr.f32.mxu0 0.0
  %1294 = vmatmul.mubr.f32.gmra.mxu0 %v167
  %v1295 = vpop.f32.mrf.mxu0
  %v1296 = vadd.f32 %v96, %v1295
  %v1297 = vpop.f32.mrf.mxu0
  %1298 = vmatprep.mubr.f32.mxu0 0.0
  %1299 = vmatmul.mubr.f32.gmra.mxu0 %v170
  %v1300 = vpop.f32.mrf.mxu0
  %v1301 = vadd.f32 %v101, %v1300
  %v1302 = vpop.f32.mrf.mxu0
  %1303 = vmatprep.mubr.f32.mxu0 0.0
  %1304 = vmatmul.mubr.f32.gmra.mxu0 %v173
  %v1305 = vpop.f32.mrf.mxu0
  %v1306 = vadd.f32 %v106, %v1305
  %v1307 = vpop.f32.mrf.mxu0
  %1308 = vmatprep.mubr.f32.mxu0 0.0
  %1309 = vmatmul.mubr.f32.gmra.mxu0 %v176
  %v1310 = vpop.f32.mrf.mxu0
  %v1311 = vadd.f32 %v111, %v1310
  %v1312 = vpop.f32.mrf.mxu0
  %1313 = vmatprep.mubr.f32.mxu0 0.0
  %1314 = vmatmul.mubr.f32.gmra.mxu0 %v179
  %v1315 = vpop.f32.mrf.mxu0
  %v1316 = vadd.f32 %v116, %v1315
  %v1317 = vpop.f32.mrf.mxu0
  %1318 = vmatprep.mubr.f32.mxu0 0.0
  %1319 = vmatmul.mubr.f32.gmra.mxu0 %v182
  %v1320 = vpop.f32.mrf.mxu0
  %v1321 = vadd.f32 %v121, %v1320
  %v1322 = vpop.f32.mrf.mxu0
  %1323 = vmatprep.mubr.f32.mxu0 0.0
  %1324 = vmatmul.mubr.f32.gmra.mxu0 %v185
  %v1325 = vpop.f32.mrf.mxu0
  %v1326 = vadd.f32 %v126, %v1325
  %v1327 = vpop.f32.mrf.mxu0
  %1328 = vmatprep.mubr.f32.mxu0 0.0
  %1329 = vmatmul.mubr.f32.gmra.mxu0 %v188
  %v1330 = vpop.f32.mrf.mxu0
  %v1331 = vadd.f32 %v131, %v1330
  %v1332 = vpop.f32.mrf.mxu0
  %1333 = vmatprep.mubr.f32.mxu0 0.0
  %1334 = vmatmul.mubr.f32.gmra.mxu0 %v191
  %v1335 = vpop.f32.mrf.mxu0
  %v1336 = vadd.f32 %v136, %v1335
  %v1337 = vpop.f32.mrf.mxu0
  %1338 = vmatprep.mubr.f32.mxu0 0.0
  %1339 = vmatmul.mubr.f32.gmra.mxu0 %v194
  %v1340 = vpop.f32.mrf.mxu0
  %v1341 = vadd.f32 %v141, %v1340
  %v1342 = vpop.f32.mrf.mxu0
  %1343 = vmatprep.mubr.f32.mxu0 0.0
  %1344 = vmatmul.mubr.f32.gmra.mxu0 %v197
  %v1345 = vpop.f32.mrf.mxu0
  %v1346 = vadd.f32 %v146, %v1345
  %v1347 = vpop.f32.mrf.mxu0
  %1348 = vmatprep.mubr.f32.mxu0 0.0
  %1349 = vmatmul.mubr.f32.gmra.mxu0 %v200
  %v1350 = vpop.f32.mrf.mxu0
  %v1351 = vadd.f32 %v151, %v1350
  %v1352 = vpop.f32.mrf.mxu0
  %1353 = vdwg.mxu0
  %s1354 = scalar_lea.vmem [#allocation2], 768
  %1355 = vst [vmem:[%s1354] sm:$0xff] %v1276
  %1356 = vst [vmem:[%s1354 + $0x8] sm:$0xff] %v1281
  %s1357 = scalar_lea.vmem [#allocation2], 1152
  %1358 = vst [vmem:[%s1357 + $0x10] sm:$0xff] %v1286
  %1359 = vst [vmem:[%s1357 + $0x18] sm:$0xff] %v1291
  %1360 = vst [vmem:[%s1354 + $0x20] sm:$0xff] %v1296
  %1361 = vst [vmem:[%s1354 + $0x28] sm:$0xff] %v1301
  %1362 = vst [vmem:[%s1357 + $0x30] sm:$0xff] %v1306
  %1363 = vst [vmem:[%s1357 + $0x38] sm:$0xff] %v1311
  %1364 = vst [vmem:[%s1354 + $0x40] sm:$0xff] %v1316
  %1365 = vst [vmem:[%s1354 + $0x48] sm:$0xff] %v1321
  %1366 = vst [vmem:[%s1357 + $0x50] sm:$0xff] %v1326
  %1367 = vst [vmem:[%s1357 + $0x58] sm:$0xff] %v1331
  %1368 = vst [vmem:[%s1354 + $0x60] sm:$0xff] %v1336
  %1369 = vst [vmem:[%s1354 + $0x68] sm:$0xff] %v1341
  %1370 = vst [vmem:[%s1357 + $0x70] sm:$0xff] %v1346
  %1371 = vst [vmem:[%s1357 + $0x78] sm:$0xff] %v1351
  %s1372 = scalar_lea.vmem %s0, 224
  %v1373 = vld [vmem:[%s1372] sm:$0xff]
  %v1374 = vld [vmem:[%s1372 + $0x8] sm:$0xff]
  %v1375 = vld [vmem:[%s1372 + $0x10] sm:$0xff]
  %v1376 = vld [vmem:[%s1372 + $0x18] sm:$0xff]
  %1377 = vmatprep.subr.mxu0 0.0
  %1378 = vmatpush1.msra.mxu0 0.0
  %1379 = vmatprep.subr.mxu0 0.0
  %1380 = vmatpush1.msra.mxu0 0.0
  %1381 = vmatprep.subr.mxu0 0.0
  %1382 = vmatpush1.msra.mxu0 0.0
  %1383 = vmatprep.subr.mxu0 0.0
  %1384 = vmatpush1.msra.mxu0 0.0
  %1385 = vmatprep.subr.mxu0 0.0
  %1386 = vmatpush1.msra.mxu0 0.0
  %1387 = vmatprep.subr.mxu0 0.0
  %1388 = vmatpush1.msra.mxu0 0.0
  %1389 = vmatprep.subr.mxu0 0.0
  %1390 = vmatpush1.msra.mxu0 0.0
  %1391 = vmatprep.subr.mxu0 0.0
  %1392 = vmatpush1.msra.mxu0 0.0
  %1393 = vmatprep.subr.mxu0 0.0
  %1394 = vmatpush1.msra.mxu0 0.0
  %1395 = vmatprep.subr.mxu0 0.0
  %1396 = vmatpush1.msra.mxu0 0.0
  %1397 = vmatprep.subr.mxu0 0.0
  %1398 = vmatpush1.msra.mxu0 0.0
  %1399 = vmatprep.subr.mxu0 0.0
  %1400 = vmatpush1.msra.mxu0 0.0
  %1401 = vmatprep.subr.mxu0 0.0
  %1402 = vmatpush1.msra.mxu0 %v1376
  %1403 = vmatprep.subr.mxu0 0.0
  %1404 = vmatpush1.msra.mxu0 %v1375
  %1405 = vmatprep.subr.mxu0 0.0
  %1406 = vmatpush1.msra.mxu0 %v1374
  %1407 = vmatprep.subr.mxu0 0.0
  %1408 = vmatpush1.msra.mxu0 %v1373
  %1409 = vmatprep.subr.mxu0 0.0
  %1410 = vmatpush2.msra.mxu0 0.0
  %1411 = vmatprep.subr.mxu0 0.0
  %1412 = vmatpush2.msra.mxu0 0.0
  %1413 = vmatprep.subr.mxu0 0.0
  %1414 = vmatpush2.msra.mxu0 0.0
  %1415 = vmatprep.subr.mxu0 0.0
  %1416 = vmatpush2.msra.mxu0 0.0
  %1417 = vmatprep.subr.mxu0 0.0
  %1418 = vmatpush2.msra.mxu0 0.0
  %1419 = vmatprep.subr.mxu0 0.0
  %1420 = vmatpush2.msra.mxu0 0.0
  %1421 = vmatprep.subr.mxu0 0.0
  %1422 = vmatpush2.msra.mxu0 0.0
  %1423 = vmatprep.subr.mxu0 0.0
  %1424 = vmatpush2.msra.mxu0 0.0
  %1425 = vmatprep.subr.mxu0 0.0
  %1426 = vmatpush2.msra.mxu0 0.0
  %1427 = vmatprep.subr.mxu0 0.0
  %1428 = vmatpush2.msra.mxu0 0.0
  %1429 = vmatprep.subr.mxu0 0.0
  %1430 = vmatpush2.msra.mxu0 0.0
  %1431 = vmatprep.subr.mxu0 0.0
  %1432 = vmatpush2.msra.mxu0 0.0
  %1433 = vmatprep.subr.mxu0 0.0
  %1434 = vmatpush2.msra.mxu0 0.0
  %1435 = vmatprep.subr.mxu0 0.0
  %1436 = vmatpush2.msra.mxu0 0.0
  %1437 = vmatprep.subr.mxu0 0.0
  %1438 = vmatpush2.msra.mxu0 0.0
  %1439 = vmatprep.subr.mxu0 0.0
  %1440 = vmatpush2.msra.mxu0 0.0
  %1441 = vmatprep.mubr.f32.mxu0 0.0
  %1442 = vmatmul.mubr.f32.gmra.mxu0 %v155
  %v1443 = vpop.f32.mrf.mxu0
  %v1444 = vadd.f32 %v76, %v1443
  %v1445 = vpop.f32.mrf.mxu0
  %1446 = vmatprep.mubr.f32.mxu0 0.0
  %1447 = vmatmul.mubr.f32.gmra.mxu0 %v158
  %v1448 = vpop.f32.mrf.mxu0
  %v1449 = vadd.f32 %v81, %v1448
  %v1450 = vpop.f32.mrf.mxu0
  %1451 = vmatprep.mubr.f32.mxu0 0.0
  %1452 = vmatmul.mubr.f32.gmra.mxu0 %v161
  %v1453 = vpop.f32.mrf.mxu0
  %v1454 = vadd.f32 %v86, %v1453
  %v1455 = vpop.f32.mrf.mxu0
  %1456 = vmatprep.mubr.f32.mxu0 0.0
  %1457 = vmatmul.mubr.f32.gmra.mxu0 %v164
  %v1458 = vpop.f32.mrf.mxu0
  %v1459 = vadd.f32 %v91, %v1458
  %v1460 = vpop.f32.mrf.mxu0
  %1461 = vmatprep.mubr.f32.mxu0 0.0
  %1462 = vmatmul.mubr.f32.gmra.mxu0 %v167
  %v1463 = vpop.f32.mrf.mxu0
  %v1464 = vadd.f32 %v96, %v1463
  %v1465 = vpop.f32.mrf.mxu0
  %1466 = vmatprep.mubr.f32.mxu0 0.0
  %1467 = vmatmul.mubr.f32.gmra.mxu0 %v170
  %v1468 = vpop.f32.mrf.mxu0
  %v1469 = vadd.f32 %v101, %v1468
  %v1470 = vpop.f32.mrf.mxu0
  %1471 = vmatprep.mubr.f32.mxu0 0.0
  %1472 = vmatmul.mubr.f32.gmra.mxu0 %v173
  %v1473 = vpop.f32.mrf.mxu0
  %v1474 = vadd.f32 %v106, %v1473
  %v1475 = vpop.f32.mrf.mxu0
  %1476 = vmatprep.mubr.f32.mxu0 0.0
  %1477 = vmatmul.mubr.f32.gmra.mxu0 %v176
  %v1478 = vpop.f32.mrf.mxu0
  %v1479 = vadd.f32 %v111, %v1478
  %v1480 = vpop.f32.mrf.mxu0
  %1481 = vmatprep.mubr.f32.mxu0 0.0
  %1482 = vmatmul.mubr.f32.gmra.mxu0 %v179
  %v1483 = vpop.f32.mrf.mxu0
  %v1484 = vadd.f32 %v116, %v1483
  %v1485 = vpop.f32.mrf.mxu0
  %1486 = vmatprep.mubr.f32.mxu0 0.0
  %1487 = vmatmul.mubr.f32.gmra.mxu0 %v182
  %v1488 = vpop.f32.mrf.mxu0
  %v1489 = vadd.f32 %v121, %v1488
  %v1490 = vpop.f32.mrf.mxu0
  %1491 = vmatprep.mubr.f32.mxu0 0.0
  %1492 = vmatmul.mubr.f32.gmra.mxu0 %v185
  %v1493 = vpop.f32.mrf.mxu0
  %v1494 = vadd.f32 %v126, %v1493
  %v1495 = vpop.f32.mrf.mxu0
  %1496 = vmatprep.mubr.f32.mxu0 0.0
  %1497 = vmatmul.mubr.f32.gmra.mxu0 %v188
  %v1498 = vpop.f32.mrf.mxu0
  %v1499 = vadd.f32 %v131, %v1498
  %v1500 = vpop.f32.mrf.mxu0
  %1501 = vmatprep.mubr.f32.mxu0 0.0
  %1502 = vmatmul.mubr.f32.gmra.mxu0 %v191
  %v1503 = vpop.f32.mrf.mxu0
  %v1504 = vadd.f32 %v136, %v1503
  %v1505 = vpop.f32.mrf.mxu0
  %1506 = vmatprep.mubr.f32.mxu0 0.0
  %1507 = vmatmul.mubr.f32.gmra.mxu0 %v194
  %v1508 = vpop.f32.mrf.mxu0
  %v1509 = vadd.f32 %v141, %v1508
  %v1510 = vpop.f32.mrf.mxu0
  %1511 = vmatprep.mubr.f32.mxu0 0.0
  %1512 = vmatmul.mubr.f32.gmra.mxu0 %v197
  %v1513 = vpop.f32.mrf.mxu0
  %v1514 = vadd.f32 %v146, %v1513
  %v1515 = vpop.f32.mrf.mxu0
  %1516 = vmatprep.mubr.f32.mxu0 0.0
  %1517 = vmatmul.mubr.f32.gmra.mxu0 %v200
  %v1518 = vpop.f32.mrf.mxu0
  %v1519 = vadd.f32 %v151, %v1518
  %v1520 = vpop.f32.mrf.mxu0
  %1521 = vdwg.mxu0
  %s1522 = scalar_lea.vmem [#allocation2], 896
  %1523 = vst [vmem:[%s1522] sm:$0xff] %v1444
  %1524 = vst [vmem:[%s1522 + $0x8] sm:$0xff] %v1449
  %s1525 = scalar_lea.vmem [#allocation2], 1024
  %1526 = vst [vmem:[%s1525 + $0x10] sm:$0xff] %v1454
  %1527 = vst [vmem:[%s1525 + $0x18] sm:$0xff] %v1459
  %1528 = vst [vmem:[%s1522 + $0x20] sm:$0xff] %v1464
  %1529 = vst [vmem:[%s1522 + $0x28] sm:$0xff] %v1469
  %1530 = vst [vmem:[%s1525 + $0x30] sm:$0xff] %v1474
  %1531 = vst [vmem:[%s1525 + $0x38] sm:$0xff] %v1479
  %1532 = vst [vmem:[%s1522 + $0x40] sm:$0xff] %v1484
  %1533 = vst [vmem:[%s1522 + $0x48] sm:$0xff] %v1489
  %1534 = vst [vmem:[%s1525 + $0x50] sm:$0xff] %v1494
  %1535 = vst [vmem:[%s1525 + $0x58] sm:$0xff] %v1499
  %1536 = vst [vmem:[%s1522 + $0x60] sm:$0xff] %v1504
  %1537 = vst [vmem:[%s1522 + $0x68] sm:$0xff] %v1509
  %1538 = vst [vmem:[%s1525 + $0x70] sm:$0xff] %v1514
  %1539 = vst [vmem:[%s1525 + $0x78] sm:$0xff] %v1519
  %s1540 = scalar_lea.vmem %s0, 256
  %v1541 = vld [vmem:[%s1540] sm:$0xff]
  %v1542 = vld [vmem:[%s1540 + $0x8] sm:$0xff]
  %v1543 = vld [vmem:[%s1540 + $0x10] sm:$0xff]
  %v1544 = vld [vmem:[%s1540 + $0x18] sm:$0xff]
  %1545 = vmatprep.subr.mxu0 0.0
  %1546 = vmatpush1.msra.mxu0 0.0
  %1547 = vmatprep.subr.mxu0 0.0
  %1548 = vmatpush1.msra.mxu0 0.0
  %1549 = vmatprep.subr.mxu0 0.0
  %1550 = vmatpush1.msra.mxu0 0.0
  %1551 = vmatprep.subr.mxu0 0.0
  %1552 = vmatpush1.msra.mxu0 0.0
  %1553 = vmatprep.subr.mxu0 0.0
  %1554 = vmatpush1.msra.mxu0 0.0
  %1555 = vmatprep.subr.mxu0 0.0
  %1556 = vmatpush1.msra.mxu0 0.0
  %1557 = vmatprep.subr.mxu0 0.0
  %1558 = vmatpush1.msra.mxu0 0.0
  %1559 = vmatprep.subr.mxu0 0.0
  %1560 = vmatpush1.msra.mxu0 0.0
  %1561 = vmatprep.subr.mxu0 0.0
  %1562 = vmatpush1.msra.mxu0 0.0
  %1563 = vmatprep.subr.mxu0 0.0
  %1564 = vmatpush1.msra.mxu0 0.0
  %1565 = vmatprep.subr.mxu0 0.0
  %1566 = vmatpush1.msra.mxu0 0.0
  %1567 = vmatprep.subr.mxu0 0.0
  %1568 = vmatpush1.msra.mxu0 0.0
  %1569 = vmatprep.subr.mxu0 0.0
  %1570 = vmatpush1.msra.mxu0 %v1544
  %1571 = vmatprep.subr.mxu0 0.0
  %1572 = vmatpush1.msra.mxu0 %v1543
  %1573 = vmatprep.subr.mxu0 0.0
  %1574 = vmatpush1.msra.mxu0 %v1542
  %1575 = vmatprep.subr.mxu0 0.0
  %1576 = vmatpush1.msra.mxu0 %v1541
  %1577 = vmatprep.subr.mxu0 0.0
  %1578 = vmatpush2.msra.mxu0 0.0
  %1579 = vmatprep.subr.mxu0 0.0
  %1580 = vmatpush2.msra.mxu0 0.0
  %1581 = vmatprep.subr.mxu0 0.0
  %1582 = vmatpush2.msra.mxu0 0.0
  %1583 = vmatprep.subr.mxu0 0.0
  %1584 = vmatpush2.msra.mxu0 0.0
  %1585 = vmatprep.subr.mxu0 0.0
  %1586 = vmatpush2.msra.mxu0 0.0
  %1587 = vmatprep.subr.mxu0 0.0
  %1588 = vmatpush2.msra.mxu0 0.0
  %1589 = vmatprep.subr.mxu0 0.0
  %1590 = vmatpush2.msra.mxu0 0.0
  %1591 = vmatprep.subr.mxu0 0.0
  %1592 = vmatpush2.msra.mxu0 0.0
  %1593 = vmatprep.subr.mxu0 0.0
  %1594 = vmatpush2.msra.mxu0 0.0
  %1595 = vmatprep.subr.mxu0 0.0
  %1596 = vmatpush2.msra.mxu0 0.0
  %1597 = vmatprep.subr.mxu0 0.0
  %1598 = vmatpush2.msra.mxu0 0.0
  %1599 = vmatprep.subr.mxu0 0.0
  %1600 = vmatpush2.msra.mxu0 0.0
  %1601 = vmatprep.subr.mxu0 0.0
  %1602 = vmatpush2.msra.mxu0 0.0
  %1603 = vmatprep.subr.mxu0 0.0
  %1604 = vmatpush2.msra.mxu0 0.0
  %1605 = vmatprep.subr.mxu0 0.0
  %1606 = vmatpush2.msra.mxu0 0.0
  %1607 = vmatprep.subr.mxu0 0.0
  %1608 = vmatpush2.msra.mxu0 0.0
  %1609 = vmatprep.mubr.f32.mxu0 0.0
  %1610 = vmatmul.mubr.f32.gmra.mxu0 %v155
  %v1611 = vpop.f32.mrf.mxu0
  %v1612 = vadd.f32 %v76, %v1611
  %v1613 = vpop.f32.mrf.mxu0
  %1614 = vmatprep.mubr.f32.mxu0 0.0
  %1615 = vmatmul.mubr.f32.gmra.mxu0 %v158
  %v1616 = vpop.f32.mrf.mxu0
  %v1617 = vadd.f32 %v81, %v1616
  %v1618 = vpop.f32.mrf.mxu0
  %1619 = vmatprep.mubr.f32.mxu0 0.0
  %1620 = vmatmul.mubr.f32.gmra.mxu0 %v161
  %v1621 = vpop.f32.mrf.mxu0
  %v1622 = vadd.f32 %v86, %v1621
  %v1623 = vpop.f32.mrf.mxu0
  %1624 = vmatprep.mubr.f32.mxu0 0.0
  %1625 = vmatmul.mubr.f32.gmra.mxu0 %v164
  %v1626 = vpop.f32.mrf.mxu0
  %v1627 = vadd.f32 %v91, %v1626
  %v1628 = vpop.f32.mrf.mxu0
  %1629 = vmatprep.mubr.f32.mxu0 0.0
  %1630 = vmatmul.mubr.f32.gmra.mxu0 %v167
  %v1631 = vpop.f32.mrf.mxu0
  %v1632 = vadd.f32 %v96, %v1631
  %v1633 = vpop.f32.mrf.mxu0
  %1634 = vmatprep.mubr.f32.mxu0 0.0
  %1635 = vmatmul.mubr.f32.gmra.mxu0 %v170
  %v1636 = vpop.f32.mrf.mxu0
  %v1637 = vadd.f32 %v101, %v1636
  %v1638 = vpop.f32.mrf.mxu0
  %1639 = vmatprep.mubr.f32.mxu0 0.0
  %1640 = vmatmul.mubr.f32.gmra.mxu0 %v173
  %v1641 = vpop.f32.mrf.mxu0
  %v1642 = vadd.f32 %v106, %v1641
  %v1643 = vpop.f32.mrf.mxu0
  %1644 = vmatprep.mubr.f32.mxu0 0.0
  %1645 = vmatmul.mubr.f32.gmra.mxu0 %v176
  %v1646 = vpop.f32.mrf.mxu0
  %v1647 = vadd.f32 %v111, %v1646
  %v1648 = vpop.f32.mrf.mxu0
  %1649 = vmatprep.mubr.f32.mxu0 0.0
  %1650 = vmatmul.mubr.f32.gmra.mxu0 %v179
  %v1651 = vpop.f32.mrf.mxu0
  %v1652 = vadd.f32 %v116, %v1651
  %v1653 = vpop.f32.mrf.mxu0
  %1654 = vmatprep.mubr.f32.mxu0 0.0
  %1655 = vmatmul.mubr.f32.gmra.mxu0 %v182
  %v1656 = vpop.f32.mrf.mxu0
  %v1657 = vadd.f32 %v121, %v1656
  %v1658 = vpop.f32.mrf.mxu0
  %1659 = vmatprep.mubr.f32.mxu0 0.0
  %1660 = vmatmul.mubr.f32.gmra.mxu0 %v185
  %v1661 = vpop.f32.mrf.mxu0
  %v1662 = vadd.f32 %v126, %v1661
  %v1663 = vpop.f32.mrf.mxu0
  %1664 = vmatprep.mubr.f32.mxu0 0.0
  %1665 = vmatmul.mubr.f32.gmra.mxu0 %v188
  %v1666 = vpop.f32.mrf.mxu0
  %v1667 = vadd.f32 %v131, %v1666
  %v1668 = vpop.f32.mrf.mxu0
  %1669 = vmatprep.mubr.f32.mxu0 0.0
  %1670 = vmatmul.mubr.f32.gmra.mxu0 %v191
  %v1671 = vpop.f32.mrf.mxu0
  %v1672 = vadd.f32 %v136, %v1671
  %v1673 = vpop.f32.mrf.mxu0
  %1674 = vmatprep.mubr.f32.mxu0 0.0
  %1675 = vmatmul.mubr.f32.gmra.mxu0 %v194
  %v1676 = vpop.f32.mrf.mxu0
  %v1677 = vadd.f32 %v141, %v1676
  %v1678 = vpop.f32.mrf.mxu0
  %1679 = vmatprep.mubr.f32.mxu0 0.0
  %1680 = vmatmul.mubr.f32.gmra.mxu0 %v197
  %v1681 = vpop.f32.mrf.mxu0
  %v1682 = vadd.f32 %v146, %v1681
  %v1683 = vpop.f32.mrf.mxu0
  %1684 = vmatprep.mubr.f32.mxu0 0.0
  %1685 = vmatmul.mubr.f32.gmra.mxu0 %v200
  %v1686 = vpop.f32.mrf.mxu0
  %v1687 = vadd.f32 %v151, %v1686
  %v1688 = vpop.f32.mrf.mxu0
  %1689 = vdwg.mxu0
  %1690 = vst [vmem:[%s1525] sm:$0xff] %v1612
  %1691 = vst [vmem:[%s1525 + $0x8] sm:$0xff] %v1617
  %1692 = vst [vmem:[%s1522 + $0x10] sm:$0xff] %v1622
  %1693 = vst [vmem:[%s1522 + $0x18] sm:$0xff] %v1627
  %1694 = vst [vmem:[%s1525 + $0x20] sm:$0xff] %v1632
  %1695 = vst [vmem:[%s1525 + $0x28] sm:$0xff] %v1637
  %1696 = vst [vmem:[%s1522 + $0x30] sm:$0xff] %v1642
  %1697 = vst [vmem:[%s1522 + $0x38] sm:$0xff] %v1647
  %1698 = vst [vmem:[%s1525 + $0x40] sm:$0xff] %v1652
  %1699 = vst [vmem:[%s1525 + $0x48] sm:$0xff] %v1657
  %1700 = vst [vmem:[%s1522 + $0x50] sm:$0xff] %v1662
  %1701 = vst [vmem:[%s1522 + $0x58] sm:$0xff] %v1667
  %1702 = vst [vmem:[%s1525 + $0x60] sm:$0xff] %v1672
  %1703 = vst [vmem:[%s1525 + $0x68] sm:$0xff] %v1677
  %1704 = vst [vmem:[%s1522 + $0x70] sm:$0xff] %v1682
  %1705 = vst [vmem:[%s1522 + $0x78] sm:$0xff] %v1687
  %s1706 = scalar_lea.vmem %s0, 288
  %v1707 = vld [vmem:[%s1706] sm:$0xff]
  %v1708 = vld [vmem:[%s1706 + $0x8] sm:$0xff]
  %v1709 = vld [vmem:[%s1706 + $0x10] sm:$0xff]
  %v1710 = vld [vmem:[%s1706 + $0x18] sm:$0xff]
  %1711 = vmatprep.subr.mxu0 0.0
  %1712 = vmatpush1.msra.mxu0 0.0
  %1713 = vmatprep.subr.mxu0 0.0
  %1714 = vmatpush1.msra.mxu0 0.0
  %1715 = vmatprep.subr.mxu0 0.0
  %1716 = vmatpush1.msra.mxu0 0.0
  %1717 = vmatprep.subr.mxu0 0.0
  %1718 = vmatpush1.msra.mxu0 0.0
  %1719 = vmatprep.subr.mxu0 0.0
  %1720 = vmatpush1.msra.mxu0 0.0
  %1721 = vmatprep.subr.mxu0 0.0
  %1722 = vmatpush1.msra.mxu0 0.0
  %1723 = vmatprep.subr.mxu0 0.0
  %1724 = vmatpush1.msra.mxu0 0.0
  %1725 = vmatprep.subr.mxu0 0.0
  %1726 = vmatpush1.msra.mxu0 0.0
  %1727 = vmatprep.subr.mxu0 0.0
  %1728 = vmatpush1.msra.mxu0 0.0
  %1729 = vmatprep.subr.mxu0 0.0
  %1730 = vmatpush1.msra.mxu0 0.0
  %1731 = vmatprep.subr.mxu0 0.0
  %1732 = vmatpush1.msra.mxu0 0.0
  %1733 = vmatprep.subr.mxu0 0.0
  %1734 = vmatpush1.msra.mxu0 0.0
  %1735 = vmatprep.subr.mxu0 0.0
  %1736 = vmatpush1.msra.mxu0 %v1710
  %1737 = vmatprep.subr.mxu0 0.0
  %1738 = vmatpush1.msra.mxu0 %v1709
  %1739 = vmatprep.subr.mxu0 0.0
  %1740 = vmatpush1.msra.mxu0 %v1708
  %1741 = vmatprep.subr.mxu0 0.0
  %1742 = vmatpush1.msra.mxu0 %v1707
  %1743 = vmatprep.subr.mxu0 0.0
  %1744 = vmatpush2.msra.mxu0 0.0
  %1745 = vmatprep.subr.mxu0 0.0
  %1746 = vmatpush2.msra.mxu0 0.0
  %1747 = vmatprep.subr.mxu0 0.0
  %1748 = vmatpush2.msra.mxu0 0.0
  %1749 = vmatprep.subr.mxu0 0.0
  %1750 = vmatpush2.msra.mxu0 0.0
  %1751 = vmatprep.subr.mxu0 0.0
  %1752 = vmatpush2.msra.mxu0 0.0
  %1753 = vmatprep.subr.mxu0 0.0
  %1754 = vmatpush2.msra.mxu0 0.0
  %1755 = vmatprep.subr.mxu0 0.0
  %1756 = vmatpush2.msra.mxu0 0.0
  %1757 = vmatprep.subr.mxu0 0.0
  %1758 = vmatpush2.msra.mxu0 0.0
  %1759 = vmatprep.subr.mxu0 0.0
  %1760 = vmatpush2.msra.mxu0 0.0
  %1761 = vmatprep.subr.mxu0 0.0
  %1762 = vmatpush2.msra.mxu0 0.0
  %1763 = vmatprep.subr.mxu0 0.0
  %1764 = vmatpush2.msra.mxu0 0.0
  %1765 = vmatprep.subr.mxu0 0.0
  %1766 = vmatpush2.msra.mxu0 0.0
  %1767 = vmatprep.subr.mxu0 0.0
  %1768 = vmatpush2.msra.mxu0 0.0
  %1769 = vmatprep.subr.mxu0 0.0
  %1770 = vmatpush2.msra.mxu0 0.0
  %1771 = vmatprep.subr.mxu0 0.0
  %1772 = vmatpush2.msra.mxu0 0.0
  %1773 = vmatprep.subr.mxu0 0.0
  %1774 = vmatpush2.msra.mxu0 0.0
  %1775 = vmatprep.mubr.f32.mxu0 0.0
  %1776 = vmatmul.mubr.f32.gmra.mxu0 %v155
  %v1777 = vpop.f32.mrf.mxu0
  %v1778 = vadd.f32 %v76, %v1777
  %v1779 = vpop.f32.mrf.mxu0
  %1780 = vmatprep.mubr.f32.mxu0 0.0
  %1781 = vmatmul.mubr.f32.gmra.mxu0 %v158
  %v1782 = vpop.f32.mrf.mxu0
  %v1783 = vadd.f32 %v81, %v1782
  %v1784 = vpop.f32.mrf.mxu0
  %1785 = vmatprep.mubr.f32.mxu0 0.0
  %1786 = vmatmul.mubr.f32.gmra.mxu0 %v161
  %v1787 = vpop.f32.mrf.mxu0
  %v1788 = vadd.f32 %v86, %v1787
  %v1789 = vpop.f32.mrf.mxu0
  %1790 = vmatprep.mubr.f32.mxu0 0.0
  %1791 = vmatmul.mubr.f32.gmra.mxu0 %v164
  %v1792 = vpop.f32.mrf.mxu0
  %v1793 = vadd.f32 %v91, %v1792
  %v1794 = vpop.f32.mrf.mxu0
  %1795 = vmatprep.mubr.f32.mxu0 0.0
  %1796 = vmatmul.mubr.f32.gmra.mxu0 %v167
  %v1797 = vpop.f32.mrf.mxu0
  %v1798 = vadd.f32 %v96, %v1797
  %v1799 = vpop.f32.mrf.mxu0
  %1800 = vmatprep.mubr.f32.mxu0 0.0
  %1801 = vmatmul.mubr.f32.gmra.mxu0 %v170
  %v1802 = vpop.f32.mrf.mxu0
  %v1803 = vadd.f32 %v101, %v1802
  %v1804 = vpop.f32.mrf.mxu0
  %1805 = vmatprep.mubr.f32.mxu0 0.0
  %1806 = vmatmul.mubr.f32.gmra.mxu0 %v173
  %v1807 = vpop.f32.mrf.mxu0
  %v1808 = vadd.f32 %v106, %v1807
  %v1809 = vpop.f32.mrf.mxu0
  %1810 = vmatprep.mubr.f32.mxu0 0.0
  %1811 = vmatmul.mubr.f32.gmra.mxu0 %v176
  %v1812 = vpop.f32.mrf.mxu0
  %v1813 = vadd.f32 %v111, %v1812
  %v1814 = vpop.f32.mrf.mxu0
  %1815 = vmatprep.mubr.f32.mxu0 0.0
  %1816 = vmatmul.mubr.f32.gmra.mxu0 %v179
  %v1817 = vpop.f32.mrf.mxu0
  %v1818 = vadd.f32 %v116, %v1817
  %v1819 = vpop.f32.mrf.mxu0
  %1820 = vmatprep.mubr.f32.mxu0 0.0
  %1821 = vmatmul.mubr.f32.gmra.mxu0 %v182
  %v1822 = vpop.f32.mrf.mxu0
  %v1823 = vadd.f32 %v121, %v1822
  %v1824 = vpop.f32.mrf.mxu0
  %1825 = vmatprep.mubr.f32.mxu0 0.0
  %1826 = vmatmul.mubr.f32.gmra.mxu0 %v185
  %v1827 = vpop.f32.mrf.mxu0
  %v1828 = vadd.f32 %v126, %v1827
  %v1829 = vpop.f32.mrf.mxu0
  %1830 = vmatprep.mubr.f32.mxu0 0.0
  %1831 = vmatmul.mubr.f32.gmra.mxu0 %v188
  %v1832 = vpop.f32.mrf.mxu0
  %v1833 = vadd.f32 %v131, %v1832
  %v1834 = vpop.f32.mrf.mxu0
  %1835 = vmatprep.mubr.f32.mxu0 0.0
  %1836 = vmatmul.mubr.f32.gmra.mxu0 %v191
  %v1837 = vpop.f32.mrf.mxu0
  %v1838 = vadd.f32 %v136, %v1837
  %v1839 = vpop.f32.mrf.mxu0
  %1840 = vmatprep.mubr.f32.mxu0 0.0
  %1841 = vmatmul.mubr.f32.gmra.mxu0 %v194
  %v1842 = vpop.f32.mrf.mxu0
  %v1843 = vadd.f32 %v141, %v1842
  %v1844 = vpop.f32.mrf.mxu0
  %1845 = vmatprep.mubr.f32.mxu0 0.0
  %1846 = vmatmul.mubr.f32.gmra.mxu0 %v197
  %v1847 = vpop.f32.mrf.mxu0
  %v1848 = vadd.f32 %v146, %v1847
  %v1849 = vpop.f32.mrf.mxu0
  %1850 = vmatprep.mubr.f32.mxu0 0.0
  %1851 = vmatmul.mubr.f32.gmra.mxu0 %v200
  %v1852 = vpop.f32.mrf.mxu0
  %v1853 = vadd.f32 %v151, %v1852
  %v1854 = vpop.f32.mrf.mxu0
  %1855 = vdwg.mxu0
  %1856 = vst [vmem:[%s1357] sm:$0xff] %v1778
  %1857 = vst [vmem:[%s1357 + $0x8] sm:$0xff] %v1783
  %1858 = vst [vmem:[%s1354 + $0x10] sm:$0xff] %v1788
  %1859 = vst [vmem:[%s1354 + $0x18] sm:$0xff] %v1793
  %1860 = vst [vmem:[%s1357 + $0x20] sm:$0xff] %v1798
  %1861 = vst [vmem:[%s1357 + $0x28] sm:$0xff] %v1803
  %1862 = vst [vmem:[%s1354 + $0x30] sm:$0xff] %v1808
  %1863 = vst [vmem:[%s1354 + $0x38] sm:$0xff] %v1813
  %1864 = vst [vmem:[%s1357 + $0x40] sm:$0xff] %v1818
  %1865 = vst [vmem:[%s1357 + $0x48] sm:$0xff] %v1823
  %1866 = vst [vmem:[%s1354 + $0x50] sm:$0xff] %v1828
  %1867 = vst [vmem:[%s1354 + $0x58] sm:$0xff] %v1833
  %1868 = vst [vmem:[%s1357 + $0x60] sm:$0xff] %v1838
  %1869 = vst [vmem:[%s1357 + $0x68] sm:$0xff] %v1843
  %1870 = vst [vmem:[%s1354 + $0x70] sm:$0xff] %v1848
  %1871 = vst [vmem:[%s1354 + $0x78] sm:$0xff] %v1853
  %s1872 = scalar_lea.vmem %s0, 320
  %v1873 = vld [vmem:[%s1872] sm:$0xff]
  %v1874 = vld [vmem:[%s1872 + $0x8] sm:$0xff]
  %v1875 = vld [vmem:[%s1872 + $0x10] sm:$0xff]
  %v1876 = vld [vmem:[%s1872 + $0x18] sm:$0xff]
  %1877 = vmatprep.subr.mxu0 0.0
  %1878 = vmatpush1.msra.mxu0 0.0
  %1879 = vmatprep.subr.mxu0 0.0
  %1880 = vmatpush1.msra.mxu0 0.0
  %1881 = vmatprep.subr.mxu0 0.0
  %1882 = vmatpush1.msra.mxu0 0.0
  %1883 = vmatprep.subr.mxu0 0.0
  %1884 = vmatpush1.msra.mxu0 0.0
  %1885 = vmatprep.subr.mxu0 0.0
  %1886 = vmatpush1.msra.mxu0 0.0
  %1887 = vmatprep.subr.mxu0 0.0
  %1888 = vmatpush1.msra.mxu0 0.0
  %1889 = vmatprep.subr.mxu0 0.0
  %1890 = vmatpush1.msra.mxu0 0.0
  %1891 = vmatprep.subr.mxu0 0.0
  %1892 = vmatpush1.msra.mxu0 0.0
  %1893 = vmatprep.subr.mxu0 0.0
  %1894 = vmatpush1.msra.mxu0 0.0
  %1895 = vmatprep.subr.mxu0 0.0
  %1896 = vmatpush1.msra.mxu0 0.0
  %1897 = vmatprep.subr.mxu0 0.0
  %1898 = vmatpush1.msra.mxu0 0.0
  %1899 = vmatprep.subr.mxu0 0.0
  %1900 = vmatpush1.msra.mxu0 0.0
  %1901 = vmatprep.subr.mxu0 0.0
  %1902 = vmatpush1.msra.mxu0 %v1876
  %1903 = vmatprep.subr.mxu0 0.0
  %1904 = vmatpush1.msra.mxu0 %v1875
  %1905 = vmatprep.subr.mxu0 0.0
  %1906 = vmatpush1.msra.mxu0 %v1874
  %1907 = vmatprep.subr.mxu0 0.0
  %1908 = vmatpush1.msra.mxu0 %v1873
  %1909 = vmatprep.subr.mxu0 0.0
  %1910 = vmatpush2.msra.mxu0 0.0
  %1911 = vmatprep.subr.mxu0 0.0
  %1912 = vmatpush2.msra.mxu0 0.0
  %1913 = vmatprep.subr.mxu0 0.0
  %1914 = vmatpush2.msra.mxu0 0.0
  %1915 = vmatprep.subr.mxu0 0.0
  %1916 = vmatpush2.msra.mxu0 0.0
  %1917 = vmatprep.subr.mxu0 0.0
  %1918 = vmatpush2.msra.mxu0 0.0
  %1919 = vmatprep.subr.mxu0 0.0
  %1920 = vmatpush2.msra.mxu0 0.0
  %1921 = vmatprep.subr.mxu0 0.0
  %1922 = vmatpush2.msra.mxu0 0.0
  %1923 = vmatprep.subr.mxu0 0.0
  %1924 = vmatpush2.msra.mxu0 0.0
  %1925 = vmatprep.subr.mxu0 0.0
  %1926 = vmatpush2.msra.mxu0 0.0
  %1927 = vmatprep.subr.mxu0 0.0
  %1928 = vmatpush2.msra.mxu0 0.0
  %1929 = vmatprep.subr.mxu0 0.0
  %1930 = vmatpush2.msra.mxu0 0.0
  %1931 = vmatprep.subr.mxu0 0.0
  %1932 = vmatpush2.msra.mxu0 0.0
  %1933 = vmatprep.subr.mxu0 0.0
  %1934 = vmatpush2.msra.mxu0 0.0
  %1935 = vmatprep.subr.mxu0 0.0
  %1936 = vmatpush2.msra.mxu0 0.0
  %1937 = vmatprep.subr.mxu0 0.0
  %1938 = vmatpush2.msra.mxu0 0.0
  %1939 = vmatprep.subr.mxu0 0.0
  %1940 = vmatpush2.msra.mxu0 0.0
  %1941 = vmatprep.mubr.f32.mxu0 0.0
  %1942 = vmatmul.mubr.f32.gmra.mxu0 %v155
  %v1943 = vpop.f32.mrf.mxu0
  %v1944 = vadd.f32 %v76, %v1943
  %v1945 = vpop.f32.mrf.mxu0
  %1946 = vmatprep.mubr.f32.mxu0 0.0
  %1947 = vmatmul.mubr.f32.gmra.mxu0 %v158
  %v1948 = vpop.f32.mrf.mxu0
  %v1949 = vadd.f32 %v81, %v1948
  %v1950 = vpop.f32.mrf.mxu0
  %1951 = vmatprep.mubr.f32.mxu0 0.0
  %1952 = vmatmul.mubr.f32.gmra.mxu0 %v161
  %v1953 = vpop.f32.mrf.mxu0
  %v1954 = vadd.f32 %v86, %v1953
  %v1955 = vpop.f32.mrf.mxu0
  %1956 = vmatprep.mubr.f32.mxu0 0.0
  %1957 = vmatmul.mubr.f32.gmra.mxu0 %v164
  %v1958 = vpop.f32.mrf.mxu0
  %v1959 = vadd.f32 %v91, %v1958
  %v1960 = vpop.f32.mrf.mxu0
  %1961 = vmatprep.mubr.f32.mxu0 0.0
  %1962 = vmatmul.mubr.f32.gmra.mxu0 %v167
  %v1963 = vpop.f32.mrf.mxu0
  %v1964 = vadd.f32 %v96, %v1963
  %v1965 = vpop.f32.mrf.mxu0
  %1966 = vmatprep.mubr.f32.mxu0 0.0
  %1967 = vmatmul.mubr.f32.gmra.mxu0 %v170
  %v1968 = vpop.f32.mrf.mxu0
  %v1969 = vadd.f32 %v101, %v1968
  %v1970 = vpop.f32.mrf.mxu0
  %1971 = vmatprep.mubr.f32.mxu0 0.0
  %1972 = vmatmul.mubr.f32.gmra.mxu0 %v173
  %v1973 = vpop.f32.mrf.mxu0
  %v1974 = vadd.f32 %v106, %v1973
  %v1975 = vpop.f32.mrf.mxu0
  %1976 = vmatprep.mubr.f32.mxu0 0.0
  %1977 = vmatmul.mubr.f32.gmra.mxu0 %v176
  %v1978 = vpop.f32.mrf.mxu0
  %v1979 = vadd.f32 %v111, %v1978
  %v1980 = vpop.f32.mrf.mxu0
  %1981 = vmatprep.mubr.f32.mxu0 0.0
  %1982 = vmatmul.mubr.f32.gmra.mxu0 %v179
  %v1983 = vpop.f32.mrf.mxu0
  %v1984 = vadd.f32 %v116, %v1983
  %v1985 = vpop.f32.mrf.mxu0
  %1986 = vmatprep.mubr.f32.mxu0 0.0
  %1987 = vmatmul.mubr.f32.gmra.mxu0 %v182
  %v1988 = vpop.f32.mrf.mxu0
  %v1989 = vadd.f32 %v121, %v1988
  %v1990 = vpop.f32.mrf.mxu0
  %1991 = vmatprep.mubr.f32.mxu0 0.0
  %1992 = vmatmul.mubr.f32.gmra.mxu0 %v185
  %v1993 = vpop.f32.mrf.mxu0
  %v1994 = vadd.f32 %v126, %v1993
  %v1995 = vpop.f32.mrf.mxu0
  %1996 = vmatprep.mubr.f32.mxu0 0.0
  %1997 = vmatmul.mubr.f32.gmra.mxu0 %v188
  %v1998 = vpop.f32.mrf.mxu0
  %v1999 = vadd.f32 %v131, %v1998
  %v2000 = vpop.f32.mrf.mxu0
  %2001 = vmatprep.mubr.f32.mxu0 0.0
  %2002 = vmatmul.mubr.f32.gmra.mxu0 %v191
  %v2003 = vpop.f32.mrf.mxu0
  %v2004 = vadd.f32 %v136, %v2003
  %v2005 = vpop.f32.mrf.mxu0
  %2006 = vmatprep.mubr.f32.mxu0 0.0
  %2007 = vmatmul.mubr.f32.gmra.mxu0 %v194
  %v2008 = vpop.f32.mrf.mxu0
  %v2009 = vadd.f32 %v141, %v2008
  %v2010 = vpop.f32.mrf.mxu0
  %2011 = vmatprep.mubr.f32.mxu0 0.0
  %2012 = vmatmul.mubr.f32.gmra.mxu0 %v197
  %v2013 = vpop.f32.mrf.mxu0
  %v2014 = vadd.f32 %v146, %v2013
  %v2015 = vpop.f32.mrf.mxu0
  %2016 = vmatprep.mubr.f32.mxu0 0.0
  %2017 = vmatmul.mubr.f32.gmra.mxu0 %v200
  %v2018 = vpop.f32.mrf.mxu0
  %v2019 = vadd.f32 %v151, %v2018
  %v2020 = vpop.f32.mrf.mxu0
  %2021 = vdwg.mxu0
  %2022 = vst [vmem:[%s1189] sm:$0xff] %v1944
  %2023 = vst [vmem:[%s1189 + $0x8] sm:$0xff] %v1949
  %2024 = vst [vmem:[%s1186 + $0x10] sm:$0xff] %v1954
  %2025 = vst [vmem:[%s1186 + $0x18] sm:$0xff] %v1959
  %2026 = vst [vmem:[%s1189 + $0x20] sm:$0xff] %v1964
  %2027 = vst [vmem:[%s1189 + $0x28] sm:$0xff] %v1969
  %2028 = vst [vmem:[%s1186 + $0x30] sm:$0xff] %v1974
  %2029 = vst [vmem:[%s1186 + $0x38] sm:$0xff] %v1979
  %2030 = vst [vmem:[%s1189 + $0x40] sm:$0xff] %v1984
  %2031 = vst [vmem:[%s1189 + $0x48] sm:$0xff] %v1989
  %2032 = vst [vmem:[%s1186 + $0x50] sm:$0xff] %v1994
  %2033 = vst [vmem:[%s1186 + $0x58] sm:$0xff] %v1999
  %2034 = vst [vmem:[%s1189 + $0x60] sm:$0xff] %v2004
  %2035 = vst [vmem:[%s1189 + $0x68] sm:$0xff] %v2009
  %2036 = vst [vmem:[%s1186 + $0x70] sm:$0xff] %v2014
  %2037 = vst [vmem:[%s1186 + $0x78] sm:$0xff] %v2019
  %s2038 = scalar_lea.vmem %s0, 352
  %v2039 = vld [vmem:[%s2038] sm:$0xff]
  %v2040 = vld [vmem:[%s2038 + $0x8] sm:$0xff]
  %v2041 = vld [vmem:[%s2038 + $0x10] sm:$0xff]
  %v2042 = vld [vmem:[%s2038 + $0x18] sm:$0xff]
  %2043 = vmatprep.subr.mxu0 0.0
  %2044 = vmatpush1.msra.mxu0 0.0
  %2045 = vmatprep.subr.mxu0 0.0
  %2046 = vmatpush1.msra.mxu0 0.0
  %2047 = vmatprep.subr.mxu0 0.0
  %2048 = vmatpush1.msra.mxu0 0.0
  %2049 = vmatprep.subr.mxu0 0.0
  %2050 = vmatpush1.msra.mxu0 0.0
  %2051 = vmatprep.subr.mxu0 0.0
  %2052 = vmatpush1.msra.mxu0 0.0
  %2053 = vmatprep.subr.mxu0 0.0
  %2054 = vmatpush1.msra.mxu0 0.0
  %2055 = vmatprep.subr.mxu0 0.0
  %2056 = vmatpush1.msra.mxu0 0.0
  %2057 = vmatprep.subr.mxu0 0.0
  %2058 = vmatpush1.msra.mxu0 0.0
  %2059 = vmatprep.subr.mxu0 0.0
  %2060 = vmatpush1.msra.mxu0 0.0
  %2061 = vmatprep.subr.mxu0 0.0
  %2062 = vmatpush1.msra.mxu0 0.0
  %2063 = vmatprep.subr.mxu0 0.0
  %2064 = vmatpush1.msra.mxu0 0.0
  %2065 = vmatprep.subr.mxu0 0.0
  %2066 = vmatpush1.msra.mxu0 0.0
  %2067 = vmatprep.subr.mxu0 0.0
  %2068 = vmatpush1.msra.mxu0 %v2042
  %2069 = vmatprep.subr.mxu0 0.0
  %2070 = vmatpush1.msra.mxu0 %v2041
  %2071 = vmatprep.subr.mxu0 0.0
  %2072 = vmatpush1.msra.mxu0 %v2040
  %2073 = vmatprep.subr.mxu0 0.0
  %2074 = vmatpush1.msra.mxu0 %v2039
  %2075 = vmatprep.subr.mxu0 0.0
  %2076 = vmatpush2.msra.mxu0 0.0
  %2077 = vmatprep.subr.mxu0 0.0
  %2078 = vmatpush2.msra.mxu0 0.0
  %2079 = vmatprep.subr.mxu0 0.0
  %2080 = vmatpush2.msra.mxu0 0.0
  %2081 = vmatprep.subr.mxu0 0.0
  %2082 = vmatpush2.msra.mxu0 0.0
  %2083 = vmatprep.subr.mxu0 0.0
  %2084 = vmatpush2.msra.mxu0 0.0
  %2085 = vmatprep.subr.mxu0 0.0
  %2086 = vmatpush2.msra.mxu0 0.0
  %2087 = vmatprep.subr.mxu0 0.0
  %2088 = vmatpush2.msra.mxu0 0.0
  %2089 = vmatprep.subr.mxu0 0.0
  %2090 = vmatpush2.msra.mxu0 0.0
  %2091 = vmatprep.subr.mxu0 0.0
  %2092 = vmatpush2.msra.mxu0 0.0
  %2093 = vmatprep.subr.mxu0 0.0
  %2094 = vmatpush2.msra.mxu0 0.0
  %2095 = vmatprep.subr.mxu0 0.0
  %2096 = vmatpush2.msra.mxu0 0.0
  %2097 = vmatprep.subr.mxu0 0.0
  %2098 = vmatpush2.msra.mxu0 0.0
  %2099 = vmatprep.subr.mxu0 0.0
  %2100 = vmatpush2.msra.mxu0 0.0
  %2101 = vmatprep.subr.mxu0 0.0
  %2102 = vmatpush2.msra.mxu0 0.0
  %2103 = vmatprep.subr.mxu0 0.0
  %2104 = vmatpush2.msra.mxu0 0.0
  %2105 = vmatprep.subr.mxu0 0.0
  %2106 = vmatpush2.msra.mxu0 0.0
  %2107 = vmatprep.mubr.f32.mxu0 0.0
  %2108 = vmatmul.mubr.f32.gmra.mxu0 %v155
  %v2109 = vpop.f32.mrf.mxu0
  %v2110 = vadd.f32 %v76, %v2109
  %v2111 = vpop.f32.mrf.mxu0
  %2112 = vmatprep.mubr.f32.mxu0 0.0
  %2113 = vmatmul.mubr.f32.gmra.mxu0 %v158
  %v2114 = vpop.f32.mrf.mxu0
  %v2115 = vadd.f32 %v81, %v2114
  %v2116 = vpop.f32.mrf.mxu0
  %2117 = vmatprep.mubr.f32.mxu0 0.0
  %2118 = vmatmul.mubr.f32.gmra.mxu0 %v161
  %v2119 = vpop.f32.mrf.mxu0
  %v2120 = vadd.f32 %v86, %v2119
  %v2121 = vpop.f32.mrf.mxu0
  %2122 = vmatprep.mubr.f32.mxu0 0.0
  %2123 = vmatmul.mubr.f32.gmra.mxu0 %v164
  %v2124 = vpop.f32.mrf.mxu0
  %v2125 = vadd.f32 %v91, %v2124
  %v2126 = vpop.f32.mrf.mxu0
  %2127 = vmatprep.mubr.f32.mxu0 0.0
  %2128 = vmatmul.mubr.f32.gmra.mxu0 %v167
  %v2129 = vpop.f32.mrf.mxu0
  %v2130 = vadd.f32 %v96, %v2129
  %v2131 = vpop.f32.mrf.mxu0
  %2132 = vmatprep.mubr.f32.mxu0 0.0
  %2133 = vmatmul.mubr.f32.gmra.mxu0 %v170
  %v2134 = vpop.f32.mrf.mxu0
  %v2135 = vadd.f32 %v101, %v2134
  %v2136 = vpop.f32.mrf.mxu0
  %2137 = vmatprep.mubr.f32.mxu0 0.0
  %2138 = vmatmul.mubr.f32.gmra.mxu0 %v173
  %v2139 = vpop.f32.mrf.mxu0
  %v2140 = vadd.f32 %v106, %v2139
  %v2141 = vpop.f32.mrf.mxu0
  %2142 = vmatprep.mubr.f32.mxu0 0.0
  %2143 = vmatmul.mubr.f32.gmra.mxu0 %v176
  %v2144 = vpop.f32.mrf.mxu0
  %v2145 = vadd.f32 %v111, %v2144
  %v2146 = vpop.f32.mrf.mxu0
  %2147 = vmatprep.mubr.f32.mxu0 0.0
  %2148 = vmatmul.mubr.f32.gmra.mxu0 %v179
  %v2149 = vpop.f32.mrf.mxu0
  %v2150 = vadd.f32 %v116, %v2149
  %v2151 = vpop.f32.mrf.mxu0
  %2152 = vmatprep.mubr.f32.mxu0 0.0
  %2153 = vmatmul.mubr.f32.gmra.mxu0 %v182
  %v2154 = vpop.f32.mrf.mxu0
  %v2155 = vadd.f32 %v121, %v2154
  %v2156 = vpop.f32.mrf.mxu0
  %2157 = vmatprep.mubr.f32.mxu0 0.0
  %2158 = vmatmul.mubr.f32.gmra.mxu0 %v185
  %v2159 = vpop.f32.mrf.mxu0
  %v2160 = vadd.f32 %v126, %v2159
  %v2161 = vpop.f32.mrf.mxu0
  %2162 = vmatprep.mubr.f32.mxu0 0.0
  %2163 = vmatmul.mubr.f32.gmra.mxu0 %v188
  %v2164 = vpop.f32.mrf.mxu0
  %v2165 = vadd.f32 %v131, %v2164
  %v2166 = vpop.f32.mrf.mxu0
  %2167 = vmatprep.mubr.f32.mxu0 0.0
  %2168 = vmatmul.mubr.f32.gmra.mxu0 %v191
  %v2169 = vpop.f32.mrf.mxu0
  %v2170 = vadd.f32 %v136, %v2169
  %v2171 = vpop.f32.mrf.mxu0
  %2172 = vmatprep.mubr.f32.mxu0 0.0
  %2173 = vmatmul.mubr.f32.gmra.mxu0 %v194
  %v2174 = vpop.f32.mrf.mxu0
  %v2175 = vadd.f32 %v141, %v2174
  %v2176 = vpop.f32.mrf.mxu0
  %2177 = vmatprep.mubr.f32.mxu0 0.0
  %2178 = vmatmul.mubr.f32.gmra.mxu0 %v197
  %v2179 = vpop.f32.mrf.mxu0
  %v2180 = vadd.f32 %v146, %v2179
  %v2181 = vpop.f32.mrf.mxu0
  %2182 = vmatprep.mubr.f32.mxu0 0.0
  %2183 = vmatmul.mubr.f32.gmra.mxu0 %v200
  %v2184 = vpop.f32.mrf.mxu0
  %v2185 = vadd.f32 %v151, %v2184
  %v2186 = vpop.f32.mrf.mxu0
  %2187 = vdwg.mxu0
  %2188 = vst [vmem:[%s1021] sm:$0xff] %v2110
  %2189 = vst [vmem:[%s1021 + $0x8] sm:$0xff] %v2115
  %2190 = vst [vmem:[%s1018 + $0x10] sm:$0xff] %v2120
  %2191 = vst [vmem:[%s1018 + $0x18] sm:$0xff] %v2125
  %2192 = vst [vmem:[%s1021 + $0x20] sm:$0xff] %v2130
  %2193 = vst [vmem:[%s1021 + $0x28] sm:$0xff] %v2135
  %2194 = vst [vmem:[%s1018 + $0x30] sm:$0xff] %v2140
  %2195 = vst [vmem:[%s1018 + $0x38] sm:$0xff] %v2145
  %2196 = vst [vmem:[%s1021 + $0x40] sm:$0xff] %v2150
  %2197 = vst [vmem:[%s1021 + $0x48] sm:$0xff] %v2155
  %2198 = vst [vmem:[%s1018 + $0x50] sm:$0xff] %v2160
  %2199 = vst [vmem:[%s1018 + $0x58] sm:$0xff] %v2165
  %2200 = vst [vmem:[%s1021 + $0x60] sm:$0xff] %v2170
  %2201 = vst [vmem:[%s1021 + $0x68] sm:$0xff] %v2175
  %2202 = vst [vmem:[%s1018 + $0x70] sm:$0xff] %v2180
  %2203 = vst [vmem:[%s1018 + $0x78] sm:$0xff] %v2185
  %s2204 = scalar_lea.vmem %s0, 384
  %v2205 = vld [vmem:[%s2204] sm:$0xff]
  %v2206 = vld [vmem:[%s2204 + $0x8] sm:$0xff]
  %v2207 = vld [vmem:[%s2204 + $0x10] sm:$0xff]
  %v2208 = vld [vmem:[%s2204 + $0x18] sm:$0xff]
  %2209 = vmatprep.subr.mxu0 0.0
  %2210 = vmatpush1.msra.mxu0 0.0
  %2211 = vmatprep.subr.mxu0 0.0
  %2212 = vmatpush1.msra.mxu0 0.0
  %2213 = vmatprep.subr.mxu0 0.0
  %2214 = vmatpush1.msra.mxu0 0.0
  %2215 = vmatprep.subr.mxu0 0.0
  %2216 = vmatpush1.msra.mxu0 0.0
  %2217 = vmatprep.subr.mxu0 0.0
  %2218 = vmatpush1.msra.mxu0 0.0
  %2219 = vmatprep.subr.mxu0 0.0
  %2220 = vmatpush1.msra.mxu0 0.0
  %2221 = vmatprep.subr.mxu0 0.0
  %2222 = vmatpush1.msra.mxu0 0.0
  %2223 = vmatprep.subr.mxu0 0.0
  %2224 = vmatpush1.msra.mxu0 0.0
  %2225 = vmatprep.subr.mxu0 0.0
  %2226 = vmatpush1.msra.mxu0 0.0
  %2227 = vmatprep.subr.mxu0 0.0
  %2228 = vmatpush1.msra.mxu0 0.0
  %2229 = vmatprep.subr.mxu0 0.0
  %2230 = vmatpush1.msra.mxu0 0.0
  %2231 = vmatprep.subr.mxu0 0.0
  %2232 = vmatpush1.msra.mxu0 0.0
  %2233 = vmatprep.subr.mxu0 0.0
  %2234 = vmatpush1.msra.mxu0 %v2208
  %2235 = vmatprep.subr.mxu0 0.0
  %2236 = vmatpush1.msra.mxu0 %v2207
  %2237 = vmatprep.subr.mxu0 0.0
  %2238 = vmatpush1.msra.mxu0 %v2206
  %2239 = vmatprep.subr.mxu0 0.0
  %2240 = vmatpush1.msra.mxu0 %v2205
  %2241 = vmatprep.subr.mxu0 0.0
  %2242 = vmatpush2.msra.mxu0 0.0
  %2243 = vmatprep.subr.mxu0 0.0
  %2244 = vmatpush2.msra.mxu0 0.0
  %2245 = vmatprep.subr.mxu0 0.0
  %2246 = vmatpush2.msra.mxu0 0.0
  %2247 = vmatprep.subr.mxu0 0.0
  %2248 = vmatpush2.msra.mxu0 0.0
  %2249 = vmatprep.subr.mxu0 0.0
  %2250 = vmatpush2.msra.mxu0 0.0
  %2251 = vmatprep.subr.mxu0 0.0
  %2252 = vmatpush2.msra.mxu0 0.0
  %2253 = vmatprep.subr.mxu0 0.0
  %2254 = vmatpush2.msra.mxu0 0.0
  %2255 = vmatprep.subr.mxu0 0.0
  %2256 = vmatpush2.msra.mxu0 0.0
  %2257 = vmatprep.subr.mxu0 0.0
  %2258 = vmatpush2.msra.mxu0 0.0
  %2259 = vmatprep.subr.mxu0 0.0
  %2260 = vmatpush2.msra.mxu0 0.0
  %2261 = vmatprep.subr.mxu0 0.0
  %2262 = vmatpush2.msra.mxu0 0.0
  %2263 = vmatprep.subr.mxu0 0.0
  %2264 = vmatpush2.msra.mxu0 0.0
  %2265 = vmatprep.subr.mxu0 0.0
  %2266 = vmatpush2.msra.mxu0 0.0
  %2267 = vmatprep.subr.mxu0 0.0
  %2268 = vmatpush2.msra.mxu0 0.0
  %2269 = vmatprep.subr.mxu0 0.0
  %2270 = vmatpush2.msra.mxu0 0.0
  %2271 = vmatprep.subr.mxu0 0.0
  %2272 = vmatpush2.msra.mxu0 0.0
  %2273 = vmatprep.mubr.f32.mxu0 0.0
  %2274 = vmatmul.mubr.f32.gmra.mxu0 %v155
  %v2275 = vpop.f32.mrf.mxu0
  %v2276 = vadd.f32 %v76, %v2275
  %v2277 = vpop.f32.mrf.mxu0
  %2278 = vmatprep.mubr.f32.mxu0 0.0
  %2279 = vmatmul.mubr.f32.gmra.mxu0 %v158
  %v2280 = vpop.f32.mrf.mxu0
  %v2281 = vadd.f32 %v81, %v2280
  %v2282 = vpop.f32.mrf.mxu0
  %2283 = vmatprep.mubr.f32.mxu0 0.0
  %2284 = vmatmul.mubr.f32.gmra.mxu0 %v161
  %v2285 = vpop.f32.mrf.mxu0
  %v2286 = vadd.f32 %v86, %v2285
  %v2287 = vpop.f32.mrf.mxu0
  %2288 = vmatprep.mubr.f32.mxu0 0.0
  %2289 = vmatmul.mubr.f32.gmra.mxu0 %v164
  %v2290 = vpop.f32.mrf.mxu0
  %v2291 = vadd.f32 %v91, %v2290
  %v2292 = vpop.f32.mrf.mxu0
  %2293 = vmatprep.mubr.f32.mxu0 0.0
  %2294 = vmatmul.mubr.f32.gmra.mxu0 %v167
  %v2295 = vpop.f32.mrf.mxu0
  %v2296 = vadd.f32 %v96, %v2295
  %v2297 = vpop.f32.mrf.mxu0
  %2298 = vmatprep.mubr.f32.mxu0 0.0
  %2299 = vmatmul.mubr.f32.gmra.mxu0 %v170
  %v2300 = vpop.f32.mrf.mxu0
  %v2301 = vadd.f32 %v101, %v2300
  %v2302 = vpop.f32.mrf.mxu0
  %2303 = vmatprep.mubr.f32.mxu0 0.0
  %2304 = vmatmul.mubr.f32.gmra.mxu0 %v173
  %v2305 = vpop.f32.mrf.mxu0
  %v2306 = vadd.f32 %v106, %v2305
  %v2307 = vpop.f32.mrf.mxu0
  %2308 = vmatprep.mubr.f32.mxu0 0.0
  %2309 = vmatmul.mubr.f32.gmra.mxu0 %v176
  %v2310 = vpop.f32.mrf.mxu0
  %v2311 = vadd.f32 %v111, %v2310
  %v2312 = vpop.f32.mrf.mxu0
  %2313 = vmatprep.mubr.f32.mxu0 0.0
  %2314 = vmatmul.mubr.f32.gmra.mxu0 %v179
  %v2315 = vpop.f32.mrf.mxu0
  %v2316 = vadd.f32 %v116, %v2315
  %v2317 = vpop.f32.mrf.mxu0
  %2318 = vmatprep.mubr.f32.mxu0 0.0
  %2319 = vmatmul.mubr.f32.gmra.mxu0 %v182
  %v2320 = vpop.f32.mrf.mxu0
  %v2321 = vadd.f32 %v121, %v2320
  %v2322 = vpop.f32.mrf.mxu0
  %2323 = vmatprep.mubr.f32.mxu0 0.0
  %2324 = vmatmul.mubr.f32.gmra.mxu0 %v185
  %v2325 = vpop.f32.mrf.mxu0
  %v2326 = vadd.f32 %v126, %v2325
  %v2327 = vpop.f32.mrf.mxu0
  %2328 = vmatprep.mubr.f32.mxu0 0.0
  %2329 = vmatmul.mubr.f32.gmra.mxu0 %v188
  %v2330 = vpop.f32.mrf.mxu0
  %v2331 = vadd.f32 %v131, %v2330
  %v2332 = vpop.f32.mrf.mxu0
  %2333 = vmatprep.mubr.f32.mxu0 0.0
  %2334 = vmatmul.mubr.f32.gmra.mxu0 %v191
  %v2335 = vpop.f32.mrf.mxu0
  %v2336 = vadd.f32 %v136, %v2335
  %v2337 = vpop.f32.mrf.mxu0
  %2338 = vmatprep.mubr.f32.mxu0 0.0
  %2339 = vmatmul.mubr.f32.gmra.mxu0 %v194
  %v2340 = vpop.f32.mrf.mxu0
  %v2341 = vadd.f32 %v141, %v2340
  %v2342 = vpop.f32.mrf.mxu0
  %2343 = vmatprep.mubr.f32.mxu0 0.0
  %2344 = vmatmul.mubr.f32.gmra.mxu0 %v197
  %v2345 = vpop.f32.mrf.mxu0
  %v2346 = vadd.f32 %v146, %v2345
  %v2347 = vpop.f32.mrf.mxu0
  %2348 = vmatprep.mubr.f32.mxu0 0.0
  %2349 = vmatmul.mubr.f32.gmra.mxu0 %v200
  %v2350 = vpop.f32.mrf.mxu0
  %v2351 = vadd.f32 %v151, %v2350
  %v2352 = vpop.f32.mrf.mxu0
  %2353 = vdwg.mxu0
  %2354 = vst [vmem:[%s853] sm:$0xff] %v2276
  %2355 = vst [vmem:[%s853 + $0x8] sm:$0xff] %v2281
  %2356 = vst [vmem:[%s850 + $0x10] sm:$0xff] %v2286
  %2357 = vst [vmem:[%s850 + $0x18] sm:$0xff] %v2291
  %2358 = vst [vmem:[%s853 + $0x20] sm:$0xff] %v2296
  %2359 = vst [vmem:[%s853 + $0x28] sm:$0xff] %v2301
  %2360 = vst [vmem:[%s850 + $0x30] sm:$0xff] %v2306
  %2361 = vst [vmem:[%s850 + $0x38] sm:$0xff] %v2311
  %2362 = vst [vmem:[%s853 + $0x40] sm:$0xff] %v2316
  %2363 = vst [vmem:[%s853 + $0x48] sm:$0xff] %v2321
  %2364 = vst [vmem:[%s850 + $0x50] sm:$0xff] %v2326
  %2365 = vst [vmem:[%s850 + $0x58] sm:$0xff] %v2331
  %2366 = vst [vmem:[%s853 + $0x60] sm:$0xff] %v2336
  %2367 = vst [vmem:[%s853 + $0x68] sm:$0xff] %v2341
  %2368 = vst [vmem:[%s850 + $0x70] sm:$0xff] %v2346
  %2369 = vst [vmem:[%s850 + $0x78] sm:$0xff] %v2351
  %s2370 = scalar_lea.vmem %s0, 416
  %v2371 = vld [vmem:[%s2370] sm:$0xff]
  %v2372 = vld [vmem:[%s2370 + $0x8] sm:$0xff]
  %v2373 = vld [vmem:[%s2370 + $0x10] sm:$0xff]
  %v2374 = vld [vmem:[%s2370 + $0x18] sm:$0xff]
  %2375 = vmatprep.subr.mxu0 0.0
  %2376 = vmatpush1.msra.mxu0 0.0
  %2377 = vmatprep.subr.mxu0 0.0
  %2378 = vmatpush1.msra.mxu0 0.0
  %2379 = vmatprep.subr.mxu0 0.0
  %2380 = vmatpush1.msra.mxu0 0.0
  %2381 = vmatprep.subr.mxu0 0.0
  %2382 = vmatpush1.msra.mxu0 0.0
  %2383 = vmatprep.subr.mxu0 0.0
  %2384 = vmatpush1.msra.mxu0 0.0
  %2385 = vmatprep.subr.mxu0 0.0
  %2386 = vmatpush1.msra.mxu0 0.0
  %2387 = vmatprep.subr.mxu0 0.0
  %2388 = vmatpush1.msra.mxu0 0.0
  %2389 = vmatprep.subr.mxu0 0.0
  %2390 = vmatpush1.msra.mxu0 0.0
  %2391 = vmatprep.subr.mxu0 0.0
  %2392 = vmatpush1.msra.mxu0 0.0
  %2393 = vmatprep.subr.mxu0 0.0
  %2394 = vmatpush1.msra.mxu0 0.0
  %2395 = vmatprep.subr.mxu0 0.0
  %2396 = vmatpush1.msra.mxu0 0.0
  %2397 = vmatprep.subr.mxu0 0.0
  %2398 = vmatpush1.msra.mxu0 0.0
  %2399 = vmatprep.subr.mxu0 0.0
  %2400 = vmatpush1.msra.mxu0 %v2374
  %2401 = vmatprep.subr.mxu0 0.0
  %2402 = vmatpush1.msra.mxu0 %v2373
  %2403 = vmatprep.subr.mxu0 0.0
  %2404 = vmatpush1.msra.mxu0 %v2372
  %2405 = vmatprep.subr.mxu0 0.0
  %2406 = vmatpush1.msra.mxu0 %v2371
  %2407 = vmatprep.subr.mxu0 0.0
  %2408 = vmatpush2.msra.mxu0 0.0
  %2409 = vmatprep.subr.mxu0 0.0
  %2410 = vmatpush2.msra.mxu0 0.0
  %2411 = vmatprep.subr.mxu0 0.0
  %2412 = vmatpush2.msra.mxu0 0.0
  %2413 = vmatprep.subr.mxu0 0.0
  %2414 = vmatpush2.msra.mxu0 0.0
  %2415 = vmatprep.subr.mxu0 0.0
  %2416 = vmatpush2.msra.mxu0 0.0
  %2417 = vmatprep.subr.mxu0 0.0
  %2418 = vmatpush2.msra.mxu0 0.0
  %2419 = vmatprep.subr.mxu0 0.0
  %2420 = vmatpush2.msra.mxu0 0.0
  %2421 = vmatprep.subr.mxu0 0.0
  %2422 = vmatpush2.msra.mxu0 0.0
  %2423 = vmatprep.subr.mxu0 0.0
  %2424 = vmatpush2.msra.mxu0 0.0
  %2425 = vmatprep.subr.mxu0 0.0
  %2426 = vmatpush2.msra.mxu0 0.0
  %2427 = vmatprep.subr.mxu0 0.0
  %2428 = vmatpush2.msra.mxu0 0.0
  %2429 = vmatprep.subr.mxu0 0.0
  %2430 = vmatpush2.msra.mxu0 0.0
  %2431 = vmatprep.subr.mxu0 0.0
  %2432 = vmatpush2.msra.mxu0 0.0
  %2433 = vmatprep.subr.mxu0 0.0
  %2434 = vmatpush2.msra.mxu0 0.0
  %2435 = vmatprep.subr.mxu0 0.0
  %2436 = vmatpush2.msra.mxu0 0.0
  %2437 = vmatprep.subr.mxu0 0.0
  %2438 = vmatpush2.msra.mxu0 0.0
  %2439 = vmatprep.mubr.f32.mxu0 0.0
  %2440 = vmatmul.mubr.f32.gmra.mxu0 %v155
  %v2441 = vpop.f32.mrf.mxu0
  %v2442 = vadd.f32 %v76, %v2441
  %v2443 = vpop.f32.mrf.mxu0
  %2444 = vmatprep.mubr.f32.mxu0 0.0
  %2445 = vmatmul.mubr.f32.gmra.mxu0 %v158
  %v2446 = vpop.f32.mrf.mxu0
  %v2447 = vadd.f32 %v81, %v2446
  %v2448 = vpop.f32.mrf.mxu0
  %2449 = vmatprep.mubr.f32.mxu0 0.0
  %2450 = vmatmul.mubr.f32.gmra.mxu0 %v161
  %v2451 = vpop.f32.mrf.mxu0
  %v2452 = vadd.f32 %v86, %v2451
  %v2453 = vpop.f32.mrf.mxu0
  %2454 = vmatprep.mubr.f32.mxu0 0.0
  %2455 = vmatmul.mubr.f32.gmra.mxu0 %v164
  %v2456 = vpop.f32.mrf.mxu0
  %v2457 = vadd.f32 %v91, %v2456
  %v2458 = vpop.f32.mrf.mxu0
  %2459 = vmatprep.mubr.f32.mxu0 0.0
  %2460 = vmatmul.mubr.f32.gmra.mxu0 %v167
  %v2461 = vpop.f32.mrf.mxu0
  %v2462 = vadd.f32 %v96, %v2461
  %v2463 = vpop.f32.mrf.mxu0
  %2464 = vmatprep.mubr.f32.mxu0 0.0
  %2465 = vmatmul.mubr.f32.gmra.mxu0 %v170
  %v2466 = vpop.f32.mrf.mxu0
  %v2467 = vadd.f32 %v101, %v2466
  %v2468 = vpop.f32.mrf.mxu0
  %2469 = vmatprep.mubr.f32.mxu0 0.0
  %2470 = vmatmul.mubr.f32.gmra.mxu0 %v173
  %v2471 = vpop.f32.mrf.mxu0
  %v2472 = vadd.f32 %v106, %v2471
  %v2473 = vpop.f32.mrf.mxu0
  %2474 = vmatprep.mubr.f32.mxu0 0.0
  %2475 = vmatmul.mubr.f32.gmra.mxu0 %v176
  %v2476 = vpop.f32.mrf.mxu0
  %v2477 = vadd.f32 %v111, %v2476
  %v2478 = vpop.f32.mrf.mxu0
  %2479 = vmatprep.mubr.f32.mxu0 0.0
  %2480 = vmatmul.mubr.f32.gmra.mxu0 %v179
  %v2481 = vpop.f32.mrf.mxu0
  %v2482 = vadd.f32 %v116, %v2481
  %v2483 = vpop.f32.mrf.mxu0
  %2484 = vmatprep.mubr.f32.mxu0 0.0
  %2485 = vmatmul.mubr.f32.gmra.mxu0 %v182
  %v2486 = vpop.f32.mrf.mxu0
  %v2487 = vadd.f32 %v121, %v2486
  %v2488 = vpop.f32.mrf.mxu0
  %2489 = vmatprep.mubr.f32.mxu0 0.0
  %2490 = vmatmul.mubr.f32.gmra.mxu0 %v185
  %v2491 = vpop.f32.mrf.mxu0
  %v2492 = vadd.f32 %v126, %v2491
  %v2493 = vpop.f32.mrf.mxu0
  %2494 = vmatprep.mubr.f32.mxu0 0.0
  %2495 = vmatmul.mubr.f32.gmra.mxu0 %v188
  %v2496 = vpop.f32.mrf.mxu0
  %v2497 = vadd.f32 %v131, %v2496
  %v2498 = vpop.f32.mrf.mxu0
  %2499 = vmatprep.mubr.f32.mxu0 0.0
  %2500 = vmatmul.mubr.f32.gmra.mxu0 %v191
  %v2501 = vpop.f32.mrf.mxu0
  %v2502 = vadd.f32 %v136, %v2501
  %v2503 = vpop.f32.mrf.mxu0
  %2504 = vmatprep.mubr.f32.mxu0 0.0
  %2505 = vmatmul.mubr.f32.gmra.mxu0 %v194
  %v2506 = vpop.f32.mrf.mxu0
  %v2507 = vadd.f32 %v141, %v2506
  %v2508 = vpop.f32.mrf.mxu0
  %2509 = vmatprep.mubr.f32.mxu0 0.0
  %2510 = vmatmul.mubr.f32.gmra.mxu0 %v197
  %v2511 = vpop.f32.mrf.mxu0
  %v2512 = vadd.f32 %v146, %v2511
  %v2513 = vpop.f32.mrf.mxu0
  %2514 = vmatprep.mubr.f32.mxu0 0.0
  %2515 = vmatmul.mubr.f32.gmra.mxu0 %v200
  %v2516 = vpop.f32.mrf.mxu0
  %v2517 = vadd.f32 %v151, %v2516
  %v2518 = vpop.f32.mrf.mxu0
  %2519 = vdwg.mxu0
  %2520 = vst [vmem:[%s685] sm:$0xff] %v2442
  %2521 = vst [vmem:[%s685 + $0x8] sm:$0xff] %v2447
  %2522 = vst [vmem:[%s682 + $0x10] sm:$0xff] %v2452
  %2523 = vst [vmem:[%s682 + $0x18] sm:$0xff] %v2457
  %2524 = vst [vmem:[%s685 + $0x20] sm:$0xff] %v2462
  %2525 = vst [vmem:[%s685 + $0x28] sm:$0xff] %v2467
  %2526 = vst [vmem:[%s682 + $0x30] sm:$0xff] %v2472
  %2527 = vst [vmem:[%s682 + $0x38] sm:$0xff] %v2477
  %2528 = vst [vmem:[%s685 + $0x40] sm:$0xff] %v2482
  %2529 = vst [vmem:[%s685 + $0x48] sm:$0xff] %v2487
  %2530 = vst [vmem:[%s682 + $0x50] sm:$0xff] %v2492
  %2531 = vst [vmem:[%s682 + $0x58] sm:$0xff] %v2497
  %2532 = vst [vmem:[%s685 + $0x60] sm:$0xff] %v2502
  %2533 = vst [vmem:[%s685 + $0x68] sm:$0xff] %v2507
  %2534 = vst [vmem:[%s682 + $0x70] sm:$0xff] %v2512
  %2535 = vst [vmem:[%s682 + $0x78] sm:$0xff] %v2517
  %s2536 = scalar_lea.vmem %s0, 448
  %v2537 = vld [vmem:[%s2536] sm:$0xff]
  %v2538 = vld [vmem:[%s2536 + $0x8] sm:$0xff]
  %v2539 = vld [vmem:[%s2536 + $0x10] sm:$0xff]
  %v2540 = vld [vmem:[%s2536 + $0x18] sm:$0xff]
  %2541 = vmatprep.subr.mxu0 0.0
  %2542 = vmatpush1.msra.mxu0 0.0
  %2543 = vmatprep.subr.mxu0 0.0
  %2544 = vmatpush1.msra.mxu0 0.0
  %2545 = vmatprep.subr.mxu0 0.0
  %2546 = vmatpush1.msra.mxu0 0.0
  %2547 = vmatprep.subr.mxu0 0.0
  %2548 = vmatpush1.msra.mxu0 0.0
  %2549 = vmatprep.subr.mxu0 0.0
  %2550 = vmatpush1.msra.mxu0 0.0
  %2551 = vmatprep.subr.mxu0 0.0
  %2552 = vmatpush1.msra.mxu0 0.0
  %2553 = vmatprep.subr.mxu0 0.0
  %2554 = vmatpush1.msra.mxu0 0.0
  %2555 = vmatprep.subr.mxu0 0.0
  %2556 = vmatpush1.msra.mxu0 0.0
  %2557 = vmatprep.subr.mxu0 0.0
  %2558 = vmatpush1.msra.mxu0 0.0
  %2559 = vmatprep.subr.mxu0 0.0
  %2560 = vmatpush1.msra.mxu0 0.0
  %2561 = vmatprep.subr.mxu0 0.0
  %2562 = vmatpush1.msra.mxu0 0.0
  %2563 = vmatprep.subr.mxu0 0.0
  %2564 = vmatpush1.msra.mxu0 0.0
  %2565 = vmatprep.subr.mxu0 0.0
  %2566 = vmatpush1.msra.mxu0 %v2540
  %2567 = vmatprep.subr.mxu0 0.0
  %2568 = vmatpush1.msra.mxu0 %v2539
  %2569 = vmatprep.subr.mxu0 0.0
  %2570 = vmatpush1.msra.mxu0 %v2538
  %2571 = vmatprep.subr.mxu0 0.0
  %2572 = vmatpush1.msra.mxu0 %v2537
  %2573 = vmatprep.subr.mxu0 0.0
  %2574 = vmatpush2.msra.mxu0 0.0
  %2575 = vmatprep.subr.mxu0 0.0
  %2576 = vmatpush2.msra.mxu0 0.0
  %2577 = vmatprep.subr.mxu0 0.0
  %2578 = vmatpush2.msra.mxu0 0.0
  %2579 = vmatprep.subr.mxu0 0.0
  %2580 = vmatpush2.msra.mxu0 0.0
  %2581 = vmatprep.subr.mxu0 0.0
  %2582 = vmatpush2.msra.mxu0 0.0
  %2583 = vmatprep.subr.mxu0 0.0
  %2584 = vmatpush2.msra.mxu0 0.0
  %2585 = vmatprep.subr.mxu0 0.0
  %2586 = vmatpush2.msra.mxu0 0.0
  %2587 = vmatprep.subr.mxu0 0.0
  %2588 = vmatpush2.msra.mxu0 0.0
  %2589 = vmatprep.subr.mxu0 0.0
  %2590 = vmatpush2.msra.mxu0 0.0
  %2591 = vmatprep.subr.mxu0 0.0
  %2592 = vmatpush2.msra.mxu0 0.0
  %2593 = vmatprep.subr.mxu0 0.0
  %2594 = vmatpush2.msra.mxu0 0.0
  %2595 = vmatprep.subr.mxu0 0.0
  %2596 = vmatpush2.msra.mxu0 0.0
  %2597 = vmatprep.subr.mxu0 0.0
  %2598 = vmatpush2.msra.mxu0 0.0
  %2599 = vmatprep.subr.mxu0 0.0
  %2600 = vmatpush2.msra.mxu0 0.0
  %2601 = vmatprep.subr.mxu0 0.0
  %2602 = vmatpush2.msra.mxu0 0.0
  %2603 = vmatprep.subr.mxu0 0.0
  %2604 = vmatpush2.msra.mxu0 0.0
  %2605 = vmatprep.mubr.f32.mxu0 0.0
  %2606 = vmatmul.mubr.f32.gmra.mxu0 %v155
  %v2607 = vpop.f32.mrf.mxu0
  %v2608 = vadd.f32 %v76, %v2607
  %v2609 = vpop.f32.mrf.mxu0
  %2610 = vmatprep.mubr.f32.mxu0 0.0
  %2611 = vmatmul.mubr.f32.gmra.mxu0 %v158
  %v2612 = vpop.f32.mrf.mxu0
  %v2613 = vadd.f32 %v81, %v2612
  %v2614 = vpop.f32.mrf.mxu0
  %2615 = vmatprep.mubr.f32.mxu0 0.0
  %2616 = vmatmul.mubr.f32.gmra.mxu0 %v161
  %v2617 = vpop.f32.mrf.mxu0
  %v2618 = vadd.f32 %v86, %v2617
  %v2619 = vpop.f32.mrf.mxu0
  %2620 = vmatprep.mubr.f32.mxu0 0.0
  %2621 = vmatmul.mubr.f32.gmra.mxu0 %v164
  %v2622 = vpop.f32.mrf.mxu0
  %v2623 = vadd.f32 %v91, %v2622
  %v2624 = vpop.f32.mrf.mxu0
  %2625 = vmatprep.mubr.f32.mxu0 0.0
  %2626 = vmatmul.mubr.f32.gmra.mxu0 %v167
  %v2627 = vpop.f32.mrf.mxu0
  %v2628 = vadd.f32 %v96, %v2627
  %v2629 = vpop.f32.mrf.mxu0
  %2630 = vmatprep.mubr.f32.mxu0 0.0
  %2631 = vmatmul.mubr.f32.gmra.mxu0 %v170
  %v2632 = vpop.f32.mrf.mxu0
  %v2633 = vadd.f32 %v101, %v2632
  %v2634 = vpop.f32.mrf.mxu0
  %2635 = vmatprep.mubr.f32.mxu0 0.0
  %2636 = vmatmul.mubr.f32.gmra.mxu0 %v173
  %v2637 = vpop.f32.mrf.mxu0
  %v2638 = vadd.f32 %v106, %v2637
  %v2639 = vpop.f32.mrf.mxu0
  %2640 = vmatprep.mubr.f32.mxu0 0.0
  %2641 = vmatmul.mubr.f32.gmra.mxu0 %v176
  %v2642 = vpop.f32.mrf.mxu0
  %v2643 = vadd.f32 %v111, %v2642
  %v2644 = vpop.f32.mrf.mxu0
  %2645 = vmatprep.mubr.f32.mxu0 0.0
  %2646 = vmatmul.mubr.f32.gmra.mxu0 %v179
  %v2647 = vpop.f32.mrf.mxu0
  %v2648 = vadd.f32 %v116, %v2647
  %v2649 = vpop.f32.mrf.mxu0
  %2650 = vmatprep.mubr.f32.mxu0 0.0
  %2651 = vmatmul.mubr.f32.gmra.mxu0 %v182
  %v2652 = vpop.f32.mrf.mxu0
  %v2653 = vadd.f32 %v121, %v2652
  %v2654 = vpop.f32.mrf.mxu0
  %2655 = vmatprep.mubr.f32.mxu0 0.0
  %2656 = vmatmul.mubr.f32.gmra.mxu0 %v185
  %v2657 = vpop.f32.mrf.mxu0
  %v2658 = vadd.f32 %v126, %v2657
  %v2659 = vpop.f32.mrf.mxu0
  %2660 = vmatprep.mubr.f32.mxu0 0.0
  %2661 = vmatmul.mubr.f32.gmra.mxu0 %v188
  %v2662 = vpop.f32.mrf.mxu0
  %v2663 = vadd.f32 %v131, %v2662
  %v2664 = vpop.f32.mrf.mxu0
  %2665 = vmatprep.mubr.f32.mxu0 0.0
  %2666 = vmatmul.mubr.f32.gmra.mxu0 %v191
  %v2667 = vpop.f32.mrf.mxu0
  %v2668 = vadd.f32 %v136, %v2667
  %v2669 = vpop.f32.mrf.mxu0
  %2670 = vmatprep.mubr.f32.mxu0 0.0
  %2671 = vmatmul.mubr.f32.gmra.mxu0 %v194
  %v2672 = vpop.f32.mrf.mxu0
  %v2673 = vadd.f32 %v141, %v2672
  %v2674 = vpop.f32.mrf.mxu0
  %2675 = vmatprep.mubr.f32.mxu0 0.0
  %2676 = vmatmul.mubr.f32.gmra.mxu0 %v197
  %v2677 = vpop.f32.mrf.mxu0
  %v2678 = vadd.f32 %v146, %v2677
  %v2679 = vpop.f32.mrf.mxu0
  %2680 = vmatprep.mubr.f32.mxu0 0.0
  %2681 = vmatmul.mubr.f32.gmra.mxu0 %v200
  %v2682 = vpop.f32.mrf.mxu0
  %v2683 = vadd.f32 %v151, %v2682
  %v2684 = vpop.f32.mrf.mxu0
  %2685 = vdwg.mxu0
  %2686 = vst [vmem:[%s517] sm:$0xff] %v2608
  %2687 = vst [vmem:[%s517 + $0x8] sm:$0xff] %v2613
  %2688 = vst [vmem:[%s514 + $0x10] sm:$0xff] %v2618
  %2689 = vst [vmem:[%s514 + $0x18] sm:$0xff] %v2623
  %2690 = vst [vmem:[%s517 + $0x20] sm:$0xff] %v2628
  %2691 = vst [vmem:[%s517 + $0x28] sm:$0xff] %v2633
  %2692 = vst [vmem:[%s514 + $0x30] sm:$0xff] %v2638
  %2693 = vst [vmem:[%s514 + $0x38] sm:$0xff] %v2643
  %2694 = vst [vmem:[%s517 + $0x40] sm:$0xff] %v2648
  %2695 = vst [vmem:[%s517 + $0x48] sm:$0xff] %v2653
  %2696 = vst [vmem:[%s514 + $0x50] sm:$0xff] %v2658
  %2697 = vst [vmem:[%s514 + $0x58] sm:$0xff] %v2663
  %2698 = vst [vmem:[%s517 + $0x60] sm:$0xff] %v2668
  %2699 = vst [vmem:[%s517 + $0x68] sm:$0xff] %v2673
  %2700 = vst [vmem:[%s514 + $0x70] sm:$0xff] %v2678
  %2701 = vst [vmem:[%s514 + $0x78] sm:$0xff] %v2683
  %s2702 = scalar_lea.vmem %s0, 480
  %v2703 = vld [vmem:[%s2702] sm:$0xff]
  %v2704 = vld [vmem:[%s2702 + $0x8] sm:$0xff]
  %v2705 = vld [vmem:[%s2702 + $0x10] sm:$0xff]
  %v2706 = vld [vmem:[%s2702 + $0x18] sm:$0xff]
  %2707 = vmatprep.subr.mxu0 0.0
  %2708 = vmatpush1.msra.mxu0 0.0
  %2709 = vmatprep.subr.mxu0 0.0
  %2710 = vmatpush1.msra.mxu0 0.0
  %2711 = vmatprep.subr.mxu0 0.0
  %2712 = vmatpush1.msra.mxu0 0.0
  %2713 = vmatprep.subr.mxu0 0.0
  %2714 = vmatpush1.msra.mxu0 0.0
  %2715 = vmatprep.subr.mxu0 0.0
  %2716 = vmatpush1.msra.mxu0 0.0
  %2717 = vmatprep.subr.mxu0 0.0
  %2718 = vmatpush1.msra.mxu0 0.0
  %2719 = vmatprep.subr.mxu0 0.0
  %2720 = vmatpush1.msra.mxu0 0.0
  %2721 = vmatprep.subr.mxu0 0.0
  %2722 = vmatpush1.msra.mxu0 0.0
  %2723 = vmatprep.subr.mxu0 0.0
  %2724 = vmatpush1.msra.mxu0 0.0
  %2725 = vmatprep.subr.mxu0 0.0
  %2726 = vmatpush1.msra.mxu0 0.0
  %2727 = vmatprep.subr.mxu0 0.0
  %2728 = vmatpush1.msra.mxu0 0.0
  %2729 = vmatprep.subr.mxu0 0.0
  %2730 = vmatpush1.msra.mxu0 0.0
  %2731 = vmatprep.subr.mxu0 0.0
  %2732 = vmatpush1.msra.mxu0 %v2706
  %2733 = vmatprep.subr.mxu0 0.0
  %2734 = vmatpush1.msra.mxu0 %v2705
  %2735 = vmatprep.subr.mxu0 0.0
  %2736 = vmatpush1.msra.mxu0 %v2704
  %2737 = vmatprep.subr.mxu0 0.0
  %2738 = vmatpush1.msra.mxu0 %v2703
  %2739 = vmatprep.subr.mxu0 0.0
  %2740 = vmatpush2.msra.mxu0 0.0
  %2741 = vmatprep.subr.mxu0 0.0
  %2742 = vmatpush2.msra.mxu0 0.0
  %2743 = vmatprep.subr.mxu0 0.0
  %2744 = vmatpush2.msra.mxu0 0.0
  %2745 = vmatprep.subr.mxu0 0.0
  %2746 = vmatpush2.msra.mxu0 0.0
  %2747 = vmatprep.subr.mxu0 0.0
  %2748 = vmatpush2.msra.mxu0 0.0
  %2749 = vmatprep.subr.mxu0 0.0
  %2750 = vmatpush2.msra.mxu0 0.0
  %2751 = vmatprep.subr.mxu0 0.0
  %2752 = vmatpush2.msra.mxu0 0.0
  %2753 = vmatprep.subr.mxu0 0.0
  %2754 = vmatpush2.msra.mxu0 0.0
  %2755 = vmatprep.subr.mxu0 0.0
  %2756 = vmatpush2.msra.mxu0 0.0
  %2757 = vmatprep.subr.mxu0 0.0
  %2758 = vmatpush2.msra.mxu0 0.0
  %2759 = vmatprep.subr.mxu0 0.0
  %2760 = vmatpush2.msra.mxu0 0.0
  %2761 = vmatprep.subr.mxu0 0.0
  %2762 = vmatpush2.msra.mxu0 0.0
  %2763 = vmatprep.subr.mxu0 0.0
  %2764 = vmatpush2.msra.mxu0 0.0
  %2765 = vmatprep.subr.mxu0 0.0
  %2766 = vmatpush2.msra.mxu0 0.0
  %2767 = vmatprep.subr.mxu0 0.0
  %2768 = vmatpush2.msra.mxu0 0.0
  %2769 = vmatprep.subr.mxu0 0.0
  %2770 = vmatpush2.msra.mxu0 0.0
  %2771 = vmatprep.mubr.f32.mxu0 0.0
  %2772 = vmatmul.mubr.f32.gmra.mxu0 %v155
  %v2773 = vpop.f32.mrf.mxu0
  %v2774 = vadd.f32 %v76, %v2773
  %v2775 = vpop.f32.mrf.mxu0
  %2776 = vmatprep.mubr.f32.mxu0 0.0
  %2777 = vmatmul.mubr.f32.gmra.mxu0 %v158
  %v2778 = vpop.f32.mrf.mxu0
  %v2779 = vadd.f32 %v81, %v2778
  %v2780 = vpop.f32.mrf.mxu0
  %2781 = vmatprep.mubr.f32.mxu0 0.0
  %2782 = vmatmul.mubr.f32.gmra.mxu0 %v161
  %v2783 = vpop.f32.mrf.mxu0
  %v2784 = vadd.f32 %v86, %v2783
  %v2785 = vpop.f32.mrf.mxu0
  %2786 = vmatprep.mubr.f32.mxu0 0.0
  %2787 = vmatmul.mubr.f32.gmra.mxu0 %v164
  %v2788 = vpop.f32.mrf.mxu0
  %v2789 = vadd.f32 %v91, %v2788
  %v2790 = vpop.f32.mrf.mxu0
  %2791 = vmatprep.mubr.f32.mxu0 0.0
  %2792 = vmatmul.mubr.f32.gmra.mxu0 %v167
  %v2793 = vpop.f32.mrf.mxu0
  %v2794 = vadd.f32 %v96, %v2793
  %v2795 = vpop.f32.mrf.mxu0
  %2796 = vmatprep.mubr.f32.mxu0 0.0
  %2797 = vmatmul.mubr.f32.gmra.mxu0 %v170
  %v2798 = vpop.f32.mrf.mxu0
  %v2799 = vadd.f32 %v101, %v2798
  %v2800 = vpop.f32.mrf.mxu0
  %2801 = vmatprep.mubr.f32.mxu0 0.0
  %2802 = vmatmul.mubr.f32.gmra.mxu0 %v173
  %v2803 = vpop.f32.mrf.mxu0
  %v2804 = vadd.f32 %v106, %v2803
  %v2805 = vpop.f32.mrf.mxu0
  %2806 = vmatprep.mubr.f32.mxu0 0.0
  %2807 = vmatmul.mubr.f32.gmra.mxu0 %v176
  %v2808 = vpop.f32.mrf.mxu0
  %v2809 = vadd.f32 %v111, %v2808
  %v2810 = vpop.f32.mrf.mxu0
  %2811 = vmatprep.mubr.f32.mxu0 0.0
  %2812 = vmatmul.mubr.f32.gmra.mxu0 %v179
  %v2813 = vpop.f32.mrf.mxu0
  %v2814 = vadd.f32 %v116, %v2813
  %v2815 = vpop.f32.mrf.mxu0
  %2816 = vmatprep.mubr.f32.mxu0 0.0
  %2817 = vmatmul.mubr.f32.gmra.mxu0 %v182
  %v2818 = vpop.f32.mrf.mxu0
  %v2819 = vadd.f32 %v121, %v2818
  %v2820 = vpop.f32.mrf.mxu0
  %2821 = vmatprep.mubr.f32.mxu0 0.0
  %2822 = vmatmul.mubr.f32.gmra.mxu0 %v185
  %v2823 = vpop.f32.mrf.mxu0
  %v2824 = vadd.f32 %v126, %v2823
  %v2825 = vpop.f32.mrf.mxu0
  %2826 = vmatprep.mubr.f32.mxu0 0.0
  %2827 = vmatmul.mubr.f32.gmra.mxu0 %v188
  %v2828 = vpop.f32.mrf.mxu0
  %v2829 = vadd.f32 %v131, %v2828
  %v2830 = vpop.f32.mrf.mxu0
  %2831 = vmatprep.mubr.f32.mxu0 0.0
  %2832 = vmatmul.mubr.f32.gmra.mxu0 %v191
  %v2833 = vpop.f32.mrf.mxu0
  %v2834 = vadd.f32 %v136, %v2833
  %v2835 = vpop.f32.mrf.mxu0
  %2836 = vmatprep.mubr.f32.mxu0 0.0
  %2837 = vmatmul.mubr.f32.gmra.mxu0 %v194
  %v2838 = vpop.f32.mrf.mxu0
  %v2839 = vadd.f32 %v141, %v2838
  %v2840 = vpop.f32.mrf.mxu0
  %2841 = vmatprep.mubr.f32.mxu0 0.0
  %2842 = vmatmul.mubr.f32.gmra.mxu0 %v197
  %v2843 = vpop.f32.mrf.mxu0
  %v2844 = vadd.f32 %v146, %v2843
  %v2845 = vpop.f32.mrf.mxu0
  %2846 = vmatprep.mubr.f32.mxu0 0.0
  %2847 = vmatmul.mubr.f32.gmra.mxu0 %v200
  %v2848 = vpop.f32.mrf.mxu0
  %v2849 = vadd.f32 %v151, %v2848
  %v2850 = vpop.f32.mrf.mxu0
  %2851 = vdwg.mxu0
  %2852 = vst [vmem:[%s349] sm:$0xff] %v2774
  %2853 = vst [vmem:[%s349 + $0x8] sm:$0xff] %v2779
  %2854 = vst [vmem:[#allocation2 + $0x10] sm:$0xff] %v2784
  %2855 = vst [vmem:[#allocation2 + $0x18] sm:$0xff] %v2789
  %2856 = vst [vmem:[%s349 + $0x20] sm:$0xff] %v2794
  %2857 = vst [vmem:[%s349 + $0x28] sm:$0xff] %v2799
  %2858 = vst [vmem:[#allocation2 + $0x30] sm:$0xff] %v2804
  %2859 = vst [vmem:[#allocation2 + $0x38] sm:$0xff] %v2809
  %2860 = vst [vmem:[%s349 + $0x40] sm:$0xff] %v2814
  %2861 = vst [vmem:[%s349 + $0x48] sm:$0xff] %v2819
  %2862 = vst [vmem:[#allocation2 + $0x50] sm:$0xff] %v2824
  %2863 = vst [vmem:[#allocation2 + $0x58] sm:$0xff] %v2829
  %2864 = vst [vmem:[%s349 + $0x60] sm:$0xff] %v2834
  %2865 = vst [vmem:[%s349 + $0x68] sm:$0xff] %v2839
  %2866 = vst [vmem:[#allocation2 + $0x70] sm:$0xff] %v2844
  %2867 = vst [vmem:[#allocation2 + $0x78] sm:$0xff] %v2849
  %v2868 = vlaneseq
  %v2869 = vshrl.u32 %v2868, 7
  %v2870 = vadd.s32 %v2869, 8
  %v2871 = vadd.s32 %v2869, 16
  %v2872 = vadd.s32 %v2869, 24
  %vm2873 = vcmp.lt.s32.totalorder %v2869, 16
  %vm2874 = vcmp.lt.s32.totalorder %v2870, 16
  %vm2875 = vcmp.lt.s32.totalorder %v2871, 16
  %vm2876 = vcmp.lt.s32.totalorder %v2872, 16
  %v2877 = vld [vmem:[#allocation2] sm:$0xff]
  %v2878 = vld [vmem:[#allocation2 + $0x8] sm:$0xff]
  %v2879 = vld [vmem:[#allocation2 + $0x10] sm:$0xff]
  %v2880 = vld [vmem:[#allocation2 + $0x18] sm:$0xff]
  %v2881 = vld [vmem:[#allocation2 + $0x20] sm:$0xff]
  %v2882 = vld [vmem:[#allocation2 + $0x28] sm:$0xff]
  %v2883 = vld [vmem:[#allocation2 + $0x30] sm:$0xff]
  %v2884 = vld [vmem:[#allocation2 + $0x38] sm:$0xff]
  %v2885 = vld [vmem:[#allocation2 + $0x40] sm:$0xff]
  %v2886 = vld [vmem:[#allocation2 + $0x48] sm:$0xff]
  %v2887 = vld [vmem:[#allocation2 + $0x50] sm:$0xff]
  %v2888 = vld [vmem:[#allocation2 + $0x58] sm:$0xff]
  %v2889 = vld [vmem:[#allocation2 + $0x60] sm:$0xff]
  %v2890 = vld [vmem:[#allocation2 + $0x68] sm:$0xff]
  %v2891 = vld [vmem:[#allocation2 + $0x70] sm:$0xff]
  %v2892 = vld [vmem:[#allocation2 + $0x78] sm:$0xff]
  %v2894 = vsel %vm153, %v52, 0
  %v2897 = vsel %vm153, %v53, 0
  %v2900 = vsel %vm153, %v54, 0
  %v2903 = vsel %vm153, %v55, 0
  %v2906 = vsel %vm153, %v56, 0
  %v2909 = vsel %vm153, %v57, 0
  %v2912 = vsel %vm153, %v58, 0
  %v2915 = vsel %vm153, %v59, 0
  %v2918 = vsel %vm153, %v60, 0
  %v2921 = vsel %vm153, %v61, 0
  %v2924 = vsel %vm153, %v62, 0
  %v2927 = vsel %vm153, %v63, 0
  %v2930 = vsel %vm153, %v64, 0
  %v2933 = vsel %vm153, %v65, 0
  %v2936 = vsel %vm153, %v66, 0
  %v2939 = vsel %vm153, %v67, 0
  %2941 = vmatprep.subr.mxu0 0.0
  %2942 = vmatpush1.msra.mxu0 0.0
  %2943 = vmatprep.subr.mxu0 0.0
  %2944 = vmatpush1.msra.mxu0 0.0
  %2945 = vmatprep.subr.mxu0 0.0
  %2946 = vmatpush1.msra.mxu0 0.0
  %2947 = vmatprep.subr.mxu0 0.0
  %2948 = vmatpush1.msra.mxu0 0.0
  %2949 = vmatprep.subr.mxu0 0.0
  %2950 = vmatpush1.msra.mxu0 0.0
  %2951 = vmatprep.subr.mxu0 0.0
  %2952 = vmatpush1.msra.mxu0 0.0
  %2953 = vmatprep.subr.mxu0 0.0
  %2954 = vmatpush1.msra.mxu0 0.0
  %2955 = vmatprep.subr.mxu0 0.0
  %2956 = vmatpush1.msra.mxu0 0.0
  %2957 = vmatprep.subr.mxu0 0.0
  %2958 = vmatpush1.msra.mxu0 0.0
  %2959 = vmatprep.subr.mxu0 0.0
  %2960 = vmatpush1.msra.mxu0 0.0
  %2961 = vmatprep.subr.mxu0 0.0
  %2962 = vmatpush1.msra.mxu0 0.0
  %2963 = vmatprep.subr.mxu0 0.0
  %2964 = vmatpush1.msra.mxu0 0.0
  %2965 = vmatprep.subr.mxu0 0.0
  %2966 = vmatpush1.msra.mxu0 0.0
  %2967 = vmatprep.subr.mxu0 0.0
  %2968 = vmatpush1.msra.mxu0 0.0
  %2969 = vmatprep.subr.mxu0 0.0
  %2970 = vmatpush1.msra.mxu0 0.0
  %2971 = vmatprep.subr.mxu0 0.0
  %2972 = vmatpush1.msra.mxu0 0.0
  %2973 = vmatprep.subr.mxu0 0.0
  %2974 = vmatpush2.msra.mxu0 0.0
  %2975 = vmatprep.subr.mxu0 0.0
  %2976 = vmatpush2.msra.mxu0 0.0
  %2977 = vmatprep.subr.mxu0 0.0
  %2978 = vmatpush2.msra.mxu0 0.0
  %2979 = vmatprep.subr.mxu0 0.0
  %2980 = vmatpush2.msra.mxu0 0.0
  %2981 = vmatprep.subr.mxu0 0.0
  %2982 = vmatpush2.msra.mxu0 0.0
  %2983 = vmatprep.subr.mxu0 0.0
  %2984 = vmatpush2.msra.mxu0 0.0
  %2985 = vmatprep.subr.mxu0 0.0
  %2986 = vmatpush2.msra.mxu0 0.0
  %2987 = vmatprep.subr.mxu0 0.0
  %2988 = vmatpush2.msra.mxu0 0.0
  %2989 = vmatprep.subr.mxu0 0.0
  %2990 = vmatpush2.msra.mxu0 0.0
  %2991 = vmatprep.subr.mxu0 0.0
  %2992 = vmatpush2.msra.mxu0 0.0
  %2993 = vmatprep.subr.mxu0 0.0
  %2994 = vmatpush2.msra.mxu0 0.0
  %2995 = vmatprep.subr.mxu0 0.0
  %2996 = vmatpush2.msra.mxu0 0.0
  %2997 = vmatprep.subr.mxu0 0.0
  %2998 = vmatpush2.msra.mxu0 0.0
  %2999 = vmatprep.subr.mxu0 0.0
  %3000 = vmatpush2.msra.mxu0 0.0
  %3001 = vmatprep.subr.mxu0 0.0
  %3002 = vmatpush2.msra.mxu0 0.0
  %3003 = vmatprep.subr.mxu0 0.0
  %3004 = vmatpush2.msra.mxu0 0.0
  %3005 = vmatprep.mubr.f32.mxu0 0.0
  %3006 = vmatmul.mubr.f32.gmra.mxu0 %v2894
  %v3007 = vpop.f32.mrf.mxu0
  %v3008 = vadd.f32 0.0, %v3007
  %v3009 = vpop.f32.mrf.mxu0
  %3010 = vmatprep.mubr.f32.mxu0 0.0
  %3011 = vmatmul.mubr.f32.gmra.mxu0 %v2897
  %v3012 = vpop.f32.mrf.mxu0
  %v3013 = vadd.f32 0.0, %v3012
  %v3014 = vpop.f32.mrf.mxu0
  %3015 = vmatprep.mubr.f32.mxu0 0.0
  %3016 = vmatmul.mubr.f32.gmra.mxu0 %v2900
  %v3017 = vpop.f32.mrf.mxu0
  %v3018 = vadd.f32 0.0, %v3017
  %v3019 = vpop.f32.mrf.mxu0
  %3020 = vmatprep.mubr.f32.mxu0 0.0
  %3021 = vmatmul.mubr.f32.gmra.mxu0 %v2903
  %v3022 = vpop.f32.mrf.mxu0
  %v3023 = vadd.f32 0.0, %v3022
  %v3024 = vpop.f32.mrf.mxu0
  %3025 = vmatprep.mubr.f32.mxu0 0.0
  %3026 = vmatmul.mubr.f32.gmra.mxu0 %v2906
  %v3027 = vpop.f32.mrf.mxu0
  %v3028 = vadd.f32 0.0, %v3027
  %v3029 = vpop.f32.mrf.mxu0
  %3030 = vmatprep.mubr.f32.mxu0 0.0
  %3031 = vmatmul.mubr.f32.gmra.mxu0 %v2909
  %v3032 = vpop.f32.mrf.mxu0
  %v3033 = vadd.f32 0.0, %v3032
  %v3034 = vpop.f32.mrf.mxu0
  %3035 = vmatprep.mubr.f32.mxu0 0.0
  %3036 = vmatmul.mubr.f32.gmra.mxu0 %v2912
  %v3037 = vpop.f32.mrf.mxu0
  %v3038 = vadd.f32 0.0, %v3037
  %v3039 = vpop.f32.mrf.mxu0
  %3040 = vmatprep.mubr.f32.mxu0 0.0
  %3041 = vmatmul.mubr.f32.gmra.mxu0 %v2915
  %v3042 = vpop.f32.mrf.mxu0
  %v3043 = vadd.f32 0.0, %v3042
  %v3044 = vpop.f32.mrf.mxu0
  %3045 = vmatprep.mubr.f32.mxu0 0.0
  %3046 = vmatmul.mubr.f32.gmra.mxu0 %v2918
  %v3047 = vpop.f32.mrf.mxu0
  %v3048 = vadd.f32 0.0, %v3047
  %v3049 = vpop.f32.mrf.mxu0
  %3050 = vmatprep.mubr.f32.mxu0 0.0
  %3051 = vmatmul.mubr.f32.gmra.mxu0 %v2921
  %v3052 = vpop.f32.mrf.mxu0
  %v3053 = vadd.f32 0.0, %v3052
  %v3054 = vpop.f32.mrf.mxu0
  %3055 = vmatprep.mubr.f32.mxu0 0.0
  %3056 = vmatmul.mubr.f32.gmra.mxu0 %v2924
  %v3057 = vpop.f32.mrf.mxu0
  %v3058 = vadd.f32 0.0, %v3057
  %v3059 = vpop.f32.mrf.mxu0
  %3060 = vmatprep.mubr.f32.mxu0 0.0
  %3061 = vmatmul.mubr.f32.gmra.mxu0 %v2927
  %v3062 = vpop.f32.mrf.mxu0
  %v3063 = vadd.f32 0.0, %v3062
  %v3064 = vpop.f32.mrf.mxu0
  %3065 = vmatprep.mubr.f32.mxu0 0.0
  %3066 = vmatmul.mubr.f32.gmra.mxu0 %v2930
  %v3067 = vpop.f32.mrf.mxu0
  %v3068 = vadd.f32 0.0, %v3067
  %v3069 = vpop.f32.mrf.mxu0
  %3070 = vmatprep.mubr.f32.mxu0 0.0
  %3071 = vmatmul.mubr.f32.gmra.mxu0 %v2933
  %v3072 = vpop.f32.mrf.mxu0
  %v3073 = vadd.f32 0.0, %v3072
  %v3074 = vpop.f32.mrf.mxu0
  %3075 = vmatprep.mubr.f32.mxu0 0.0
  %3076 = vmatmul.mubr.f32.gmra.mxu0 %v2936
  %v3077 = vpop.f32.mrf.mxu0
  %v3078 = vadd.f32 0.0, %v3077
  %v3079 = vpop.f32.mrf.mxu0
  %3080 = vmatprep.mubr.f32.mxu0 0.0
  %3081 = vmatmul.mubr.f32.gmra.mxu0 %v2939
  %v3082 = vpop.f32.mrf.mxu0
  %v3083 = vadd.f32 0.0, %v3082
  %v3084 = vpop.f32.mrf.mxu0
  %3085 = vdwg.mxu0
  %v3086 = vadd.f32 %v2877, %v3008
  %v3087 = vadd.f32 %v2878, %v3013
  %v3088 = vadd.f32 %v2879, %v3018
  %v3089 = vadd.f32 %v2880, %v3023
  %v3090 = vadd.f32 %v2881, %v3028
  %v3091 = vadd.f32 %v2882, %v3033
  %v3092 = vadd.f32 %v2883, %v3038
  %v3093 = vadd.f32 %v2884, %v3043
  %v3094 = vadd.f32 %v2885, %v3048
  %v3095 = vadd.f32 %v2886, %v3053
  %v3096 = vadd.f32 %v2887, %v3058
  %v3097 = vadd.f32 %v2888, %v3063
  %v3098 = vadd.f32 %v2889, %v3068
  %v3099 = vadd.f32 %v2890, %v3073
  %v3100 = vadd.f32 %v2891, %v3078
  %v3101 = vadd.f32 %v2892, %v3083
  %v3102 = vxor.u32 %v3086, 2147483648
  %v3103 = vxor.u32 %v3087, 2147483648
  %v3104 = vxor.u32 %v3088, 2147483648
  %v3105 = vxor.u32 %v3089, 2147483648
  %v3106 = vmul.f32 %v3102, 1.442695
  %v3107 = vpow.pop %v3106
  %v3108 = vmul.f32 %v3103, 1.442695
  %v3109 = vpow.pop %v3108
  %v3110 = vmul.f32 %v3104, 1.442695
  %v3111 = vpow.pop %v3110
  %v3112 = vmul.f32 %v3105, 1.442695
  %v3113 = vpow.pop %v3112
  %v3114 = vadd.f32 %v3107, 1.0
  %v3115 = vadd.f32 %v3109, 1.0
  %v3116 = vadd.f32 %v3111, 1.0
  %v3117 = vadd.f32 %v3113, 1.0
  %v3118 = vrcp.pop %v3114
  %v3119 = vmul.f32 1.0, %v3118
  %v3120 = vrcp.pop %v3115
  %v3121 = vmul.f32 1.0, %v3120
  %v3122 = vrcp.pop %v3116
  %v3123 = vmul.f32 1.0, %v3122
  %v3124 = vrcp.pop %v3117
  %v3125 = vmul.f32 1.0, %v3124
  %v3126 = vxor.u32 %v3090, 2147483648
  %v3127 = vxor.u32 %v3091, 2147483648
  %v3128 = vxor.u32 %v3092, 2147483648
  %v3129 = vxor.u32 %v3093, 2147483648
  %v3130 = vmul.f32 %v3126, 1.442695
  %v3131 = vpow.pop %v3130
  %v3132 = vmul.f32 %v3127, 1.442695
  %v3133 = vpow.pop %v3132
  %v3134 = vmul.f32 %v3128, 1.442695
  %v3135 = vpow.pop %v3134
  %v3136 = vmul.f32 %v3129, 1.442695
  %v3137 = vpow.pop %v3136
  %v3138 = vadd.f32 %v3131, 1.0
  %v3139 = vadd.f32 %v3133, 1.0
  %v3140 = vadd.f32 %v3135, 1.0
  %v3141 = vadd.f32 %v3137, 1.0
  %v3142 = vrcp.pop %v3138
  %v3143 = vmul.f32 1.0, %v3142
  %v3144 = vrcp.pop %v3139
  %v3145 = vmul.f32 1.0, %v3144
  %v3146 = vrcp.pop %v3140
  %v3147 = vmul.f32 1.0, %v3146
  %v3148 = vrcp.pop %v3141
  %v3149 = vmul.f32 1.0, %v3148
  %v3150 = vtanh.pop %v3094
  %v3151 = vtanh.pop %v3095
  %v3152 = vtanh.pop %v3096
  %v3153 = vtanh.pop %v3097
  %v3154 = vxor.u32 %v3098, 2147483648
  %v3155 = vxor.u32 %v3099, 2147483648
  %v3156 = vxor.u32 %v3100, 2147483648
  %v3157 = vxor.u32 %v3101, 2147483648
  %v3158 = vmul.f32 %v3154, 1.442695
  %v3159 = vpow.pop %v3158
  %v3160 = vmul.f32 %v3155, 1.442695
  %v3161 = vpow.pop %v3160
  %v3162 = vmul.f32 %v3156, 1.442695
  %v3163 = vpow.pop %v3162
  %v3164 = vmul.f32 %v3157, 1.442695
  %v3165 = vpow.pop %v3164
  %v3166 = vadd.f32 %v3159, 1.0
  %v3167 = vadd.f32 %v3161, 1.0
  %v3168 = vadd.f32 %v3163, 1.0
  %v3169 = vadd.f32 %v3165, 1.0
  %v3170 = vrcp.pop %v3166
  %v3171 = vmul.f32 1.0, %v3170
  %v3172 = vrcp.pop %v3167
  %v3173 = vmul.f32 1.0, %v3172
  %v3174 = vrcp.pop %v3168
  %v3175 = vmul.f32 1.0, %v3174
  %v3176 = vrcp.pop %v3169
  %v3177 = vmul.f32 1.0, %v3176
  %v3178 = vmul.f32 %v3143, 0.0
  %v3179 = vmul.f32 %v3145, 0.0
  %v3180 = vmul.f32 %v3147, 0.0
  %v3181 = vmul.f32 %v3149, 0.0
  %v3182 = vmul.f32 %v3119, %v3150
  %v3183 = vmul.f32 %v3121, %v3151
  %v3184 = vmul.f32 %v3123, %v3152
  %v3185 = vmul.f32 %v3125, %v3153
  %v3186 = vadd.f32 %v3178, %v3182
  %v3187 = vadd.f32 %v3179, %v3183
  %v3188 = vadd.f32 %v3180, %v3184
  %v3189 = vadd.f32 %v3181, %v3185
  %v3190 = vtanh.pop %v3186
  %v3191 = vtanh.pop %v3187
  %v3192 = vtanh.pop %v3188
  %v3193 = vtanh.pop %v3189
  %v3194 = vmul.f32 %v3171, %v3190
  %v3195 = vmul.f32 %v3173, %v3191
  %v3196 = vmul.f32 %v3175, %v3192
  %v3197 = vmul.f32 %v3177, %v3193
  %v3198 = vsel %vm2873, 0, 15
  %v3199 = vsel %vm2874, 0, 15
  %v3200 = vsel %vm2875, 0, 15
  %v3201 = vsel %vm2876, 0, 15
  %v3202 = vlaneseq
  %v3203 = vshrl.u32 %v3202, 7
  %v3204 = vsub.s32 0, %v3203
  %v3205 = vrot.slane %v68, %v3204
  %vm3206 = vcmp.lt.s32.totalorder %v3198, %v3205
  %vm3207 = vcmp.lt.s32.totalorder %v3199, %v3205
  %vm3208 = vcmp.lt.s32.totalorder %v3200, %v3205
  %vm3209 = vcmp.lt.s32.totalorder %v3201, %v3205
  %v3210 = vsel %vm3206, %v3194, 0.0
  %v3211 = vsel %vm3207, %v3195, 0.0
  %v3212 = vsel %vm3208, %v3196, 0.0
  %v3213 = vsel %vm3209, %v3197, 0.0
  %3214 = vst [vmem:[%s5] sm:$0xff] %v3210
  %3215 = vst [vmem:[%s5 + $0x8] sm:$0xff] %v3211
  %3216 = vst [vmem:[%s5 + $0x10] sm:$0xff] %v3212
  %3217 = vst [vmem:[%s5 + $0x18] sm:$0xff] %v3213
  %v3218 = vsel %vm3206, %v3186, 0.0
  %v3219 = vsel %vm3207, %v3187, 0.0
  %v3220 = vsel %vm3208, %v3188, 0.0
  %v3221 = vsel %vm3209, %v3189, 0.0
  %v3222 = vld [vmem:[%s514] sm:$0xff]
  %v3223 = vld [vmem:[%s514 + $0x8] sm:$0xff]
  %v3224 = vld [vmem:[%s514 + $0x10] sm:$0xff]
  %v3225 = vld [vmem:[%s514 + $0x18] sm:$0xff]
  %v3226 = vld [vmem:[%s514 + $0x20] sm:$0xff]
  %v3227 = vld [vmem:[%s514 + $0x28] sm:$0xff]
  %v3228 = vld [vmem:[%s514 + $0x30] sm:$0xff]
  %v3229 = vld [vmem:[%s514 + $0x38] sm:$0xff]
  %v3230 = vld [vmem:[%s514 + $0x40] sm:$0xff]
  %v3231 = vld [vmem:[%s514 + $0x48] sm:$0xff]
  %v3232 = vld [vmem:[%s514 + $0x50] sm:$0xff]
  %v3233 = vld [vmem:[%s514 + $0x58] sm:$0xff]
  %v3234 = vld [vmem:[%s514 + $0x60] sm:$0xff]
  %v3235 = vld [vmem:[%s514 + $0x68] sm:$0xff]
  %v3236 = vld [vmem:[%s514 + $0x70] sm:$0xff]
  %v3237 = vld [vmem:[%s514 + $0x78] sm:$0xff]
  %3238 = vmatprep.subr.mxu0 0.0
  %3239 = vmatpush1.msra.mxu0 0.0
  %3240 = vmatprep.subr.mxu0 0.0
  %3241 = vmatpush1.msra.mxu0 0.0
  %3242 = vmatprep.subr.mxu0 0.0
  %3243 = vmatpush1.msra.mxu0 0.0
  %3244 = vmatprep.subr.mxu0 0.0
  %3245 = vmatpush1.msra.mxu0 0.0
  %3246 = vmatprep.subr.mxu0 0.0
  %3247 = vmatpush1.msra.mxu0 0.0
  %3248 = vmatprep.subr.mxu0 0.0
  %3249 = vmatpush1.msra.mxu0 0.0
  %3250 = vmatprep.subr.mxu0 0.0
  %3251 = vmatpush1.msra.mxu0 0.0
  %3252 = vmatprep.subr.mxu0 0.0
  %3253 = vmatpush1.msra.mxu0 0.0
  %3254 = vmatprep.subr.mxu0 0.0
  %3255 = vmatpush1.msra.mxu0 0.0
  %3256 = vmatprep.subr.mxu0 0.0
  %3257 = vmatpush1.msra.mxu0 0.0
  %3258 = vmatprep.subr.mxu0 0.0
  %3259 = vmatpush1.msra.mxu0 0.0
  %3260 = vmatprep.subr.mxu0 0.0
  %3261 = vmatpush1.msra.mxu0 0.0
  %3262 = vmatprep.subr.mxu0 0.0
  %3263 = vmatpush1.msra.mxu0 %v3213
  %3264 = vmatprep.subr.mxu0 0.0
  %3265 = vmatpush1.msra.mxu0 %v3212
  %3266 = vmatprep.subr.mxu0 0.0
  %3267 = vmatpush1.msra.mxu0 %v3211
  %3268 = vmatprep.subr.mxu0 0.0
  %3269 = vmatpush1.msra.mxu0 %v3210
  %3270 = vmatprep.subr.mxu0 0.0
  %3271 = vmatpush2.msra.mxu0 0.0
  %3272 = vmatprep.subr.mxu0 0.0
  %3273 = vmatpush2.msra.mxu0 0.0
  %3274 = vmatprep.subr.mxu0 0.0
  %3275 = vmatpush2.msra.mxu0 0.0
  %3276 = vmatprep.subr.mxu0 0.0
  %3277 = vmatpush2.msra.mxu0 0.0
  %3278 = vmatprep.subr.mxu0 0.0
  %3279 = vmatpush2.msra.mxu0 0.0
  %3280 = vmatprep.subr.mxu0 0.0
  %3281 = vmatpush2.msra.mxu0 0.0
  %3282 = vmatprep.subr.mxu0 0.0
  %3283 = vmatpush2.msra.mxu0 0.0
  %3284 = vmatprep.subr.mxu0 0.0
  %3285 = vmatpush2.msra.mxu0 0.0
  %3286 = vmatprep.subr.mxu0 0.0
  %3287 = vmatpush2.msra.mxu0 0.0
  %3288 = vmatprep.subr.mxu0 0.0
  %3289 = vmatpush2.msra.mxu0 0.0
  %3290 = vmatprep.subr.mxu0 0.0
  %3291 = vmatpush2.msra.mxu0 0.0
  %3292 = vmatprep.subr.mxu0 0.0
  %3293 = vmatpush2.msra.mxu0 0.0
  %3294 = vmatprep.subr.mxu0 0.0
  %3295 = vmatpush2.msra.mxu0 0.0
  %3296 = vmatprep.subr.mxu0 0.0
  %3297 = vmatpush2.msra.mxu0 0.0
  %3298 = vmatprep.subr.mxu0 0.0
  %3299 = vmatpush2.msra.mxu0 0.0
  %3300 = vmatprep.subr.mxu0 0.0
  %3301 = vmatpush2.msra.mxu0 0.0
  %3302 = vmatprep.mubr.f32.mxu0 0.0
  %3303 = vmatmul.mubr.f32.gmra.mxu0 %v2894
  %v3304 = vpop.f32.mrf.mxu0
  %v3305 = vadd.f32 0.0, %v3304
  %v3306 = vpop.f32.mrf.mxu0
  %3307 = vmatprep.mubr.f32.mxu0 0.0
  %3308 = vmatmul.mubr.f32.gmra.mxu0 %v2897
  %v3309 = vpop.f32.mrf.mxu0
  %v3310 = vadd.f32 0.0, %v3309
  %v3311 = vpop.f32.mrf.mxu0
  %3312 = vmatprep.mubr.f32.mxu0 0.0
  %3313 = vmatmul.mubr.f32.gmra.mxu0 %v2900
  %v3314 = vpop.f32.mrf.mxu0
  %v3315 = vadd.f32 0.0, %v3314
  %v3316 = vpop.f32.mrf.mxu0
  %3317 = vmatprep.mubr.f32.mxu0 0.0
  %3318 = vmatmul.mubr.f32.gmra.mxu0 %v2903
  %v3319 = vpop.f32.mrf.mxu0
  %v3320 = vadd.f32 0.0, %v3319
  %v3321 = vpop.f32.mrf.mxu0
  %3322 = vmatprep.mubr.f32.mxu0 0.0
  %3323 = vmatmul.mubr.f32.gmra.mxu0 %v2906
  %v3324 = vpop.f32.mrf.mxu0
  %v3325 = vadd.f32 0.0, %v3324
  %v3326 = vpop.f32.mrf.mxu0
  %3327 = vmatprep.mubr.f32.mxu0 0.0
  %3328 = vmatmul.mubr.f32.gmra.mxu0 %v2909
  %v3329 = vpop.f32.mrf.mxu0
  %v3330 = vadd.f32 0.0, %v3329
  %v3331 = vpop.f32.mrf.mxu0
  %3332 = vmatprep.mubr.f32.mxu0 0.0
  %3333 = vmatmul.mubr.f32.gmra.mxu0 %v2912
  %v3334 = vpop.f32.mrf.mxu0
  %v3335 = vadd.f32 0.0, %v3334
  %v3336 = vpop.f32.mrf.mxu0
  %3337 = vmatprep.mubr.f32.mxu0 0.0
  %3338 = vmatmul.mubr.f32.gmra.mxu0 %v2915
  %v3339 = vpop.f32.mrf.mxu0
  %v3340 = vadd.f32 0.0, %v3339
  %v3341 = vpop.f32.mrf.mxu0
  %3342 = vmatprep.mubr.f32.mxu0 0.0
  %3343 = vmatmul.mubr.f32.gmra.mxu0 %v2918
  %v3344 = vpop.f32.mrf.mxu0
  %v3345 = vadd.f32 0.0, %v3344
  %v3346 = vpop.f32.mrf.mxu0
  %3347 = vmatprep.mubr.f32.mxu0 0.0
  %3348 = vmatmul.mubr.f32.gmra.mxu0 %v2921
  %v3349 = vpop.f32.mrf.mxu0
  %v3350 = vadd.f32 0.0, %v3349
  %v3351 = vpop.f32.mrf.mxu0
  %3352 = vmatprep.mubr.f32.mxu0 0.0
  %3353 = vmatmul.mubr.f32.gmra.mxu0 %v2924
  %v3354 = vpop.f32.mrf.mxu0
  %v3355 = vadd.f32 0.0, %v3354
  %v3356 = vpop.f32.mrf.mxu0
  %3357 = vmatprep.mubr.f32.mxu0 0.0
  %3358 = vmatmul.mubr.f32.gmra.mxu0 %v2927
  %v3359 = vpop.f32.mrf.mxu0
  %v3360 = vadd.f32 0.0, %v3359
  %v3361 = vpop.f32.mrf.mxu0
  %3362 = vmatprep.mubr.f32.mxu0 0.0
  %3363 = vmatmul.mubr.f32.gmra.mxu0 %v2930
  %v3364 = vpop.f32.mrf.mxu0
  %v3365 = vadd.f32 0.0, %v3364
  %v3366 = vpop.f32.mrf.mxu0
  %3367 = vmatprep.mubr.f32.mxu0 0.0
  %3368 = vmatmul.mubr.f32.gmra.mxu0 %v2933
  %v3369 = vpop.f32.mrf.mxu0
  %v3370 = vadd.f32 0.0, %v3369
  %v3371 = vpop.f32.mrf.mxu0
  %3372 = vmatprep.mubr.f32.mxu0 0.0
  %3373 = vmatmul.mubr.f32.gmra.mxu0 %v2936
  %v3374 = vpop.f32.mrf.mxu0
  %v3375 = vadd.f32 0.0, %v3374
  %v3376 = vpop.f32.mrf.mxu0
  %3377 = vmatprep.mubr.f32.mxu0 0.0
  %3378 = vmatmul.mubr.f32.gmra.mxu0 %v2939
  %v3379 = vpop.f32.mrf.mxu0
  %v3380 = vadd.f32 0.0, %v3379
  %v3381 = vpop.f32.mrf.mxu0
  %3382 = vdwg.mxu0
  %v3383 = vadd.f32 %v3222, %v3305
  %v3384 = vadd.f32 %v3223, %v3310
  %v3385 = vadd.f32 %v3224, %v3315
  %v3386 = vadd.f32 %v3225, %v3320
  %v3387 = vadd.f32 %v3226, %v3325
  %v3388 = vadd.f32 %v3227, %v3330
  %v3389 = vadd.f32 %v3228, %v3335
  %v3390 = vadd.f32 %v3229, %v3340
  %v3391 = vadd.f32 %v3230, %v3345
  %v3392 = vadd.f32 %v3231, %v3350
  %v3393 = vadd.f32 %v3232, %v3355
  %v3394 = vadd.f32 %v3233, %v3360
  %v3395 = vadd.f32 %v3234, %v3365
  %v3396 = vadd.f32 %v3235, %v3370
  %v3397 = vadd.f32 %v3236, %v3375
  %v3398 = vadd.f32 %v3237, %v3380
  %v3399 = vxor.u32 %v3383, 2147483648
  %v3400 = vxor.u32 %v3384, 2147483648
  %v3401 = vxor.u32 %v3385, 2147483648
  %v3402 = vxor.u32 %v3386, 2147483648
  %v3403 = vmul.f32 %v3399, 1.442695
  %v3404 = vpow.pop %v3403
  %v3405 = vmul.f32 %v3400, 1.442695
  %v3406 = vpow.pop %v3405
  %v3407 = vmul.f32 %v3401, 1.442695
  %v3408 = vpow.pop %v3407
  %v3409 = vmul.f32 %v3402, 1.442695
  %v3410 = vpow.pop %v3409
  %v3411 = vadd.f32 %v3404, 1.0
  %v3412 = vadd.f32 %v3406, 1.0
  %v3413 = vadd.f32 %v3408, 1.0
  %v3414 = vadd.f32 %v3410, 1.0
  %v3415 = vrcp.pop %v3411
  %v3416 = vmul.f32 1.0, %v3415
  %v3417 = vrcp.pop %v3412
  %v3418 = vmul.f32 1.0, %v3417
  %v3419 = vrcp.pop %v3413
  %v3420 = vmul.f32 1.0, %v3419
  %v3421 = vrcp.pop %v3414
  %v3422 = vmul.f32 1.0, %v3421
  %v3423 = vxor.u32 %v3387, 2147483648
  %v3424 = vxor.u32 %v3388, 2147483648
  %v3425 = vxor.u32 %v3389, 2147483648
  %v3426 = vxor.u32 %v3390, 2147483648
  %v3427 = vmul.f32 %v3423, 1.442695
  %v3428 = vpow.pop %v3427
  %v3429 = vmul.f32 %v3424, 1.442695
  %v3430 = vpow.pop %v3429
  %v3431 = vmul.f32 %v3425, 1.442695
  %v3432 = vpow.pop %v3431
  %v3433 = vmul.f32 %v3426, 1.442695
  %v3434 = vpow.pop %v3433
  %v3435 = vadd.f32 %v3428, 1.0
  %v3436 = vadd.f32 %v3430, 1.0
  %v3437 = vadd.f32 %v3432, 1.0
  %v3438 = vadd.f32 %v3434, 1.0
  %v3439 = vrcp.pop %v3435
  %v3440 = vmul.f32 1.0, %v3439
  %v3441 = vrcp.pop %v3436
  %v3442 = vmul.f32 1.0, %v3441
  %v3443 = vrcp.pop %v3437
  %v3444 = vmul.f32 1.0, %v3443
  %v3445 = vrcp.pop %v3438
  %v3446 = vmul.f32 1.0, %v3445
  %v3447 = vtanh.pop %v3391
  %v3448 = vtanh.pop %v3392
  %v3449 = vtanh.pop %v3393
  %v3450 = vtanh.pop %v3394
  %v3451 = vxor.u32 %v3395, 2147483648
  %v3452 = vxor.u32 %v3396, 2147483648
  %v3453 = vxor.u32 %v3397, 2147483648
  %v3454 = vxor.u32 %v3398, 2147483648
  %v3455 = vmul.f32 %v3451, 1.442695
  %v3456 = vpow.pop %v3455
  %v3457 = vmul.f32 %v3452, 1.442695
  %v3458 = vpow.pop %v3457
  %v3459 = vmul.f32 %v3453, 1.442695
  %v3460 = vpow.pop %v3459
  %v3461 = vmul.f32 %v3454, 1.442695
  %v3462 = vpow.pop %v3461
  %v3463 = vadd.f32 %v3456, 1.0
  %v3464 = vadd.f32 %v3458, 1.0
  %v3465 = vadd.f32 %v3460, 1.0
  %v3466 = vadd.f32 %v3462, 1.0
  %v3467 = vrcp.pop %v3463
  %v3468 = vmul.f32 1.0, %v3467
  %v3469 = vrcp.pop %v3464
  %v3470 = vmul.f32 1.0, %v3469
  %v3471 = vrcp.pop %v3465
  %v3472 = vmul.f32 1.0, %v3471
  %v3473 = vrcp.pop %v3466
  %v3474 = vmul.f32 1.0, %v3473
  %v3475 = vmul.f32 %v3440, %v3218
  %v3476 = vmul.f32 %v3442, %v3219
  %v3477 = vmul.f32 %v3444, %v3220
  %v3478 = vmul.f32 %v3446, %v3221
  %v3479 = vmul.f32 %v3416, %v3447
  %v3480 = vmul.f32 %v3418, %v3448
  %v3481 = vmul.f32 %v3420, %v3449
  %v3482 = vmul.f32 %v3422, %v3450
  %v3483 = vadd.f32 %v3475, %v3479
  %v3484 = vadd.f32 %v3476, %v3480
  %v3485 = vadd.f32 %v3477, %v3481
  %v3486 = vadd.f32 %v3478, %v3482
  %v3487 = vtanh.pop %v3483
  %v3488 = vtanh.pop %v3484
  %v3489 = vtanh.pop %v3485
  %v3490 = vtanh.pop %v3486
  %v3491 = vmul.f32 %v3468, %v3487
  %v3492 = vmul.f32 %v3470, %v3488
  %v3493 = vmul.f32 %v3472, %v3489
  %v3494 = vmul.f32 %v3474, %v3490
  %v3495 = vsel %vm2873, 1, 14
  %v3496 = vsel %vm2874, 1, 14
  %v3497 = vsel %vm2875, 1, 14
  %v3498 = vsel %vm2876, 1, 14
  %vm3499 = vcmp.lt.s32.totalorder %v3495, %v3205
  %vm3500 = vcmp.lt.s32.totalorder %v3496, %v3205
  %vm3501 = vcmp.lt.s32.totalorder %v3497, %v3205
  %vm3502 = vcmp.lt.s32.totalorder %v3498, %v3205
  %v3503 = vsel %vm3499, %v3491, 0.0
  %v3504 = vsel %vm3500, %v3492, 0.0
  %v3505 = vsel %vm3501, %v3493, 0.0
  %v3506 = vsel %vm3502, %v3494, 0.0
  %s3507 = scalar_lea.vmem %s5, 32
  %3508 = vst [vmem:[%s3507] sm:$0xff] %v3503
  %3509 = vst [vmem:[%s3507 + $0x8] sm:$0xff] %v3504
  %3510 = vst [vmem:[%s3507 + $0x10] sm:$0xff] %v3505
  %3511 = vst [vmem:[%s3507 + $0x18] sm:$0xff] %v3506
  %v3512 = vsel %vm3499, %v3491, %v3210
  %v3513 = vsel %vm3500, %v3492, %v3211
  %v3514 = vsel %vm3501, %v3493, %v3212
  %v3515 = vsel %vm3502, %v3494, %v3213
  %v3516 = vsel %vm3499, %v3483, %v3218
  %v3517 = vsel %vm3500, %v3484, %v3219
  %v3518 = vsel %vm3501, %v3485, %v3220
  %v3519 = vsel %vm3502, %v3486, %v3221
  %v3520 = vld [vmem:[%s682] sm:$0xff]
  %v3521 = vld [vmem:[%s682 + $0x8] sm:$0xff]
  %v3522 = vld [vmem:[%s682 + $0x10] sm:$0xff]
  %v3523 = vld [vmem:[%s682 + $0x18] sm:$0xff]
  %v3524 = vld [vmem:[%s682 + $0x20] sm:$0xff]
  %v3525 = vld [vmem:[%s682 + $0x28] sm:$0xff]
  %v3526 = vld [vmem:[%s682 + $0x30] sm:$0xff]
  %v3527 = vld [vmem:[%s682 + $0x38] sm:$0xff]
  %v3528 = vld [vmem:[%s682 + $0x40] sm:$0xff]
  %v3529 = vld [vmem:[%s682 + $0x48] sm:$0xff]
  %v3530 = vld [vmem:[%s682 + $0x50] sm:$0xff]
  %v3531 = vld [vmem:[%s682 + $0x58] sm:$0xff]
  %v3532 = vld [vmem:[%s682 + $0x60] sm:$0xff]
  %v3533 = vld [vmem:[%s682 + $0x68] sm:$0xff]
  %v3534 = vld [vmem:[%s682 + $0x70] sm:$0xff]
  %v3535 = vld [vmem:[%s682 + $0x78] sm:$0xff]
  %3536 = vmatprep.subr.mxu0 0.0
  %3537 = vmatpush1.msra.mxu0 0.0
  %3538 = vmatprep.subr.mxu0 0.0
  %3539 = vmatpush1.msra.mxu0 0.0
  %3540 = vmatprep.subr.mxu0 0.0
  %3541 = vmatpush1.msra.mxu0 0.0
  %3542 = vmatprep.subr.mxu0 0.0
  %3543 = vmatpush1.msra.mxu0 0.0
  %3544 = vmatprep.subr.mxu0 0.0
  %3545 = vmatpush1.msra.mxu0 0.0
  %3546 = vmatprep.subr.mxu0 0.0
  %3547 = vmatpush1.msra.mxu0 0.0
  %3548 = vmatprep.subr.mxu0 0.0
  %3549 = vmatpush1.msra.mxu0 0.0
  %3550 = vmatprep.subr.mxu0 0.0
  %3551 = vmatpush1.msra.mxu0 0.0
  %3552 = vmatprep.subr.mxu0 0.0
  %3553 = vmatpush1.msra.mxu0 0.0
  %3554 = vmatprep.subr.mxu0 0.0
  %3555 = vmatpush1.msra.mxu0 0.0
  %3556 = vmatprep.subr.mxu0 0.0
  %3557 = vmatpush1.msra.mxu0 0.0
  %3558 = vmatprep.subr.mxu0 0.0
  %3559 = vmatpush1.msra.mxu0 0.0
  %3560 = vmatprep.subr.mxu0 0.0
  %3561 = vmatpush1.msra.mxu0 %v3515
  %3562 = vmatprep.subr.mxu0 0.0
  %3563 = vmatpush1.msra.mxu0 %v3514
  %3564 = vmatprep.subr.mxu0 0.0
  %3565 = vmatpush1.msra.mxu0 %v3513
  %3566 = vmatprep.subr.mxu0 0.0
  %3567 = vmatpush1.msra.mxu0 %v3512
  %3568 = vmatprep.subr.mxu0 0.0
  %3569 = vmatpush2.msra.mxu0 0.0
  %3570 = vmatprep.subr.mxu0 0.0
  %3571 = vmatpush2.msra.mxu0 0.0
  %3572 = vmatprep.subr.mxu0 0.0
  %3573 = vmatpush2.msra.mxu0 0.0
  %3574 = vmatprep.subr.mxu0 0.0
  %3575 = vmatpush2.msra.mxu0 0.0
  %3576 = vmatprep.subr.mxu0 0.0
  %3577 = vmatpush2.msra.mxu0 0.0
  %3578 = vmatprep.subr.mxu0 0.0
  %3579 = vmatpush2.msra.mxu0 0.0
  %3580 = vmatprep.subr.mxu0 0.0
  %3581 = vmatpush2.msra.mxu0 0.0
  %3582 = vmatprep.subr.mxu0 0.0
  %3583 = vmatpush2.msra.mxu0 0.0
  %3584 = vmatprep.subr.mxu0 0.0
  %3585 = vmatpush2.msra.mxu0 0.0
  %3586 = vmatprep.subr.mxu0 0.0
  %3587 = vmatpush2.msra.mxu0 0.0
  %3588 = vmatprep.subr.mxu0 0.0
  %3589 = vmatpush2.msra.mxu0 0.0
  %3590 = vmatprep.subr.mxu0 0.0
  %3591 = vmatpush2.msra.mxu0 0.0
  %3592 = vmatprep.subr.mxu0 0.0
  %3593 = vmatpush2.msra.mxu0 0.0
  %3594 = vmatprep.subr.mxu0 0.0
  %3595 = vmatpush2.msra.mxu0 0.0
  %3596 = vmatprep.subr.mxu0 0.0
  %3597 = vmatpush2.msra.mxu0 0.0
  %3598 = vmatprep.subr.mxu0 0.0
  %3599 = vmatpush2.msra.mxu0 0.0
  %3600 = vmatprep.mubr.f32.mxu0 0.0
  %3601 = vmatmul.mubr.f32.gmra.mxu0 %v2894
  %v3602 = vpop.f32.mrf.mxu0
  %v3603 = vadd.f32 0.0, %v3602
  %v3604 = vpop.f32.mrf.mxu0
  %3605 = vmatprep.mubr.f32.mxu0 0.0
  %3606 = vmatmul.mubr.f32.gmra.mxu0 %v2897
  %v3607 = vpop.f32.mrf.mxu0
  %v3608 = vadd.f32 0.0, %v3607
  %v3609 = vpop.f32.mrf.mxu0
  %3610 = vmatprep.mubr.f32.mxu0 0.0
  %3611 = vmatmul.mubr.f32.gmra.mxu0 %v2900
  %v3612 = vpop.f32.mrf.mxu0
  %v3613 = vadd.f32 0.0, %v3612
  %v3614 = vpop.f32.mrf.mxu0
  %3615 = vmatprep.mubr.f32.mxu0 0.0
  %3616 = vmatmul.mubr.f32.gmra.mxu0 %v2903
  %v3617 = vpop.f32.mrf.mxu0
  %v3618 = vadd.f32 0.0, %v3617
  %v3619 = vpop.f32.mrf.mxu0
  %3620 = vmatprep.mubr.f32.mxu0 0.0
  %3621 = vmatmul.mubr.f32.gmra.mxu0 %v2906
  %v3622 = vpop.f32.mrf.mxu0
  %v3623 = vadd.f32 0.0, %v3622
  %v3624 = vpop.f32.mrf.mxu0
  %3625 = vmatprep.mubr.f32.mxu0 0.0
  %3626 = vmatmul.mubr.f32.gmra.mxu0 %v2909
  %v3627 = vpop.f32.mrf.mxu0
  %v3628 = vadd.f32 0.0, %v3627
  %v3629 = vpop.f32.mrf.mxu0
  %3630 = vmatprep.mubr.f32.mxu0 0.0
  %3631 = vmatmul.mubr.f32.gmra.mxu0 %v2912
  %v3632 = vpop.f32.mrf.mxu0
  %v3633 = vadd.f32 0.0, %v3632
  %v3634 = vpop.f32.mrf.mxu0
  %3635 = vmatprep.mubr.f32.mxu0 0.0
  %3636 = vmatmul.mubr.f32.gmra.mxu0 %v2915
  %v3637 = vpop.f32.mrf.mxu0
  %v3638 = vadd.f32 0.0, %v3637
  %v3639 = vpop.f32.mrf.mxu0
  %3640 = vmatprep.mubr.f32.mxu0 0.0
  %3641 = vmatmul.mubr.f32.gmra.mxu0 %v2918
  %v3642 = vpop.f32.mrf.mxu0
  %v3643 = vadd.f32 0.0, %v3642
  %v3644 = vpop.f32.mrf.mxu0
  %3645 = vmatprep.mubr.f32.mxu0 0.0
  %3646 = vmatmul.mubr.f32.gmra.mxu0 %v2921
  %v3647 = vpop.f32.mrf.mxu0
  %v3648 = vadd.f32 0.0, %v3647
  %v3649 = vpop.f32.mrf.mxu0
  %3650 = vmatprep.mubr.f32.mxu0 0.0
  %3651 = vmatmul.mubr.f32.gmra.mxu0 %v2924
  %v3652 = vpop.f32.mrf.mxu0
  %v3653 = vadd.f32 0.0, %v3652
  %v3654 = vpop.f32.mrf.mxu0
  %3655 = vmatprep.mubr.f32.mxu0 0.0
  %3656 = vmatmul.mubr.f32.gmra.mxu0 %v2927
  %v3657 = vpop.f32.mrf.mxu0
  %v3658 = vadd.f32 0.0, %v3657
  %v3659 = vpop.f32.mrf.mxu0
  %3660 = vmatprep.mubr.f32.mxu0 0.0
  %3661 = vmatmul.mubr.f32.gmra.mxu0 %v2930
  %v3662 = vpop.f32.mrf.mxu0
  %v3663 = vadd.f32 0.0, %v3662
  %v3664 = vpop.f32.mrf.mxu0
  %3665 = vmatprep.mubr.f32.mxu0 0.0
  %3666 = vmatmul.mubr.f32.gmra.mxu0 %v2933
  %v3667 = vpop.f32.mrf.mxu0
  %v3668 = vadd.f32 0.0, %v3667
  %v3669 = vpop.f32.mrf.mxu0
  %3670 = vmatprep.mubr.f32.mxu0 0.0
  %3671 = vmatmul.mubr.f32.gmra.mxu0 %v2936
  %v3672 = vpop.f32.mrf.mxu0
  %v3673 = vadd.f32 0.0, %v3672
  %v3674 = vpop.f32.mrf.mxu0
  %3675 = vmatprep.mubr.f32.mxu0 0.0
  %3676 = vmatmul.mubr.f32.gmra.mxu0 %v2939
  %v3677 = vpop.f32.mrf.mxu0
  %v3678 = vadd.f32 0.0, %v3677
  %v3679 = vpop.f32.mrf.mxu0
  %3680 = vdwg.mxu0
  %v3681 = vadd.f32 %v3520, %v3603
  %v3682 = vadd.f32 %v3521, %v3608
  %v3683 = vadd.f32 %v3522, %v3613
  %v3684 = vadd.f32 %v3523, %v3618
  %v3685 = vadd.f32 %v3524, %v3623
  %v3686 = vadd.f32 %v3525, %v3628
  %v3687 = vadd.f32 %v3526, %v3633
  %v3688 = vadd.f32 %v3527, %v3638
  %v3689 = vadd.f32 %v3528, %v3643
  %v3690 = vadd.f32 %v3529, %v3648
  %v3691 = vadd.f32 %v3530, %v3653
  %v3692 = vadd.f32 %v3531, %v3658
  %v3693 = vadd.f32 %v3532, %v3663
  %v3694 = vadd.f32 %v3533, %v3668
  %v3695 = vadd.f32 %v3534, %v3673
  %v3696 = vadd.f32 %v3535, %v3678
  %v3697 = vxor.u32 %v3681, 2147483648
  %v3698 = vxor.u32 %v3682, 2147483648
  %v3699 = vxor.u32 %v3683, 2147483648
  %v3700 = vxor.u32 %v3684, 2147483648
  %v3701 = vmul.f32 %v3697, 1.442695
  %v3702 = vpow.pop %v3701
  %v3703 = vmul.f32 %v3698, 1.442695
  %v3704 = vpow.pop %v3703
  %v3705 = vmul.f32 %v3699, 1.442695
  %v3706 = vpow.pop %v3705
  %v3707 = vmul.f32 %v3700, 1.442695
  %v3708 = vpow.pop %v3707
  %v3709 = vadd.f32 %v3702, 1.0
  %v3710 = vadd.f32 %v3704, 1.0
  %v3711 = vadd.f32 %v3706, 1.0
  %v3712 = vadd.f32 %v3708, 1.0
  %v3713 = vrcp.pop %v3709
  %v3714 = vmul.f32 1.0, %v3713
  %v3715 = vrcp.pop %v3710
  %v3716 = vmul.f32 1.0, %v3715
  %v3717 = vrcp.pop %v3711
  %v3718 = vmul.f32 1.0, %v3717
  %v3719 = vrcp.pop %v3712
  %v3720 = vmul.f32 1.0, %v3719
  %v3721 = vxor.u32 %v3685, 2147483648
  %v3722 = vxor.u32 %v3686, 2147483648
  %v3723 = vxor.u32 %v3687, 2147483648
  %v3724 = vxor.u32 %v3688, 2147483648
  %v3725 = vmul.f32 %v3721, 1.442695
  %v3726 = vpow.pop %v3725
  %v3727 = vmul.f32 %v3722, 1.442695
  %v3728 = vpow.pop %v3727
  %v3729 = vmul.f32 %v3723, 1.442695
  %v3730 = vpow.pop %v3729
  %v3731 = vmul.f32 %v3724, 1.442695
  %v3732 = vpow.pop %v3731
  %v3733 = vadd.f32 %v3726, 1.0
  %v3734 = vadd.f32 %v3728, 1.0
  %v3735 = vadd.f32 %v3730, 1.0
  %v3736 = vadd.f32 %v3732, 1.0
  %v3737 = vrcp.pop %v3733
  %v3738 = vmul.f32 1.0, %v3737
  %v3739 = vrcp.pop %v3734
  %v3740 = vmul.f32 1.0, %v3739
  %v3741 = vrcp.pop %v3735
  %v3742 = vmul.f32 1.0, %v3741
  %v3743 = vrcp.pop %v3736
  %v3744 = vmul.f32 1.0, %v3743
  %v3745 = vtanh.pop %v3689
  %v3746 = vtanh.pop %v3690
  %v3747 = vtanh.pop %v3691
  %v3748 = vtanh.pop %v3692
  %v3749 = vxor.u32 %v3693, 2147483648
  %v3750 = vxor.u32 %v3694, 2147483648
  %v3751 = vxor.u32 %v3695, 2147483648
  %v3752 = vxor.u32 %v3696, 2147483648
  %v3753 = vmul.f32 %v3749, 1.442695
  %v3754 = vpow.pop %v3753
  %v3755 = vmul.f32 %v3750, 1.442695
  %v3756 = vpow.pop %v3755
  %v3757 = vmul.f32 %v3751, 1.442695
  %v3758 = vpow.pop %v3757
  %v3759 = vmul.f32 %v3752, 1.442695
  %v3760 = vpow.pop %v3759
  %v3761 = vadd.f32 %v3754, 1.0
  %v3762 = vadd.f32 %v3756, 1.0
  %v3763 = vadd.f32 %v3758, 1.0
  %v3764 = vadd.f32 %v3760, 1.0
  %v3765 = vrcp.pop %v3761
  %v3766 = vmul.f32 1.0, %v3765
  %v3767 = vrcp.pop %v3762
  %v3768 = vmul.f32 1.0, %v3767
  %v3769 = vrcp.pop %v3763
  %v3770 = vmul.f32 1.0, %v3769
  %v3771 = vrcp.pop %v3764
  %v3772 = vmul.f32 1.0, %v3771
  %v3773 = vmul.f32 %v3738, %v3516
  %v3774 = vmul.f32 %v3740, %v3517
  %v3775 = vmul.f32 %v3742, %v3518
  %v3776 = vmul.f32 %v3744, %v3519
  %v3777 = vmul.f32 %v3714, %v3745
  %v3778 = vmul.f32 %v3716, %v3746
  %v3779 = vmul.f32 %v3718, %v3747
  %v3780 = vmul.f32 %v3720, %v3748
  %v3781 = vadd.f32 %v3773, %v3777
  %v3782 = vadd.f32 %v3774, %v3778
  %v3783 = vadd.f32 %v3775, %v3779
  %v3784 = vadd.f32 %v3776, %v3780
  %v3785 = vtanh.pop %v3781
  %v3786 = vtanh.pop %v3782
  %v3787 = vtanh.pop %v3783
  %v3788 = vtanh.pop %v3784
  %v3789 = vmul.f32 %v3766, %v3785
  %v3790 = vmul.f32 %v3768, %v3786
  %v3791 = vmul.f32 %v3770, %v3787
  %v3792 = vmul.f32 %v3772, %v3788
  %v3793 = vsel %vm2873, 2, 13
  %v3794 = vsel %vm2874, 2, 13
  %v3795 = vsel %vm2875, 2, 13
  %v3796 = vsel %vm2876, 2, 13
  %vm3797 = vcmp.lt.s32.totalorder %v3793, %v3205
  %vm3798 = vcmp.lt.s32.totalorder %v3794, %v3205
  %vm3799 = vcmp.lt.s32.totalorder %v3795, %v3205
  %vm3800 = vcmp.lt.s32.totalorder %v3796, %v3205
  %v3801 = vsel %vm3797, %v3789, 0.0
  %v3802 = vsel %vm3798, %v3790, 0.0
  %v3803 = vsel %vm3799, %v3791, 0.0
  %v3804 = vsel %vm3800, %v3792, 0.0
  %s3805 = scalar_lea.vmem %s5, 64
  %3806 = vst [vmem:[%s3805] sm:$0xff] %v3801
  %3807 = vst [vmem:[%s3805 + $0x8] sm:$0xff] %v3802
  %3808 = vst [vmem:[%s3805 + $0x10] sm:$0xff] %v3803
  %3809 = vst [vmem:[%s3805 + $0x18] sm:$0xff] %v3804
  %v3810 = vsel %vm3797, %v3789, %v3512
  %v3811 = vsel %vm3798, %v3790, %v3513
  %v3812 = vsel %vm3799, %v3791, %v3514
  %v3813 = vsel %vm3800, %v3792, %v3515
  %v3814 = vsel %vm3797, %v3781, %v3516
  %v3815 = vsel %vm3798, %v3782, %v3517
  %v3816 = vsel %vm3799, %v3783, %v3518
  %v3817 = vsel %vm3800, %v3784, %v3519
  %v3818 = vld [vmem:[%s850] sm:$0xff]
  %v3819 = vld [vmem:[%s850 + $0x8] sm:$0xff]
  %v3820 = vld [vmem:[%s850 + $0x10] sm:$0xff]
  %v3821 = vld [vmem:[%s850 + $0x18] sm:$0xff]
  %v3822 = vld [vmem:[%s850 + $0x20] sm:$0xff]
  %v3823 = vld [vmem:[%s850 + $0x28] sm:$0xff]
  %v3824 = vld [vmem:[%s850 + $0x30] sm:$0xff]
  %v3825 = vld [vmem:[%s850 + $0x38] sm:$0xff]
  %v3826 = vld [vmem:[%s850 + $0x40] sm:$0xff]
  %v3827 = vld [vmem:[%s850 + $0x48] sm:$0xff]
  %v3828 = vld [vmem:[%s850 + $0x50] sm:$0xff]
  %v3829 = vld [vmem:[%s850 + $0x58] sm:$0xff]
  %v3830 = vld [vmem:[%s850 + $0x60] sm:$0xff]
  %v3831 = vld [vmem:[%s850 + $0x68] sm:$0xff]
  %v3832 = vld [vmem:[%s850 + $0x70] sm:$0xff]
  %v3833 = vld [vmem:[%s850 + $0x78] sm:$0xff]
  %3834 = vmatprep.subr.mxu0 0.0
  %3835 = vmatpush1.msra.mxu0 0.0
  %3836 = vmatprep.subr.mxu0 0.0
  %3837 = vmatpush1.msra.mxu0 0.0
  %3838 = vmatprep.subr.mxu0 0.0
  %3839 = vmatpush1.msra.mxu0 0.0
  %3840 = vmatprep.subr.mxu0 0.0
  %3841 = vmatpush1.msra.mxu0 0.0
  %3842 = vmatprep.subr.mxu0 0.0
  %3843 = vmatpush1.msra.mxu0 0.0
  %3844 = vmatprep.subr.mxu0 0.0
  %3845 = vmatpush1.msra.mxu0 0.0
  %3846 = vmatprep.subr.mxu0 0.0
  %3847 = vmatpush1.msra.mxu0 0.0
  %3848 = vmatprep.subr.mxu0 0.0
  %3849 = vmatpush1.msra.mxu0 0.0
  %3850 = vmatprep.subr.mxu0 0.0
  %3851 = vmatpush1.msra.mxu0 0.0
  %3852 = vmatprep.subr.mxu0 0.0
  %3853 = vmatpush1.msra.mxu0 0.0
  %3854 = vmatprep.subr.mxu0 0.0
  %3855 = vmatpush1.msra.mxu0 0.0
  %3856 = vmatprep.subr.mxu0 0.0
  %3857 = vmatpush1.msra.mxu0 0.0
  %3858 = vmatprep.subr.mxu0 0.0
  %3859 = vmatpush1.msra.mxu0 %v3813
  %3860 = vmatprep.subr.mxu0 0.0
  %3861 = vmatpush1.msra.mxu0 %v3812
  %3862 = vmatprep.subr.mxu0 0.0
  %3863 = vmatpush1.msra.mxu0 %v3811
  %3864 = vmatprep.subr.mxu0 0.0
  %3865 = vmatpush1.msra.mxu0 %v3810
  %3866 = vmatprep.subr.mxu0 0.0
  %3867 = vmatpush2.msra.mxu0 0.0
  %3868 = vmatprep.subr.mxu0 0.0
  %3869 = vmatpush2.msra.mxu0 0.0
  %3870 = vmatprep.subr.mxu0 0.0
  %3871 = vmatpush2.msra.mxu0 0.0
  %3872 = vmatprep.subr.mxu0 0.0
  %3873 = vmatpush2.msra.mxu0 0.0
  %3874 = vmatprep.subr.mxu0 0.0
  %3875 = vmatpush2.msra.mxu0 0.0
  %3876 = vmatprep.subr.mxu0 0.0
  %3877 = vmatpush2.msra.mxu0 0.0
  %3878 = vmatprep.subr.mxu0 0.0
  %3879 = vmatpush2.msra.mxu0 0.0
  %3880 = vmatprep.subr.mxu0 0.0
  %3881 = vmatpush2.msra.mxu0 0.0
  %3882 = vmatprep.subr.mxu0 0.0
  %3883 = vmatpush2.msra.mxu0 0.0
  %3884 = vmatprep.subr.mxu0 0.0
  %3885 = vmatpush2.msra.mxu0 0.0
  %3886 = vmatprep.subr.mxu0 0.0
  %3887 = vmatpush2.msra.mxu0 0.0
  %3888 = vmatprep.subr.mxu0 0.0
  %3889 = vmatpush2.msra.mxu0 0.0
  %3890 = vmatprep.subr.mxu0 0.0
  %3891 = vmatpush2.msra.mxu0 0.0
  %3892 = vmatprep.subr.mxu0 0.0
  %3893 = vmatpush2.msra.mxu0 0.0
  %3894 = vmatprep.subr.mxu0 0.0
  %3895 = vmatpush2.msra.mxu0 0.0
  %3896 = vmatprep.subr.mxu0 0.0
  %3897 = vmatpush2.msra.mxu0 0.0
  %3898 = vmatprep.mubr.f32.mxu0 0.0
  %3899 = vmatmul.mubr.f32.gmra.mxu0 %v2894
  %v3900 = vpop.f32.mrf.mxu0
  %v3901 = vadd.f32 0.0, %v3900
  %v3902 = vpop.f32.mrf.mxu0
  %3903 = vmatprep.mubr.f32.mxu0 0.0
  %3904 = vmatmul.mubr.f32.gmra.mxu0 %v2897
  %v3905 = vpop.f32.mrf.mxu0
  %v3906 = vadd.f32 0.0, %v3905
  %v3907 = vpop.f32.mrf.mxu0
  %3908 = vmatprep.mubr.f32.mxu0 0.0
  %3909 = vmatmul.mubr.f32.gmra.mxu0 %v2900
  %v3910 = vpop.f32.mrf.mxu0
  %v3911 = vadd.f32 0.0, %v3910
  %v3912 = vpop.f32.mrf.mxu0
  %3913 = vmatprep.mubr.f32.mxu0 0.0
  %3914 = vmatmul.mubr.f32.gmra.mxu0 %v2903
  %v3915 = vpop.f32.mrf.mxu0
  %v3916 = vadd.f32 0.0, %v3915
  %v3917 = vpop.f32.mrf.mxu0
  %3918 = vmatprep.mubr.f32.mxu0 0.0
  %3919 = vmatmul.mubr.f32.gmra.mxu0 %v2906
  %v3920 = vpop.f32.mrf.mxu0
  %v3921 = vadd.f32 0.0, %v3920
  %v3922 = vpop.f32.mrf.mxu0
  %3923 = vmatprep.mubr.f32.mxu0 0.0
  %3924 = vmatmul.mubr.f32.gmra.mxu0 %v2909
  %v3925 = vpop.f32.mrf.mxu0
  %v3926 = vadd.f32 0.0, %v3925
  %v3927 = vpop.f32.mrf.mxu0
  %3928 = vmatprep.mubr.f32.mxu0 0.0
  %3929 = vmatmul.mubr.f32.gmra.mxu0 %v2912
  %v3930 = vpop.f32.mrf.mxu0
  %v3931 = vadd.f32 0.0, %v3930
  %v3932 = vpop.f32.mrf.mxu0
  %3933 = vmatprep.mubr.f32.mxu0 0.0
  %3934 = vmatmul.mubr.f32.gmra.mxu0 %v2915
  %v3935 = vpop.f32.mrf.mxu0
  %v3936 = vadd.f32 0.0, %v3935
  %v3937 = vpop.f32.mrf.mxu0
  %3938 = vmatprep.mubr.f32.mxu0 0.0
  %3939 = vmatmul.mubr.f32.gmra.mxu0 %v2918
  %v3940 = vpop.f32.mrf.mxu0
  %v3941 = vadd.f32 0.0, %v3940
  %v3942 = vpop.f32.mrf.mxu0
  %3943 = vmatprep.mubr.f32.mxu0 0.0
  %3944 = vmatmul.mubr.f32.gmra.mxu0 %v2921
  %v3945 = vpop.f32.mrf.mxu0
  %v3946 = vadd.f32 0.0, %v3945
  %v3947 = vpop.f32.mrf.mxu0
  %3948 = vmatprep.mubr.f32.mxu0 0.0
  %3949 = vmatmul.mubr.f32.gmra.mxu0 %v2924
  %v3950 = vpop.f32.mrf.mxu0
  %v3951 = vadd.f32 0.0, %v3950
  %v3952 = vpop.f32.mrf.mxu0
  %3953 = vmatprep.mubr.f32.mxu0 0.0
  %3954 = vmatmul.mubr.f32.gmra.mxu0 %v2927
  %v3955 = vpop.f32.mrf.mxu0
  %v3956 = vadd.f32 0.0, %v3955
  %v3957 = vpop.f32.mrf.mxu0
  %3958 = vmatprep.mubr.f32.mxu0 0.0
  %3959 = vmatmul.mubr.f32.gmra.mxu0 %v2930
  %v3960 = vpop.f32.mrf.mxu0
  %v3961 = vadd.f32 0.0, %v3960
  %v3962 = vpop.f32.mrf.mxu0
  %3963 = vmatprep.mubr.f32.mxu0 0.0
  %3964 = vmatmul.mubr.f32.gmra.mxu0 %v2933
  %v3965 = vpop.f32.mrf.mxu0
  %v3966 = vadd.f32 0.0, %v3965
  %v3967 = vpop.f32.mrf.mxu0
  %3968 = vmatprep.mubr.f32.mxu0 0.0
  %3969 = vmatmul.mubr.f32.gmra.mxu0 %v2936
  %v3970 = vpop.f32.mrf.mxu0
  %v3971 = vadd.f32 0.0, %v3970
  %v3972 = vpop.f32.mrf.mxu0
  %3973 = vmatprep.mubr.f32.mxu0 0.0
  %3974 = vmatmul.mubr.f32.gmra.mxu0 %v2939
  %v3975 = vpop.f32.mrf.mxu0
  %v3976 = vadd.f32 0.0, %v3975
  %v3977 = vpop.f32.mrf.mxu0
  %3978 = vdwg.mxu0
  %v3979 = vadd.f32 %v3818, %v3901
  %v3980 = vadd.f32 %v3819, %v3906
  %v3981 = vadd.f32 %v3820, %v3911
  %v3982 = vadd.f32 %v3821, %v3916
  %v3983 = vadd.f32 %v3822, %v3921
  %v3984 = vadd.f32 %v3823, %v3926
  %v3985 = vadd.f32 %v3824, %v3931
  %v3986 = vadd.f32 %v3825, %v3936
  %v3987 = vadd.f32 %v3826, %v3941
  %v3988 = vadd.f32 %v3827, %v3946
  %v3989 = vadd.f32 %v3828, %v3951
  %v3990 = vadd.f32 %v3829, %v3956
  %v3991 = vadd.f32 %v3830, %v3961
  %v3992 = vadd.f32 %v3831, %v3966
  %v3993 = vadd.f32 %v3832, %v3971
  %v3994 = vadd.f32 %v3833, %v3976
  %v3995 = vxor.u32 %v3979, 2147483648
  %v3996 = vxor.u32 %v3980, 2147483648
  %v3997 = vxor.u32 %v3981, 2147483648
  %v3998 = vxor.u32 %v3982, 2147483648
  %v3999 = vmul.f32 %v3995, 1.442695
  %v4000 = vpow.pop %v3999
  %v4001 = vmul.f32 %v3996, 1.442695
  %v4002 = vpow.pop %v4001
  %v4003 = vmul.f32 %v3997, 1.442695
  %v4004 = vpow.pop %v4003
  %v4005 = vmul.f32 %v3998, 1.442695
  %v4006 = vpow.pop %v4005
  %v4007 = vadd.f32 %v4000, 1.0
  %v4008 = vadd.f32 %v4002, 1.0
  %v4009 = vadd.f32 %v4004, 1.0
  %v4010 = vadd.f32 %v4006, 1.0
  %v4011 = vrcp.pop %v4007
  %v4012 = vmul.f32 1.0, %v4011
  %v4013 = vrcp.pop %v4008
  %v4014 = vmul.f32 1.0, %v4013
  %v4015 = vrcp.pop %v4009
  %v4016 = vmul.f32 1.0, %v4015
  %v4017 = vrcp.pop %v4010
  %v4018 = vmul.f32 1.0, %v4017
  %v4019 = vxor.u32 %v3983, 2147483648
  %v4020 = vxor.u32 %v3984, 2147483648
  %v4021 = vxor.u32 %v3985, 2147483648
  %v4022 = vxor.u32 %v3986, 2147483648
  %v4023 = vmul.f32 %v4019, 1.442695
  %v4024 = vpow.pop %v4023
  %v4025 = vmul.f32 %v4020, 1.442695
  %v4026 = vpow.pop %v4025
  %v4027 = vmul.f32 %v4021, 1.442695
  %v4028 = vpow.pop %v4027
  %v4029 = vmul.f32 %v4022, 1.442695
  %v4030 = vpow.pop %v4029
  %v4031 = vadd.f32 %v4024, 1.0
  %v4032 = vadd.f32 %v4026, 1.0
  %v4033 = vadd.f32 %v4028, 1.0
  %v4034 = vadd.f32 %v4030, 1.0
  %v4035 = vrcp.pop %v4031
  %v4036 = vmul.f32 1.0, %v4035
  %v4037 = vrcp.pop %v4032
  %v4038 = vmul.f32 1.0, %v4037
  %v4039 = vrcp.pop %v4033
  %v4040 = vmul.f32 1.0, %v4039
  %v4041 = vrcp.pop %v4034
  %v4042 = vmul.f32 1.0, %v4041
  %v4043 = vtanh.pop %v3987
  %v4044 = vtanh.pop %v3988
  %v4045 = vtanh.pop %v3989
  %v4046 = vtanh.pop %v3990
  %v4047 = vxor.u32 %v3991, 2147483648
  %v4048 = vxor.u32 %v3992, 2147483648
  %v4049 = vxor.u32 %v3993, 2147483648
  %v4050 = vxor.u32 %v3994, 2147483648
  %v4051 = vmul.f32 %v4047, 1.442695
  %v4052 = vpow.pop %v4051
  %v4053 = vmul.f32 %v4048, 1.442695
  %v4054 = vpow.pop %v4053
  %v4055 = vmul.f32 %v4049, 1.442695
  %v4056 = vpow.pop %v4055
  %v4057 = vmul.f32 %v4050, 1.442695
  %v4058 = vpow.pop %v4057
  %v4059 = vadd.f32 %v4052, 1.0
  %v4060 = vadd.f32 %v4054, 1.0
  %v4061 = vadd.f32 %v4056, 1.0
  %v4062 = vadd.f32 %v4058, 1.0
  %v4063 = vrcp.pop %v4059
  %v4064 = vmul.f32 1.0, %v4063
  %v4065 = vrcp.pop %v4060
  %v4066 = vmul.f32 1.0, %v4065
  %v4067 = vrcp.pop %v4061
  %v4068 = vmul.f32 1.0, %v4067
  %v4069 = vrcp.pop %v4062
  %v4070 = vmul.f32 1.0, %v4069
  %v4071 = vmul.f32 %v4036, %v3814
  %v4072 = vmul.f32 %v4038, %v3815
  %v4073 = vmul.f32 %v4040, %v3816
  %v4074 = vmul.f32 %v4042, %v3817
  %v4075 = vmul.f32 %v4012, %v4043
  %v4076 = vmul.f32 %v4014, %v4044
  %v4077 = vmul.f32 %v4016, %v4045
  %v4078 = vmul.f32 %v4018, %v4046
  %v4079 = vadd.f32 %v4071, %v4075
  %v4080 = vadd.f32 %v4072, %v4076
  %v4081 = vadd.f32 %v4073, %v4077
  %v4082 = vadd.f32 %v4074, %v4078
  %v4083 = vtanh.pop %v4079
  %v4084 = vtanh.pop %v4080
  %v4085 = vtanh.pop %v4081
  %v4086 = vtanh.pop %v4082
  %v4087 = vmul.f32 %v4064, %v4083
  %v4088 = vmul.f32 %v4066, %v4084
  %v4089 = vmul.f32 %v4068, %v4085
  %v4090 = vmul.f32 %v4070, %v4086
  %v4091 = vsel %vm2873, 3, 12
  %v4092 = vsel %vm2874, 3, 12
  %v4093 = vsel %vm2875, 3, 12
  %v4094 = vsel %vm2876, 3, 12
  %vm4095 = vcmp.lt.s32.totalorder %v4091, %v3205
  %vm4096 = vcmp.lt.s32.totalorder %v4092, %v3205
  %vm4097 = vcmp.lt.s32.totalorder %v4093, %v3205
  %vm4098 = vcmp.lt.s32.totalorder %v4094, %v3205
  %v4099 = vsel %vm4095, %v4087, 0.0
  %v4100 = vsel %vm4096, %v4088, 0.0
  %v4101 = vsel %vm4097, %v4089, 0.0
  %v4102 = vsel %vm4098, %v4090, 0.0
  %s4103 = scalar_lea.vmem %s5, 96
  %4104 = vst [vmem:[%s4103] sm:$0xff] %v4099
  %4105 = vst [vmem:[%s4103 + $0x8] sm:$0xff] %v4100
  %4106 = vst [vmem:[%s4103 + $0x10] sm:$0xff] %v4101
  %4107 = vst [vmem:[%s4103 + $0x18] sm:$0xff] %v4102
  %v4108 = vsel %vm4095, %v4087, %v3810
  %v4109 = vsel %vm4096, %v4088, %v3811
  %v4110 = vsel %vm4097, %v4089, %v3812
  %v4111 = vsel %vm4098, %v4090, %v3813
  %v4112 = vsel %vm4095, %v4079, %v3814
  %v4113 = vsel %vm4096, %v4080, %v3815
  %v4114 = vsel %vm4097, %v4081, %v3816
  %v4115 = vsel %vm4098, %v4082, %v3817
  %v4116 = vld [vmem:[%s1018] sm:$0xff]
  %v4117 = vld [vmem:[%s1018 + $0x8] sm:$0xff]
  %v4118 = vld [vmem:[%s1018 + $0x10] sm:$0xff]
  %v4119 = vld [vmem:[%s1018 + $0x18] sm:$0xff]
  %v4120 = vld [vmem:[%s1018 + $0x20] sm:$0xff]
  %v4121 = vld [vmem:[%s1018 + $0x28] sm:$0xff]
  %v4122 = vld [vmem:[%s1018 + $0x30] sm:$0xff]
  %v4123 = vld [vmem:[%s1018 + $0x38] sm:$0xff]
  %v4124 = vld [vmem:[%s1018 + $0x40] sm:$0xff]
  %v4125 = vld [vmem:[%s1018 + $0x48] sm:$0xff]
  %v4126 = vld [vmem:[%s1018 + $0x50] sm:$0xff]
  %v4127 = vld [vmem:[%s1018 + $0x58] sm:$0xff]
  %v4128 = vld [vmem:[%s1018 + $0x60] sm:$0xff]
  %v4129 = vld [vmem:[%s1018 + $0x68] sm:$0xff]
  %v4130 = vld [vmem:[%s1018 + $0x70] sm:$0xff]
  %v4131 = vld [vmem:[%s1018 + $0x78] sm:$0xff]
  %4132 = vmatprep.subr.mxu0 0.0
  %4133 = vmatpush1.msra.mxu0 0.0
  %4134 = vmatprep.subr.mxu0 0.0
  %4135 = vmatpush1.msra.mxu0 0.0
  %4136 = vmatprep.subr.mxu0 0.0
  %4137 = vmatpush1.msra.mxu0 0.0
  %4138 = vmatprep.subr.mxu0 0.0
  %4139 = vmatpush1.msra.mxu0 0.0
  %4140 = vmatprep.subr.mxu0 0.0
  %4141 = vmatpush1.msra.mxu0 0.0
  %4142 = vmatprep.subr.mxu0 0.0
  %4143 = vmatpush1.msra.mxu0 0.0
  %4144 = vmatprep.subr.mxu0 0.0
  %4145 = vmatpush1.msra.mxu0 0.0
  %4146 = vmatprep.subr.mxu0 0.0
  %4147 = vmatpush1.msra.mxu0 0.0
  %4148 = vmatprep.subr.mxu0 0.0
  %4149 = vmatpush1.msra.mxu0 0.0
  %4150 = vmatprep.subr.mxu0 0.0
  %4151 = vmatpush1.msra.mxu0 0.0
  %4152 = vmatprep.subr.mxu0 0.0
  %4153 = vmatpush1.msra.mxu0 0.0
  %4154 = vmatprep.subr.mxu0 0.0
  %4155 = vmatpush1.msra.mxu0 0.0
  %4156 = vmatprep.subr.mxu0 0.0
  %4157 = vmatpush1.msra.mxu0 %v4111
  %4158 = vmatprep.subr.mxu0 0.0
  %4159 = vmatpush1.msra.mxu0 %v4110
  %4160 = vmatprep.subr.mxu0 0.0
  %4161 = vmatpush1.msra.mxu0 %v4109
  %4162 = vmatprep.subr.mxu0 0.0
  %4163 = vmatpush1.msra.mxu0 %v4108
  %4164 = vmatprep.subr.mxu0 0.0
  %4165 = vmatpush2.msra.mxu0 0.0
  %4166 = vmatprep.subr.mxu0 0.0
  %4167 = vmatpush2.msra.mxu0 0.0
  %4168 = vmatprep.subr.mxu0 0.0
  %4169 = vmatpush2.msra.mxu0 0.0
  %4170 = vmatprep.subr.mxu0 0.0
  %4171 = vmatpush2.msra.mxu0 0.0
  %4172 = vmatprep.subr.mxu0 0.0
  %4173 = vmatpush2.msra.mxu0 0.0
  %4174 = vmatprep.subr.mxu0 0.0
  %4175 = vmatpush2.msra.mxu0 0.0
  %4176 = vmatprep.subr.mxu0 0.0
  %4177 = vmatpush2.msra.mxu0 0.0
  %4178 = vmatprep.subr.mxu0 0.0
  %4179 = vmatpush2.msra.mxu0 0.0
  %4180 = vmatprep.subr.mxu0 0.0
  %4181 = vmatpush2.msra.mxu0 0.0
  %4182 = vmatprep.subr.mxu0 0.0
  %4183 = vmatpush2.msra.mxu0 0.0
  %4184 = vmatprep.subr.mxu0 0.0
  %4185 = vmatpush2.msra.mxu0 0.0
  %4186 = vmatprep.subr.mxu0 0.0
  %4187 = vmatpush2.msra.mxu0 0.0
  %4188 = vmatprep.subr.mxu0 0.0
  %4189 = vmatpush2.msra.mxu0 0.0
  %4190 = vmatprep.subr.mxu0 0.0
  %4191 = vmatpush2.msra.mxu0 0.0
  %4192 = vmatprep.subr.mxu0 0.0
  %4193 = vmatpush2.msra.mxu0 0.0
  %4194 = vmatprep.subr.mxu0 0.0
  %4195 = vmatpush2.msra.mxu0 0.0
  %4196 = vmatprep.mubr.f32.mxu0 0.0
  %4197 = vmatmul.mubr.f32.gmra.mxu0 %v2894
  %v4198 = vpop.f32.mrf.mxu0
  %v4199 = vadd.f32 0.0, %v4198
  %v4200 = vpop.f32.mrf.mxu0
  %4201 = vmatprep.mubr.f32.mxu0 0.0
  %4202 = vmatmul.mubr.f32.gmra.mxu0 %v2897
  %v4203 = vpop.f32.mrf.mxu0
  %v4204 = vadd.f32 0.0, %v4203
  %v4205 = vpop.f32.mrf.mxu0
  %4206 = vmatprep.mubr.f32.mxu0 0.0
  %4207 = vmatmul.mubr.f32.gmra.mxu0 %v2900
  %v4208 = vpop.f32.mrf.mxu0
  %v4209 = vadd.f32 0.0, %v4208
  %v4210 = vpop.f32.mrf.mxu0
  %4211 = vmatprep.mubr.f32.mxu0 0.0
  %4212 = vmatmul.mubr.f32.gmra.mxu0 %v2903
  %v4213 = vpop.f32.mrf.mxu0
  %v4214 = vadd.f32 0.0, %v4213
  %v4215 = vpop.f32.mrf.mxu0
  %4216 = vmatprep.mubr.f32.mxu0 0.0
  %4217 = vmatmul.mubr.f32.gmra.mxu0 %v2906
  %v4218 = vpop.f32.mrf.mxu0
  %v4219 = vadd.f32 0.0, %v4218
  %v4220 = vpop.f32.mrf.mxu0
  %4221 = vmatprep.mubr.f32.mxu0 0.0
  %4222 = vmatmul.mubr.f32.gmra.mxu0 %v2909
  %v4223 = vpop.f32.mrf.mxu0
  %v4224 = vadd.f32 0.0, %v4223
  %v4225 = vpop.f32.mrf.mxu0
  %4226 = vmatprep.mubr.f32.mxu0 0.0
  %4227 = vmatmul.mubr.f32.gmra.mxu0 %v2912
  %v4228 = vpop.f32.mrf.mxu0
  %v4229 = vadd.f32 0.0, %v4228
  %v4230 = vpop.f32.mrf.mxu0
  %4231 = vmatprep.mubr.f32.mxu0 0.0
  %4232 = vmatmul.mubr.f32.gmra.mxu0 %v2915
  %v4233 = vpop.f32.mrf.mxu0
  %v4234 = vadd.f32 0.0, %v4233
  %v4235 = vpop.f32.mrf.mxu0
  %4236 = vmatprep.mubr.f32.mxu0 0.0
  %4237 = vmatmul.mubr.f32.gmra.mxu0 %v2918
  %v4238 = vpop.f32.mrf.mxu0
  %v4239 = vadd.f32 0.0, %v4238
  %v4240 = vpop.f32.mrf.mxu0
  %4241 = vmatprep.mubr.f32.mxu0 0.0
  %4242 = vmatmul.mubr.f32.gmra.mxu0 %v2921
  %v4243 = vpop.f32.mrf.mxu0
  %v4244 = vadd.f32 0.0, %v4243
  %v4245 = vpop.f32.mrf.mxu0
  %4246 = vmatprep.mubr.f32.mxu0 0.0
  %4247 = vmatmul.mubr.f32.gmra.mxu0 %v2924
  %v4248 = vpop.f32.mrf.mxu0
  %v4249 = vadd.f32 0.0, %v4248
  %v4250 = vpop.f32.mrf.mxu0
  %4251 = vmatprep.mubr.f32.mxu0 0.0
  %4252 = vmatmul.mubr.f32.gmra.mxu0 %v2927
  %v4253 = vpop.f32.mrf.mxu0
  %v4254 = vadd.f32 0.0, %v4253
  %v4255 = vpop.f32.mrf.mxu0
  %4256 = vmatprep.mubr.f32.mxu0 0.0
  %4257 = vmatmul.mubr.f32.gmra.mxu0 %v2930
  %v4258 = vpop.f32.mrf.mxu0
  %v4259 = vadd.f32 0.0, %v4258
  %v4260 = vpop.f32.mrf.mxu0
  %4261 = vmatprep.mubr.f32.mxu0 0.0
  %4262 = vmatmul.mubr.f32.gmra.mxu0 %v2933
  %v4263 = vpop.f32.mrf.mxu0
  %v4264 = vadd.f32 0.0, %v4263
  %v4265 = vpop.f32.mrf.mxu0
  %4266 = vmatprep.mubr.f32.mxu0 0.0
  %4267 = vmatmul.mubr.f32.gmra.mxu0 %v2936
  %v4268 = vpop.f32.mrf.mxu0
  %v4269 = vadd.f32 0.0, %v4268
  %v4270 = vpop.f32.mrf.mxu0
  %4271 = vmatprep.mubr.f32.mxu0 0.0
  %4272 = vmatmul.mubr.f32.gmra.mxu0 %v2939
  %v4273 = vpop.f32.mrf.mxu0
  %v4274 = vadd.f32 0.0, %v4273
  %v4275 = vpop.f32.mrf.mxu0
  %4276 = vdwg.mxu0
  %v4277 = vadd.f32 %v4116, %v4199
  %v4278 = vadd.f32 %v4117, %v4204
  %v4279 = vadd.f32 %v4118, %v4209
  %v4280 = vadd.f32 %v4119, %v4214
  %v4281 = vadd.f32 %v4120, %v4219
  %v4282 = vadd.f32 %v4121, %v4224
  %v4283 = vadd.f32 %v4122, %v4229
  %v4284 = vadd.f32 %v4123, %v4234
  %v4285 = vadd.f32 %v4124, %v4239
  %v4286 = vadd.f32 %v4125, %v4244
  %v4287 = vadd.f32 %v4126, %v4249
  %v4288 = vadd.f32 %v4127, %v4254
  %v4289 = vadd.f32 %v4128, %v4259
  %v4290 = vadd.f32 %v4129, %v4264
  %v4291 = vadd.f32 %v4130, %v4269
  %v4292 = vadd.f32 %v4131, %v4274
  %v4293 = vxor.u32 %v4277, 2147483648
  %v4294 = vxor.u32 %v4278, 2147483648
  %v4295 = vxor.u32 %v4279, 2147483648
  %v4296 = vxor.u32 %v4280, 2147483648
  %v4297 = vmul.f32 %v4293, 1.442695
  %v4298 = vpow.pop %v4297
  %v4299 = vmul.f32 %v4294, 1.442695
  %v4300 = vpow.pop %v4299
  %v4301 = vmul.f32 %v4295, 1.442695
  %v4302 = vpow.pop %v4301
  %v4303 = vmul.f32 %v4296, 1.442695
  %v4304 = vpow.pop %v4303
  %v4305 = vadd.f32 %v4298, 1.0
  %v4306 = vadd.f32 %v4300, 1.0
  %v4307 = vadd.f32 %v4302, 1.0
  %v4308 = vadd.f32 %v4304, 1.0
  %v4309 = vrcp.pop %v4305
  %v4310 = vmul.f32 1.0, %v4309
  %v4311 = vrcp.pop %v4306
  %v4312 = vmul.f32 1.0, %v4311
  %v4313 = vrcp.pop %v4307
  %v4314 = vmul.f32 1.0, %v4313
  %v4315 = vrcp.pop %v4308
  %v4316 = vmul.f32 1.0, %v4315
  %v4317 = vxor.u32 %v4281, 2147483648
  %v4318 = vxor.u32 %v4282, 2147483648
  %v4319 = vxor.u32 %v4283, 2147483648
  %v4320 = vxor.u32 %v4284, 2147483648
  %v4321 = vmul.f32 %v4317, 1.442695
  %v4322 = vpow.pop %v4321
  %v4323 = vmul.f32 %v4318, 1.442695
  %v4324 = vpow.pop %v4323
  %v4325 = vmul.f32 %v4319, 1.442695
  %v4326 = vpow.pop %v4325
  %v4327 = vmul.f32 %v4320, 1.442695
  %v4328 = vpow.pop %v4327
  %v4329 = vadd.f32 %v4322, 1.0
  %v4330 = vadd.f32 %v4324, 1.0
  %v4331 = vadd.f32 %v4326, 1.0
  %v4332 = vadd.f32 %v4328, 1.0
  %v4333 = vrcp.pop %v4329
  %v4334 = vmul.f32 1.0, %v4333
  %v4335 = vrcp.pop %v4330
  %v4336 = vmul.f32 1.0, %v4335
  %v4337 = vrcp.pop %v4331
  %v4338 = vmul.f32 1.0, %v4337
  %v4339 = vrcp.pop %v4332
  %v4340 = vmul.f32 1.0, %v4339
  %v4341 = vtanh.pop %v4285
  %v4342 = vtanh.pop %v4286
  %v4343 = vtanh.pop %v4287
  %v4344 = vtanh.pop %v4288
  %v4345 = vxor.u32 %v4289, 2147483648
  %v4346 = vxor.u32 %v4290, 2147483648
  %v4347 = vxor.u32 %v4291, 2147483648
  %v4348 = vxor.u32 %v4292, 2147483648
  %v4349 = vmul.f32 %v4345, 1.442695
  %v4350 = vpow.pop %v4349
  %v4351 = vmul.f32 %v4346, 1.442695
  %v4352 = vpow.pop %v4351
  %v4353 = vmul.f32 %v4347, 1.442695
  %v4354 = vpow.pop %v4353
  %v4355 = vmul.f32 %v4348, 1.442695
  %v4356 = vpow.pop %v4355
  %v4357 = vadd.f32 %v4350, 1.0
  %v4358 = vadd.f32 %v4352, 1.0
  %v4359 = vadd.f32 %v4354, 1.0
  %v4360 = vadd.f32 %v4356, 1.0
  %v4361 = vrcp.pop %v4357
  %v4362 = vmul.f32 1.0, %v4361
  %v4363 = vrcp.pop %v4358
  %v4364 = vmul.f32 1.0, %v4363
  %v4365 = vrcp.pop %v4359
  %v4366 = vmul.f32 1.0, %v4365
  %v4367 = vrcp.pop %v4360
  %v4368 = vmul.f32 1.0, %v4367
  %v4369 = vmul.f32 %v4334, %v4112
  %v4370 = vmul.f32 %v4336, %v4113
  %v4371 = vmul.f32 %v4338, %v4114
  %v4372 = vmul.f32 %v4340, %v4115
  %v4373 = vmul.f32 %v4310, %v4341
  %v4374 = vmul.f32 %v4312, %v4342
  %v4375 = vmul.f32 %v4314, %v4343
  %v4376 = vmul.f32 %v4316, %v4344
  %v4377 = vadd.f32 %v4369, %v4373
  %v4378 = vadd.f32 %v4370, %v4374
  %v4379 = vadd.f32 %v4371, %v4375
  %v4380 = vadd.f32 %v4372, %v4376
  %v4381 = vtanh.pop %v4377
  %v4382 = vtanh.pop %v4378
  %v4383 = vtanh.pop %v4379
  %v4384 = vtanh.pop %v4380
  %v4385 = vmul.f32 %v4362, %v4381
  %v4386 = vmul.f32 %v4364, %v4382
  %v4387 = vmul.f32 %v4366, %v4383
  %v4388 = vmul.f32 %v4368, %v4384
  %v4389 = vsel %vm2873, 4, 11
  %v4390 = vsel %vm2874, 4, 11
  %v4391 = vsel %vm2875, 4, 11
  %v4392 = vsel %vm2876, 4, 11
  %vm4393 = vcmp.lt.s32.totalorder %v4389, %v3205
  %vm4394 = vcmp.lt.s32.totalorder %v4390, %v3205
  %vm4395 = vcmp.lt.s32.totalorder %v4391, %v3205
  %vm4396 = vcmp.lt.s32.totalorder %v4392, %v3205
  %v4397 = vsel %vm4393, %v4385, 0.0
  %v4398 = vsel %vm4394, %v4386, 0.0
  %v4399 = vsel %vm4395, %v4387, 0.0
  %v4400 = vsel %vm4396, %v4388, 0.0
  %s4401 = scalar_lea.vmem %s5, 128
  %4402 = vst [vmem:[%s4401] sm:$0xff] %v4397
  %4403 = vst [vmem:[%s4401 + $0x8] sm:$0xff] %v4398
  %4404 = vst [vmem:[%s4401 + $0x10] sm:$0xff] %v4399
  %4405 = vst [vmem:[%s4401 + $0x18] sm:$0xff] %v4400
  %v4406 = vsel %vm4393, %v4385, %v4108
  %v4407 = vsel %vm4394, %v4386, %v4109
  %v4408 = vsel %vm4395, %v4387, %v4110
  %v4409 = vsel %vm4396, %v4388, %v4111
  %v4410 = vsel %vm4393, %v4377, %v4112
  %v4411 = vsel %vm4394, %v4378, %v4113
  %v4412 = vsel %vm4395, %v4379, %v4114
  %v4413 = vsel %vm4396, %v4380, %v4115
  %v4414 = vld [vmem:[%s1186] sm:$0xff]
  %v4415 = vld [vmem:[%s1186 + $0x8] sm:$0xff]
  %v4416 = vld [vmem:[%s1186 + $0x10] sm:$0xff]
  %v4417 = vld [vmem:[%s1186 + $0x18] sm:$0xff]
  %v4418 = vld [vmem:[%s1186 + $0x20] sm:$0xff]
  %v4419 = vld [vmem:[%s1186 + $0x28] sm:$0xff]
  %v4420 = vld [vmem:[%s1186 + $0x30] sm:$0xff]
  %v4421 = vld [vmem:[%s1186 + $0x38] sm:$0xff]
  %v4422 = vld [vmem:[%s1186 + $0x40] sm:$0xff]
  %v4423 = vld [vmem:[%s1186 + $0x48] sm:$0xff]
  %v4424 = vld [vmem:[%s1186 + $0x50] sm:$0xff]
  %v4425 = vld [vmem:[%s1186 + $0x58] sm:$0xff]
  %v4426 = vld [vmem:[%s1186 + $0x60] sm:$0xff]
  %v4427 = vld [vmem:[%s1186 + $0x68] sm:$0xff]
  %v4428 = vld [vmem:[%s1186 + $0x70] sm:$0xff]
  %v4429 = vld [vmem:[%s1186 + $0x78] sm:$0xff]
  %4430 = vmatprep.subr.mxu0 0.0
  %4431 = vmatpush1.msra.mxu0 0.0
  %4432 = vmatprep.subr.mxu0 0.0
  %4433 = vmatpush1.msra.mxu0 0.0
  %4434 = vmatprep.subr.mxu0 0.0
  %4435 = vmatpush1.msra.mxu0 0.0
  %4436 = vmatprep.subr.mxu0 0.0
  %4437 = vmatpush1.msra.mxu0 0.0
  %4438 = vmatprep.subr.mxu0 0.0
  %4439 = vmatpush1.msra.mxu0 0.0
  %4440 = vmatprep.subr.mxu0 0.0
  %4441 = vmatpush1.msra.mxu0 0.0
  %4442 = vmatprep.subr.mxu0 0.0
  %4443 = vmatpush1.msra.mxu0 0.0
  %4444 = vmatprep.subr.mxu0 0.0
  %4445 = vmatpush1.msra.mxu0 0.0
  %4446 = vmatprep.subr.mxu0 0.0
  %4447 = vmatpush1.msra.mxu0 0.0
  %4448 = vmatprep.subr.mxu0 0.0
  %4449 = vmatpush1.msra.mxu0 0.0
  %4450 = vmatprep.subr.mxu0 0.0
  %4451 = vmatpush1.msra.mxu0 0.0
  %4452 = vmatprep.subr.mxu0 0.0
  %4453 = vmatpush1.msra.mxu0 0.0
  %4454 = vmatprep.subr.mxu0 0.0
  %4455 = vmatpush1.msra.mxu0 %v4409
  %4456 = vmatprep.subr.mxu0 0.0
  %4457 = vmatpush1.msra.mxu0 %v4408
  %4458 = vmatprep.subr.mxu0 0.0
  %4459 = vmatpush1.msra.mxu0 %v4407
  %4460 = vmatprep.subr.mxu0 0.0
  %4461 = vmatpush1.msra.mxu0 %v4406
  %4462 = vmatprep.subr.mxu0 0.0
  %4463 = vmatpush2.msra.mxu0 0.0
  %4464 = vmatprep.subr.mxu0 0.0
  %4465 = vmatpush2.msra.mxu0 0.0
  %4466 = vmatprep.subr.mxu0 0.0
  %4467 = vmatpush2.msra.mxu0 0.0
  %4468 = vmatprep.subr.mxu0 0.0
  %4469 = vmatpush2.msra.mxu0 0.0
  %4470 = vmatprep.subr.mxu0 0.0
  %4471 = vmatpush2.msra.mxu0 0.0
  %4472 = vmatprep.subr.mxu0 0.0
  %4473 = vmatpush2.msra.mxu0 0.0
  %4474 = vmatprep.subr.mxu0 0.0
  %4475 = vmatpush2.msra.mxu0 0.0
  %4476 = vmatprep.subr.mxu0 0.0
  %4477 = vmatpush2.msra.mxu0 0.0
  %4478 = vmatprep.subr.mxu0 0.0
  %4479 = vmatpush2.msra.mxu0 0.0
  %4480 = vmatprep.subr.mxu0 0.0
  %4481 = vmatpush2.msra.mxu0 0.0
  %4482 = vmatprep.subr.mxu0 0.0
  %4483 = vmatpush2.msra.mxu0 0.0
  %4484 = vmatprep.subr.mxu0 0.0
  %4485 = vmatpush2.msra.mxu0 0.0
  %4486 = vmatprep.subr.mxu0 0.0
  %4487 = vmatpush2.msra.mxu0 0.0
  %4488 = vmatprep.subr.mxu0 0.0
  %4489 = vmatpush2.msra.mxu0 0.0
  %4490 = vmatprep.subr.mxu0 0.0
  %4491 = vmatpush2.msra.mxu0 0.0
  %4492 = vmatprep.subr.mxu0 0.0
  %4493 = vmatpush2.msra.mxu0 0.0
  %4494 = vmatprep.mubr.f32.mxu0 0.0
  %4495 = vmatmul.mubr.f32.gmra.mxu0 %v2894
  %v4496 = vpop.f32.mrf.mxu0
  %v4497 = vadd.f32 0.0, %v4496
  %v4498 = vpop.f32.mrf.mxu0
  %4499 = vmatprep.mubr.f32.mxu0 0.0
  %4500 = vmatmul.mubr.f32.gmra.mxu0 %v2897
  %v4501 = vpop.f32.mrf.mxu0
  %v4502 = vadd.f32 0.0, %v4501
  %v4503 = vpop.f32.mrf.mxu0
  %4504 = vmatprep.mubr.f32.mxu0 0.0
  %4505 = vmatmul.mubr.f32.gmra.mxu0 %v2900
  %v4506 = vpop.f32.mrf.mxu0
  %v4507 = vadd.f32 0.0, %v4506
  %v4508 = vpop.f32.mrf.mxu0
  %4509 = vmatprep.mubr.f32.mxu0 0.0
  %4510 = vmatmul.mubr.f32.gmra.mxu0 %v2903
  %v4511 = vpop.f32.mrf.mxu0
  %v4512 = vadd.f32 0.0, %v4511
  %v4513 = vpop.f32.mrf.mxu0
  %4514 = vmatprep.mubr.f32.mxu0 0.0
  %4515 = vmatmul.mubr.f32.gmra.mxu0 %v2906
  %v4516 = vpop.f32.mrf.mxu0
  %v4517 = vadd.f32 0.0, %v4516
  %v4518 = vpop.f32.mrf.mxu0
  %4519 = vmatprep.mubr.f32.mxu0 0.0
  %4520 = vmatmul.mubr.f32.gmra.mxu0 %v2909
  %v4521 = vpop.f32.mrf.mxu0
  %v4522 = vadd.f32 0.0, %v4521
  %v4523 = vpop.f32.mrf.mxu0
  %4524 = vmatprep.mubr.f32.mxu0 0.0
  %4525 = vmatmul.mubr.f32.gmra.mxu0 %v2912
  %v4526 = vpop.f32.mrf.mxu0
  %v4527 = vadd.f32 0.0, %v4526
  %v4528 = vpop.f32.mrf.mxu0
  %4529 = vmatprep.mubr.f32.mxu0 0.0
  %4530 = vmatmul.mubr.f32.gmra.mxu0 %v2915
  %v4531 = vpop.f32.mrf.mxu0
  %v4532 = vadd.f32 0.0, %v4531
  %v4533 = vpop.f32.mrf.mxu0
  %4534 = vmatprep.mubr.f32.mxu0 0.0
  %4535 = vmatmul.mubr.f32.gmra.mxu0 %v2918
  %v4536 = vpop.f32.mrf.mxu0
  %v4537 = vadd.f32 0.0, %v4536
  %v4538 = vpop.f32.mrf.mxu0
  %4539 = vmatprep.mubr.f32.mxu0 0.0
  %4540 = vmatmul.mubr.f32.gmra.mxu0 %v2921
  %v4541 = vpop.f32.mrf.mxu0
  %v4542 = vadd.f32 0.0, %v4541
  %v4543 = vpop.f32.mrf.mxu0
  %4544 = vmatprep.mubr.f32.mxu0 0.0
  %4545 = vmatmul.mubr.f32.gmra.mxu0 %v2924
  %v4546 = vpop.f32.mrf.mxu0
  %v4547 = vadd.f32 0.0, %v4546
  %v4548 = vpop.f32.mrf.mxu0
  %4549 = vmatprep.mubr.f32.mxu0 0.0
  %4550 = vmatmul.mubr.f32.gmra.mxu0 %v2927
  %v4551 = vpop.f32.mrf.mxu0
  %v4552 = vadd.f32 0.0, %v4551
  %v4553 = vpop.f32.mrf.mxu0
  %4554 = vmatprep.mubr.f32.mxu0 0.0
  %4555 = vmatmul.mubr.f32.gmra.mxu0 %v2930
  %v4556 = vpop.f32.mrf.mxu0
  %v4557 = vadd.f32 0.0, %v4556
  %v4558 = vpop.f32.mrf.mxu0
  %4559 = vmatprep.mubr.f32.mxu0 0.0
  %4560 = vmatmul.mubr.f32.gmra.mxu0 %v2933
  %v4561 = vpop.f32.mrf.mxu0
  %v4562 = vadd.f32 0.0, %v4561
  %v4563 = vpop.f32.mrf.mxu0
  %4564 = vmatprep.mubr.f32.mxu0 0.0
  %4565 = vmatmul.mubr.f32.gmra.mxu0 %v2936
  %v4566 = vpop.f32.mrf.mxu0
  %v4567 = vadd.f32 0.0, %v4566
  %v4568 = vpop.f32.mrf.mxu0
  %4569 = vmatprep.mubr.f32.mxu0 0.0
  %4570 = vmatmul.mubr.f32.gmra.mxu0 %v2939
  %v4571 = vpop.f32.mrf.mxu0
  %v4572 = vadd.f32 0.0, %v4571
  %v4573 = vpop.f32.mrf.mxu0
  %4574 = vdwg.mxu0
  %v4575 = vadd.f32 %v4414, %v4497
  %v4576 = vadd.f32 %v4415, %v4502
  %v4577 = vadd.f32 %v4416, %v4507
  %v4578 = vadd.f32 %v4417, %v4512
  %v4579 = vadd.f32 %v4418, %v4517
  %v4580 = vadd.f32 %v4419, %v4522
  %v4581 = vadd.f32 %v4420, %v4527
  %v4582 = vadd.f32 %v4421, %v4532
  %v4583 = vadd.f32 %v4422, %v4537
  %v4584 = vadd.f32 %v4423, %v4542
  %v4585 = vadd.f32 %v4424, %v4547
  %v4586 = vadd.f32 %v4425, %v4552
  %v4587 = vadd.f32 %v4426, %v4557
  %v4588 = vadd.f32 %v4427, %v4562
  %v4589 = vadd.f32 %v4428, %v4567
  %v4590 = vadd.f32 %v4429, %v4572
  %v4591 = vxor.u32 %v4575, 2147483648
  %v4592 = vxor.u32 %v4576, 2147483648
  %v4593 = vxor.u32 %v4577, 2147483648
  %v4594 = vxor.u32 %v4578, 2147483648
  %v4595 = vmul.f32 %v4591, 1.442695
  %v4596 = vpow.pop %v4595
  %v4597 = vmul.f32 %v4592, 1.442695
  %v4598 = vpow.pop %v4597
  %v4599 = vmul.f32 %v4593, 1.442695
  %v4600 = vpow.pop %v4599
  %v4601 = vmul.f32 %v4594, 1.442695
  %v4602 = vpow.pop %v4601
  %v4603 = vadd.f32 %v4596, 1.0
  %v4604 = vadd.f32 %v4598, 1.0
  %v4605 = vadd.f32 %v4600, 1.0
  %v4606 = vadd.f32 %v4602, 1.0
  %v4607 = vrcp.pop %v4603
  %v4608 = vmul.f32 1.0, %v4607
  %v4609 = vrcp.pop %v4604
  %v4610 = vmul.f32 1.0, %v4609
  %v4611 = vrcp.pop %v4605
  %v4612 = vmul.f32 1.0, %v4611
  %v4613 = vrcp.pop %v4606
  %v4614 = vmul.f32 1.0, %v4613
  %v4615 = vxor.u32 %v4579, 2147483648
  %v4616 = vxor.u32 %v4580, 2147483648
  %v4617 = vxor.u32 %v4581, 2147483648
  %v4618 = vxor.u32 %v4582, 2147483648
  %v4619 = vmul.f32 %v4615, 1.442695
  %v4620 = vpow.pop %v4619
  %v4621 = vmul.f32 %v4616, 1.442695
  %v4622 = vpow.pop %v4621
  %v4623 = vmul.f32 %v4617, 1.442695
  %v4624 = vpow.pop %v4623
  %v4625 = vmul.f32 %v4618, 1.442695
  %v4626 = vpow.pop %v4625
  %v4627 = vadd.f32 %v4620, 1.0
  %v4628 = vadd.f32 %v4622, 1.0
  %v4629 = vadd.f32 %v4624, 1.0
  %v4630 = vadd.f32 %v4626, 1.0
  %v4631 = vrcp.pop %v4627
  %v4632 = vmul.f32 1.0, %v4631
  %v4633 = vrcp.pop %v4628
  %v4634 = vmul.f32 1.0, %v4633
  %v4635 = vrcp.pop %v4629
  %v4636 = vmul.f32 1.0, %v4635
  %v4637 = vrcp.pop %v4630
  %v4638 = vmul.f32 1.0, %v4637
  %v4639 = vtanh.pop %v4583
  %v4640 = vtanh.pop %v4584
  %v4641 = vtanh.pop %v4585
  %v4642 = vtanh.pop %v4586
  %v4643 = vxor.u32 %v4587, 2147483648
  %v4644 = vxor.u32 %v4588, 2147483648
  %v4645 = vxor.u32 %v4589, 2147483648
  %v4646 = vxor.u32 %v4590, 2147483648
  %v4647 = vmul.f32 %v4643, 1.442695
  %v4648 = vpow.pop %v4647
  %v4649 = vmul.f32 %v4644, 1.442695
  %v4650 = vpow.pop %v4649
  %v4651 = vmul.f32 %v4645, 1.442695
  %v4652 = vpow.pop %v4651
  %v4653 = vmul.f32 %v4646, 1.442695
  %v4654 = vpow.pop %v4653
  %v4655 = vadd.f32 %v4648, 1.0
  %v4656 = vadd.f32 %v4650, 1.0
  %v4657 = vadd.f32 %v4652, 1.0
  %v4658 = vadd.f32 %v4654, 1.0
  %v4659 = vrcp.pop %v4655
  %v4660 = vmul.f32 1.0, %v4659
  %v4661 = vrcp.pop %v4656
  %v4662 = vmul.f32 1.0, %v4661
  %v4663 = vrcp.pop %v4657
  %v4664 = vmul.f32 1.0, %v4663
  %v4665 = vrcp.pop %v4658
  %v4666 = vmul.f32 1.0, %v4665
  %v4667 = vmul.f32 %v4632, %v4410
  %v4668 = vmul.f32 %v4634, %v4411
  %v4669 = vmul.f32 %v4636, %v4412
  %v4670 = vmul.f32 %v4638, %v4413
  %v4671 = vmul.f32 %v4608, %v4639
  %v4672 = vmul.f32 %v4610, %v4640
  %v4673 = vmul.f32 %v4612, %v4641
  %v4674 = vmul.f32 %v4614, %v4642
  %v4675 = vadd.f32 %v4667, %v4671
  %v4676 = vadd.f32 %v4668, %v4672
  %v4677 = vadd.f32 %v4669, %v4673
  %v4678 = vadd.f32 %v4670, %v4674
  %v4679 = vtanh.pop %v4675
  %v4680 = vtanh.pop %v4676
  %v4681 = vtanh.pop %v4677
  %v4682 = vtanh.pop %v4678
  %v4683 = vmul.f32 %v4660, %v4679
  %v4684 = vmul.f32 %v4662, %v4680
  %v4685 = vmul.f32 %v4664, %v4681
  %v4686 = vmul.f32 %v4666, %v4682
  %v4687 = vsel %vm2873, 5, 10
  %v4688 = vsel %vm2874, 5, 10
  %v4689 = vsel %vm2875, 5, 10
  %v4690 = vsel %vm2876, 5, 10
  %vm4691 = vcmp.lt.s32.totalorder %v4687, %v3205
  %vm4692 = vcmp.lt.s32.totalorder %v4688, %v3205
  %vm4693 = vcmp.lt.s32.totalorder %v4689, %v3205
  %vm4694 = vcmp.lt.s32.totalorder %v4690, %v3205
  %v4695 = vsel %vm4691, %v4683, 0.0
  %v4696 = vsel %vm4692, %v4684, 0.0
  %v4697 = vsel %vm4693, %v4685, 0.0
  %v4698 = vsel %vm4694, %v4686, 0.0
  %s4699 = scalar_lea.vmem %s5, 160
  %4700 = vst [vmem:[%s4699] sm:$0xff] %v4695
  %4701 = vst [vmem:[%s4699 + $0x8] sm:$0xff] %v4696
  %4702 = vst [vmem:[%s4699 + $0x10] sm:$0xff] %v4697
  %4703 = vst [vmem:[%s4699 + $0x18] sm:$0xff] %v4698
  %v4704 = vsel %vm4691, %v4683, %v4406
  %v4705 = vsel %vm4692, %v4684, %v4407
  %v4706 = vsel %vm4693, %v4685, %v4408
  %v4707 = vsel %vm4694, %v4686, %v4409
  %v4708 = vsel %vm4691, %v4675, %v4410
  %v4709 = vsel %vm4692, %v4676, %v4411
  %v4710 = vsel %vm4693, %v4677, %v4412
  %v4711 = vsel %vm4694, %v4678, %v4413
  %v4712 = vld [vmem:[%s1354] sm:$0xff]
  %v4713 = vld [vmem:[%s1354 + $0x8] sm:$0xff]
  %v4714 = vld [vmem:[%s1354 + $0x10] sm:$0xff]
  %v4715 = vld [vmem:[%s1354 + $0x18] sm:$0xff]
  %v4716 = vld [vmem:[%s1354 + $0x20] sm:$0xff]
  %v4717 = vld [vmem:[%s1354 + $0x28] sm:$0xff]
  %v4718 = vld [vmem:[%s1354 + $0x30] sm:$0xff]
  %v4719 = vld [vmem:[%s1354 + $0x38] sm:$0xff]
  %v4720 = vld [vmem:[%s1354 + $0x40] sm:$0xff]
  %v4721 = vld [vmem:[%s1354 + $0x48] sm:$0xff]
  %v4722 = vld [vmem:[%s1354 + $0x50] sm:$0xff]
  %v4723 = vld [vmem:[%s1354 + $0x58] sm:$0xff]
  %v4724 = vld [vmem:[%s1354 + $0x60] sm:$0xff]
  %v4725 = vld [vmem:[%s1354 + $0x68] sm:$0xff]
  %v4726 = vld [vmem:[%s1354 + $0x70] sm:$0xff]
  %v4727 = vld [vmem:[%s1354 + $0x78] sm:$0xff]
  %4728 = vmatprep.subr.mxu0 0.0
  %4729 = vmatpush1.msra.mxu0 0.0
  %4730 = vmatprep.subr.mxu0 0.0
  %4731 = vmatpush1.msra.mxu0 0.0
  %4732 = vmatprep.subr.mxu0 0.0
  %4733 = vmatpush1.msra.mxu0 0.0
  %4734 = vmatprep.subr.mxu0 0.0
  %4735 = vmatpush1.msra.mxu0 0.0
  %4736 = vmatprep.subr.mxu0 0.0
  %4737 = vmatpush1.msra.mxu0 0.0
  %4738 = vmatprep.subr.mxu0 0.0
  %4739 = vmatpush1.msra.mxu0 0.0
  %4740 = vmatprep.subr.mxu0 0.0
  %4741 = vmatpush1.msra.mxu0 0.0
  %4742 = vmatprep.subr.mxu0 0.0
  %4743 = vmatpush1.msra.mxu0 0.0
  %4744 = vmatprep.subr.mxu0 0.0
  %4745 = vmatpush1.msra.mxu0 0.0
  %4746 = vmatprep.subr.mxu0 0.0
  %4747 = vmatpush1.msra.mxu0 0.0
  %4748 = vmatprep.subr.mxu0 0.0
  %4749 = vmatpush1.msra.mxu0 0.0
  %4750 = vmatprep.subr.mxu0 0.0
  %4751 = vmatpush1.msra.mxu0 0.0
  %4752 = vmatprep.subr.mxu0 0.0
  %4753 = vmatpush1.msra.mxu0 %v4707
  %4754 = vmatprep.subr.mxu0 0.0
  %4755 = vmatpush1.msra.mxu0 %v4706
  %4756 = vmatprep.subr.mxu0 0.0
  %4757 = vmatpush1.msra.mxu0 %v4705
  %4758 = vmatprep.subr.mxu0 0.0
  %4759 = vmatpush1.msra.mxu0 %v4704
  %4760 = vmatprep.subr.mxu0 0.0
  %4761 = vmatpush2.msra.mxu0 0.0
  %4762 = vmatprep.subr.mxu0 0.0
  %4763 = vmatpush2.msra.mxu0 0.0
  %4764 = vmatprep.subr.mxu0 0.0
  %4765 = vmatpush2.msra.mxu0 0.0
  %4766 = vmatprep.subr.mxu0 0.0
  %4767 = vmatpush2.msra.mxu0 0.0
  %4768 = vmatprep.subr.mxu0 0.0
  %4769 = vmatpush2.msra.mxu0 0.0
  %4770 = vmatprep.subr.mxu0 0.0
  %4771 = vmatpush2.msra.mxu0 0.0
  %4772 = vmatprep.subr.mxu0 0.0
  %4773 = vmatpush2.msra.mxu0 0.0
  %4774 = vmatprep.subr.mxu0 0.0
  %4775 = vmatpush2.msra.mxu0 0.0
  %4776 = vmatprep.subr.mxu0 0.0
  %4777 = vmatpush2.msra.mxu0 0.0
  %4778 = vmatprep.subr.mxu0 0.0
  %4779 = vmatpush2.msra.mxu0 0.0
  %4780 = vmatprep.subr.mxu0 0.0
  %4781 = vmatpush2.msra.mxu0 0.0
  %4782 = vmatprep.subr.mxu0 0.0
  %4783 = vmatpush2.msra.mxu0 0.0
  %4784 = vmatprep.subr.mxu0 0.0
  %4785 = vmatpush2.msra.mxu0 0.0
  %4786 = vmatprep.subr.mxu0 0.0
  %4787 = vmatpush2.msra.mxu0 0.0
  %4788 = vmatprep.subr.mxu0 0.0
  %4789 = vmatpush2.msra.mxu0 0.0
  %4790 = vmatprep.subr.mxu0 0.0
  %4791 = vmatpush2.msra.mxu0 0.0
  %4792 = vmatprep.mubr.f32.mxu0 0.0
  %4793 = vmatmul.mubr.f32.gmra.mxu0 %v2894
  %v4794 = vpop.f32.mrf.mxu0
  %v4795 = vadd.f32 0.0, %v4794
  %v4796 = vpop.f32.mrf.mxu0
  %4797 = vmatprep.mubr.f32.mxu0 0.0
  %4798 = vmatmul.mubr.f32.gmra.mxu0 %v2897
  %v4799 = vpop.f32.mrf.mxu0
  %v4800 = vadd.f32 0.0, %v4799
  %v4801 = vpop.f32.mrf.mxu0
  %4802 = vmatprep.mubr.f32.mxu0 0.0
  %4803 = vmatmul.mubr.f32.gmra.mxu0 %v2900
  %v4804 = vpop.f32.mrf.mxu0
  %v4805 = vadd.f32 0.0, %v4804
  %v4806 = vpop.f32.mrf.mxu0
  %4807 = vmatprep.mubr.f32.mxu0 0.0
  %4808 = vmatmul.mubr.f32.gmra.mxu0 %v2903
  %v4809 = vpop.f32.mrf.mxu0
  %v4810 = vadd.f32 0.0, %v4809
  %v4811 = vpop.f32.mrf.mxu0
  %4812 = vmatprep.mubr.f32.mxu0 0.0
  %4813 = vmatmul.mubr.f32.gmra.mxu0 %v2906
  %v4814 = vpop.f32.mrf.mxu0
  %v4815 = vadd.f32 0.0, %v4814
  %v4816 = vpop.f32.mrf.mxu0
  %4817 = vmatprep.mubr.f32.mxu0 0.0
  %4818 = vmatmul.mubr.f32.gmra.mxu0 %v2909
  %v4819 = vpop.f32.mrf.mxu0
  %v4820 = vadd.f32 0.0, %v4819
  %v4821 = vpop.f32.mrf.mxu0
  %4822 = vmatprep.mubr.f32.mxu0 0.0
  %4823 = vmatmul.mubr.f32.gmra.mxu0 %v2912
  %v4824 = vpop.f32.mrf.mxu0
  %v4825 = vadd.f32 0.0, %v4824
  %v4826 = vpop.f32.mrf.mxu0
  %4827 = vmatprep.mubr.f32.mxu0 0.0
  %4828 = vmatmul.mubr.f32.gmra.mxu0 %v2915
  %v4829 = vpop.f32.mrf.mxu0
  %v4830 = vadd.f32 0.0, %v4829
  %v4831 = vpop.f32.mrf.mxu0
  %4832 = vmatprep.mubr.f32.mxu0 0.0
  %4833 = vmatmul.mubr.f32.gmra.mxu0 %v2918
  %v4834 = vpop.f32.mrf.mxu0
  %v4835 = vadd.f32 0.0, %v4834
  %v4836 = vpop.f32.mrf.mxu0
  %4837 = vmatprep.mubr.f32.mxu0 0.0
  %4838 = vmatmul.mubr.f32.gmra.mxu0 %v2921
  %v4839 = vpop.f32.mrf.mxu0
  %v4840 = vadd.f32 0.0, %v4839
  %v4841 = vpop.f32.mrf.mxu0
  %4842 = vmatprep.mubr.f32.mxu0 0.0
  %4843 = vmatmul.mubr.f32.gmra.mxu0 %v2924
  %v4844 = vpop.f32.mrf.mxu0
  %v4845 = vadd.f32 0.0, %v4844
  %v4846 = vpop.f32.mrf.mxu0
  %4847 = vmatprep.mubr.f32.mxu0 0.0
  %4848 = vmatmul.mubr.f32.gmra.mxu0 %v2927
  %v4849 = vpop.f32.mrf.mxu0
  %v4850 = vadd.f32 0.0, %v4849
  %v4851 = vpop.f32.mrf.mxu0
  %4852 = vmatprep.mubr.f32.mxu0 0.0
  %4853 = vmatmul.mubr.f32.gmra.mxu0 %v2930
  %v4854 = vpop.f32.mrf.mxu0
  %v4855 = vadd.f32 0.0, %v4854
  %v4856 = vpop.f32.mrf.mxu0
  %4857 = vmatprep.mubr.f32.mxu0 0.0
  %4858 = vmatmul.mubr.f32.gmra.mxu0 %v2933
  %v4859 = vpop.f32.mrf.mxu0
  %v4860 = vadd.f32 0.0, %v4859
  %v4861 = vpop.f32.mrf.mxu0
  %4862 = vmatprep.mubr.f32.mxu0 0.0
  %4863 = vmatmul.mubr.f32.gmra.mxu0 %v2936
  %v4864 = vpop.f32.mrf.mxu0
  %v4865 = vadd.f32 0.0, %v4864
  %v4866 = vpop.f32.mrf.mxu0
  %4867 = vmatprep.mubr.f32.mxu0 0.0
  %4868 = vmatmul.mubr.f32.gmra.mxu0 %v2939
  %v4869 = vpop.f32.mrf.mxu0
  %v4870 = vadd.f32 0.0, %v4869
  %v4871 = vpop.f32.mrf.mxu0
  %4872 = vdwg.mxu0
  %v4873 = vadd.f32 %v4712, %v4795
  %v4874 = vadd.f32 %v4713, %v4800
  %v4875 = vadd.f32 %v4714, %v4805
  %v4876 = vadd.f32 %v4715, %v4810
  %v4877 = vadd.f32 %v4716, %v4815
  %v4878 = vadd.f32 %v4717, %v4820
  %v4879 = vadd.f32 %v4718, %v4825
  %v4880 = vadd.f32 %v4719, %v4830
  %v4881 = vadd.f32 %v4720, %v4835
  %v4882 = vadd.f32 %v4721, %v4840
  %v4883 = vadd.f32 %v4722, %v4845
  %v4884 = vadd.f32 %v4723, %v4850
  %v4885 = vadd.f32 %v4724, %v4855
  %v4886 = vadd.f32 %v4725, %v4860
  %v4887 = vadd.f32 %v4726, %v4865
  %v4888 = vadd.f32 %v4727, %v4870
  %v4889 = vxor.u32 %v4873, 2147483648
  %v4890 = vxor.u32 %v4874, 2147483648
  %v4891 = vxor.u32 %v4875, 2147483648
  %v4892 = vxor.u32 %v4876, 2147483648
  %v4893 = vmul.f32 %v4889, 1.442695
  %v4894 = vpow.pop %v4893
  %v4895 = vmul.f32 %v4890, 1.442695
  %v4896 = vpow.pop %v4895
  %v4897 = vmul.f32 %v4891, 1.442695
  %v4898 = vpow.pop %v4897
  %v4899 = vmul.f32 %v4892, 1.442695
  %v4900 = vpow.pop %v4899
  %v4901 = vadd.f32 %v4894, 1.0
  %v4902 = vadd.f32 %v4896, 1.0
  %v4903 = vadd.f32 %v4898, 1.0
  %v4904 = vadd.f32 %v4900, 1.0
  %v4905 = vrcp.pop %v4901
  %v4906 = vmul.f32 1.0, %v4905
  %v4907 = vrcp.pop %v4902
  %v4908 = vmul.f32 1.0, %v4907
  %v4909 = vrcp.pop %v4903
  %v4910 = vmul.f32 1.0, %v4909
  %v4911 = vrcp.pop %v4904
  %v4912 = vmul.f32 1.0, %v4911
  %v4913 = vxor.u32 %v4877, 2147483648
  %v4914 = vxor.u32 %v4878, 2147483648
  %v4915 = vxor.u32 %v4879, 2147483648
  %v4916 = vxor.u32 %v4880, 2147483648
  %v4917 = vmul.f32 %v4913, 1.442695
  %v4918 = vpow.pop %v4917
  %v4919 = vmul.f32 %v4914, 1.442695
  %v4920 = vpow.pop %v4919
  %v4921 = vmul.f32 %v4915, 1.442695
  %v4922 = vpow.pop %v4921
  %v4923 = vmul.f32 %v4916, 1.442695
  %v4924 = vpow.pop %v4923
  %v4925 = vadd.f32 %v4918, 1.0
  %v4926 = vadd.f32 %v4920, 1.0
  %v4927 = vadd.f32 %v4922, 1.0
  %v4928 = vadd.f32 %v4924, 1.0
  %v4929 = vrcp.pop %v4925
  %v4930 = vmul.f32 1.0, %v4929
  %v4931 = vrcp.pop %v4926
  %v4932 = vmul.f32 1.0, %v4931
  %v4933 = vrcp.pop %v4927
  %v4934 = vmul.f32 1.0, %v4933
  %v4935 = vrcp.pop %v4928
  %v4936 = vmul.f32 1.0, %v4935
  %v4937 = vtanh.pop %v4881
  %v4938 = vtanh.pop %v4882
  %v4939 = vtanh.pop %v4883
  %v4940 = vtanh.pop %v4884
  %v4941 = vxor.u32 %v4885, 2147483648
  %v4942 = vxor.u32 %v4886, 2147483648
  %v4943 = vxor.u32 %v4887, 2147483648
  %v4944 = vxor.u32 %v4888, 2147483648
  %v4945 = vmul.f32 %v4941, 1.442695
  %v4946 = vpow.pop %v4945
  %v4947 = vmul.f32 %v4942, 1.442695
  %v4948 = vpow.pop %v4947
  %v4949 = vmul.f32 %v4943, 1.442695
  %v4950 = vpow.pop %v4949
  %v4951 = vmul.f32 %v4944, 1.442695
  %v4952 = vpow.pop %v4951
  %v4953 = vadd.f32 %v4946, 1.0
  %v4954 = vadd.f32 %v4948, 1.0
  %v4955 = vadd.f32 %v4950, 1.0
  %v4956 = vadd.f32 %v4952, 1.0
  %v4957 = vrcp.pop %v4953
  %v4958 = vmul.f32 1.0, %v4957
  %v4959 = vrcp.pop %v4954
  %v4960 = vmul.f32 1.0, %v4959
  %v4961 = vrcp.pop %v4955
  %v4962 = vmul.f32 1.0, %v4961
  %v4963 = vrcp.pop %v4956
  %v4964 = vmul.f32 1.0, %v4963
  %v4965 = vmul.f32 %v4930, %v4708
  %v4966 = vmul.f32 %v4932, %v4709
  %v4967 = vmul.f32 %v4934, %v4710
  %v4968 = vmul.f32 %v4936, %v4711
  %v4969 = vmul.f32 %v4906, %v4937
  %v4970 = vmul.f32 %v4908, %v4938
  %v4971 = vmul.f32 %v4910, %v4939
  %v4972 = vmul.f32 %v4912, %v4940
  %v4973 = vadd.f32 %v4965, %v4969
  %v4974 = vadd.f32 %v4966, %v4970
  %v4975 = vadd.f32 %v4967, %v4971
  %v4976 = vadd.f32 %v4968, %v4972
  %v4977 = vtanh.pop %v4973
  %v4978 = vtanh.pop %v4974
  %v4979 = vtanh.pop %v4975
  %v4980 = vtanh.pop %v4976
  %v4981 = vmul.f32 %v4958, %v4977
  %v4982 = vmul.f32 %v4960, %v4978
  %v4983 = vmul.f32 %v4962, %v4979
  %v4984 = vmul.f32 %v4964, %v4980
  %v4985 = vsel %vm2873, 6, 9
  %v4986 = vsel %vm2874, 6, 9
  %v4987 = vsel %vm2875, 6, 9
  %v4988 = vsel %vm2876, 6, 9
  %vm4989 = vcmp.lt.s32.totalorder %v4985, %v3205
  %vm4990 = vcmp.lt.s32.totalorder %v4986, %v3205
  %vm4991 = vcmp.lt.s32.totalorder %v4987, %v3205
  %vm4992 = vcmp.lt.s32.totalorder %v4988, %v3205
  %v4993 = vsel %vm4989, %v4981, 0.0
  %v4994 = vsel %vm4990, %v4982, 0.0
  %v4995 = vsel %vm4991, %v4983, 0.0
  %v4996 = vsel %vm4992, %v4984, 0.0
  %s4997 = scalar_lea.vmem %s5, 192
  %4998 = vst [vmem:[%s4997] sm:$0xff] %v4993
  %4999 = vst [vmem:[%s4997 + $0x8] sm:$0xff] %v4994
  %5000 = vst [vmem:[%s4997 + $0x10] sm:$0xff] %v4995
  %5001 = vst [vmem:[%s4997 + $0x18] sm:$0xff] %v4996
  %v5002 = vsel %vm4989, %v4981, %v4704
  %v5003 = vsel %vm4990, %v4982, %v4705
  %v5004 = vsel %vm4991, %v4983, %v4706
  %v5005 = vsel %vm4992, %v4984, %v4707
  %v5006 = vsel %vm4989, %v4973, %v4708
  %v5007 = vsel %vm4990, %v4974, %v4709
  %v5008 = vsel %vm4991, %v4975, %v4710
  %v5009 = vsel %vm4992, %v4976, %v4711
  %v5010 = vld [vmem:[%s1522] sm:$0xff]
  %v5011 = vld [vmem:[%s1522 + $0x8] sm:$0xff]
  %v5012 = vld [vmem:[%s1522 + $0x10] sm:$0xff]
  %v5013 = vld [vmem:[%s1522 + $0x18] sm:$0xff]
  %v5014 = vld [vmem:[%s1522 + $0x20] sm:$0xff]
  %v5015 = vld [vmem:[%s1522 + $0x28] sm:$0xff]
  %v5016 = vld [vmem:[%s1522 + $0x30] sm:$0xff]
  %v5017 = vld [vmem:[%s1522 + $0x38] sm:$0xff]
  %v5018 = vld [vmem:[%s1522 + $0x40] sm:$0xff]
  %v5019 = vld [vmem:[%s1522 + $0x48] sm:$0xff]
  %v5020 = vld [vmem:[%s1522 + $0x50] sm:$0xff]
  %v5021 = vld [vmem:[%s1522 + $0x58] sm:$0xff]
  %v5022 = vld [vmem:[%s1522 + $0x60] sm:$0xff]
  %v5023 = vld [vmem:[%s1522 + $0x68] sm:$0xff]
  %v5024 = vld [vmem:[%s1522 + $0x70] sm:$0xff]
  %v5025 = vld [vmem:[%s1522 + $0x78] sm:$0xff]
  %5026 = vmatprep.subr.mxu0 0.0
  %5027 = vmatpush1.msra.mxu0 0.0
  %5028 = vmatprep.subr.mxu0 0.0
  %5029 = vmatpush1.msra.mxu0 0.0
  %5030 = vmatprep.subr.mxu0 0.0
  %5031 = vmatpush1.msra.mxu0 0.0
  %5032 = vmatprep.subr.mxu0 0.0
  %5033 = vmatpush1.msra.mxu0 0.0
  %5034 = vmatprep.subr.mxu0 0.0
  %5035 = vmatpush1.msra.mxu0 0.0
  %5036 = vmatprep.subr.mxu0 0.0
  %5037 = vmatpush1.msra.mxu0 0.0
  %5038 = vmatprep.subr.mxu0 0.0
  %5039 = vmatpush1.msra.mxu0 0.0
  %5040 = vmatprep.subr.mxu0 0.0
  %5041 = vmatpush1.msra.mxu0 0.0
  %5042 = vmatprep.subr.mxu0 0.0
  %5043 = vmatpush1.msra.mxu0 0.0
  %5044 = vmatprep.subr.mxu0 0.0
  %5045 = vmatpush1.msra.mxu0 0.0
  %5046 = vmatprep.subr.mxu0 0.0
  %5047 = vmatpush1.msra.mxu0 0.0
  %5048 = vmatprep.subr.mxu0 0.0
  %5049 = vmatpush1.msra.mxu0 0.0
  %5050 = vmatprep.subr.mxu0 0.0
  %5051 = vmatpush1.msra.mxu0 %v5005
  %5052 = vmatprep.subr.mxu0 0.0
  %5053 = vmatpush1.msra.mxu0 %v5004
  %5054 = vmatprep.subr.mxu0 0.0
  %5055 = vmatpush1.msra.mxu0 %v5003
  %5056 = vmatprep.subr.mxu0 0.0
  %5057 = vmatpush1.msra.mxu0 %v5002
  %5058 = vmatprep.subr.mxu0 0.0
  %5059 = vmatpush2.msra.mxu0 0.0
  %5060 = vmatprep.subr.mxu0 0.0
  %5061 = vmatpush2.msra.mxu0 0.0
  %5062 = vmatprep.subr.mxu0 0.0
  %5063 = vmatpush2.msra.mxu0 0.0
  %5064 = vmatprep.subr.mxu0 0.0
  %5065 = vmatpush2.msra.mxu0 0.0
  %5066 = vmatprep.subr.mxu0 0.0
  %5067 = vmatpush2.msra.mxu0 0.0
  %5068 = vmatprep.subr.mxu0 0.0
  %5069 = vmatpush2.msra.mxu0 0.0
  %5070 = vmatprep.subr.mxu0 0.0
  %5071 = vmatpush2.msra.mxu0 0.0
  %5072 = vmatprep.subr.mxu0 0.0
  %5073 = vmatpush2.msra.mxu0 0.0
  %5074 = vmatprep.subr.mxu0 0.0
  %5075 = vmatpush2.msra.mxu0 0.0
  %5076 = vmatprep.subr.mxu0 0.0
  %5077 = vmatpush2.msra.mxu0 0.0
  %5078 = vmatprep.subr.mxu0 0.0
  %5079 = vmatpush2.msra.mxu0 0.0
  %5080 = vmatprep.subr.mxu0 0.0
  %5081 = vmatpush2.msra.mxu0 0.0
  %5082 = vmatprep.subr.mxu0 0.0
  %5083 = vmatpush2.msra.mxu0 0.0
  %5084 = vmatprep.subr.mxu0 0.0
  %5085 = vmatpush2.msra.mxu0 0.0
  %5086 = vmatprep.subr.mxu0 0.0
  %5087 = vmatpush2.msra.mxu0 0.0
  %5088 = vmatprep.subr.mxu0 0.0
  %5089 = vmatpush2.msra.mxu0 0.0
  %5090 = vmatprep.mubr.f32.mxu0 0.0
  %5091 = vmatmul.mubr.f32.gmra.mxu0 %v2894
  %v5092 = vpop.f32.mrf.mxu0
  %v5093 = vadd.f32 0.0, %v5092
  %v5094 = vpop.f32.mrf.mxu0
  %5095 = vmatprep.mubr.f32.mxu0 0.0
  %5096 = vmatmul.mubr.f32.gmra.mxu0 %v2897
  %v5097 = vpop.f32.mrf.mxu0
  %v5098 = vadd.f32 0.0, %v5097
  %v5099 = vpop.f32.mrf.mxu0
  %5100 = vmatprep.mubr.f32.mxu0 0.0
  %5101 = vmatmul.mubr.f32.gmra.mxu0 %v2900
  %v5102 = vpop.f32.mrf.mxu0
  %v5103 = vadd.f32 0.0, %v5102
  %v5104 = vpop.f32.mrf.mxu0
  %5105 = vmatprep.mubr.f32.mxu0 0.0
  %5106 = vmatmul.mubr.f32.gmra.mxu0 %v2903
  %v5107 = vpop.f32.mrf.mxu0
  %v5108 = vadd.f32 0.0, %v5107
  %v5109 = vpop.f32.mrf.mxu0
  %5110 = vmatprep.mubr.f32.mxu0 0.0
  %5111 = vmatmul.mubr.f32.gmra.mxu0 %v2906
  %v5112 = vpop.f32.mrf.mxu0
  %v5113 = vadd.f32 0.0, %v5112
  %v5114 = vpop.f32.mrf.mxu0
  %5115 = vmatprep.mubr.f32.mxu0 0.0
  %5116 = vmatmul.mubr.f32.gmra.mxu0 %v2909
  %v5117 = vpop.f32.mrf.mxu0
  %v5118 = vadd.f32 0.0, %v5117
  %v5119 = vpop.f32.mrf.mxu0
  %5120 = vmatprep.mubr.f32.mxu0 0.0
  %5121 = vmatmul.mubr.f32.gmra.mxu0 %v2912
  %v5122 = vpop.f32.mrf.mxu0
  %v5123 = vadd.f32 0.0, %v5122
  %v5124 = vpop.f32.mrf.mxu0
  %5125 = vmatprep.mubr.f32.mxu0 0.0
  %5126 = vmatmul.mubr.f32.gmra.mxu0 %v2915
  %v5127 = vpop.f32.mrf.mxu0
  %v5128 = vadd.f32 0.0, %v5127
  %v5129 = vpop.f32.mrf.mxu0
  %5130 = vmatprep.mubr.f32.mxu0 0.0
  %5131 = vmatmul.mubr.f32.gmra.mxu0 %v2918
  %v5132 = vpop.f32.mrf.mxu0
  %v5133 = vadd.f32 0.0, %v5132
  %v5134 = vpop.f32.mrf.mxu0
  %5135 = vmatprep.mubr.f32.mxu0 0.0
  %5136 = vmatmul.mubr.f32.gmra.mxu0 %v2921
  %v5137 = vpop.f32.mrf.mxu0
  %v5138 = vadd.f32 0.0, %v5137
  %v5139 = vpop.f32.mrf.mxu0
  %5140 = vmatprep.mubr.f32.mxu0 0.0
  %5141 = vmatmul.mubr.f32.gmra.mxu0 %v2924
  %v5142 = vpop.f32.mrf.mxu0
  %v5143 = vadd.f32 0.0, %v5142
  %v5144 = vpop.f32.mrf.mxu0
  %5145 = vmatprep.mubr.f32.mxu0 0.0
  %5146 = vmatmul.mubr.f32.gmra.mxu0 %v2927
  %v5147 = vpop.f32.mrf.mxu0
  %v5148 = vadd.f32 0.0, %v5147
  %v5149 = vpop.f32.mrf.mxu0
  %5150 = vmatprep.mubr.f32.mxu0 0.0
  %5151 = vmatmul.mubr.f32.gmra.mxu0 %v2930
  %v5152 = vpop.f32.mrf.mxu0
  %v5153 = vadd.f32 0.0, %v5152
  %v5154 = vpop.f32.mrf.mxu0
  %5155 = vmatprep.mubr.f32.mxu0 0.0
  %5156 = vmatmul.mubr.f32.gmra.mxu0 %v2933
  %v5157 = vpop.f32.mrf.mxu0
  %v5158 = vadd.f32 0.0, %v5157
  %v5159 = vpop.f32.mrf.mxu0
  %5160 = vmatprep.mubr.f32.mxu0 0.0
  %5161 = vmatmul.mubr.f32.gmra.mxu0 %v2936
  %v5162 = vpop.f32.mrf.mxu0
  %v5163 = vadd.f32 0.0, %v5162
  %v5164 = vpop.f32.mrf.mxu0
  %5165 = vmatprep.mubr.f32.mxu0 0.0
  %5166 = vmatmul.mubr.f32.gmra.mxu0 %v2939
  %v5167 = vpop.f32.mrf.mxu0
  %v5168 = vadd.f32 0.0, %v5167
  %v5169 = vpop.f32.mrf.mxu0
  %5170 = vdwg.mxu0
  %v5171 = vadd.f32 %v5010, %v5093
  %v5172 = vadd.f32 %v5011, %v5098
  %v5173 = vadd.f32 %v5012, %v5103
  %v5174 = vadd.f32 %v5013, %v5108
  %v5175 = vadd.f32 %v5014, %v5113
  %v5176 = vadd.f32 %v5015, %v5118
  %v5177 = vadd.f32 %v5016, %v5123
  %v5178 = vadd.f32 %v5017, %v5128
  %v5179 = vadd.f32 %v5018, %v5133
  %v5180 = vadd.f32 %v5019, %v5138
  %v5181 = vadd.f32 %v5020, %v5143
  %v5182 = vadd.f32 %v5021, %v5148
  %v5183 = vadd.f32 %v5022, %v5153
  %v5184 = vadd.f32 %v5023, %v5158
  %v5185 = vadd.f32 %v5024, %v5163
  %v5186 = vadd.f32 %v5025, %v5168
  %v5187 = vxor.u32 %v5171, 2147483648
  %v5188 = vxor.u32 %v5172, 2147483648
  %v5189 = vxor.u32 %v5173, 2147483648
  %v5190 = vxor.u32 %v5174, 2147483648
  %v5191 = vmul.f32 %v5187, 1.442695
  %v5192 = vpow.pop %v5191
  %v5193 = vmul.f32 %v5188, 1.442695
  %v5194 = vpow.pop %v5193
  %v5195 = vmul.f32 %v5189, 1.442695
  %v5196 = vpow.pop %v5195
  %v5197 = vmul.f32 %v5190, 1.442695
  %v5198 = vpow.pop %v5197
  %v5199 = vadd.f32 %v5192, 1.0
  %v5200 = vadd.f32 %v5194, 1.0
  %v5201 = vadd.f32 %v5196, 1.0
  %v5202 = vadd.f32 %v5198, 1.0
  %v5203 = vrcp.pop %v5199
  %v5204 = vmul.f32 1.0, %v5203
  %v5205 = vrcp.pop %v5200
  %v5206 = vmul.f32 1.0, %v5205
  %v5207 = vrcp.pop %v5201
  %v5208 = vmul.f32 1.0, %v5207
  %v5209 = vrcp.pop %v5202
  %v5210 = vmul.f32 1.0, %v5209
  %v5211 = vxor.u32 %v5175, 2147483648
  %v5212 = vxor.u32 %v5176, 2147483648
  %v5213 = vxor.u32 %v5177, 2147483648
  %v5214 = vxor.u32 %v5178, 2147483648
  %v5215 = vmul.f32 %v5211, 1.442695
  %v5216 = vpow.pop %v5215
  %v5217 = vmul.f32 %v5212, 1.442695
  %v5218 = vpow.pop %v5217
  %v5219 = vmul.f32 %v5213, 1.442695
  %v5220 = vpow.pop %v5219
  %v5221 = vmul.f32 %v5214, 1.442695
  %v5222 = vpow.pop %v5221
  %v5223 = vadd.f32 %v5216, 1.0
  %v5224 = vadd.f32 %v5218, 1.0
  %v5225 = vadd.f32 %v5220, 1.0
  %v5226 = vadd.f32 %v5222, 1.0
  %v5227 = vrcp.pop %v5223
  %v5228 = vmul.f32 1.0, %v5227
  %v5229 = vrcp.pop %v5224
  %v5230 = vmul.f32 1.0, %v5229
  %v5231 = vrcp.pop %v5225
  %v5232 = vmul.f32 1.0, %v5231
  %v5233 = vrcp.pop %v5226
  %v5234 = vmul.f32 1.0, %v5233
  %v5235 = vtanh.pop %v5179
  %v5236 = vtanh.pop %v5180
  %v5237 = vtanh.pop %v5181
  %v5238 = vtanh.pop %v5182
  %v5239 = vxor.u32 %v5183, 2147483648
  %v5240 = vxor.u32 %v5184, 2147483648
  %v5241 = vxor.u32 %v5185, 2147483648
  %v5242 = vxor.u32 %v5186, 2147483648
  %v5243 = vmul.f32 %v5239, 1.442695
  %v5244 = vpow.pop %v5243
  %v5245 = vmul.f32 %v5240, 1.442695
  %v5246 = vpow.pop %v5245
  %v5247 = vmul.f32 %v5241, 1.442695
  %v5248 = vpow.pop %v5247
  %v5249 = vmul.f32 %v5242, 1.442695
  %v5250 = vpow.pop %v5249
  %v5251 = vadd.f32 %v5244, 1.0
  %v5252 = vadd.f32 %v5246, 1.0
  %v5253 = vadd.f32 %v5248, 1.0
  %v5254 = vadd.f32 %v5250, 1.0
  %v5255 = vrcp.pop %v5251
  %v5256 = vmul.f32 1.0, %v5255
  %v5257 = vrcp.pop %v5252
  %v5258 = vmul.f32 1.0, %v5257
  %v5259 = vrcp.pop %v5253
  %v5260 = vmul.f32 1.0, %v5259
  %v5261 = vrcp.pop %v5254
  %v5262 = vmul.f32 1.0, %v5261
  %v5263 = vmul.f32 %v5228, %v5006
  %v5264 = vmul.f32 %v5230, %v5007
  %v5265 = vmul.f32 %v5232, %v5008
  %v5266 = vmul.f32 %v5234, %v5009
  %v5267 = vmul.f32 %v5204, %v5235
  %v5268 = vmul.f32 %v5206, %v5236
  %v5269 = vmul.f32 %v5208, %v5237
  %v5270 = vmul.f32 %v5210, %v5238
  %v5271 = vadd.f32 %v5263, %v5267
  %v5272 = vadd.f32 %v5264, %v5268
  %v5273 = vadd.f32 %v5265, %v5269
  %v5274 = vadd.f32 %v5266, %v5270
  %v5275 = vtanh.pop %v5271
  %v5276 = vtanh.pop %v5272
  %v5277 = vtanh.pop %v5273
  %v5278 = vtanh.pop %v5274
  %v5279 = vmul.f32 %v5256, %v5275
  %v5280 = vmul.f32 %v5258, %v5276
  %v5281 = vmul.f32 %v5260, %v5277
  %v5282 = vmul.f32 %v5262, %v5278
  %v5283 = vsel %vm2873, 7, 8
  %v5284 = vsel %vm2874, 7, 8
  %v5285 = vsel %vm2875, 7, 8
  %v5286 = vsel %vm2876, 7, 8
  %vm5287 = vcmp.lt.s32.totalorder %v5283, %v3205
  %vm5288 = vcmp.lt.s32.totalorder %v5284, %v3205
  %vm5289 = vcmp.lt.s32.totalorder %v5285, %v3205
  %vm5290 = vcmp.lt.s32.totalorder %v5286, %v3205
  %v5291 = vsel %vm5287, %v5279, 0.0
  %v5292 = vsel %vm5288, %v5280, 0.0
  %v5293 = vsel %vm5289, %v5281, 0.0
  %v5294 = vsel %vm5290, %v5282, 0.0
  %s5295 = scalar_lea.vmem %s5, 224
  %5296 = vst [vmem:[%s5295] sm:$0xff] %v5291
  %5297 = vst [vmem:[%s5295 + $0x8] sm:$0xff] %v5292
  %5298 = vst [vmem:[%s5295 + $0x10] sm:$0xff] %v5293
  %5299 = vst [vmem:[%s5295 + $0x18] sm:$0xff] %v5294
  %v5300 = vsel %vm5287, %v5279, %v5002
  %v5301 = vsel %vm5288, %v5280, %v5003
  %v5302 = vsel %vm5289, %v5281, %v5004
  %v5303 = vsel %vm5290, %v5282, %v5005
  %v5304 = vsel %vm5287, %v5271, %v5006
  %v5305 = vsel %vm5288, %v5272, %v5007
  %v5306 = vsel %vm5289, %v5273, %v5008
  %v5307 = vsel %vm5290, %v5274, %v5009
  %v5308 = vld [vmem:[%s1525] sm:$0xff]
  %v5309 = vld [vmem:[%s1525 + $0x8] sm:$0xff]
  %v5310 = vld [vmem:[%s1525 + $0x10] sm:$0xff]
  %v5311 = vld [vmem:[%s1525 + $0x18] sm:$0xff]
  %v5312 = vld [vmem:[%s1525 + $0x20] sm:$0xff]
  %v5313 = vld [vmem:[%s1525 + $0x28] sm:$0xff]
  %v5314 = vld [vmem:[%s1525 + $0x30] sm:$0xff]
  %v5315 = vld [vmem:[%s1525 + $0x38] sm:$0xff]
  %v5316 = vld [vmem:[%s1525 + $0x40] sm:$0xff]
  %v5317 = vld [vmem:[%s1525 + $0x48] sm:$0xff]
  %v5318 = vld [vmem:[%s1525 + $0x50] sm:$0xff]
  %v5319 = vld [vmem:[%s1525 + $0x58] sm:$0xff]
  %v5320 = vld [vmem:[%s1525 + $0x60] sm:$0xff]
  %v5321 = vld [vmem:[%s1525 + $0x68] sm:$0xff]
  %v5322 = vld [vmem:[%s1525 + $0x70] sm:$0xff]
  %v5323 = vld [vmem:[%s1525 + $0x78] sm:$0xff]
  %5324 = vmatprep.subr.mxu0 0.0
  %5325 = vmatpush1.msra.mxu0 0.0
  %5326 = vmatprep.subr.mxu0 0.0
  %5327 = vmatpush1.msra.mxu0 0.0
  %5328 = vmatprep.subr.mxu0 0.0
  %5329 = vmatpush1.msra.mxu0 0.0
  %5330 = vmatprep.subr.mxu0 0.0
  %5331 = vmatpush1.msra.mxu0 0.0
  %5332 = vmatprep.subr.mxu0 0.0
  %5333 = vmatpush1.msra.mxu0 0.0
  %5334 = vmatprep.subr.mxu0 0.0
  %5335 = vmatpush1.msra.mxu0 0.0
  %5336 = vmatprep.subr.mxu0 0.0
  %5337 = vmatpush1.msra.mxu0 0.0
  %5338 = vmatprep.subr.mxu0 0.0
  %5339 = vmatpush1.msra.mxu0 0.0
  %5340 = vmatprep.subr.mxu0 0.0
  %5341 = vmatpush1.msra.mxu0 0.0
  %5342 = vmatprep.subr.mxu0 0.0
  %5343 = vmatpush1.msra.mxu0 0.0
  %5344 = vmatprep.subr.mxu0 0.0
  %5345 = vmatpush1.msra.mxu0 0.0
  %5346 = vmatprep.subr.mxu0 0.0
  %5347 = vmatpush1.msra.mxu0 0.0
  %5348 = vmatprep.subr.mxu0 0.0
  %5349 = vmatpush1.msra.mxu0 %v5303
  %5350 = vmatprep.subr.mxu0 0.0
  %5351 = vmatpush1.msra.mxu0 %v5302
  %5352 = vmatprep.subr.mxu0 0.0
  %5353 = vmatpush1.msra.mxu0 %v5301
  %5354 = vmatprep.subr.mxu0 0.0
  %5355 = vmatpush1.msra.mxu0 %v5300
  %5356 = vmatprep.subr.mxu0 0.0
  %5357 = vmatpush2.msra.mxu0 0.0
  %5358 = vmatprep.subr.mxu0 0.0
  %5359 = vmatpush2.msra.mxu0 0.0
  %5360 = vmatprep.subr.mxu0 0.0
  %5361 = vmatpush2.msra.mxu0 0.0
  %5362 = vmatprep.subr.mxu0 0.0
  %5363 = vmatpush2.msra.mxu0 0.0
  %5364 = vmatprep.subr.mxu0 0.0
  %5365 = vmatpush2.msra.mxu0 0.0
  %5366 = vmatprep.subr.mxu0 0.0
  %5367 = vmatpush2.msra.mxu0 0.0
  %5368 = vmatprep.subr.mxu0 0.0
  %5369 = vmatpush2.msra.mxu0 0.0
  %5370 = vmatprep.subr.mxu0 0.0
  %5371 = vmatpush2.msra.mxu0 0.0
  %5372 = vmatprep.subr.mxu0 0.0
  %5373 = vmatpush2.msra.mxu0 0.0
  %5374 = vmatprep.subr.mxu0 0.0
  %5375 = vmatpush2.msra.mxu0 0.0
  %5376 = vmatprep.subr.mxu0 0.0
  %5377 = vmatpush2.msra.mxu0 0.0
  %5378 = vmatprep.subr.mxu0 0.0
  %5379 = vmatpush2.msra.mxu0 0.0
  %5380 = vmatprep.subr.mxu0 0.0
  %5381 = vmatpush2.msra.mxu0 0.0
  %5382 = vmatprep.subr.mxu0 0.0
  %5383 = vmatpush2.msra.mxu0 0.0
  %5384 = vmatprep.subr.mxu0 0.0
  %5385 = vmatpush2.msra.mxu0 0.0
  %5386 = vmatprep.subr.mxu0 0.0
  %5387 = vmatpush2.msra.mxu0 0.0
  %5388 = vmatprep.mubr.f32.mxu0 0.0
  %5389 = vmatmul.mubr.f32.gmra.mxu0 %v2894
  %v5390 = vpop.f32.mrf.mxu0
  %v5391 = vadd.f32 0.0, %v5390
  %v5392 = vpop.f32.mrf.mxu0
  %5393 = vmatprep.mubr.f32.mxu0 0.0
  %5394 = vmatmul.mubr.f32.gmra.mxu0 %v2897
  %v5395 = vpop.f32.mrf.mxu0
  %v5396 = vadd.f32 0.0, %v5395
  %v5397 = vpop.f32.mrf.mxu0
  %5398 = vmatprep.mubr.f32.mxu0 0.0
  %5399 = vmatmul.mubr.f32.gmra.mxu0 %v2900
  %v5400 = vpop.f32.mrf.mxu0
  %v5401 = vadd.f32 0.0, %v5400
  %v5402 = vpop.f32.mrf.mxu0
  %5403 = vmatprep.mubr.f32.mxu0 0.0
  %5404 = vmatmul.mubr.f32.gmra.mxu0 %v2903
  %v5405 = vpop.f32.mrf.mxu0
  %v5406 = vadd.f32 0.0, %v5405
  %v5407 = vpop.f32.mrf.mxu0
  %5408 = vmatprep.mubr.f32.mxu0 0.0
  %5409 = vmatmul.mubr.f32.gmra.mxu0 %v2906
  %v5410 = vpop.f32.mrf.mxu0
  %v5411 = vadd.f32 0.0, %v5410
  %v5412 = vpop.f32.mrf.mxu0
  %5413 = vmatprep.mubr.f32.mxu0 0.0
  %5414 = vmatmul.mubr.f32.gmra.mxu0 %v2909
  %v5415 = vpop.f32.mrf.mxu0
  %v5416 = vadd.f32 0.0, %v5415
  %v5417 = vpop.f32.mrf.mxu0
  %5418 = vmatprep.mubr.f32.mxu0 0.0
  %5419 = vmatmul.mubr.f32.gmra.mxu0 %v2912
  %v5420 = vpop.f32.mrf.mxu0
  %v5421 = vadd.f32 0.0, %v5420
  %v5422 = vpop.f32.mrf.mxu0
  %5423 = vmatprep.mubr.f32.mxu0 0.0
  %5424 = vmatmul.mubr.f32.gmra.mxu0 %v2915
  %v5425 = vpop.f32.mrf.mxu0
  %v5426 = vadd.f32 0.0, %v5425
  %v5427 = vpop.f32.mrf.mxu0
  %5428 = vmatprep.mubr.f32.mxu0 0.0
  %5429 = vmatmul.mubr.f32.gmra.mxu0 %v2918
  %v5430 = vpop.f32.mrf.mxu0
  %v5431 = vadd.f32 0.0, %v5430
  %v5432 = vpop.f32.mrf.mxu0
  %5433 = vmatprep.mubr.f32.mxu0 0.0
  %5434 = vmatmul.mubr.f32.gmra.mxu0 %v2921
  %v5435 = vpop.f32.mrf.mxu0
  %v5436 = vadd.f32 0.0, %v5435
  %v5437 = vpop.f32.mrf.mxu0
  %5438 = vmatprep.mubr.f32.mxu0 0.0
  %5439 = vmatmul.mubr.f32.gmra.mxu0 %v2924
  %v5440 = vpop.f32.mrf.mxu0
  %v5441 = vadd.f32 0.0, %v5440
  %v5442 = vpop.f32.mrf.mxu0
  %5443 = vmatprep.mubr.f32.mxu0 0.0
  %5444 = vmatmul.mubr.f32.gmra.mxu0 %v2927
  %v5445 = vpop.f32.mrf.mxu0
  %v5446 = vadd.f32 0.0, %v5445
  %v5447 = vpop.f32.mrf.mxu0
  %5448 = vmatprep.mubr.f32.mxu0 0.0
  %5449 = vmatmul.mubr.f32.gmra.mxu0 %v2930
  %v5450 = vpop.f32.mrf.mxu0
  %v5451 = vadd.f32 0.0, %v5450
  %v5452 = vpop.f32.mrf.mxu0
  %5453 = vmatprep.mubr.f32.mxu0 0.0
  %5454 = vmatmul.mubr.f32.gmra.mxu0 %v2933
  %v5455 = vpop.f32.mrf.mxu0
  %v5456 = vadd.f32 0.0, %v5455
  %v5457 = vpop.f32.mrf.mxu0
  %5458 = vmatprep.mubr.f32.mxu0 0.0
  %5459 = vmatmul.mubr.f32.gmra.mxu0 %v2936
  %v5460 = vpop.f32.mrf.mxu0
  %v5461 = vadd.f32 0.0, %v5460
  %v5462 = vpop.f32.mrf.mxu0
  %5463 = vmatprep.mubr.f32.mxu0 0.0
  %5464 = vmatmul.mubr.f32.gmra.mxu0 %v2939
  %v5465 = vpop.f32.mrf.mxu0
  %v5466 = vadd.f32 0.0, %v5465
  %v5467 = vpop.f32.mrf.mxu0
  %5468 = vdwg.mxu0
  %v5469 = vadd.f32 %v5308, %v5391
  %v5470 = vadd.f32 %v5309, %v5396
  %v5471 = vadd.f32 %v5310, %v5401
  %v5472 = vadd.f32 %v5311, %v5406
  %v5473 = vadd.f32 %v5312, %v5411
  %v5474 = vadd.f32 %v5313, %v5416
  %v5475 = vadd.f32 %v5314, %v5421
  %v5476 = vadd.f32 %v5315, %v5426
  %v5477 = vadd.f32 %v5316, %v5431
  %v5478 = vadd.f32 %v5317, %v5436
  %v5479 = vadd.f32 %v5318, %v5441
  %v5480 = vadd.f32 %v5319, %v5446
  %v5481 = vadd.f32 %v5320, %v5451
  %v5482 = vadd.f32 %v5321, %v5456
  %v5483 = vadd.f32 %v5322, %v5461
  %v5484 = vadd.f32 %v5323, %v5466
  %v5485 = vxor.u32 %v5469, 2147483648
  %v5486 = vxor.u32 %v5470, 2147483648
  %v5487 = vxor.u32 %v5471, 2147483648
  %v5488 = vxor.u32 %v5472, 2147483648
  %v5489 = vmul.f32 %v5485, 1.442695
  %v5490 = vpow.pop %v5489
  %v5491 = vmul.f32 %v5486, 1.442695
  %v5492 = vpow.pop %v5491
  %v5493 = vmul.f32 %v5487, 1.442695
  %v5494 = vpow.pop %v5493
  %v5495 = vmul.f32 %v5488, 1.442695
  %v5496 = vpow.pop %v5495
  %v5497 = vadd.f32 %v5490, 1.0
  %v5498 = vadd.f32 %v5492, 1.0
  %v5499 = vadd.f32 %v5494, 1.0
  %v5500 = vadd.f32 %v5496, 1.0
  %v5501 = vrcp.pop %v5497
  %v5502 = vmul.f32 1.0, %v5501
  %v5503 = vrcp.pop %v5498
  %v5504 = vmul.f32 1.0, %v5503
  %v5505 = vrcp.pop %v5499
  %v5506 = vmul.f32 1.0, %v5505
  %v5507 = vrcp.pop %v5500
  %v5508 = vmul.f32 1.0, %v5507
  %v5509 = vxor.u32 %v5473, 2147483648
  %v5510 = vxor.u32 %v5474, 2147483648
  %v5511 = vxor.u32 %v5475, 2147483648
  %v5512 = vxor.u32 %v5476, 2147483648
  %v5513 = vmul.f32 %v5509, 1.442695
  %v5514 = vpow.pop %v5513
  %v5515 = vmul.f32 %v5510, 1.442695
  %v5516 = vpow.pop %v5515
  %v5517 = vmul.f32 %v5511, 1.442695
  %v5518 = vpow.pop %v5517
  %v5519 = vmul.f32 %v5512, 1.442695
  %v5520 = vpow.pop %v5519
  %v5521 = vadd.f32 %v5514, 1.0
  %v5522 = vadd.f32 %v5516, 1.0
  %v5523 = vadd.f32 %v5518, 1.0
  %v5524 = vadd.f32 %v5520, 1.0
  %v5525 = vrcp.pop %v5521
  %v5526 = vmul.f32 1.0, %v5525
  %v5527 = vrcp.pop %v5522
  %v5528 = vmul.f32 1.0, %v5527
  %v5529 = vrcp.pop %v5523
  %v5530 = vmul.f32 1.0, %v5529
  %v5531 = vrcp.pop %v5524
  %v5532 = vmul.f32 1.0, %v5531
  %v5533 = vtanh.pop %v5477
  %v5534 = vtanh.pop %v5478
  %v5535 = vtanh.pop %v5479
  %v5536 = vtanh.pop %v5480
  %v5537 = vxor.u32 %v5481, 2147483648
  %v5538 = vxor.u32 %v5482, 2147483648
  %v5539 = vxor.u32 %v5483, 2147483648
  %v5540 = vxor.u32 %v5484, 2147483648
  %v5541 = vmul.f32 %v5537, 1.442695
  %v5542 = vpow.pop %v5541
  %v5543 = vmul.f32 %v5538, 1.442695
  %v5544 = vpow.pop %v5543
  %v5545 = vmul.f32 %v5539, 1.442695
  %v5546 = vpow.pop %v5545
  %v5547 = vmul.f32 %v5540, 1.442695
  %v5548 = vpow.pop %v5547
  %v5549 = vadd.f32 %v5542, 1.0
  %v5550 = vadd.f32 %v5544, 1.0
  %v5551 = vadd.f32 %v5546, 1.0
  %v5552 = vadd.f32 %v5548, 1.0
  %v5553 = vrcp.pop %v5549
  %v5554 = vmul.f32 1.0, %v5553
  %v5555 = vrcp.pop %v5550
  %v5556 = vmul.f32 1.0, %v5555
  %v5557 = vrcp.pop %v5551
  %v5558 = vmul.f32 1.0, %v5557
  %v5559 = vrcp.pop %v5552
  %v5560 = vmul.f32 1.0, %v5559
  %v5561 = vmul.f32 %v5526, %v5304
  %v5562 = vmul.f32 %v5528, %v5305
  %v5563 = vmul.f32 %v5530, %v5306
  %v5564 = vmul.f32 %v5532, %v5307
  %v5565 = vmul.f32 %v5502, %v5533
  %v5566 = vmul.f32 %v5504, %v5534
  %v5567 = vmul.f32 %v5506, %v5535
  %v5568 = vmul.f32 %v5508, %v5536
  %v5569 = vadd.f32 %v5561, %v5565
  %v5570 = vadd.f32 %v5562, %v5566
  %v5571 = vadd.f32 %v5563, %v5567
  %v5572 = vadd.f32 %v5564, %v5568
  %v5573 = vtanh.pop %v5569
  %v5574 = vtanh.pop %v5570
  %v5575 = vtanh.pop %v5571
  %v5576 = vtanh.pop %v5572
  %v5577 = vmul.f32 %v5554, %v5573
  %v5578 = vmul.f32 %v5556, %v5574
  %v5579 = vmul.f32 %v5558, %v5575
  %v5580 = vmul.f32 %v5560, %v5576
  %v5581 = vsel %vm2873, 8, 7
  %v5582 = vsel %vm2874, 8, 7
  %v5583 = vsel %vm2875, 8, 7
  %v5584 = vsel %vm2876, 8, 7
  %vm5585 = vcmp.lt.s32.totalorder %v5581, %v3205
  %vm5586 = vcmp.lt.s32.totalorder %v5582, %v3205
  %vm5587 = vcmp.lt.s32.totalorder %v5583, %v3205
  %vm5588 = vcmp.lt.s32.totalorder %v5584, %v3205
  %v5589 = vsel %vm5585, %v5577, 0.0
  %v5590 = vsel %vm5586, %v5578, 0.0
  %v5591 = vsel %vm5587, %v5579, 0.0
  %v5592 = vsel %vm5588, %v5580, 0.0
  %s5593 = scalar_lea.vmem %s5, 256
  %5594 = vst [vmem:[%s5593] sm:$0xff] %v5589
  %5595 = vst [vmem:[%s5593 + $0x8] sm:$0xff] %v5590
  %5596 = vst [vmem:[%s5593 + $0x10] sm:$0xff] %v5591
  %5597 = vst [vmem:[%s5593 + $0x18] sm:$0xff] %v5592
  %v5598 = vsel %vm5585, %v5577, %v5300
  %v5599 = vsel %vm5586, %v5578, %v5301
  %v5600 = vsel %vm5587, %v5579, %v5302
  %v5601 = vsel %vm5588, %v5580, %v5303
  %v5602 = vsel %vm5585, %v5569, %v5304
  %v5603 = vsel %vm5586, %v5570, %v5305
  %v5604 = vsel %vm5587, %v5571, %v5306
  %v5605 = vsel %vm5588, %v5572, %v5307
  %v5606 = vld [vmem:[%s1357] sm:$0xff]
  %v5607 = vld [vmem:[%s1357 + $0x8] sm:$0xff]
  %v5608 = vld [vmem:[%s1357 + $0x10] sm:$0xff]
  %v5609 = vld [vmem:[%s1357 + $0x18] sm:$0xff]
  %v5610 = vld [vmem:[%s1357 + $0x20] sm:$0xff]
  %v5611 = vld [vmem:[%s1357 + $0x28] sm:$0xff]
  %v5612 = vld [vmem:[%s1357 + $0x30] sm:$0xff]
  %v5613 = vld [vmem:[%s1357 + $0x38] sm:$0xff]
  %v5614 = vld [vmem:[%s1357 + $0x40] sm:$0xff]
  %v5615 = vld [vmem:[%s1357 + $0x48] sm:$0xff]
  %v5616 = vld [vmem:[%s1357 + $0x50] sm:$0xff]
  %v5617 = vld [vmem:[%s1357 + $0x58] sm:$0xff]
  %v5618 = vld [vmem:[%s1357 + $0x60] sm:$0xff]
  %v5619 = vld [vmem:[%s1357 + $0x68] sm:$0xff]
  %v5620 = vld [vmem:[%s1357 + $0x70] sm:$0xff]
  %v5621 = vld [vmem:[%s1357 + $0x78] sm:$0xff]
  %5622 = vmatprep.subr.mxu0 0.0
  %5623 = vmatpush1.msra.mxu0 0.0
  %5624 = vmatprep.subr.mxu0 0.0
  %5625 = vmatpush1.msra.mxu0 0.0
  %5626 = vmatprep.subr.mxu0 0.0
  %5627 = vmatpush1.msra.mxu0 0.0
  %5628 = vmatprep.subr.mxu0 0.0
  %5629 = vmatpush1.msra.mxu0 0.0
  %5630 = vmatprep.subr.mxu0 0.0
  %5631 = vmatpush1.msra.mxu0 0.0
  %5632 = vmatprep.subr.mxu0 0.0
  %5633 = vmatpush1.msra.mxu0 0.0
  %5634 = vmatprep.subr.mxu0 0.0
  %5635 = vmatpush1.msra.mxu0 0.0
  %5636 = vmatprep.subr.mxu0 0.0
  %5637 = vmatpush1.msra.mxu0 0.0
  %5638 = vmatprep.subr.mxu0 0.0
  %5639 = vmatpush1.msra.mxu0 0.0
  %5640 = vmatprep.subr.mxu0 0.0
  %5641 = vmatpush1.msra.mxu0 0.0
  %5642 = vmatprep.subr.mxu0 0.0
  %5643 = vmatpush1.msra.mxu0 0.0
  %5644 = vmatprep.subr.mxu0 0.0
  %5645 = vmatpush1.msra.mxu0 0.0
  %5646 = vmatprep.subr.mxu0 0.0
  %5647 = vmatpush1.msra.mxu0 %v5601
  %5648 = vmatprep.subr.mxu0 0.0
  %5649 = vmatpush1.msra.mxu0 %v5600
  %5650 = vmatprep.subr.mxu0 0.0
  %5651 = vmatpush1.msra.mxu0 %v5599
  %5652 = vmatprep.subr.mxu0 0.0
  %5653 = vmatpush1.msra.mxu0 %v5598
  %5654 = vmatprep.subr.mxu0 0.0
  %5655 = vmatpush2.msra.mxu0 0.0
  %5656 = vmatprep.subr.mxu0 0.0
  %5657 = vmatpush2.msra.mxu0 0.0
  %5658 = vmatprep.subr.mxu0 0.0
  %5659 = vmatpush2.msra.mxu0 0.0
  %5660 = vmatprep.subr.mxu0 0.0
  %5661 = vmatpush2.msra.mxu0 0.0
  %5662 = vmatprep.subr.mxu0 0.0
  %5663 = vmatpush2.msra.mxu0 0.0
  %5664 = vmatprep.subr.mxu0 0.0
  %5665 = vmatpush2.msra.mxu0 0.0
  %5666 = vmatprep.subr.mxu0 0.0
  %5667 = vmatpush2.msra.mxu0 0.0
  %5668 = vmatprep.subr.mxu0 0.0
  %5669 = vmatpush2.msra.mxu0 0.0
  %5670 = vmatprep.subr.mxu0 0.0
  %5671 = vmatpush2.msra.mxu0 0.0
  %5672 = vmatprep.subr.mxu0 0.0
  %5673 = vmatpush2.msra.mxu0 0.0
  %5674 = vmatprep.subr.mxu0 0.0
  %5675 = vmatpush2.msra.mxu0 0.0
  %5676 = vmatprep.subr.mxu0 0.0
  %5677 = vmatpush2.msra.mxu0 0.0
  %5678 = vmatprep.subr.mxu0 0.0
  %5679 = vmatpush2.msra.mxu0 0.0
  %5680 = vmatprep.subr.mxu0 0.0
  %5681 = vmatpush2.msra.mxu0 0.0
  %5682 = vmatprep.subr.mxu0 0.0
  %5683 = vmatpush2.msra.mxu0 0.0
  %5684 = vmatprep.subr.mxu0 0.0
  %5685 = vmatpush2.msra.mxu0 0.0
  %5686 = vmatprep.mubr.f32.mxu0 0.0
  %5687 = vmatmul.mubr.f32.gmra.mxu0 %v2894
  %v5688 = vpop.f32.mrf.mxu0
  %v5689 = vadd.f32 0.0, %v5688
  %v5690 = vpop.f32.mrf.mxu0
  %5691 = vmatprep.mubr.f32.mxu0 0.0
  %5692 = vmatmul.mubr.f32.gmra.mxu0 %v2897
  %v5693 = vpop.f32.mrf.mxu0
  %v5694 = vadd.f32 0.0, %v5693
  %v5695 = vpop.f32.mrf.mxu0
  %5696 = vmatprep.mubr.f32.mxu0 0.0
  %5697 = vmatmul.mubr.f32.gmra.mxu0 %v2900
  %v5698 = vpop.f32.mrf.mxu0
  %v5699 = vadd.f32 0.0, %v5698
  %v5700 = vpop.f32.mrf.mxu0
  %5701 = vmatprep.mubr.f32.mxu0 0.0
  %5702 = vmatmul.mubr.f32.gmra.mxu0 %v2903
  %v5703 = vpop.f32.mrf.mxu0
  %v5704 = vadd.f32 0.0, %v5703
  %v5705 = vpop.f32.mrf.mxu0
  %5706 = vmatprep.mubr.f32.mxu0 0.0
  %5707 = vmatmul.mubr.f32.gmra.mxu0 %v2906
  %v5708 = vpop.f32.mrf.mxu0
  %v5709 = vadd.f32 0.0, %v5708
  %v5710 = vpop.f32.mrf.mxu0
  %5711 = vmatprep.mubr.f32.mxu0 0.0
  %5712 = vmatmul.mubr.f32.gmra.mxu0 %v2909
  %v5713 = vpop.f32.mrf.mxu0
  %v5714 = vadd.f32 0.0, %v5713
  %v5715 = vpop.f32.mrf.mxu0
  %5716 = vmatprep.mubr.f32.mxu0 0.0
  %5717 = vmatmul.mubr.f32.gmra.mxu0 %v2912
  %v5718 = vpop.f32.mrf.mxu0
  %v5719 = vadd.f32 0.0, %v5718
  %v5720 = vpop.f32.mrf.mxu0
  %5721 = vmatprep.mubr.f32.mxu0 0.0
  %5722 = vmatmul.mubr.f32.gmra.mxu0 %v2915
  %v5723 = vpop.f32.mrf.mxu0
  %v5724 = vadd.f32 0.0, %v5723
  %v5725 = vpop.f32.mrf.mxu0
  %5726 = vmatprep.mubr.f32.mxu0 0.0
  %5727 = vmatmul.mubr.f32.gmra.mxu0 %v2918
  %v5728 = vpop.f32.mrf.mxu0
  %v5729 = vadd.f32 0.0, %v5728
  %v5730 = vpop.f32.mrf.mxu0
  %5731 = vmatprep.mubr.f32.mxu0 0.0
  %5732 = vmatmul.mubr.f32.gmra.mxu0 %v2921
  %v5733 = vpop.f32.mrf.mxu0
  %v5734 = vadd.f32 0.0, %v5733
  %v5735 = vpop.f32.mrf.mxu0
  %5736 = vmatprep.mubr.f32.mxu0 0.0
  %5737 = vmatmul.mubr.f32.gmra.mxu0 %v2924
  %v5738 = vpop.f32.mrf.mxu0
  %v5739 = vadd.f32 0.0, %v5738
  %v5740 = vpop.f32.mrf.mxu0
  %5741 = vmatprep.mubr.f32.mxu0 0.0
  %5742 = vmatmul.mubr.f32.gmra.mxu0 %v2927
  %v5743 = vpop.f32.mrf.mxu0
  %v5744 = vadd.f32 0.0, %v5743
  %v5745 = vpop.f32.mrf.mxu0
  %5746 = vmatprep.mubr.f32.mxu0 0.0
  %5747 = vmatmul.mubr.f32.gmra.mxu0 %v2930
  %v5748 = vpop.f32.mrf.mxu0
  %v5749 = vadd.f32 0.0, %v5748
  %v5750 = vpop.f32.mrf.mxu0
  %5751 = vmatprep.mubr.f32.mxu0 0.0
  %5752 = vmatmul.mubr.f32.gmra.mxu0 %v2933
  %v5753 = vpop.f32.mrf.mxu0
  %v5754 = vadd.f32 0.0, %v5753
  %v5755 = vpop.f32.mrf.mxu0
  %5756 = vmatprep.mubr.f32.mxu0 0.0
  %5757 = vmatmul.mubr.f32.gmra.mxu0 %v2936
  %v5758 = vpop.f32.mrf.mxu0
  %v5759 = vadd.f32 0.0, %v5758
  %v5760 = vpop.f32.mrf.mxu0
  %5761 = vmatprep.mubr.f32.mxu0 0.0
  %5762 = vmatmul.mubr.f32.gmra.mxu0 %v2939
  %v5763 = vpop.f32.mrf.mxu0
  %v5764 = vadd.f32 0.0, %v5763
  %v5765 = vpop.f32.mrf.mxu0
  %5766 = vdwg.mxu0
  %v5767 = vadd.f32 %v5606, %v5689
  %v5768 = vadd.f32 %v5607, %v5694
  %v5769 = vadd.f32 %v5608, %v5699
  %v5770 = vadd.f32 %v5609, %v5704
  %v5771 = vadd.f32 %v5610, %v5709
  %v5772 = vadd.f32 %v5611, %v5714
  %v5773 = vadd.f32 %v5612, %v5719
  %v5774 = vadd.f32 %v5613, %v5724
  %v5775 = vadd.f32 %v5614, %v5729
  %v5776 = vadd.f32 %v5615, %v5734
  %v5777 = vadd.f32 %v5616, %v5739
  %v5778 = vadd.f32 %v5617, %v5744
  %v5779 = vadd.f32 %v5618, %v5749
  %v5780 = vadd.f32 %v5619, %v5754
  %v5781 = vadd.f32 %v5620, %v5759
  %v5782 = vadd.f32 %v5621, %v5764
  %v5783 = vxor.u32 %v5767, 2147483648
  %v5784 = vxor.u32 %v5768, 2147483648
  %v5785 = vxor.u32 %v5769, 2147483648
  %v5786 = vxor.u32 %v5770, 2147483648
  %v5787 = vmul.f32 %v5783, 1.442695
  %v5788 = vpow.pop %v5787
  %v5789 = vmul.f32 %v5784, 1.442695
  %v5790 = vpow.pop %v5789
  %v5791 = vmul.f32 %v5785, 1.442695
  %v5792 = vpow.pop %v5791
  %v5793 = vmul.f32 %v5786, 1.442695
  %v5794 = vpow.pop %v5793
  %v5795 = vadd.f32 %v5788, 1.0
  %v5796 = vadd.f32 %v5790, 1.0
  %v5797 = vadd.f32 %v5792, 1.0
  %v5798 = vadd.f32 %v5794, 1.0
  %v5799 = vrcp.pop %v5795
  %v5800 = vmul.f32 1.0, %v5799
  %v5801 = vrcp.pop %v5796
  %v5802 = vmul.f32 1.0, %v5801
  %v5803 = vrcp.pop %v5797
  %v5804 = vmul.f32 1.0, %v5803
  %v5805 = vrcp.pop %v5798
  %v5806 = vmul.f32 1.0, %v5805
  %v5807 = vxor.u32 %v5771, 2147483648
  %v5808 = vxor.u32 %v5772, 2147483648
  %v5809 = vxor.u32 %v5773, 2147483648
  %v5810 = vxor.u32 %v5774, 2147483648
  %v5811 = vmul.f32 %v5807, 1.442695
  %v5812 = vpow.pop %v5811
  %v5813 = vmul.f32 %v5808, 1.442695
  %v5814 = vpow.pop %v5813
  %v5815 = vmul.f32 %v5809, 1.442695
  %v5816 = vpow.pop %v5815
  %v5817 = vmul.f32 %v5810, 1.442695
  %v5818 = vpow.pop %v5817
  %v5819 = vadd.f32 %v5812, 1.0
  %v5820 = vadd.f32 %v5814, 1.0
  %v5821 = vadd.f32 %v5816, 1.0
  %v5822 = vadd.f32 %v5818, 1.0
  %v5823 = vrcp.pop %v5819
  %v5824 = vmul.f32 1.0, %v5823
  %v5825 = vrcp.pop %v5820
  %v5826 = vmul.f32 1.0, %v5825
  %v5827 = vrcp.pop %v5821
  %v5828 = vmul.f32 1.0, %v5827
  %v5829 = vrcp.pop %v5822
  %v5830 = vmul.f32 1.0, %v5829
  %v5831 = vtanh.pop %v5775
  %v5832 = vtanh.pop %v5776
  %v5833 = vtanh.pop %v5777
  %v5834 = vtanh.pop %v5778
  %v5835 = vxor.u32 %v5779, 2147483648
  %v5836 = vxor.u32 %v5780, 2147483648
  %v5837 = vxor.u32 %v5781, 2147483648
  %v5838 = vxor.u32 %v5782, 2147483648
  %v5839 = vmul.f32 %v5835, 1.442695
  %v5840 = vpow.pop %v5839
  %v5841 = vmul.f32 %v5836, 1.442695
  %v5842 = vpow.pop %v5841
  %v5843 = vmul.f32 %v5837, 1.442695
  %v5844 = vpow.pop %v5843
  %v5845 = vmul.f32 %v5838, 1.442695
  %v5846 = vpow.pop %v5845
  %v5847 = vadd.f32 %v5840, 1.0
  %v5848 = vadd.f32 %v5842, 1.0
  %v5849 = vadd.f32 %v5844, 1.0
  %v5850 = vadd.f32 %v5846, 1.0
  %v5851 = vrcp.pop %v5847
  %v5852 = vmul.f32 1.0, %v5851
  %v5853 = vrcp.pop %v5848
  %v5854 = vmul.f32 1.0, %v5853
  %v5855 = vrcp.pop %v5849
  %v5856 = vmul.f32 1.0, %v5855
  %v5857 = vrcp.pop %v5850
  %v5858 = vmul.f32 1.0, %v5857
  %v5859 = vmul.f32 %v5824, %v5602
  %v5860 = vmul.f32 %v5826, %v5603
  %v5861 = vmul.f32 %v5828, %v5604
  %v5862 = vmul.f32 %v5830, %v5605
  %v5863 = vmul.f32 %v5800, %v5831
  %v5864 = vmul.f32 %v5802, %v5832
  %v5865 = vmul.f32 %v5804, %v5833
  %v5866 = vmul.f32 %v5806, %v5834
  %v5867 = vadd.f32 %v5859, %v5863
  %v5868 = vadd.f32 %v5860, %v5864
  %v5869 = vadd.f32 %v5861, %v5865
  %v5870 = vadd.f32 %v5862, %v5866
  %v5871 = vtanh.pop %v5867
  %v5872 = vtanh.pop %v5868
  %v5873 = vtanh.pop %v5869
  %v5874 = vtanh.pop %v5870
  %v5875 = vmul.f32 %v5852, %v5871
  %v5876 = vmul.f32 %v5854, %v5872
  %v5877 = vmul.f32 %v5856, %v5873
  %v5878 = vmul.f32 %v5858, %v5874
  %v5879 = vsel %vm2873, 9, 6
  %v5880 = vsel %vm2874, 9, 6
  %v5881 = vsel %vm2875, 9, 6
  %v5882 = vsel %vm2876, 9, 6
  %vm5883 = vcmp.lt.s32.totalorder %v5879, %v3205
  %vm5884 = vcmp.lt.s32.totalorder %v5880, %v3205
  %vm5885 = vcmp.lt.s32.totalorder %v5881, %v3205
  %vm5886 = vcmp.lt.s32.totalorder %v5882, %v3205
  %v5887 = vsel %vm5883, %v5875, 0.0
  %v5888 = vsel %vm5884, %v5876, 0.0
  %v5889 = vsel %vm5885, %v5877, 0.0
  %v5890 = vsel %vm5886, %v5878, 0.0
  %s5891 = scalar_lea.vmem %s5, 288
  %5892 = vst [vmem:[%s5891] sm:$0xff] %v5887
  %5893 = vst [vmem:[%s5891 + $0x8] sm:$0xff] %v5888
  %5894 = vst [vmem:[%s5891 + $0x10] sm:$0xff] %v5889
  %5895 = vst [vmem:[%s5891 + $0x18] sm:$0xff] %v5890
  %v5896 = vsel %vm5883, %v5875, %v5598
  %v5897 = vsel %vm5884, %v5876, %v5599
  %v5898 = vsel %vm5885, %v5877, %v5600
  %v5899 = vsel %vm5886, %v5878, %v5601
  %v5900 = vsel %vm5883, %v5867, %v5602
  %v5901 = vsel %vm5884, %v5868, %v5603
  %v5902 = vsel %vm5885, %v5869, %v5604
  %v5903 = vsel %vm5886, %v5870, %v5605
  %v5904 = vld [vmem:[%s1189] sm:$0xff]
  %v5905 = vld [vmem:[%s1189 + $0x8] sm:$0xff]
  %v5906 = vld [vmem:[%s1189 + $0x10] sm:$0xff]
  %v5907 = vld [vmem:[%s1189 + $0x18] sm:$0xff]
  %v5908 = vld [vmem:[%s1189 + $0x20] sm:$0xff]
  %v5909 = vld [vmem:[%s1189 + $0x28] sm:$0xff]
  %v5910 = vld [vmem:[%s1189 + $0x30] sm:$0xff]
  %v5911 = vld [vmem:[%s1189 + $0x38] sm:$0xff]
  %v5912 = vld [vmem:[%s1189 + $0x40] sm:$0xff]
  %v5913 = vld [vmem:[%s1189 + $0x48] sm:$0xff]
  %v5914 = vld [vmem:[%s1189 + $0x50] sm:$0xff]
  %v5915 = vld [vmem:[%s1189 + $0x58] sm:$0xff]
  %v5916 = vld [vmem:[%s1189 + $0x60] sm:$0xff]
  %v5917 = vld [vmem:[%s1189 + $0x68] sm:$0xff]
  %v5918 = vld [vmem:[%s1189 + $0x70] sm:$0xff]
  %v5919 = vld [vmem:[%s1189 + $0x78] sm:$0xff]
  %5920 = vmatprep.subr.mxu0 0.0
  %5921 = vmatpush1.msra.mxu0 0.0
  %5922 = vmatprep.subr.mxu0 0.0
  %5923 = vmatpush1.msra.mxu0 0.0
  %5924 = vmatprep.subr.mxu0 0.0
  %5925 = vmatpush1.msra.mxu0 0.0
  %5926 = vmatprep.subr.mxu0 0.0
  %5927 = vmatpush1.msra.mxu0 0.0
  %5928 = vmatprep.subr.mxu0 0.0
  %5929 = vmatpush1.msra.mxu0 0.0
  %5930 = vmatprep.subr.mxu0 0.0
  %5931 = vmatpush1.msra.mxu0 0.0
  %5932 = vmatprep.subr.mxu0 0.0
  %5933 = vmatpush1.msra.mxu0 0.0
  %5934 = vmatprep.subr.mxu0 0.0
  %5935 = vmatpush1.msra.mxu0 0.0
  %5936 = vmatprep.subr.mxu0 0.0
  %5937 = vmatpush1.msra.mxu0 0.0
  %5938 = vmatprep.subr.mxu0 0.0
  %5939 = vmatpush1.msra.mxu0 0.0
  %5940 = vmatprep.subr.mxu0 0.0
  %5941 = vmatpush1.msra.mxu0 0.0
  %5942 = vmatprep.subr.mxu0 0.0
  %5943 = vmatpush1.msra.mxu0 0.0
  %5944 = vmatprep.subr.mxu0 0.0
  %5945 = vmatpush1.msra.mxu0 %v5899
  %5946 = vmatprep.subr.mxu0 0.0
  %5947 = vmatpush1.msra.mxu0 %v5898
  %5948 = vmatprep.subr.mxu0 0.0
  %5949 = vmatpush1.msra.mxu0 %v5897
  %5950 = vmatprep.subr.mxu0 0.0
  %5951 = vmatpush1.msra.mxu0 %v5896
  %5952 = vmatprep.subr.mxu0 0.0
  %5953 = vmatpush2.msra.mxu0 0.0
  %5954 = vmatprep.subr.mxu0 0.0
  %5955 = vmatpush2.msra.mxu0 0.0
  %5956 = vmatprep.subr.mxu0 0.0
  %5957 = vmatpush2.msra.mxu0 0.0
  %5958 = vmatprep.subr.mxu0 0.0
  %5959 = vmatpush2.msra.mxu0 0.0
  %5960 = vmatprep.subr.mxu0 0.0
  %5961 = vmatpush2.msra.mxu0 0.0
  %5962 = vmatprep.subr.mxu0 0.0
  %5963 = vmatpush2.msra.mxu0 0.0
  %5964 = vmatprep.subr.mxu0 0.0
  %5965 = vmatpush2.msra.mxu0 0.0
  %5966 = vmatprep.subr.mxu0 0.0
  %5967 = vmatpush2.msra.mxu0 0.0
  %5968 = vmatprep.subr.mxu0 0.0
  %5969 = vmatpush2.msra.mxu0 0.0
  %5970 = vmatprep.subr.mxu0 0.0
  %5971 = vmatpush2.msra.mxu0 0.0
  %5972 = vmatprep.subr.mxu0 0.0
  %5973 = vmatpush2.msra.mxu0 0.0
  %5974 = vmatprep.subr.mxu0 0.0
  %5975 = vmatpush2.msra.mxu0 0.0
  %5976 = vmatprep.subr.mxu0 0.0
  %5977 = vmatpush2.msra.mxu0 0.0
  %5978 = vmatprep.subr.mxu0 0.0
  %5979 = vmatpush2.msra.mxu0 0.0
  %5980 = vmatprep.subr.mxu0 0.0
  %5981 = vmatpush2.msra.mxu0 0.0
  %5982 = vmatprep.subr.mxu0 0.0
  %5983 = vmatpush2.msra.mxu0 0.0
  %5984 = vmatprep.mubr.f32.mxu0 0.0
  %5985 = vmatmul.mubr.f32.gmra.mxu0 %v2894
  %v5986 = vpop.f32.mrf.mxu0
  %v5987 = vadd.f32 0.0, %v5986
  %v5988 = vpop.f32.mrf.mxu0
  %5989 = vmatprep.mubr.f32.mxu0 0.0
  %5990 = vmatmul.mubr.f32.gmra.mxu0 %v2897
  %v5991 = vpop.f32.mrf.mxu0
  %v5992 = vadd.f32 0.0, %v5991
  %v5993 = vpop.f32.mrf.mxu0
  %5994 = vmatprep.mubr.f32.mxu0 0.0
  %5995 = vmatmul.mubr.f32.gmra.mxu0 %v2900
  %v5996 = vpop.f32.mrf.mxu0
  %v5997 = vadd.f32 0.0, %v5996
  %v5998 = vpop.f32.mrf.mxu0
  %5999 = vmatprep.mubr.f32.mxu0 0.0
  %6000 = vmatmul.mubr.f32.gmra.mxu0 %v2903
  %v6001 = vpop.f32.mrf.mxu0
  %v6002 = vadd.f32 0.0, %v6001
  %v6003 = vpop.f32.mrf.mxu0
  %6004 = vmatprep.mubr.f32.mxu0 0.0
  %6005 = vmatmul.mubr.f32.gmra.mxu0 %v2906
  %v6006 = vpop.f32.mrf.mxu0
  %v6007 = vadd.f32 0.0, %v6006
  %v6008 = vpop.f32.mrf.mxu0
  %6009 = vmatprep.mubr.f32.mxu0 0.0
  %6010 = vmatmul.mubr.f32.gmra.mxu0 %v2909
  %v6011 = vpop.f32.mrf.mxu0
  %v6012 = vadd.f32 0.0, %v6011
  %v6013 = vpop.f32.mrf.mxu0
  %6014 = vmatprep.mubr.f32.mxu0 0.0
  %6015 = vmatmul.mubr.f32.gmra.mxu0 %v2912
  %v6016 = vpop.f32.mrf.mxu0
  %v6017 = vadd.f32 0.0, %v6016
  %v6018 = vpop.f32.mrf.mxu0
  %6019 = vmatprep.mubr.f32.mxu0 0.0
  %6020 = vmatmul.mubr.f32.gmra.mxu0 %v2915
  %v6021 = vpop.f32.mrf.mxu0
  %v6022 = vadd.f32 0.0, %v6021
  %v6023 = vpop.f32.mrf.mxu0
  %6024 = vmatprep.mubr.f32.mxu0 0.0
  %6025 = vmatmul.mubr.f32.gmra.mxu0 %v2918
  %v6026 = vpop.f32.mrf.mxu0
  %v6027 = vadd.f32 0.0, %v6026
  %v6028 = vpop.f32.mrf.mxu0
  %6029 = vmatprep.mubr.f32.mxu0 0.0
  %6030 = vmatmul.mubr.f32.gmra.mxu0 %v2921
  %v6031 = vpop.f32.mrf.mxu0
  %v6032 = vadd.f32 0.0, %v6031
  %v6033 = vpop.f32.mrf.mxu0
  %6034 = vmatprep.mubr.f32.mxu0 0.0
  %6035 = vmatmul.mubr.f32.gmra.mxu0 %v2924
  %v6036 = vpop.f32.mrf.mxu0
  %v6037 = vadd.f32 0.0, %v6036
  %v6038 = vpop.f32.mrf.mxu0
  %6039 = vmatprep.mubr.f32.mxu0 0.0
  %6040 = vmatmul.mubr.f32.gmra.mxu0 %v2927
  %v6041 = vpop.f32.mrf.mxu0
  %v6042 = vadd.f32 0.0, %v6041
  %v6043 = vpop.f32.mrf.mxu0
  %6044 = vmatprep.mubr.f32.mxu0 0.0
  %6045 = vmatmul.mubr.f32.gmra.mxu0 %v2930
  %v6046 = vpop.f32.mrf.mxu0
  %v6047 = vadd.f32 0.0, %v6046
  %v6048 = vpop.f32.mrf.mxu0
  %6049 = vmatprep.mubr.f32.mxu0 0.0
  %6050 = vmatmul.mubr.f32.gmra.mxu0 %v2933
  %v6051 = vpop.f32.mrf.mxu0
  %v6052 = vadd.f32 0.0, %v6051
  %v6053 = vpop.f32.mrf.mxu0
  %6054 = vmatprep.mubr.f32.mxu0 0.0
  %6055 = vmatmul.mubr.f32.gmra.mxu0 %v2936
  %v6056 = vpop.f32.mrf.mxu0
  %v6057 = vadd.f32 0.0, %v6056
  %v6058 = vpop.f32.mrf.mxu0
  %6059 = vmatprep.mubr.f32.mxu0 0.0
  %6060 = vmatmul.mubr.f32.gmra.mxu0 %v2939
  %v6061 = vpop.f32.mrf.mxu0
  %v6062 = vadd.f32 0.0, %v6061
  %v6063 = vpop.f32.mrf.mxu0
  %6064 = vdwg.mxu0
  %v6065 = vadd.f32 %v5904, %v5987
  %v6066 = vadd.f32 %v5905, %v5992
  %v6067 = vadd.f32 %v5906, %v5997
  %v6068 = vadd.f32 %v5907, %v6002
  %v6069 = vadd.f32 %v5908, %v6007
  %v6070 = vadd.f32 %v5909, %v6012
  %v6071 = vadd.f32 %v5910, %v6017
  %v6072 = vadd.f32 %v5911, %v6022
  %v6073 = vadd.f32 %v5912, %v6027
  %v6074 = vadd.f32 %v5913, %v6032
  %v6075 = vadd.f32 %v5914, %v6037
  %v6076 = vadd.f32 %v5915, %v6042
  %v6077 = vadd.f32 %v5916, %v6047
  %v6078 = vadd.f32 %v5917, %v6052
  %v6079 = vadd.f32 %v5918, %v6057
  %v6080 = vadd.f32 %v5919, %v6062
  %v6081 = vxor.u32 %v6065, 2147483648
  %v6082 = vxor.u32 %v6066, 2147483648
  %v6083 = vxor.u32 %v6067, 2147483648
  %v6084 = vxor.u32 %v6068, 2147483648
  %v6085 = vmul.f32 %v6081, 1.442695
  %v6086 = vpow.pop %v6085
  %v6087 = vmul.f32 %v6082, 1.442695
  %v6088 = vpow.pop %v6087
  %v6089 = vmul.f32 %v6083, 1.442695
  %v6090 = vpow.pop %v6089
  %v6091 = vmul.f32 %v6084, 1.442695
  %v6092 = vpow.pop %v6091
  %v6093 = vadd.f32 %v6086, 1.0
  %v6094 = vadd.f32 %v6088, 1.0
  %v6095 = vadd.f32 %v6090, 1.0
  %v6096 = vadd.f32 %v6092, 1.0
  %v6097 = vrcp.pop %v6093
  %v6098 = vmul.f32 1.0, %v6097
  %v6099 = vrcp.pop %v6094
  %v6100 = vmul.f32 1.0, %v6099
  %v6101 = vrcp.pop %v6095
  %v6102 = vmul.f32 1.0, %v6101
  %v6103 = vrcp.pop %v6096
  %v6104 = vmul.f32 1.0, %v6103
  %v6105 = vxor.u32 %v6069, 2147483648
  %v6106 = vxor.u32 %v6070, 2147483648
  %v6107 = vxor.u32 %v6071, 2147483648
  %v6108 = vxor.u32 %v6072, 2147483648
  %v6109 = vmul.f32 %v6105, 1.442695
  %v6110 = vpow.pop %v6109
  %v6111 = vmul.f32 %v6106, 1.442695
  %v6112 = vpow.pop %v6111
  %v6113 = vmul.f32 %v6107, 1.442695
  %v6114 = vpow.pop %v6113
  %v6115 = vmul.f32 %v6108, 1.442695
  %v6116 = vpow.pop %v6115
  %v6117 = vadd.f32 %v6110, 1.0
  %v6118 = vadd.f32 %v6112, 1.0
  %v6119 = vadd.f32 %v6114, 1.0
  %v6120 = vadd.f32 %v6116, 1.0
  %v6121 = vrcp.pop %v6117
  %v6122 = vmul.f32 1.0, %v6121
  %v6123 = vrcp.pop %v6118
  %v6124 = vmul.f32 1.0, %v6123
  %v6125 = vrcp.pop %v6119
  %v6126 = vmul.f32 1.0, %v6125
  %v6127 = vrcp.pop %v6120
  %v6128 = vmul.f32 1.0, %v6127
  %v6129 = vtanh.pop %v6073
  %v6130 = vtanh.pop %v6074
  %v6131 = vtanh.pop %v6075
  %v6132 = vtanh.pop %v6076
  %v6133 = vxor.u32 %v6077, 2147483648
  %v6134 = vxor.u32 %v6078, 2147483648
  %v6135 = vxor.u32 %v6079, 2147483648
  %v6136 = vxor.u32 %v6080, 2147483648
  %v6137 = vmul.f32 %v6133, 1.442695
  %v6138 = vpow.pop %v6137
  %v6139 = vmul.f32 %v6134, 1.442695
  %v6140 = vpow.pop %v6139
  %v6141 = vmul.f32 %v6135, 1.442695
  %v6142 = vpow.pop %v6141
  %v6143 = vmul.f32 %v6136, 1.442695
  %v6144 = vpow.pop %v6143
  %v6145 = vadd.f32 %v6138, 1.0
  %v6146 = vadd.f32 %v6140, 1.0
  %v6147 = vadd.f32 %v6142, 1.0
  %v6148 = vadd.f32 %v6144, 1.0
  %v6149 = vrcp.pop %v6145
  %v6150 = vmul.f32 1.0, %v6149
  %v6151 = vrcp.pop %v6146
  %v6152 = vmul.f32 1.0, %v6151
  %v6153 = vrcp.pop %v6147
  %v6154 = vmul.f32 1.0, %v6153
  %v6155 = vrcp.pop %v6148
  %v6156 = vmul.f32 1.0, %v6155
  %v6157 = vmul.f32 %v6122, %v5900
  %v6158 = vmul.f32 %v6124, %v5901
  %v6159 = vmul.f32 %v6126, %v5902
  %v6160 = vmul.f32 %v6128, %v5903
  %v6161 = vmul.f32 %v6098, %v6129
  %v6162 = vmul.f32 %v6100, %v6130
  %v6163 = vmul.f32 %v6102, %v6131
  %v6164 = vmul.f32 %v6104, %v6132
  %v6165 = vadd.f32 %v6157, %v6161
  %v6166 = vadd.f32 %v6158, %v6162
  %v6167 = vadd.f32 %v6159, %v6163
  %v6168 = vadd.f32 %v6160, %v6164
  %v6169 = vtanh.pop %v6165
  %v6170 = vtanh.pop %v6166
  %v6171 = vtanh.pop %v6167
  %v6172 = vtanh.pop %v6168
  %v6173 = vmul.f32 %v6150, %v6169
  %v6174 = vmul.f32 %v6152, %v6170
  %v6175 = vmul.f32 %v6154, %v6171
  %v6176 = vmul.f32 %v6156, %v6172
  %v6177 = vsel %vm2873, 10, 5
  %v6178 = vsel %vm2874, 10, 5
  %v6179 = vsel %vm2875, 10, 5
  %v6180 = vsel %vm2876, 10, 5
  %vm6181 = vcmp.lt.s32.totalorder %v6177, %v3205
  %vm6182 = vcmp.lt.s32.totalorder %v6178, %v3205
  %vm6183 = vcmp.lt.s32.totalorder %v6179, %v3205
  %vm6184 = vcmp.lt.s32.totalorder %v6180, %v3205
  %v6185 = vsel %vm6181, %v6173, 0.0
  %v6186 = vsel %vm6182, %v6174, 0.0
  %v6187 = vsel %vm6183, %v6175, 0.0
  %v6188 = vsel %vm6184, %v6176, 0.0
  %s6189 = scalar_lea.vmem %s5, 320
  %6190 = vst [vmem:[%s6189] sm:$0xff] %v6185
  %6191 = vst [vmem:[%s6189 + $0x8] sm:$0xff] %v6186
  %6192 = vst [vmem:[%s6189 + $0x10] sm:$0xff] %v6187
  %6193 = vst [vmem:[%s6189 + $0x18] sm:$0xff] %v6188
  %v6194 = vsel %vm6181, %v6173, %v5896
  %v6195 = vsel %vm6182, %v6174, %v5897
  %v6196 = vsel %vm6183, %v6175, %v5898
  %v6197 = vsel %vm6184, %v6176, %v5899
  %v6198 = vsel %vm6181, %v6165, %v5900
  %v6199 = vsel %vm6182, %v6166, %v5901
  %v6200 = vsel %vm6183, %v6167, %v5902
  %v6201 = vsel %vm6184, %v6168, %v5903
  %v6202 = vld [vmem:[%s1021] sm:$0xff]
  %v6203 = vld [vmem:[%s1021 + $0x8] sm:$0xff]
  %v6204 = vld [vmem:[%s1021 + $0x10] sm:$0xff]
  %v6205 = vld [vmem:[%s1021 + $0x18] sm:$0xff]
  %v6206 = vld [vmem:[%s1021 + $0x20] sm:$0xff]
  %v6207 = vld [vmem:[%s1021 + $0x28] sm:$0xff]
  %v6208 = vld [vmem:[%s1021 + $0x30] sm:$0xff]
  %v6209 = vld [vmem:[%s1021 + $0x38] sm:$0xff]
  %v6210 = vld [vmem:[%s1021 + $0x40] sm:$0xff]
  %v6211 = vld [vmem:[%s1021 + $0x48] sm:$0xff]
  %v6212 = vld [vmem:[%s1021 + $0x50] sm:$0xff]
  %v6213 = vld [vmem:[%s1021 + $0x58] sm:$0xff]
  %v6214 = vld [vmem:[%s1021 + $0x60] sm:$0xff]
  %v6215 = vld [vmem:[%s1021 + $0x68] sm:$0xff]
  %v6216 = vld [vmem:[%s1021 + $0x70] sm:$0xff]
  %v6217 = vld [vmem:[%s1021 + $0x78] sm:$0xff]
  %6218 = vmatprep.subr.mxu0 0.0
  %6219 = vmatpush1.msra.mxu0 0.0
  %6220 = vmatprep.subr.mxu0 0.0
  %6221 = vmatpush1.msra.mxu0 0.0
  %6222 = vmatprep.subr.mxu0 0.0
  %6223 = vmatpush1.msra.mxu0 0.0
  %6224 = vmatprep.subr.mxu0 0.0
  %6225 = vmatpush1.msra.mxu0 0.0
  %6226 = vmatprep.subr.mxu0 0.0
  %6227 = vmatpush1.msra.mxu0 0.0
  %6228 = vmatprep.subr.mxu0 0.0
  %6229 = vmatpush1.msra.mxu0 0.0
  %6230 = vmatprep.subr.mxu0 0.0
  %6231 = vmatpush1.msra.mxu0 0.0
  %6232 = vmatprep.subr.mxu0 0.0
  %6233 = vmatpush1.msra.mxu0 0.0
  %6234 = vmatprep.subr.mxu0 0.0
  %6235 = vmatpush1.msra.mxu0 0.0
  %6236 = vmatprep.subr.mxu0 0.0
  %6237 = vmatpush1.msra.mxu0 0.0
  %6238 = vmatprep.subr.mxu0 0.0
  %6239 = vmatpush1.msra.mxu0 0.0
  %6240 = vmatprep.subr.mxu0 0.0
  %6241 = vmatpush1.msra.mxu0 0.0
  %6242 = vmatprep.subr.mxu0 0.0
  %6243 = vmatpush1.msra.mxu0 %v6197
  %6244 = vmatprep.subr.mxu0 0.0
  %6245 = vmatpush1.msra.mxu0 %v6196
  %6246 = vmatprep.subr.mxu0 0.0
  %6247 = vmatpush1.msra.mxu0 %v6195
  %6248 = vmatprep.subr.mxu0 0.0
  %6249 = vmatpush1.msra.mxu0 %v6194
  %6250 = vmatprep.subr.mxu0 0.0
  %6251 = vmatpush2.msra.mxu0 0.0
  %6252 = vmatprep.subr.mxu0 0.0
  %6253 = vmatpush2.msra.mxu0 0.0
  %6254 = vmatprep.subr.mxu0 0.0
  %6255 = vmatpush2.msra.mxu0 0.0
  %6256 = vmatprep.subr.mxu0 0.0
  %6257 = vmatpush2.msra.mxu0 0.0
  %6258 = vmatprep.subr.mxu0 0.0
  %6259 = vmatpush2.msra.mxu0 0.0
  %6260 = vmatprep.subr.mxu0 0.0
  %6261 = vmatpush2.msra.mxu0 0.0
  %6262 = vmatprep.subr.mxu0 0.0
  %6263 = vmatpush2.msra.mxu0 0.0
  %6264 = vmatprep.subr.mxu0 0.0
  %6265 = vmatpush2.msra.mxu0 0.0
  %6266 = vmatprep.subr.mxu0 0.0
  %6267 = vmatpush2.msra.mxu0 0.0
  %6268 = vmatprep.subr.mxu0 0.0
  %6269 = vmatpush2.msra.mxu0 0.0
  %6270 = vmatprep.subr.mxu0 0.0
  %6271 = vmatpush2.msra.mxu0 0.0
  %6272 = vmatprep.subr.mxu0 0.0
  %6273 = vmatpush2.msra.mxu0 0.0
  %6274 = vmatprep.subr.mxu0 0.0
  %6275 = vmatpush2.msra.mxu0 0.0
  %6276 = vmatprep.subr.mxu0 0.0
  %6277 = vmatpush2.msra.mxu0 0.0
  %6278 = vmatprep.subr.mxu0 0.0
  %6279 = vmatpush2.msra.mxu0 0.0
  %6280 = vmatprep.subr.mxu0 0.0
  %6281 = vmatpush2.msra.mxu0 0.0
  %6282 = vmatprep.mubr.f32.mxu0 0.0
  %6283 = vmatmul.mubr.f32.gmra.mxu0 %v2894
  %v6284 = vpop.f32.mrf.mxu0
  %v6285 = vadd.f32 0.0, %v6284
  %v6286 = vpop.f32.mrf.mxu0
  %6287 = vmatprep.mubr.f32.mxu0 0.0
  %6288 = vmatmul.mubr.f32.gmra.mxu0 %v2897
  %v6289 = vpop.f32.mrf.mxu0
  %v6290 = vadd.f32 0.0, %v6289
  %v6291 = vpop.f32.mrf.mxu0
  %6292 = vmatprep.mubr.f32.mxu0 0.0
  %6293 = vmatmul.mubr.f32.gmra.mxu0 %v2900
  %v6294 = vpop.f32.mrf.mxu0
  %v6295 = vadd.f32 0.0, %v6294
  %v6296 = vpop.f32.mrf.mxu0
  %6297 = vmatprep.mubr.f32.mxu0 0.0
  %6298 = vmatmul.mubr.f32.gmra.mxu0 %v2903
  %v6299 = vpop.f32.mrf.mxu0
  %v6300 = vadd.f32 0.0, %v6299
  %v6301 = vpop.f32.mrf.mxu0
  %6302 = vmatprep.mubr.f32.mxu0 0.0
  %6303 = vmatmul.mubr.f32.gmra.mxu0 %v2906
  %v6304 = vpop.f32.mrf.mxu0
  %v6305 = vadd.f32 0.0, %v6304
  %v6306 = vpop.f32.mrf.mxu0
  %6307 = vmatprep.mubr.f32.mxu0 0.0
  %6308 = vmatmul.mubr.f32.gmra.mxu0 %v2909
  %v6309 = vpop.f32.mrf.mxu0
  %v6310 = vadd.f32 0.0, %v6309
  %v6311 = vpop.f32.mrf.mxu0
  %6312 = vmatprep.mubr.f32.mxu0 0.0
  %6313 = vmatmul.mubr.f32.gmra.mxu0 %v2912
  %v6314 = vpop.f32.mrf.mxu0
  %v6315 = vadd.f32 0.0, %v6314
  %v6316 = vpop.f32.mrf.mxu0
  %6317 = vmatprep.mubr.f32.mxu0 0.0
  %6318 = vmatmul.mubr.f32.gmra.mxu0 %v2915
  %v6319 = vpop.f32.mrf.mxu0
  %v6320 = vadd.f32 0.0, %v6319
  %v6321 = vpop.f32.mrf.mxu0
  %6322 = vmatprep.mubr.f32.mxu0 0.0
  %6323 = vmatmul.mubr.f32.gmra.mxu0 %v2918
  %v6324 = vpop.f32.mrf.mxu0
  %v6325 = vadd.f32 0.0, %v6324
  %v6326 = vpop.f32.mrf.mxu0
  %6327 = vmatprep.mubr.f32.mxu0 0.0
  %6328 = vmatmul.mubr.f32.gmra.mxu0 %v2921
  %v6329 = vpop.f32.mrf.mxu0
  %v6330 = vadd.f32 0.0, %v6329
  %v6331 = vpop.f32.mrf.mxu0
  %6332 = vmatprep.mubr.f32.mxu0 0.0
  %6333 = vmatmul.mubr.f32.gmra.mxu0 %v2924
  %v6334 = vpop.f32.mrf.mxu0
  %v6335 = vadd.f32 0.0, %v6334
  %v6336 = vpop.f32.mrf.mxu0
  %6337 = vmatprep.mubr.f32.mxu0 0.0
  %6338 = vmatmul.mubr.f32.gmra.mxu0 %v2927
  %v6339 = vpop.f32.mrf.mxu0
  %v6340 = vadd.f32 0.0, %v6339
  %v6341 = vpop.f32.mrf.mxu0
  %6342 = vmatprep.mubr.f32.mxu0 0.0
  %6343 = vmatmul.mubr.f32.gmra.mxu0 %v2930
  %v6344 = vpop.f32.mrf.mxu0
  %v6345 = vadd.f32 0.0, %v6344
  %v6346 = vpop.f32.mrf.mxu0
  %6347 = vmatprep.mubr.f32.mxu0 0.0
  %6348 = vmatmul.mubr.f32.gmra.mxu0 %v2933
  %v6349 = vpop.f32.mrf.mxu0
  %v6350 = vadd.f32 0.0, %v6349
  %v6351 = vpop.f32.mrf.mxu0
  %6352 = vmatprep.mubr.f32.mxu0 0.0
  %6353 = vmatmul.mubr.f32.gmra.mxu0 %v2936
  %v6354 = vpop.f32.mrf.mxu0
  %v6355 = vadd.f32 0.0, %v6354
  %v6356 = vpop.f32.mrf.mxu0
  %6357 = vmatprep.mubr.f32.mxu0 0.0
  %6358 = vmatmul.mubr.f32.gmra.mxu0 %v2939
  %v6359 = vpop.f32.mrf.mxu0
  %v6360 = vadd.f32 0.0, %v6359
  %v6361 = vpop.f32.mrf.mxu0
  %6362 = vdwg.mxu0
  %v6363 = vadd.f32 %v6202, %v6285
  %v6364 = vadd.f32 %v6203, %v6290
  %v6365 = vadd.f32 %v6204, %v6295
  %v6366 = vadd.f32 %v6205, %v6300
  %v6367 = vadd.f32 %v6206, %v6305
  %v6368 = vadd.f32 %v6207, %v6310
  %v6369 = vadd.f32 %v6208, %v6315
  %v6370 = vadd.f32 %v6209, %v6320
  %v6371 = vadd.f32 %v6210, %v6325
  %v6372 = vadd.f32 %v6211, %v6330
  %v6373 = vadd.f32 %v6212, %v6335
  %v6374 = vadd.f32 %v6213, %v6340
  %v6375 = vadd.f32 %v6214, %v6345
  %v6376 = vadd.f32 %v6215, %v6350
  %v6377 = vadd.f32 %v6216, %v6355
  %v6378 = vadd.f32 %v6217, %v6360
  %v6379 = vxor.u32 %v6363, 2147483648
  %v6380 = vxor.u32 %v6364, 2147483648
  %v6381 = vxor.u32 %v6365, 2147483648
  %v6382 = vxor.u32 %v6366, 2147483648
  %v6383 = vmul.f32 %v6379, 1.442695
  %v6384 = vpow.pop %v6383
  %v6385 = vmul.f32 %v6380, 1.442695
  %v6386 = vpow.pop %v6385
  %v6387 = vmul.f32 %v6381, 1.442695
  %v6388 = vpow.pop %v6387
  %v6389 = vmul.f32 %v6382, 1.442695
  %v6390 = vpow.pop %v6389
  %v6391 = vadd.f32 %v6384, 1.0
  %v6392 = vadd.f32 %v6386, 1.0
  %v6393 = vadd.f32 %v6388, 1.0
  %v6394 = vadd.f32 %v6390, 1.0
  %v6395 = vrcp.pop %v6391
  %v6396 = vmul.f32 1.0, %v6395
  %v6397 = vrcp.pop %v6392
  %v6398 = vmul.f32 1.0, %v6397
  %v6399 = vrcp.pop %v6393
  %v6400 = vmul.f32 1.0, %v6399
  %v6401 = vrcp.pop %v6394
  %v6402 = vmul.f32 1.0, %v6401
  %v6403 = vxor.u32 %v6367, 2147483648
  %v6404 = vxor.u32 %v6368, 2147483648
  %v6405 = vxor.u32 %v6369, 2147483648
  %v6406 = vxor.u32 %v6370, 2147483648
  %v6407 = vmul.f32 %v6403, 1.442695
  %v6408 = vpow.pop %v6407
  %v6409 = vmul.f32 %v6404, 1.442695
  %v6410 = vpow.pop %v6409
  %v6411 = vmul.f32 %v6405, 1.442695
  %v6412 = vpow.pop %v6411
  %v6413 = vmul.f32 %v6406, 1.442695
  %v6414 = vpow.pop %v6413
  %v6415 = vadd.f32 %v6408, 1.0
  %v6416 = vadd.f32 %v6410, 1.0
  %v6417 = vadd.f32 %v6412, 1.0
  %v6418 = vadd.f32 %v6414, 1.0
  %v6419 = vrcp.pop %v6415
  %v6420 = vmul.f32 1.0, %v6419
  %v6421 = vrcp.pop %v6416
  %v6422 = vmul.f32 1.0, %v6421
  %v6423 = vrcp.pop %v6417
  %v6424 = vmul.f32 1.0, %v6423
  %v6425 = vrcp.pop %v6418
  %v6426 = vmul.f32 1.0, %v6425
  %v6427 = vtanh.pop %v6371
  %v6428 = vtanh.pop %v6372
  %v6429 = vtanh.pop %v6373
  %v6430 = vtanh.pop %v6374
  %v6431 = vxor.u32 %v6375, 2147483648
  %v6432 = vxor.u32 %v6376, 2147483648
  %v6433 = vxor.u32 %v6377, 2147483648
  %v6434 = vxor.u32 %v6378, 2147483648
  %v6435 = vmul.f32 %v6431, 1.442695
  %v6436 = vpow.pop %v6435
  %v6437 = vmul.f32 %v6432, 1.442695
  %v6438 = vpow.pop %v6437
  %v6439 = vmul.f32 %v6433, 1.442695
  %v6440 = vpow.pop %v6439
  %v6441 = vmul.f32 %v6434, 1.442695
  %v6442 = vpow.pop %v6441
  %v6443 = vadd.f32 %v6436, 1.0
  %v6444 = vadd.f32 %v6438, 1.0
  %v6445 = vadd.f32 %v6440, 1.0
  %v6446 = vadd.f32 %v6442, 1.0
  %v6447 = vrcp.pop %v6443
  %v6448 = vmul.f32 1.0, %v6447
  %v6449 = vrcp.pop %v6444
  %v6450 = vmul.f32 1.0, %v6449
  %v6451 = vrcp.pop %v6445
  %v6452 = vmul.f32 1.0, %v6451
  %v6453 = vrcp.pop %v6446
  %v6454 = vmul.f32 1.0, %v6453
  %v6455 = vmul.f32 %v6420, %v6198
  %v6456 = vmul.f32 %v6422, %v6199
  %v6457 = vmul.f32 %v6424, %v6200
  %v6458 = vmul.f32 %v6426, %v6201
  %v6459 = vmul.f32 %v6396, %v6427
  %v6460 = vmul.f32 %v6398, %v6428
  %v6461 = vmul.f32 %v6400, %v6429
  %v6462 = vmul.f32 %v6402, %v6430
  %v6463 = vadd.f32 %v6455, %v6459
  %v6464 = vadd.f32 %v6456, %v6460
  %v6465 = vadd.f32 %v6457, %v6461
  %v6466 = vadd.f32 %v6458, %v6462
  %v6467 = vtanh.pop %v6463
  %v6468 = vtanh.pop %v6464
  %v6469 = vtanh.pop %v6465
  %v6470 = vtanh.pop %v6466
  %v6471 = vmul.f32 %v6448, %v6467
  %v6472 = vmul.f32 %v6450, %v6468
  %v6473 = vmul.f32 %v6452, %v6469
  %v6474 = vmul.f32 %v6454, %v6470
  %v6475 = vsel %vm2873, 11, 4
  %v6476 = vsel %vm2874, 11, 4
  %v6477 = vsel %vm2875, 11, 4
  %v6478 = vsel %vm2876, 11, 4
  %vm6479 = vcmp.lt.s32.totalorder %v6475, %v3205
  %vm6480 = vcmp.lt.s32.totalorder %v6476, %v3205
  %vm6481 = vcmp.lt.s32.totalorder %v6477, %v3205
  %vm6482 = vcmp.lt.s32.totalorder %v6478, %v3205
  %v6483 = vsel %vm6479, %v6471, 0.0
  %v6484 = vsel %vm6480, %v6472, 0.0
  %v6485 = vsel %vm6481, %v6473, 0.0
  %v6486 = vsel %vm6482, %v6474, 0.0
  %s6487 = scalar_lea.vmem %s5, 352
  %6488 = vst [vmem:[%s6487] sm:$0xff] %v6483
  %6489 = vst [vmem:[%s6487 + $0x8] sm:$0xff] %v6484
  %6490 = vst [vmem:[%s6487 + $0x10] sm:$0xff] %v6485
  %6491 = vst [vmem:[%s6487 + $0x18] sm:$0xff] %v6486
  %v6492 = vsel %vm6479, %v6471, %v6194
  %v6493 = vsel %vm6480, %v6472, %v6195
  %v6494 = vsel %vm6481, %v6473, %v6196
  %v6495 = vsel %vm6482, %v6474, %v6197
  %v6496 = vsel %vm6479, %v6463, %v6198
  %v6497 = vsel %vm6480, %v6464, %v6199
  %v6498 = vsel %vm6481, %v6465, %v6200
  %v6499 = vsel %vm6482, %v6466, %v6201
  %v6500 = vld [vmem:[%s853] sm:$0xff]
  %v6501 = vld [vmem:[%s853 + $0x8] sm:$0xff]
  %v6502 = vld [vmem:[%s853 + $0x10] sm:$0xff]
  %v6503 = vld [vmem:[%s853 + $0x18] sm:$0xff]
  %v6504 = vld [vmem:[%s853 + $0x20] sm:$0xff]
  %v6505 = vld [vmem:[%s853 + $0x28] sm:$0xff]
  %v6506 = vld [vmem:[%s853 + $0x30] sm:$0xff]
  %v6507 = vld [vmem:[%s853 + $0x38] sm:$0xff]
  %v6508 = vld [vmem:[%s853 + $0x40] sm:$0xff]
  %v6509 = vld [vmem:[%s853 + $0x48] sm:$0xff]
  %v6510 = vld [vmem:[%s853 + $0x50] sm:$0xff]
  %v6511 = vld [vmem:[%s853 + $0x58] sm:$0xff]
  %v6512 = vld [vmem:[%s853 + $0x60] sm:$0xff]
  %v6513 = vld [vmem:[%s853 + $0x68] sm:$0xff]
  %v6514 = vld [vmem:[%s853 + $0x70] sm:$0xff]
  %v6515 = vld [vmem:[%s853 + $0x78] sm:$0xff]
  %6516 = vmatprep.subr.mxu0 0.0
  %6517 = vmatpush1.msra.mxu0 0.0
  %6518 = vmatprep.subr.mxu0 0.0
  %6519 = vmatpush1.msra.mxu0 0.0
  %6520 = vmatprep.subr.mxu0 0.0
  %6521 = vmatpush1.msra.mxu0 0.0
  %6522 = vmatprep.subr.mxu0 0.0
  %6523 = vmatpush1.msra.mxu0 0.0
  %6524 = vmatprep.subr.mxu0 0.0
  %6525 = vmatpush1.msra.mxu0 0.0
  %6526 = vmatprep.subr.mxu0 0.0
  %6527 = vmatpush1.msra.mxu0 0.0
  %6528 = vmatprep.subr.mxu0 0.0
  %6529 = vmatpush1.msra.mxu0 0.0
  %6530 = vmatprep.subr.mxu0 0.0
  %6531 = vmatpush1.msra.mxu0 0.0
  %6532 = vmatprep.subr.mxu0 0.0
  %6533 = vmatpush1.msra.mxu0 0.0
  %6534 = vmatprep.subr.mxu0 0.0
  %6535 = vmatpush1.msra.mxu0 0.0
  %6536 = vmatprep.subr.mxu0 0.0
  %6537 = vmatpush1.msra.mxu0 0.0
  %6538 = vmatprep.subr.mxu0 0.0
  %6539 = vmatpush1.msra.mxu0 0.0
  %6540 = vmatprep.subr.mxu0 0.0
  %6541 = vmatpush1.msra.mxu0 %v6495
  %6542 = vmatprep.subr.mxu0 0.0
  %6543 = vmatpush1.msra.mxu0 %v6494
  %6544 = vmatprep.subr.mxu0 0.0
  %6545 = vmatpush1.msra.mxu0 %v6493
  %6546 = vmatprep.subr.mxu0 0.0
  %6547 = vmatpush1.msra.mxu0 %v6492
  %6548 = vmatprep.subr.mxu0 0.0
  %6549 = vmatpush2.msra.mxu0 0.0
  %6550 = vmatprep.subr.mxu0 0.0
  %6551 = vmatpush2.msra.mxu0 0.0
  %6552 = vmatprep.subr.mxu0 0.0
  %6553 = vmatpush2.msra.mxu0 0.0
  %6554 = vmatprep.subr.mxu0 0.0
  %6555 = vmatpush2.msra.mxu0 0.0
  %6556 = vmatprep.subr.mxu0 0.0
  %6557 = vmatpush2.msra.mxu0 0.0
  %6558 = vmatprep.subr.mxu0 0.0
  %6559 = vmatpush2.msra.mxu0 0.0
  %6560 = vmatprep.subr.mxu0 0.0
  %6561 = vmatpush2.msra.mxu0 0.0
  %6562 = vmatprep.subr.mxu0 0.0
  %6563 = vmatpush2.msra.mxu0 0.0
  %6564 = vmatprep.subr.mxu0 0.0
  %6565 = vmatpush2.msra.mxu0 0.0
  %6566 = vmatprep.subr.mxu0 0.0
  %6567 = vmatpush2.msra.mxu0 0.0
  %6568 = vmatprep.subr.mxu0 0.0
  %6569 = vmatpush2.msra.mxu0 0.0
  %6570 = vmatprep.subr.mxu0 0.0
  %6571 = vmatpush2.msra.mxu0 0.0
  %6572 = vmatprep.subr.mxu0 0.0
  %6573 = vmatpush2.msra.mxu0 0.0
  %6574 = vmatprep.subr.mxu0 0.0
  %6575 = vmatpush2.msra.mxu0 0.0
  %6576 = vmatprep.subr.mxu0 0.0
  %6577 = vmatpush2.msra.mxu0 0.0
  %6578 = vmatprep.subr.mxu0 0.0
  %6579 = vmatpush2.msra.mxu0 0.0
  %6580 = vmatprep.mubr.f32.mxu0 0.0
  %6581 = vmatmul.mubr.f32.gmra.mxu0 %v2894
  %v6582 = vpop.f32.mrf.mxu0
  %v6583 = vadd.f32 0.0, %v6582
  %v6584 = vpop.f32.mrf.mxu0
  %6585 = vmatprep.mubr.f32.mxu0 0.0
  %6586 = vmatmul.mubr.f32.gmra.mxu0 %v2897
  %v6587 = vpop.f32.mrf.mxu0
  %v6588 = vadd.f32 0.0, %v6587
  %v6589 = vpop.f32.mrf.mxu0
  %6590 = vmatprep.mubr.f32.mxu0 0.0
  %6591 = vmatmul.mubr.f32.gmra.mxu0 %v2900
  %v6592 = vpop.f32.mrf.mxu0
  %v6593 = vadd.f32 0.0, %v6592
  %v6594 = vpop.f32.mrf.mxu0
  %6595 = vmatprep.mubr.f32.mxu0 0.0
  %6596 = vmatmul.mubr.f32.gmra.mxu0 %v2903
  %v6597 = vpop.f32.mrf.mxu0
  %v6598 = vadd.f32 0.0, %v6597
  %v6599 = vpop.f32.mrf.mxu0
  %6600 = vmatprep.mubr.f32.mxu0 0.0
  %6601 = vmatmul.mubr.f32.gmra.mxu0 %v2906
  %v6602 = vpop.f32.mrf.mxu0
  %v6603 = vadd.f32 0.0, %v6602
  %v6604 = vpop.f32.mrf.mxu0
  %6605 = vmatprep.mubr.f32.mxu0 0.0
  %6606 = vmatmul.mubr.f32.gmra.mxu0 %v2909
  %v6607 = vpop.f32.mrf.mxu0
  %v6608 = vadd.f32 0.0, %v6607
  %v6609 = vpop.f32.mrf.mxu0
  %6610 = vmatprep.mubr.f32.mxu0 0.0
  %6611 = vmatmul.mubr.f32.gmra.mxu0 %v2912
  %v6612 = vpop.f32.mrf.mxu0
  %v6613 = vadd.f32 0.0, %v6612
  %v6614 = vpop.f32.mrf.mxu0
  %6615 = vmatprep.mubr.f32.mxu0 0.0
  %6616 = vmatmul.mubr.f32.gmra.mxu0 %v2915
  %v6617 = vpop.f32.mrf.mxu0
  %v6618 = vadd.f32 0.0, %v6617
  %v6619 = vpop.f32.mrf.mxu0
  %6620 = vmatprep.mubr.f32.mxu0 0.0
  %6621 = vmatmul.mubr.f32.gmra.mxu0 %v2918
  %v6622 = vpop.f32.mrf.mxu0
  %v6623 = vadd.f32 0.0, %v6622
  %v6624 = vpop.f32.mrf.mxu0
  %6625 = vmatprep.mubr.f32.mxu0 0.0
  %6626 = vmatmul.mubr.f32.gmra.mxu0 %v2921
  %v6627 = vpop.f32.mrf.mxu0
  %v6628 = vadd.f32 0.0, %v6627
  %v6629 = vpop.f32.mrf.mxu0
  %6630 = vmatprep.mubr.f32.mxu0 0.0
  %6631 = vmatmul.mubr.f32.gmra.mxu0 %v2924
  %v6632 = vpop.f32.mrf.mxu0
  %v6633 = vadd.f32 0.0, %v6632
  %v6634 = vpop.f32.mrf.mxu0
  %6635 = vmatprep.mubr.f32.mxu0 0.0
  %6636 = vmatmul.mubr.f32.gmra.mxu0 %v2927
  %v6637 = vpop.f32.mrf.mxu0
  %v6638 = vadd.f32 0.0, %v6637
  %v6639 = vpop.f32.mrf.mxu0
  %6640 = vmatprep.mubr.f32.mxu0 0.0
  %6641 = vmatmul.mubr.f32.gmra.mxu0 %v2930
  %v6642 = vpop.f32.mrf.mxu0
  %v6643 = vadd.f32 0.0, %v6642
  %v6644 = vpop.f32.mrf.mxu0
  %6645 = vmatprep.mubr.f32.mxu0 0.0
  %6646 = vmatmul.mubr.f32.gmra.mxu0 %v2933
  %v6647 = vpop.f32.mrf.mxu0
  %v6648 = vadd.f32 0.0, %v6647
  %v6649 = vpop.f32.mrf.mxu0
  %6650 = vmatprep.mubr.f32.mxu0 0.0
  %6651 = vmatmul.mubr.f32.gmra.mxu0 %v2936
  %v6652 = vpop.f32.mrf.mxu0
  %v6653 = vadd.f32 0.0, %v6652
  %v6654 = vpop.f32.mrf.mxu0
  %6655 = vmatprep.mubr.f32.mxu0 0.0
  %6656 = vmatmul.mubr.f32.gmra.mxu0 %v2939
  %v6657 = vpop.f32.mrf.mxu0
  %v6658 = vadd.f32 0.0, %v6657
  %v6659 = vpop.f32.mrf.mxu0
  %6660 = vdwg.mxu0
  %v6661 = vadd.f32 %v6500, %v6583
  %v6662 = vadd.f32 %v6501, %v6588
  %v6663 = vadd.f32 %v6502, %v6593
  %v6664 = vadd.f32 %v6503, %v6598
  %v6665 = vadd.f32 %v6504, %v6603
  %v6666 = vadd.f32 %v6505, %v6608
  %v6667 = vadd.f32 %v6506, %v6613
  %v6668 = vadd.f32 %v6507, %v6618
  %v6669 = vadd.f32 %v6508, %v6623
  %v6670 = vadd.f32 %v6509, %v6628
  %v6671 = vadd.f32 %v6510, %v6633
  %v6672 = vadd.f32 %v6511, %v6638
  %v6673 = vadd.f32 %v6512, %v6643
  %v6674 = vadd.f32 %v6513, %v6648
  %v6675 = vadd.f32 %v6514, %v6653
  %v6676 = vadd.f32 %v6515, %v6658
  %v6677 = vxor.u32 %v6661, 2147483648
  %v6678 = vxor.u32 %v6662, 2147483648
  %v6679 = vxor.u32 %v6663, 2147483648
  %v6680 = vxor.u32 %v6664, 2147483648
  %v6681 = vmul.f32 %v6677, 1.442695
  %v6682 = vpow.pop %v6681
  %v6683 = vmul.f32 %v6678, 1.442695
  %v6684 = vpow.pop %v6683
  %v6685 = vmul.f32 %v6679, 1.442695
  %v6686 = vpow.pop %v6685
  %v6687 = vmul.f32 %v6680, 1.442695
  %v6688 = vpow.pop %v6687
  %v6689 = vadd.f32 %v6682, 1.0
  %v6690 = vadd.f32 %v6684, 1.0
  %v6691 = vadd.f32 %v6686, 1.0
  %v6692 = vadd.f32 %v6688, 1.0
  %v6693 = vrcp.pop %v6689
  %v6694 = vmul.f32 1.0, %v6693
  %v6695 = vrcp.pop %v6690
  %v6696 = vmul.f32 1.0, %v6695
  %v6697 = vrcp.pop %v6691
  %v6698 = vmul.f32 1.0, %v6697
  %v6699 = vrcp.pop %v6692
  %v6700 = vmul.f32 1.0, %v6699
  %v6701 = vxor.u32 %v6665, 2147483648
  %v6702 = vxor.u32 %v6666, 2147483648
  %v6703 = vxor.u32 %v6667, 2147483648
  %v6704 = vxor.u32 %v6668, 2147483648
  %v6705 = vmul.f32 %v6701, 1.442695
  %v6706 = vpow.pop %v6705
  %v6707 = vmul.f32 %v6702, 1.442695
  %v6708 = vpow.pop %v6707
  %v6709 = vmul.f32 %v6703, 1.442695
  %v6710 = vpow.pop %v6709
  %v6711 = vmul.f32 %v6704, 1.442695
  %v6712 = vpow.pop %v6711
  %v6713 = vadd.f32 %v6706, 1.0
  %v6714 = vadd.f32 %v6708, 1.0
  %v6715 = vadd.f32 %v6710, 1.0
  %v6716 = vadd.f32 %v6712, 1.0
  %v6717 = vrcp.pop %v6713
  %v6718 = vmul.f32 1.0, %v6717
  %v6719 = vrcp.pop %v6714
  %v6720 = vmul.f32 1.0, %v6719
  %v6721 = vrcp.pop %v6715
  %v6722 = vmul.f32 1.0, %v6721
  %v6723 = vrcp.pop %v6716
  %v6724 = vmul.f32 1.0, %v6723
  %v6725 = vtanh.pop %v6669
  %v6726 = vtanh.pop %v6670
  %v6727 = vtanh.pop %v6671
  %v6728 = vtanh.pop %v6672
  %v6729 = vxor.u32 %v6673, 2147483648
  %v6730 = vxor.u32 %v6674, 2147483648
  %v6731 = vxor.u32 %v6675, 2147483648
  %v6732 = vxor.u32 %v6676, 2147483648
  %v6733 = vmul.f32 %v6729, 1.442695
  %v6734 = vpow.pop %v6733
  %v6735 = vmul.f32 %v6730, 1.442695
  %v6736 = vpow.pop %v6735
  %v6737 = vmul.f32 %v6731, 1.442695
  %v6738 = vpow.pop %v6737
  %v6739 = vmul.f32 %v6732, 1.442695
  %v6740 = vpow.pop %v6739
  %v6741 = vadd.f32 %v6734, 1.0
  %v6742 = vadd.f32 %v6736, 1.0
  %v6743 = vadd.f32 %v6738, 1.0
  %v6744 = vadd.f32 %v6740, 1.0
  %v6745 = vrcp.pop %v6741
  %v6746 = vmul.f32 1.0, %v6745
  %v6747 = vrcp.pop %v6742
  %v6748 = vmul.f32 1.0, %v6747
  %v6749 = vrcp.pop %v6743
  %v6750 = vmul.f32 1.0, %v6749
  %v6751 = vrcp.pop %v6744
  %v6752 = vmul.f32 1.0, %v6751
  %v6753 = vmul.f32 %v6718, %v6496
  %v6754 = vmul.f32 %v6720, %v6497
  %v6755 = vmul.f32 %v6722, %v6498
  %v6756 = vmul.f32 %v6724, %v6499
  %v6757 = vmul.f32 %v6694, %v6725
  %v6758 = vmul.f32 %v6696, %v6726
  %v6759 = vmul.f32 %v6698, %v6727
  %v6760 = vmul.f32 %v6700, %v6728
  %v6761 = vadd.f32 %v6753, %v6757
  %v6762 = vadd.f32 %v6754, %v6758
  %v6763 = vadd.f32 %v6755, %v6759
  %v6764 = vadd.f32 %v6756, %v6760
  %v6765 = vtanh.pop %v6761
  %v6766 = vtanh.pop %v6762
  %v6767 = vtanh.pop %v6763
  %v6768 = vtanh.pop %v6764
  %v6769 = vmul.f32 %v6746, %v6765
  %v6770 = vmul.f32 %v6748, %v6766
  %v6771 = vmul.f32 %v6750, %v6767
  %v6772 = vmul.f32 %v6752, %v6768
  %v6773 = vsel %vm2873, 12, 3
  %v6774 = vsel %vm2874, 12, 3
  %v6775 = vsel %vm2875, 12, 3
  %v6776 = vsel %vm2876, 12, 3
  %vm6777 = vcmp.lt.s32.totalorder %v6773, %v3205
  %vm6778 = vcmp.lt.s32.totalorder %v6774, %v3205
  %vm6779 = vcmp.lt.s32.totalorder %v6775, %v3205
  %vm6780 = vcmp.lt.s32.totalorder %v6776, %v3205
  %v6781 = vsel %vm6777, %v6769, 0.0
  %v6782 = vsel %vm6778, %v6770, 0.0
  %v6783 = vsel %vm6779, %v6771, 0.0
  %v6784 = vsel %vm6780, %v6772, 0.0
  %s6785 = scalar_lea.vmem %s5, 384
  %6786 = vst [vmem:[%s6785] sm:$0xff] %v6781
  %6787 = vst [vmem:[%s6785 + $0x8] sm:$0xff] %v6782
  %6788 = vst [vmem:[%s6785 + $0x10] sm:$0xff] %v6783
  %6789 = vst [vmem:[%s6785 + $0x18] sm:$0xff] %v6784
  %v6790 = vsel %vm6777, %v6769, %v6492
  %v6791 = vsel %vm6778, %v6770, %v6493
  %v6792 = vsel %vm6779, %v6771, %v6494
  %v6793 = vsel %vm6780, %v6772, %v6495
  %v6794 = vsel %vm6777, %v6761, %v6496
  %v6795 = vsel %vm6778, %v6762, %v6497
  %v6796 = vsel %vm6779, %v6763, %v6498
  %v6797 = vsel %vm6780, %v6764, %v6499
  %v6798 = vld [vmem:[%s685] sm:$0xff]
  %v6799 = vld [vmem:[%s685 + $0x8] sm:$0xff]
  %v6800 = vld [vmem:[%s685 + $0x10] sm:$0xff]
  %v6801 = vld [vmem:[%s685 + $0x18] sm:$0xff]
  %v6802 = vld [vmem:[%s685 + $0x20] sm:$0xff]
  %v6803 = vld [vmem:[%s685 + $0x28] sm:$0xff]
  %v6804 = vld [vmem:[%s685 + $0x30] sm:$0xff]
  %v6805 = vld [vmem:[%s685 + $0x38] sm:$0xff]
  %v6806 = vld [vmem:[%s685 + $0x40] sm:$0xff]
  %v6807 = vld [vmem:[%s685 + $0x48] sm:$0xff]
  %v6808 = vld [vmem:[%s685 + $0x50] sm:$0xff]
  %v6809 = vld [vmem:[%s685 + $0x58] sm:$0xff]
  %v6810 = vld [vmem:[%s685 + $0x60] sm:$0xff]
  %v6811 = vld [vmem:[%s685 + $0x68] sm:$0xff]
  %v6812 = vld [vmem:[%s685 + $0x70] sm:$0xff]
  %v6813 = vld [vmem:[%s685 + $0x78] sm:$0xff]
  %6814 = vmatprep.subr.mxu0 0.0
  %6815 = vmatpush1.msra.mxu0 0.0
  %6816 = vmatprep.subr.mxu0 0.0
  %6817 = vmatpush1.msra.mxu0 0.0
  %6818 = vmatprep.subr.mxu0 0.0
  %6819 = vmatpush1.msra.mxu0 0.0
  %6820 = vmatprep.subr.mxu0 0.0
  %6821 = vmatpush1.msra.mxu0 0.0
  %6822 = vmatprep.subr.mxu0 0.0
  %6823 = vmatpush1.msra.mxu0 0.0
  %6824 = vmatprep.subr.mxu0 0.0
  %6825 = vmatpush1.msra.mxu0 0.0
  %6826 = vmatprep.subr.mxu0 0.0
  %6827 = vmatpush1.msra.mxu0 0.0
  %6828 = vmatprep.subr.mxu0 0.0
  %6829 = vmatpush1.msra.mxu0 0.0
  %6830 = vmatprep.subr.mxu0 0.0
  %6831 = vmatpush1.msra.mxu0 0.0
  %6832 = vmatprep.subr.mxu0 0.0
  %6833 = vmatpush1.msra.mxu0 0.0
  %6834 = vmatprep.subr.mxu0 0.0
  %6835 = vmatpush1.msra.mxu0 0.0
  %6836 = vmatprep.subr.mxu0 0.0
  %6837 = vmatpush1.msra.mxu0 0.0
  %6838 = vmatprep.subr.mxu0 0.0
  %6839 = vmatpush1.msra.mxu0 %v6793
  %6840 = vmatprep.subr.mxu0 0.0
  %6841 = vmatpush1.msra.mxu0 %v6792
  %6842 = vmatprep.subr.mxu0 0.0
  %6843 = vmatpush1.msra.mxu0 %v6791
  %6844 = vmatprep.subr.mxu0 0.0
  %6845 = vmatpush1.msra.mxu0 %v6790
  %6846 = vmatprep.subr.mxu0 0.0
  %6847 = vmatpush2.msra.mxu0 0.0
  %6848 = vmatprep.subr.mxu0 0.0
  %6849 = vmatpush2.msra.mxu0 0.0
  %6850 = vmatprep.subr.mxu0 0.0
  %6851 = vmatpush2.msra.mxu0 0.0
  %6852 = vmatprep.subr.mxu0 0.0
  %6853 = vmatpush2.msra.mxu0 0.0
  %6854 = vmatprep.subr.mxu0 0.0
  %6855 = vmatpush2.msra.mxu0 0.0
  %6856 = vmatprep.subr.mxu0 0.0
  %6857 = vmatpush2.msra.mxu0 0.0
  %6858 = vmatprep.subr.mxu0 0.0
  %6859 = vmatpush2.msra.mxu0 0.0
  %6860 = vmatprep.subr.mxu0 0.0
  %6861 = vmatpush2.msra.mxu0 0.0
  %6862 = vmatprep.subr.mxu0 0.0
  %6863 = vmatpush2.msra.mxu0 0.0
  %6864 = vmatprep.subr.mxu0 0.0
  %6865 = vmatpush2.msra.mxu0 0.0
  %6866 = vmatprep.subr.mxu0 0.0
  %6867 = vmatpush2.msra.mxu0 0.0
  %6868 = vmatprep.subr.mxu0 0.0
  %6869 = vmatpush2.msra.mxu0 0.0
  %6870 = vmatprep.subr.mxu0 0.0
  %6871 = vmatpush2.msra.mxu0 0.0
  %6872 = vmatprep.subr.mxu0 0.0
  %6873 = vmatpush2.msra.mxu0 0.0
  %6874 = vmatprep.subr.mxu0 0.0
  %6875 = vmatpush2.msra.mxu0 0.0
  %6876 = vmatprep.subr.mxu0 0.0
  %6877 = vmatpush2.msra.mxu0 0.0
  %6878 = vmatprep.mubr.f32.mxu0 0.0
  %6879 = vmatmul.mubr.f32.gmra.mxu0 %v2894
  %v6880 = vpop.f32.mrf.mxu0
  %v6881 = vadd.f32 0.0, %v6880
  %v6882 = vpop.f32.mrf.mxu0
  %6883 = vmatprep.mubr.f32.mxu0 0.0
  %6884 = vmatmul.mubr.f32.gmra.mxu0 %v2897
  %v6885 = vpop.f32.mrf.mxu0
  %v6886 = vadd.f32 0.0, %v6885
  %v6887 = vpop.f32.mrf.mxu0
  %6888 = vmatprep.mubr.f32.mxu0 0.0
  %6889 = vmatmul.mubr.f32.gmra.mxu0 %v2900
  %v6890 = vpop.f32.mrf.mxu0
  %v6891 = vadd.f32 0.0, %v6890
  %v6892 = vpop.f32.mrf.mxu0
  %6893 = vmatprep.mubr.f32.mxu0 0.0
  %6894 = vmatmul.mubr.f32.gmra.mxu0 %v2903
  %v6895 = vpop.f32.mrf.mxu0
  %v6896 = vadd.f32 0.0, %v6895
  %v6897 = vpop.f32.mrf.mxu0
  %6898 = vmatprep.mubr.f32.mxu0 0.0
  %6899 = vmatmul.mubr.f32.gmra.mxu0 %v2906
  %v6900 = vpop.f32.mrf.mxu0
  %v6901 = vadd.f32 0.0, %v6900
  %v6902 = vpop.f32.mrf.mxu0
  %6903 = vmatprep.mubr.f32.mxu0 0.0
  %6904 = vmatmul.mubr.f32.gmra.mxu0 %v2909
  %v6905 = vpop.f32.mrf.mxu0
  %v6906 = vadd.f32 0.0, %v6905
  %v6907 = vpop.f32.mrf.mxu0
  %6908 = vmatprep.mubr.f32.mxu0 0.0
  %6909 = vmatmul.mubr.f32.gmra.mxu0 %v2912
  %v6910 = vpop.f32.mrf.mxu0
  %v6911 = vadd.f32 0.0, %v6910
  %v6912 = vpop.f32.mrf.mxu0
  %6913 = vmatprep.mubr.f32.mxu0 0.0
  %6914 = vmatmul.mubr.f32.gmra.mxu0 %v2915
  %v6915 = vpop.f32.mrf.mxu0
  %v6916 = vadd.f32 0.0, %v6915
  %v6917 = vpop.f32.mrf.mxu0
  %6918 = vmatprep.mubr.f32.mxu0 0.0
  %6919 = vmatmul.mubr.f32.gmra.mxu0 %v2918
  %v6920 = vpop.f32.mrf.mxu0
  %v6921 = vadd.f32 0.0, %v6920
  %v6922 = vpop.f32.mrf.mxu0
  %6923 = vmatprep.mubr.f32.mxu0 0.0
  %6924 = vmatmul.mubr.f32.gmra.mxu0 %v2921
  %v6925 = vpop.f32.mrf.mxu0
  %v6926 = vadd.f32 0.0, %v6925
  %v6927 = vpop.f32.mrf.mxu0
  %6928 = vmatprep.mubr.f32.mxu0 0.0
  %6929 = vmatmul.mubr.f32.gmra.mxu0 %v2924
  %v6930 = vpop.f32.mrf.mxu0
  %v6931 = vadd.f32 0.0, %v6930
  %v6932 = vpop.f32.mrf.mxu0
  %6933 = vmatprep.mubr.f32.mxu0 0.0
  %6934 = vmatmul.mubr.f32.gmra.mxu0 %v2927
  %v6935 = vpop.f32.mrf.mxu0
  %v6936 = vadd.f32 0.0, %v6935
  %v6937 = vpop.f32.mrf.mxu0
  %6938 = vmatprep.mubr.f32.mxu0 0.0
  %6939 = vmatmul.mubr.f32.gmra.mxu0 %v2930
  %v6940 = vpop.f32.mrf.mxu0
  %v6941 = vadd.f32 0.0, %v6940
  %v6942 = vpop.f32.mrf.mxu0
  %6943 = vmatprep.mubr.f32.mxu0 0.0
  %6944 = vmatmul.mubr.f32.gmra.mxu0 %v2933
  %v6945 = vpop.f32.mrf.mxu0
  %v6946 = vadd.f32 0.0, %v6945
  %v6947 = vpop.f32.mrf.mxu0
  %6948 = vmatprep.mubr.f32.mxu0 0.0
  %6949 = vmatmul.mubr.f32.gmra.mxu0 %v2936
  %v6950 = vpop.f32.mrf.mxu0
  %v6951 = vadd.f32 0.0, %v6950
  %v6952 = vpop.f32.mrf.mxu0
  %6953 = vmatprep.mubr.f32.mxu0 0.0
  %6954 = vmatmul.mubr.f32.gmra.mxu0 %v2939
  %v6955 = vpop.f32.mrf.mxu0
  %v6956 = vadd.f32 0.0, %v6955
  %v6957 = vpop.f32.mrf.mxu0
  %6958 = vdwg.mxu0
  %v6959 = vadd.f32 %v6798, %v6881
  %v6960 = vadd.f32 %v6799, %v6886
  %v6961 = vadd.f32 %v6800, %v6891
  %v6962 = vadd.f32 %v6801, %v6896
  %v6963 = vadd.f32 %v6802, %v6901
  %v6964 = vadd.f32 %v6803, %v6906
  %v6965 = vadd.f32 %v6804, %v6911
  %v6966 = vadd.f32 %v6805, %v6916
  %v6967 = vadd.f32 %v6806, %v6921
  %v6968 = vadd.f32 %v6807, %v6926
  %v6969 = vadd.f32 %v6808, %v6931
  %v6970 = vadd.f32 %v6809, %v6936
  %v6971 = vadd.f32 %v6810, %v6941
  %v6972 = vadd.f32 %v6811, %v6946
  %v6973 = vadd.f32 %v6812, %v6951
  %v6974 = vadd.f32 %v6813, %v6956
  %v6975 = vxor.u32 %v6959, 2147483648
  %v6976 = vxor.u32 %v6960, 2147483648
  %v6977 = vxor.u32 %v6961, 2147483648
  %v6978 = vxor.u32 %v6962, 2147483648
  %v6979 = vmul.f32 %v6975, 1.442695
  %v6980 = vpow.pop %v6979
  %v6981 = vmul.f32 %v6976, 1.442695
  %v6982 = vpow.pop %v6981
  %v6983 = vmul.f32 %v6977, 1.442695
  %v6984 = vpow.pop %v6983
  %v6985 = vmul.f32 %v6978, 1.442695
  %v6986 = vpow.pop %v6985
  %v6987 = vadd.f32 %v6980, 1.0
  %v6988 = vadd.f32 %v6982, 1.0
  %v6989 = vadd.f32 %v6984, 1.0
  %v6990 = vadd.f32 %v6986, 1.0
  %v6991 = vrcp.pop %v6987
  %v6992 = vmul.f32 1.0, %v6991
  %v6993 = vrcp.pop %v6988
  %v6994 = vmul.f32 1.0, %v6993
  %v6995 = vrcp.pop %v6989
  %v6996 = vmul.f32 1.0, %v6995
  %v6997 = vrcp.pop %v6990
  %v6998 = vmul.f32 1.0, %v6997
  %v6999 = vxor.u32 %v6963, 2147483648
  %v7000 = vxor.u32 %v6964, 2147483648
  %v7001 = vxor.u32 %v6965, 2147483648
  %v7002 = vxor.u32 %v6966, 2147483648
  %v7003 = vmul.f32 %v6999, 1.442695
  %v7004 = vpow.pop %v7003
  %v7005 = vmul.f32 %v7000, 1.442695
  %v7006 = vpow.pop %v7005
  %v7007 = vmul.f32 %v7001, 1.442695
  %v7008 = vpow.pop %v7007
  %v7009 = vmul.f32 %v7002, 1.442695
  %v7010 = vpow.pop %v7009
  %v7011 = vadd.f32 %v7004, 1.0
  %v7012 = vadd.f32 %v7006, 1.0
  %v7013 = vadd.f32 %v7008, 1.0
  %v7014 = vadd.f32 %v7010, 1.0
  %v7015 = vrcp.pop %v7011
  %v7016 = vmul.f32 1.0, %v7015
  %v7017 = vrcp.pop %v7012
  %v7018 = vmul.f32 1.0, %v7017
  %v7019 = vrcp.pop %v7013
  %v7020 = vmul.f32 1.0, %v7019
  %v7021 = vrcp.pop %v7014
  %v7022 = vmul.f32 1.0, %v7021
  %v7023 = vtanh.pop %v6967
  %v7024 = vtanh.pop %v6968
  %v7025 = vtanh.pop %v6969
  %v7026 = vtanh.pop %v6970
  %v7027 = vxor.u32 %v6971, 2147483648
  %v7028 = vxor.u32 %v6972, 2147483648
  %v7029 = vxor.u32 %v6973, 2147483648
  %v7030 = vxor.u32 %v6974, 2147483648
  %v7031 = vmul.f32 %v7027, 1.442695
  %v7032 = vpow.pop %v7031
  %v7033 = vmul.f32 %v7028, 1.442695
  %v7034 = vpow.pop %v7033
  %v7035 = vmul.f32 %v7029, 1.442695
  %v7036 = vpow.pop %v7035
  %v7037 = vmul.f32 %v7030, 1.442695
  %v7038 = vpow.pop %v7037
  %v7039 = vadd.f32 %v7032, 1.0
  %v7040 = vadd.f32 %v7034, 1.0
  %v7041 = vadd.f32 %v7036, 1.0
  %v7042 = vadd.f32 %v7038, 1.0
  %v7043 = vrcp.pop %v7039
  %v7044 = vmul.f32 1.0, %v7043
  %v7045 = vrcp.pop %v7040
  %v7046 = vmul.f32 1.0, %v7045
  %v7047 = vrcp.pop %v7041
  %v7048 = vmul.f32 1.0, %v7047
  %v7049 = vrcp.pop %v7042
  %v7050 = vmul.f32 1.0, %v7049
  %v7051 = vmul.f32 %v7016, %v6794
  %v7052 = vmul.f32 %v7018, %v6795
  %v7053 = vmul.f32 %v7020, %v6796
  %v7054 = vmul.f32 %v7022, %v6797
  %v7055 = vmul.f32 %v6992, %v7023
  %v7056 = vmul.f32 %v6994, %v7024
  %v7057 = vmul.f32 %v6996, %v7025
  %v7058 = vmul.f32 %v6998, %v7026
  %v7059 = vadd.f32 %v7051, %v7055
  %v7060 = vadd.f32 %v7052, %v7056
  %v7061 = vadd.f32 %v7053, %v7057
  %v7062 = vadd.f32 %v7054, %v7058
  %v7063 = vtanh.pop %v7059
  %v7064 = vtanh.pop %v7060
  %v7065 = vtanh.pop %v7061
  %v7066 = vtanh.pop %v7062
  %v7067 = vmul.f32 %v7044, %v7063
  %v7068 = vmul.f32 %v7046, %v7064
  %v7069 = vmul.f32 %v7048, %v7065
  %v7070 = vmul.f32 %v7050, %v7066
  %v7071 = vsel %vm2873, 13, 2
  %v7072 = vsel %vm2874, 13, 2
  %v7073 = vsel %vm2875, 13, 2
  %v7074 = vsel %vm2876, 13, 2
  %vm7075 = vcmp.lt.s32.totalorder %v7071, %v3205
  %vm7076 = vcmp.lt.s32.totalorder %v7072, %v3205
  %vm7077 = vcmp.lt.s32.totalorder %v7073, %v3205
  %vm7078 = vcmp.lt.s32.totalorder %v7074, %v3205
  %v7079 = vsel %vm7075, %v7067, 0.0
  %v7080 = vsel %vm7076, %v7068, 0.0
  %v7081 = vsel %vm7077, %v7069, 0.0
  %v7082 = vsel %vm7078, %v7070, 0.0
  %s7083 = scalar_lea.vmem %s5, 416
  %7084 = vst [vmem:[%s7083] sm:$0xff] %v7079
  %7085 = vst [vmem:[%s7083 + $0x8] sm:$0xff] %v7080
  %7086 = vst [vmem:[%s7083 + $0x10] sm:$0xff] %v7081
  %7087 = vst [vmem:[%s7083 + $0x18] sm:$0xff] %v7082
  %v7088 = vsel %vm7075, %v7067, %v6790
  %v7089 = vsel %vm7076, %v7068, %v6791
  %v7090 = vsel %vm7077, %v7069, %v6792
  %v7091 = vsel %vm7078, %v7070, %v6793
  %v7092 = vsel %vm7075, %v7059, %v6794
  %v7093 = vsel %vm7076, %v7060, %v6795
  %v7094 = vsel %vm7077, %v7061, %v6796
  %v7095 = vsel %vm7078, %v7062, %v6797
  %v7096 = vld [vmem:[%s517] sm:$0xff]
  %v7097 = vld [vmem:[%s517 + $0x8] sm:$0xff]
  %v7098 = vld [vmem:[%s517 + $0x10] sm:$0xff]
  %v7099 = vld [vmem:[%s517 + $0x18] sm:$0xff]
  %v7100 = vld [vmem:[%s517 + $0x20] sm:$0xff]
  %v7101 = vld [vmem:[%s517 + $0x28] sm:$0xff]
  %v7102 = vld [vmem:[%s517 + $0x30] sm:$0xff]
  %v7103 = vld [vmem:[%s517 + $0x38] sm:$0xff]
  %v7104 = vld [vmem:[%s517 + $0x40] sm:$0xff]
  %v7105 = vld [vmem:[%s517 + $0x48] sm:$0xff]
  %v7106 = vld [vmem:[%s517 + $0x50] sm:$0xff]
  %v7107 = vld [vmem:[%s517 + $0x58] sm:$0xff]
  %v7108 = vld [vmem:[%s517 + $0x60] sm:$0xff]
  %v7109 = vld [vmem:[%s517 + $0x68] sm:$0xff]
  %v7110 = vld [vmem:[%s517 + $0x70] sm:$0xff]
  %v7111 = vld [vmem:[%s517 + $0x78] sm:$0xff]
  %7112 = vmatprep.subr.mxu0 0.0
  %7113 = vmatpush1.msra.mxu0 0.0
  %7114 = vmatprep.subr.mxu0 0.0
  %7115 = vmatpush1.msra.mxu0 0.0
  %7116 = vmatprep.subr.mxu0 0.0
  %7117 = vmatpush1.msra.mxu0 0.0
  %7118 = vmatprep.subr.mxu0 0.0
  %7119 = vmatpush1.msra.mxu0 0.0
  %7120 = vmatprep.subr.mxu0 0.0
  %7121 = vmatpush1.msra.mxu0 0.0
  %7122 = vmatprep.subr.mxu0 0.0
  %7123 = vmatpush1.msra.mxu0 0.0
  %7124 = vmatprep.subr.mxu0 0.0
  %7125 = vmatpush1.msra.mxu0 0.0
  %7126 = vmatprep.subr.mxu0 0.0
  %7127 = vmatpush1.msra.mxu0 0.0
  %7128 = vmatprep.subr.mxu0 0.0
  %7129 = vmatpush1.msra.mxu0 0.0
  %7130 = vmatprep.subr.mxu0 0.0
  %7131 = vmatpush1.msra.mxu0 0.0
  %7132 = vmatprep.subr.mxu0 0.0
  %7133 = vmatpush1.msra.mxu0 0.0
  %7134 = vmatprep.subr.mxu0 0.0
  %7135 = vmatpush1.msra.mxu0 0.0
  %7136 = vmatprep.subr.mxu0 0.0
  %7137 = vmatpush1.msra.mxu0 %v7091
  %7138 = vmatprep.subr.mxu0 0.0
  %7139 = vmatpush1.msra.mxu0 %v7090
  %7140 = vmatprep.subr.mxu0 0.0
  %7141 = vmatpush1.msra.mxu0 %v7089
  %7142 = vmatprep.subr.mxu0 0.0
  %7143 = vmatpush1.msra.mxu0 %v7088
  %7144 = vmatprep.subr.mxu0 0.0
  %7145 = vmatpush2.msra.mxu0 0.0
  %7146 = vmatprep.subr.mxu0 0.0
  %7147 = vmatpush2.msra.mxu0 0.0
  %7148 = vmatprep.subr.mxu0 0.0
  %7149 = vmatpush2.msra.mxu0 0.0
  %7150 = vmatprep.subr.mxu0 0.0
  %7151 = vmatpush2.msra.mxu0 0.0
  %7152 = vmatprep.subr.mxu0 0.0
  %7153 = vmatpush2.msra.mxu0 0.0
  %7154 = vmatprep.subr.mxu0 0.0
  %7155 = vmatpush2.msra.mxu0 0.0
  %7156 = vmatprep.subr.mxu0 0.0
  %7157 = vmatpush2.msra.mxu0 0.0
  %7158 = vmatprep.subr.mxu0 0.0
  %7159 = vmatpush2.msra.mxu0 0.0
  %7160 = vmatprep.subr.mxu0 0.0
  %7161 = vmatpush2.msra.mxu0 0.0
  %7162 = vmatprep.subr.mxu0 0.0
  %7163 = vmatpush2.msra.mxu0 0.0
  %7164 = vmatprep.subr.mxu0 0.0
  %7165 = vmatpush2.msra.mxu0 0.0
  %7166 = vmatprep.subr.mxu0 0.0
  %7167 = vmatpush2.msra.mxu0 0.0
  %7168 = vmatprep.subr.mxu0 0.0
  %7169 = vmatpush2.msra.mxu0 0.0
  %7170 = vmatprep.subr.mxu0 0.0
  %7171 = vmatpush2.msra.mxu0 0.0
  %7172 = vmatprep.subr.mxu0 0.0
  %7173 = vmatpush2.msra.mxu0 0.0
  %7174 = vmatprep.subr.mxu0 0.0
  %7175 = vmatpush2.msra.mxu0 0.0
  %7176 = vmatprep.mubr.f32.mxu0 0.0
  %7177 = vmatmul.mubr.f32.gmra.mxu0 %v2894
  %v7178 = vpop.f32.mrf.mxu0
  %v7179 = vadd.f32 0.0, %v7178
  %v7180 = vpop.f32.mrf.mxu0
  %7181 = vmatprep.mubr.f32.mxu0 0.0
  %7182 = vmatmul.mubr.f32.gmra.mxu0 %v2897
  %v7183 = vpop.f32.mrf.mxu0
  %v7184 = vadd.f32 0.0, %v7183
  %v7185 = vpop.f32.mrf.mxu0
  %7186 = vmatprep.mubr.f32.mxu0 0.0
  %7187 = vmatmul.mubr.f32.gmra.mxu0 %v2900
  %v7188 = vpop.f32.mrf.mxu0
  %v7189 = vadd.f32 0.0, %v7188
  %v7190 = vpop.f32.mrf.mxu0
  %7191 = vmatprep.mubr.f32.mxu0 0.0
  %7192 = vmatmul.mubr.f32.gmra.mxu0 %v2903
  %v7193 = vpop.f32.mrf.mxu0
  %v7194 = vadd.f32 0.0, %v7193
  %v7195 = vpop.f32.mrf.mxu0
  %7196 = vmatprep.mubr.f32.mxu0 0.0
  %7197 = vmatmul.mubr.f32.gmra.mxu0 %v2906
  %v7198 = vpop.f32.mrf.mxu0
  %v7199 = vadd.f32 0.0, %v7198
  %v7200 = vpop.f32.mrf.mxu0
  %7201 = vmatprep.mubr.f32.mxu0 0.0
  %7202 = vmatmul.mubr.f32.gmra.mxu0 %v2909
  %v7203 = vpop.f32.mrf.mxu0
  %v7204 = vadd.f32 0.0, %v7203
  %v7205 = vpop.f32.mrf.mxu0
  %7206 = vmatprep.mubr.f32.mxu0 0.0
  %7207 = vmatmul.mubr.f32.gmra.mxu0 %v2912
  %v7208 = vpop.f32.mrf.mxu0
  %v7209 = vadd.f32 0.0, %v7208
  %v7210 = vpop.f32.mrf.mxu0
  %7211 = vmatprep.mubr.f32.mxu0 0.0
  %7212 = vmatmul.mubr.f32.gmra.mxu0 %v2915
  %v7213 = vpop.f32.mrf.mxu0
  %v7214 = vadd.f32 0.0, %v7213
  %v7215 = vpop.f32.mrf.mxu0
  %7216 = vmatprep.mubr.f32.mxu0 0.0
  %7217 = vmatmul.mubr.f32.gmra.mxu0 %v2918
  %v7218 = vpop.f32.mrf.mxu0
  %v7219 = vadd.f32 0.0, %v7218
  %v7220 = vpop.f32.mrf.mxu0
  %7221 = vmatprep.mubr.f32.mxu0 0.0
  %7222 = vmatmul.mubr.f32.gmra.mxu0 %v2921
  %v7223 = vpop.f32.mrf.mxu0
  %v7224 = vadd.f32 0.0, %v7223
  %v7225 = vpop.f32.mrf.mxu0
  %7226 = vmatprep.mubr.f32.mxu0 0.0
  %7227 = vmatmul.mubr.f32.gmra.mxu0 %v2924
  %v7228 = vpop.f32.mrf.mxu0
  %v7229 = vadd.f32 0.0, %v7228
  %v7230 = vpop.f32.mrf.mxu0
  %7231 = vmatprep.mubr.f32.mxu0 0.0
  %7232 = vmatmul.mubr.f32.gmra.mxu0 %v2927
  %v7233 = vpop.f32.mrf.mxu0
  %v7234 = vadd.f32 0.0, %v7233
  %v7235 = vpop.f32.mrf.mxu0
  %7236 = vmatprep.mubr.f32.mxu0 0.0
  %7237 = vmatmul.mubr.f32.gmra.mxu0 %v2930
  %v7238 = vpop.f32.mrf.mxu0
  %v7239 = vadd.f32 0.0, %v7238
  %v7240 = vpop.f32.mrf.mxu0
  %7241 = vmatprep.mubr.f32.mxu0 0.0
  %7242 = vmatmul.mubr.f32.gmra.mxu0 %v2933
  %v7243 = vpop.f32.mrf.mxu0
  %v7244 = vadd.f32 0.0, %v7243
  %v7245 = vpop.f32.mrf.mxu0
  %7246 = vmatprep.mubr.f32.mxu0 0.0
  %7247 = vmatmul.mubr.f32.gmra.mxu0 %v2936
  %v7248 = vpop.f32.mrf.mxu0
  %v7249 = vadd.f32 0.0, %v7248
  %v7250 = vpop.f32.mrf.mxu0
  %7251 = vmatprep.mubr.f32.mxu0 0.0
  %7252 = vmatmul.mubr.f32.gmra.mxu0 %v2939
  %v7253 = vpop.f32.mrf.mxu0
  %v7254 = vadd.f32 0.0, %v7253
  %v7255 = vpop.f32.mrf.mxu0
  %7256 = vdwg.mxu0
  %v7257 = vadd.f32 %v7096, %v7179
  %v7258 = vadd.f32 %v7097, %v7184
  %v7259 = vadd.f32 %v7098, %v7189
  %v7260 = vadd.f32 %v7099, %v7194
  %v7261 = vadd.f32 %v7100, %v7199
  %v7262 = vadd.f32 %v7101, %v7204
  %v7263 = vadd.f32 %v7102, %v7209
  %v7264 = vadd.f32 %v7103, %v7214
  %v7265 = vadd.f32 %v7104, %v7219
  %v7266 = vadd.f32 %v7105, %v7224
  %v7267 = vadd.f32 %v7106, %v7229
  %v7268 = vadd.f32 %v7107, %v7234
  %v7269 = vadd.f32 %v7108, %v7239
  %v7270 = vadd.f32 %v7109, %v7244
  %v7271 = vadd.f32 %v7110, %v7249
  %v7272 = vadd.f32 %v7111, %v7254
  %v7273 = vxor.u32 %v7257, 2147483648
  %v7274 = vxor.u32 %v7258, 2147483648
  %v7275 = vxor.u32 %v7259, 2147483648
  %v7276 = vxor.u32 %v7260, 2147483648
  %v7277 = vmul.f32 %v7273, 1.442695
  %v7278 = vpow.pop %v7277
  %v7279 = vmul.f32 %v7274, 1.442695
  %v7280 = vpow.pop %v7279
  %v7281 = vmul.f32 %v7275, 1.442695
  %v7282 = vpow.pop %v7281
  %v7283 = vmul.f32 %v7276, 1.442695
  %v7284 = vpow.pop %v7283
  %v7285 = vadd.f32 %v7278, 1.0
  %v7286 = vadd.f32 %v7280, 1.0
  %v7287 = vadd.f32 %v7282, 1.0
  %v7288 = vadd.f32 %v7284, 1.0
  %v7289 = vrcp.pop %v7285
  %v7290 = vmul.f32 1.0, %v7289
  %v7291 = vrcp.pop %v7286
  %v7292 = vmul.f32 1.0, %v7291
  %v7293 = vrcp.pop %v7287
  %v7294 = vmul.f32 1.0, %v7293
  %v7295 = vrcp.pop %v7288
  %v7296 = vmul.f32 1.0, %v7295
  %v7297 = vxor.u32 %v7261, 2147483648
  %v7298 = vxor.u32 %v7262, 2147483648
  %v7299 = vxor.u32 %v7263, 2147483648
  %v7300 = vxor.u32 %v7264, 2147483648
  %v7301 = vmul.f32 %v7297, 1.442695
  %v7302 = vpow.pop %v7301
  %v7303 = vmul.f32 %v7298, 1.442695
  %v7304 = vpow.pop %v7303
  %v7305 = vmul.f32 %v7299, 1.442695
  %v7306 = vpow.pop %v7305
  %v7307 = vmul.f32 %v7300, 1.442695
  %v7308 = vpow.pop %v7307
  %v7309 = vadd.f32 %v7302, 1.0
  %v7310 = vadd.f32 %v7304, 1.0
  %v7311 = vadd.f32 %v7306, 1.0
  %v7312 = vadd.f32 %v7308, 1.0
  %v7313 = vrcp.pop %v7309
  %v7314 = vmul.f32 1.0, %v7313
  %v7315 = vrcp.pop %v7310
  %v7316 = vmul.f32 1.0, %v7315
  %v7317 = vrcp.pop %v7311
  %v7318 = vmul.f32 1.0, %v7317
  %v7319 = vrcp.pop %v7312
  %v7320 = vmul.f32 1.0, %v7319
  %v7321 = vtanh.pop %v7265
  %v7322 = vtanh.pop %v7266
  %v7323 = vtanh.pop %v7267
  %v7324 = vtanh.pop %v7268
  %v7325 = vxor.u32 %v7269, 2147483648
  %v7326 = vxor.u32 %v7270, 2147483648
  %v7327 = vxor.u32 %v7271, 2147483648
  %v7328 = vxor.u32 %v7272, 2147483648
  %v7329 = vmul.f32 %v7325, 1.442695
  %v7330 = vpow.pop %v7329
  %v7331 = vmul.f32 %v7326, 1.442695
  %v7332 = vpow.pop %v7331
  %v7333 = vmul.f32 %v7327, 1.442695
  %v7334 = vpow.pop %v7333
  %v7335 = vmul.f32 %v7328, 1.442695
  %v7336 = vpow.pop %v7335
  %v7337 = vadd.f32 %v7330, 1.0
  %v7338 = vadd.f32 %v7332, 1.0
  %v7339 = vadd.f32 %v7334, 1.0
  %v7340 = vadd.f32 %v7336, 1.0
  %v7341 = vrcp.pop %v7337
  %v7342 = vmul.f32 1.0, %v7341
  %v7343 = vrcp.pop %v7338
  %v7344 = vmul.f32 1.0, %v7343
  %v7345 = vrcp.pop %v7339
  %v7346 = vmul.f32 1.0, %v7345
  %v7347 = vrcp.pop %v7340
  %v7348 = vmul.f32 1.0, %v7347
  %v7349 = vmul.f32 %v7314, %v7092
  %v7350 = vmul.f32 %v7316, %v7093
  %v7351 = vmul.f32 %v7318, %v7094
  %v7352 = vmul.f32 %v7320, %v7095
  %v7353 = vmul.f32 %v7290, %v7321
  %v7354 = vmul.f32 %v7292, %v7322
  %v7355 = vmul.f32 %v7294, %v7323
  %v7356 = vmul.f32 %v7296, %v7324
  %v7357 = vadd.f32 %v7349, %v7353
  %v7358 = vadd.f32 %v7350, %v7354
  %v7359 = vadd.f32 %v7351, %v7355
  %v7360 = vadd.f32 %v7352, %v7356
  %v7361 = vtanh.pop %v7357
  %v7362 = vtanh.pop %v7358
  %v7363 = vtanh.pop %v7359
  %v7364 = vtanh.pop %v7360
  %v7365 = vmul.f32 %v7342, %v7361
  %v7366 = vmul.f32 %v7344, %v7362
  %v7367 = vmul.f32 %v7346, %v7363
  %v7368 = vmul.f32 %v7348, %v7364
  %v7369 = vsel %vm2873, 14, 1
  %v7370 = vsel %vm2874, 14, 1
  %v7371 = vsel %vm2875, 14, 1
  %v7372 = vsel %vm2876, 14, 1
  %vm7373 = vcmp.lt.s32.totalorder %v7369, %v3205
  %vm7374 = vcmp.lt.s32.totalorder %v7370, %v3205
  %vm7375 = vcmp.lt.s32.totalorder %v7371, %v3205
  %vm7376 = vcmp.lt.s32.totalorder %v7372, %v3205
  %v7377 = vsel %vm7373, %v7365, 0.0
  %v7378 = vsel %vm7374, %v7366, 0.0
  %v7379 = vsel %vm7375, %v7367, 0.0
  %v7380 = vsel %vm7376, %v7368, 0.0
  %s7381 = scalar_lea.vmem %s5, 448
  %7382 = vst [vmem:[%s7381] sm:$0xff] %v7377
  %7383 = vst [vmem:[%s7381 + $0x8] sm:$0xff] %v7378
  %7384 = vst [vmem:[%s7381 + $0x10] sm:$0xff] %v7379
  %7385 = vst [vmem:[%s7381 + $0x18] sm:$0xff] %v7380
  %v7386 = vsel %vm7373, %v7365, %v7088
  %v7387 = vsel %vm7374, %v7366, %v7089
  %v7388 = vsel %vm7375, %v7367, %v7090
  %v7389 = vsel %vm7376, %v7368, %v7091
  %v7390 = vsel %vm7373, %v7357, %v7092
  %v7391 = vsel %vm7374, %v7358, %v7093
  %v7392 = vsel %vm7375, %v7359, %v7094
  %v7393 = vsel %vm7376, %v7360, %v7095
  %v7394 = vld [vmem:[%s349] sm:$0xff]
  %v7395 = vld [vmem:[%s349 + $0x8] sm:$0xff]
  %v7396 = vld [vmem:[%s349 + $0x10] sm:$0xff]
  %v7397 = vld [vmem:[%s349 + $0x18] sm:$0xff]
  %v7398 = vld [vmem:[%s349 + $0x20] sm:$0xff]
  %v7399 = vld [vmem:[%s349 + $0x28] sm:$0xff]
  %v7400 = vld [vmem:[%s349 + $0x30] sm:$0xff]
  %v7401 = vld [vmem:[%s349 + $0x38] sm:$0xff]
  %v7402 = vld [vmem:[%s349 + $0x40] sm:$0xff]
  %v7403 = vld [vmem:[%s349 + $0x48] sm:$0xff]
  %v7404 = vld [vmem:[%s349 + $0x50] sm:$0xff]
  %v7405 = vld [vmem:[%s349 + $0x58] sm:$0xff]
  %v7406 = vld [vmem:[%s349 + $0x60] sm:$0xff]
  %v7407 = vld [vmem:[%s349 + $0x68] sm:$0xff]
  %v7408 = vld [vmem:[%s349 + $0x70] sm:$0xff]
  %v7409 = vld [vmem:[%s349 + $0x78] sm:$0xff]
  %7410 = vmatprep.subr.mxu0 0.0
  %7411 = vmatpush1.msra.mxu0 0.0
  %7412 = vmatprep.subr.mxu0 0.0
  %7413 = vmatpush1.msra.mxu0 0.0
  %7414 = vmatprep.subr.mxu0 0.0
  %7415 = vmatpush1.msra.mxu0 0.0
  %7416 = vmatprep.subr.mxu0 0.0
  %7417 = vmatpush1.msra.mxu0 0.0
  %7418 = vmatprep.subr.mxu0 0.0
  %7419 = vmatpush1.msra.mxu0 0.0
  %7420 = vmatprep.subr.mxu0 0.0
  %7421 = vmatpush1.msra.mxu0 0.0
  %7422 = vmatprep.subr.mxu0 0.0
  %7423 = vmatpush1.msra.mxu0 0.0
  %7424 = vmatprep.subr.mxu0 0.0
  %7425 = vmatpush1.msra.mxu0 0.0
  %7426 = vmatprep.subr.mxu0 0.0
  %7427 = vmatpush1.msra.mxu0 0.0
  %7428 = vmatprep.subr.mxu0 0.0
  %7429 = vmatpush1.msra.mxu0 0.0
  %7430 = vmatprep.subr.mxu0 0.0
  %7431 = vmatpush1.msra.mxu0 0.0
  %7432 = vmatprep.subr.mxu0 0.0
  %7433 = vmatpush1.msra.mxu0 0.0
  %7434 = vmatprep.subr.mxu0 0.0
  %7435 = vmatpush1.msra.mxu0 %v7389
  %7436 = vmatprep.subr.mxu0 0.0
  %7437 = vmatpush1.msra.mxu0 %v7388
  %7438 = vmatprep.subr.mxu0 0.0
  %7439 = vmatpush1.msra.mxu0 %v7387
  %7440 = vmatprep.subr.mxu0 0.0
  %7441 = vmatpush1.msra.mxu0 %v7386
  %7442 = vmatprep.subr.mxu0 0.0
  %7443 = vmatpush2.msra.mxu0 0.0
  %7444 = vmatprep.subr.mxu0 0.0
  %7445 = vmatpush2.msra.mxu0 0.0
  %7446 = vmatprep.subr.mxu0 0.0
  %7447 = vmatpush2.msra.mxu0 0.0
  %7448 = vmatprep.subr.mxu0 0.0
  %7449 = vmatpush2.msra.mxu0 0.0
  %7450 = vmatprep.subr.mxu0 0.0
  %7451 = vmatpush2.msra.mxu0 0.0
  %7452 = vmatprep.subr.mxu0 0.0
  %7453 = vmatpush2.msra.mxu0 0.0
  %7454 = vmatprep.subr.mxu0 0.0
  %7455 = vmatpush2.msra.mxu0 0.0
  %7456 = vmatprep.subr.mxu0 0.0
  %7457 = vmatpush2.msra.mxu0 0.0
  %7458 = vmatprep.subr.mxu0 0.0
  %7459 = vmatpush2.msra.mxu0 0.0
  %7460 = vmatprep.subr.mxu0 0.0
  %7461 = vmatpush2.msra.mxu0 0.0
  %7462 = vmatprep.subr.mxu0 0.0
  %7463 = vmatpush2.msra.mxu0 0.0
  %7464 = vmatprep.subr.mxu0 0.0
  %7465 = vmatpush2.msra.mxu0 0.0
  %7466 = vmatprep.subr.mxu0 0.0
  %7467 = vmatpush2.msra.mxu0 0.0
  %7468 = vmatprep.subr.mxu0 0.0
  %7469 = vmatpush2.msra.mxu0 0.0
  %7470 = vmatprep.subr.mxu0 0.0
  %7471 = vmatpush2.msra.mxu0 0.0
  %7472 = vmatprep.subr.mxu0 0.0
  %7473 = vmatpush2.msra.mxu0 0.0
  %7474 = vmatprep.mubr.f32.mxu0 0.0
  %7475 = vmatmul.mubr.f32.gmra.mxu0 %v2894
  %v7476 = vpop.f32.mrf.mxu0
  %v7477 = vadd.f32 0.0, %v7476
  %v7478 = vpop.f32.mrf.mxu0
  %7479 = vmatprep.mubr.f32.mxu0 0.0
  %7480 = vmatmul.mubr.f32.gmra.mxu0 %v2897
  %v7481 = vpop.f32.mrf.mxu0
  %v7482 = vadd.f32 0.0, %v7481
  %v7483 = vpop.f32.mrf.mxu0
  %7484 = vmatprep.mubr.f32.mxu0 0.0
  %7485 = vmatmul.mubr.f32.gmra.mxu0 %v2900
  %v7486 = vpop.f32.mrf.mxu0
  %v7487 = vadd.f32 0.0, %v7486
  %v7488 = vpop.f32.mrf.mxu0
  %7489 = vmatprep.mubr.f32.mxu0 0.0
  %7490 = vmatmul.mubr.f32.gmra.mxu0 %v2903
  %v7491 = vpop.f32.mrf.mxu0
  %v7492 = vadd.f32 0.0, %v7491
  %v7493 = vpop.f32.mrf.mxu0
  %7494 = vmatprep.mubr.f32.mxu0 0.0
  %7495 = vmatmul.mubr.f32.gmra.mxu0 %v2906
  %v7496 = vpop.f32.mrf.mxu0
  %v7497 = vadd.f32 0.0, %v7496
  %v7498 = vpop.f32.mrf.mxu0
  %7499 = vmatprep.mubr.f32.mxu0 0.0
  %7500 = vmatmul.mubr.f32.gmra.mxu0 %v2909
  %v7501 = vpop.f32.mrf.mxu0
  %v7502 = vadd.f32 0.0, %v7501
  %v7503 = vpop.f32.mrf.mxu0
  %7504 = vmatprep.mubr.f32.mxu0 0.0
  %7505 = vmatmul.mubr.f32.gmra.mxu0 %v2912
  %v7506 = vpop.f32.mrf.mxu0
  %v7507 = vadd.f32 0.0, %v7506
  %v7508 = vpop.f32.mrf.mxu0
  %7509 = vmatprep.mubr.f32.mxu0 0.0
  %7510 = vmatmul.mubr.f32.gmra.mxu0 %v2915
  %v7511 = vpop.f32.mrf.mxu0
  %v7512 = vadd.f32 0.0, %v7511
  %v7513 = vpop.f32.mrf.mxu0
  %7514 = vmatprep.mubr.f32.mxu0 0.0
  %7515 = vmatmul.mubr.f32.gmra.mxu0 %v2918
  %v7516 = vpop.f32.mrf.mxu0
  %v7517 = vadd.f32 0.0, %v7516
  %v7518 = vpop.f32.mrf.mxu0
  %7519 = vmatprep.mubr.f32.mxu0 0.0
  %7520 = vmatmul.mubr.f32.gmra.mxu0 %v2921
  %v7521 = vpop.f32.mrf.mxu0
  %v7522 = vadd.f32 0.0, %v7521
  %v7523 = vpop.f32.mrf.mxu0
  %7524 = vmatprep.mubr.f32.mxu0 0.0
  %7525 = vmatmul.mubr.f32.gmra.mxu0 %v2924
  %v7526 = vpop.f32.mrf.mxu0
  %v7527 = vadd.f32 0.0, %v7526
  %v7528 = vpop.f32.mrf.mxu0
  %7529 = vmatprep.mubr.f32.mxu0 0.0
  %7530 = vmatmul.mubr.f32.gmra.mxu0 %v2927
  %v7531 = vpop.f32.mrf.mxu0
  %v7532 = vadd.f32 0.0, %v7531
  %v7533 = vpop.f32.mrf.mxu0
  %7534 = vmatprep.mubr.f32.mxu0 0.0
  %7535 = vmatmul.mubr.f32.gmra.mxu0 %v2930
  %v7536 = vpop.f32.mrf.mxu0
  %v7537 = vadd.f32 0.0, %v7536
  %v7538 = vpop.f32.mrf.mxu0
  %7539 = vmatprep.mubr.f32.mxu0 0.0
  %7540 = vmatmul.mubr.f32.gmra.mxu0 %v2933
  %v7541 = vpop.f32.mrf.mxu0
  %v7542 = vadd.f32 0.0, %v7541
  %v7543 = vpop.f32.mrf.mxu0
  %7544 = vmatprep.mubr.f32.mxu0 0.0
  %7545 = vmatmul.mubr.f32.gmra.mxu0 %v2936
  %v7546 = vpop.f32.mrf.mxu0
  %v7547 = vadd.f32 0.0, %v7546
  %v7548 = vpop.f32.mrf.mxu0
  %7549 = vmatprep.mubr.f32.mxu0 0.0
  %7550 = vmatmul.mubr.f32.gmra.mxu0 %v2939
  %v7551 = vpop.f32.mrf.mxu0
  %v7552 = vadd.f32 0.0, %v7551
  %v7553 = vpop.f32.mrf.mxu0
  %7554 = vdwg.mxu0
  %v7555 = vadd.f32 %v7394, %v7477
  %v7556 = vadd.f32 %v7395, %v7482
  %v7557 = vadd.f32 %v7396, %v7487
  %v7558 = vadd.f32 %v7397, %v7492
  %v7559 = vadd.f32 %v7398, %v7497
  %v7560 = vadd.f32 %v7399, %v7502
  %v7561 = vadd.f32 %v7400, %v7507
  %v7562 = vadd.f32 %v7401, %v7512
  %v7563 = vadd.f32 %v7402, %v7517
  %v7564 = vadd.f32 %v7403, %v7522
  %v7565 = vadd.f32 %v7404, %v7527
  %v7566 = vadd.f32 %v7405, %v7532
  %v7567 = vadd.f32 %v7406, %v7537
  %v7568 = vadd.f32 %v7407, %v7542
  %v7569 = vadd.f32 %v7408, %v7547
  %v7570 = vadd.f32 %v7409, %v7552
  %v7571 = vxor.u32 %v7555, 2147483648
  %v7572 = vxor.u32 %v7556, 2147483648
  %v7573 = vxor.u32 %v7557, 2147483648
  %v7574 = vxor.u32 %v7558, 2147483648
  %v7575 = vmul.f32 %v7571, 1.442695
  %v7576 = vpow.pop %v7575
  %v7577 = vmul.f32 %v7572, 1.442695
  %v7578 = vpow.pop %v7577
  %v7579 = vmul.f32 %v7573, 1.442695
  %v7580 = vpow.pop %v7579
  %v7581 = vmul.f32 %v7574, 1.442695
  %v7582 = vpow.pop %v7581
  %v7583 = vadd.f32 %v7576, 1.0
  %v7584 = vadd.f32 %v7578, 1.0
  %v7585 = vadd.f32 %v7580, 1.0
  %v7586 = vadd.f32 %v7582, 1.0
  %v7587 = vrcp.pop %v7583
  %v7588 = vmul.f32 1.0, %v7587
  %v7589 = vrcp.pop %v7584
  %v7590 = vmul.f32 1.0, %v7589
  %v7591 = vrcp.pop %v7585
  %v7592 = vmul.f32 1.0, %v7591
  %v7593 = vrcp.pop %v7586
  %v7594 = vmul.f32 1.0, %v7593
  %v7595 = vxor.u32 %v7559, 2147483648
  %v7596 = vxor.u32 %v7560, 2147483648
  %v7597 = vxor.u32 %v7561, 2147483648
  %v7598 = vxor.u32 %v7562, 2147483648
  %v7599 = vmul.f32 %v7595, 1.442695
  %v7600 = vpow.pop %v7599
  %v7601 = vmul.f32 %v7596, 1.442695
  %v7602 = vpow.pop %v7601
  %v7603 = vmul.f32 %v7597, 1.442695
  %v7604 = vpow.pop %v7603
  %v7605 = vmul.f32 %v7598, 1.442695
  %v7606 = vpow.pop %v7605
  %v7607 = vadd.f32 %v7600, 1.0
  %v7608 = vadd.f32 %v7602, 1.0
  %v7609 = vadd.f32 %v7604, 1.0
  %v7610 = vadd.f32 %v7606, 1.0
  %v7611 = vrcp.pop %v7607
  %v7612 = vmul.f32 1.0, %v7611
  %v7613 = vrcp.pop %v7608
  %v7614 = vmul.f32 1.0, %v7613
  %v7615 = vrcp.pop %v7609
  %v7616 = vmul.f32 1.0, %v7615
  %v7617 = vrcp.pop %v7610
  %v7618 = vmul.f32 1.0, %v7617
  %v7619 = vtanh.pop %v7563
  %v7620 = vtanh.pop %v7564
  %v7621 = vtanh.pop %v7565
  %v7622 = vtanh.pop %v7566
  %v7623 = vxor.u32 %v7567, 2147483648
  %v7624 = vxor.u32 %v7568, 2147483648
  %v7625 = vxor.u32 %v7569, 2147483648
  %v7626 = vxor.u32 %v7570, 2147483648
  %v7627 = vmul.f32 %v7623, 1.442695
  %v7628 = vpow.pop %v7627
  %v7629 = vmul.f32 %v7624, 1.442695
  %v7630 = vpow.pop %v7629
  %v7631 = vmul.f32 %v7625, 1.442695
  %v7632 = vpow.pop %v7631
  %v7633 = vmul.f32 %v7626, 1.442695
  %v7634 = vpow.pop %v7633
  %v7635 = vadd.f32 %v7628, 1.0
  %v7636 = vadd.f32 %v7630, 1.0
  %v7637 = vadd.f32 %v7632, 1.0
  %v7638 = vadd.f32 %v7634, 1.0
  %v7639 = vrcp.pop %v7635
  %v7640 = vmul.f32 1.0, %v7639
  %v7641 = vrcp.pop %v7636
  %v7642 = vmul.f32 1.0, %v7641
  %v7643 = vrcp.pop %v7637
  %v7644 = vmul.f32 1.0, %v7643
  %v7645 = vrcp.pop %v7638
  %v7646 = vmul.f32 1.0, %v7645
  %v7647 = vmul.f32 %v7612, %v7390
  %v7648 = vmul.f32 %v7614, %v7391
  %v7649 = vmul.f32 %v7616, %v7392
  %v7650 = vmul.f32 %v7618, %v7393
  %v7651 = vmul.f32 %v7588, %v7619
  %v7652 = vmul.f32 %v7590, %v7620
  %v7653 = vmul.f32 %v7592, %v7621
  %v7654 = vmul.f32 %v7594, %v7622
  %v7655 = vadd.f32 %v7647, %v7651
  %v7656 = vadd.f32 %v7648, %v7652
  %v7657 = vadd.f32 %v7649, %v7653
  %v7658 = vadd.f32 %v7650, %v7654
  %v7659 = vtanh.pop %v7655
  %v7660 = vtanh.pop %v7656
  %v7661 = vtanh.pop %v7657
  %v7662 = vtanh.pop %v7658
  %v7663 = vmul.f32 %v7640, %v7659
  %v7664 = vmul.f32 %v7642, %v7660
  %v7665 = vmul.f32 %v7644, %v7661
  %v7666 = vmul.f32 %v7646, %v7662
  %v7667 = vsel %vm2873, 15, 0
  %v7668 = vsel %vm2874, 15, 0
  %v7669 = vsel %vm2875, 15, 0
  %v7670 = vsel %vm2876, 15, 0
  %vm7671 = vcmp.lt.s32.totalorder %v7667, %v3205
  %vm7672 = vcmp.lt.s32.totalorder %v7668, %v3205
  %vm7673 = vcmp.lt.s32.totalorder %v7669, %v3205
  %vm7674 = vcmp.lt.s32.totalorder %v7670, %v3205
  %v7675 = vsel %vm7671, %v7663, 0.0
  %v7676 = vsel %vm7672, %v7664, 0.0
  %v7677 = vsel %vm7673, %v7665, 0.0
  %v7678 = vsel %vm7674, %v7666, 0.0
  %s7679 = scalar_lea.vmem %s5, 480
  %7680 = vst [vmem:[%s7679] sm:$0xff] %v7675
  %7681 = vst [vmem:[%s7679 + $0x8] sm:$0xff] %v7676
  %7682 = vst [vmem:[%s7679 + $0x10] sm:$0xff] %v7677
  %7683 = vst [vmem:[%s7679 + $0x18] sm:$0xff] %v7678
  // Predicated region
  $region22: #{char_bilstm_forward.1} parent=0 // pred_check
    _
  $region23: #{char_bilstm_forward.1} parent=0 // pred_check_branch
    %7685 = sbr.rel (0) target = $region25
  $region24: #{char_bilstm_forward.1} parent=0 // pred_region
    _
  $region25: #{char_bilstm_forward.1} parent=0 // pred_fallthru
    _
  // Predicated region
  $region26: #{char_bilstm_forward.1} parent=0 // pred_check
    _
  $region27: #{char_bilstm_forward.1} parent=0 // pred_check_branch
    %7687 = sbr.rel (0) target = $region29
  $region28: #{char_bilstm_forward.1} parent=0 // pred_region
    _
  $region29: #{char_bilstm_forward.1} parent=0 // pred_fallthru
    _

</llo_original>
